<compile_context>
chip_gen: v7x
topology: tpu7x:2x2x1
jax: 0.10.0
libtpu: 0.0.40
codegen_flags: <defaults>
</compile_context>

<pallas_src>
import functools
import math

import jax
import jax.numpy as jnp
from jax import lax
from jax.experimental import pallas as pl
from jax.experimental.pallas import tpu as pltpu

# ----------------------------- config -----------------------------
PAD = 0
D_MODEL = 32          # enc_embed_dim == enc_hidden_dim
N_HEAD = 4
D_HEAD = D_MODEL // N_HEAD
N_LAYERS = 2          # enc_num_layers == dec_num_layers
D_INNER = 64          # inner_hidden of the position-wise FFN
SRC_VOCAB = 37
TGT_VOCAB = 41
V_PAD = 128           # generator vocab padded to a lane-dense 128 columns
MAX_LEN = 64
LN_EPS = 1e-6
NEG_INF = -1e9
ATTN_SCALE = 1.0 / math.sqrt(D_HEAD)


# ----------------------------- in-kernel helpers (traced inside the fused kernel) -----------------------------
def _ln(x, g, b):
    """Pre-norm LayerNorm over the feature (lane) axis.  x:(T,D) g,b:(1,D)."""
    mu = jnp.mean(x, axis=-1, keepdims=True)
    xc = x - mu
    var = jnp.mean(xc * xc, axis=-1, keepdims=True)
    return xc * lax.rsqrt(var + LN_EPS) * g + b


def _mha(q, k, v, bias, wo, bo, hmask):
    """Multi-head attention on pre-projected q/k/v with head-stacked matmuls.

    q:(Tq,D) k,v:(Tk,D)  bias: additive, (1,Tk) or (N_HEAD*Tq,Tk)  wo:(D,D) bo:(1,D)
    hmask: N_HEAD lane-indicator rows (1,D) selecting each head's feature lanes.

    Heads are stacked along sublanes: one QK^T, one softmax pass and one P@V cover
    all heads.  Because each head finally occupies a disjoint set of context lanes,
    masked per-head slices of the stacked context sum to the concatenated multi-head
    context exactly, and a single ctx @ wo finishes the sub-layer.
    """
    Tq = q.shape[0]
    qs = q * ATTN_SCALE
    q_stack = jnp.concatenate([qs * m for m in hmask], axis=0)            # (H*Tq, D)
    s = lax.dot_general(q_stack, k, (((1,), (1,)), ((), ())),
                        preferred_element_type=jnp.float32) + bias        # (H*Tq, Tk)
    s = s - jnp.max(s, axis=-1, keepdims=True)
    p = jnp.exp(s)
    p = p * pl.reciprocal(jnp.sum(p, axis=-1, keepdims=True), approx=True)
    ctx_stack = jnp.dot(p, v, preferred_element_type=jnp.float32)         # (H*Tq, D)
    ctx = ctx_stack[0:Tq] * hmask[0]
    for h in range(1, N_HEAD):
        ctx = ctx + ctx_stack[h * Tq:(h + 1) * Tq] * hmask[h]
    return jnp.dot(ctx, wo, preferred_element_type=jnp.float32) + bo


# ----------------------------- fused whole-model kernel -----------------------------
def _fwd_kernel(xs_ref, xt_ref, sb_ref, tb_ref,
                vecd_ref, veci_ref, wdd_ref, w1s_ref, w2s_ref, wg_ref,
                o_ref, *, log_probs):
    f32 = jnp.float32

    # ---- packed-parameter cursors (static Python indices, same order as pack_params) ----
    iv, im, jf = [0], [0], [0]

    def V():                         # next (1, D_MODEL) vector
        r = vecd_ref[iv[0]]
        iv[0] += 1
        return r

    def Vn(n):
        return [V() for _ in range(n)]

    def M():                         # next (D_MODEL, D_MODEL) matrix
        r = wdd_ref[im[0]]
        im[0] += 1
        return r

    def FF():                        # next FFN triple (w1, b1, w2)
        j = jf[0]
        jf[0] += 1
        return w1s_ref[j], veci_ref[j], w2s_ref[j]

    # ---- per-head lane-indicator masks, hoisted once and reused by every attention ----
    lane = lax.broadcasted_iota(jnp.int32, (1, D_MODEL), 1)
    hmask = [jnp.where((lane >= h * D_HEAD) & (lane < (h + 1) * D_HEAD), 1.0, 0.0).astype(f32)
             for h in range(N_HEAD)]

    src_bias = sb_ref[0]             # (1, Ts) additive key-pad bias (encoder & cross attn)
    tgt_bias = tb_ref[0]             # (1, Tt) additive key-pad bias (decoder self attn)

    # ---- encoder: N_LAYERS x (LN -> MHA(+res) -> LN -> FFN(+res)), then final LN ----
    x = xs_ref[0]
    for _ in range(N_LAYERS):
        ln_g, ln_b, bq, bk, bv, bo, f_g, f_b, b2 = Vn(9)
        wq, wk, wv, wo = M(), M(), M(), M()
        w1, b1, w2 = FF()
        xn = _ln(x, ln_g, ln_b)
        q = jnp.dot(xn, wq, preferred_element_type=f32) + bq
        k = jnp.dot(xn, wk, preferred_element_type=f32) + bk
        v = jnp.dot(xn, wv, preferred_element_type=f32) + bv
        a = _mha(q, k, v, src_bias, wo, bo, hmask) + x
        h = _ln(a, f_g, f_b)
        h = jnp.maximum(jnp.dot(h, w1, preferred_element_type=f32) + b1, 0.0)
        x = jnp.dot(h, w2, preferred_element_type=f32) + b2 + a
    enc_g, enc_b = V(), V()
    enc = _ln(x, enc_g, enc_b)

    # ---- decoder: causal+pad self-attn bias built in-kernel, stacked over heads ----
    y = xt_ref[0]
    Tt = y.shape[0]
    r1 = lax.broadcasted_iota(jnp.int32, (Tt, Tt), 0)
    c1 = lax.broadcasted_iota(jnp.int32, (Tt, Tt), 1)
    causal = jnp.where(c1 > r1, NEG_INF, 0.0).astype(f32)
    self_bias = jnp.concatenate([causal] * N_HEAD, axis=0) + tgt_bias     # (H*Tt, Tt)

    for _ in range(N_LAYERS):
        (ln1_g, ln1_b, sbq, sbk, sbv, sbo,
         ln2_g, ln2_b, cbq, cbk, cbv, cbo, f_g, f_b, b2) = Vn(15)
        swq, swk, swv, swo, cwq, cwk, cwv, cwo = [M() for _ in range(8)]
        w1, b1, w2 = FF()
        # masked self-attention sub-layer
        yn = _ln(y, ln1_g, ln1_b)
        q = jnp.dot(yn, swq, preferred_element_type=f32) + sbq
        k = jnp.dot(yn, swk, preferred_element_type=f32) + sbk
        v = jnp.dot(yn, swv, preferred_element_type=f32) + sbv
        a = _mha(q, k, v, self_bias, swo, sbo, hmask) + y
        # encoder-decoder (cross) attention sub-layer: keys/values from encoder output
        an = _ln(a, ln2_g, ln2_b)
        q2 = jnp.dot(an, cwq, preferred_element_type=f32) + cbq
        k2 = jnp.dot(enc, cwk, preferred_element_type=f32) + cbk
        v2 = jnp.dot(enc, cwv, preferred_element_type=f32) + cbv
        mid = _mha(q2, k2, v2, src_bias, cwo, cbo, hmask) + a
        # position-wise FFN sub-layer
        h = _ln(mid, f_g, f_b)
        h = jnp.maximum(jnp.dot(h, w1, preferred_element_type=f32) + b1, 0.0)
        y = jnp.dot(h, w2, preferred_element_type=f32) + b2 + mid
    dec_g, dec_b = V(), V()

    # ---- generator: decoder final LN -> logits (lane-dense padded vocab) -> PAD mask -> (log-)softmax ----
    hfin = _ln(y, dec_g, dec_b)
    logits = jnp.dot(hfin, wg_ref[...], preferred_element_type=f32)       # (Tt, V_PAD)
    colv = lax.broadcasted_iota(jnp.int32, (1, V_PAD), 1)
    logits = logits + jnp.where((colv == PAD) | (colv >= TGT_VOCAB), NEG_INF, 0.0).astype(f32)
    mrow = jnp.max(logits, axis=-1, keepdims=True)
    e = jnp.exp(logits - mrow)
    srow = jnp.sum(e, axis=-1, keepdims=True)
    if log_probs:
        out = logits - (jnp.log(srow) + mrow)
    else:
        out = e * pl.reciprocal(srow, approx=True)
    o_ref[0] = out.astype(o_ref.dtype)


# ----------------------------- wrapper (one pallas_call for the whole forward) -----------------------------
def _round_up(n, m):
    return ((n + m - 1) // m) * m


def sinusoid_pe(max_len, D):
    pos = jnp.arange(max_len, dtype=jnp.float32)[:, None]
    i = jnp.arange(D)[None, :]
    angle = pos / jnp.power(10000.0, (2 * (i // 2)).astype(jnp.float32) / D)
    return jnp.where(i % 2 == 0, jnp.sin(angle), jnp.cos(angle)).astype(jnp.float32)


def embed(tokens, table, pe):
    # embedding gather + cached positional table; dropout == identity (eval mode)
    T = tokens.shape[1]
    return jnp.take(table, tokens, axis=0) * math.sqrt(D_MODEL) + pe[:T][None]


def transformer_forward(model, src_seq, tgt_seq, log_probs=True):
    B, Ts = src_seq.shape
    Tt = tgt_seq.shape[1]
    # Pad sequence lengths to a multiple of 8 (sublane-aligned head stacking).  The extra
    # PAD tokens are fully masked in every attention, so real outputs are unchanged.
    Tsp, Ttp = _round_up(Ts, 8), _round_up(Tt, 8)
    src_p = jnp.pad(src_seq, ((0, 0), (0, Tsp - Ts)), constant_values=PAD)
    tgt_p = jnp.pad(tgt_seq, ((0, 0), (0, Ttp - Tt)), constant_values=PAD)

    xs = embed(src_p, model['emb_src'], model['pe'])                       # (B, Tsp, D)
    xt = embed(tgt_p, model['emb_tgt'], model['pe'])                       # (B, Ttp, D)
    sb = jnp.where(src_p == PAD, NEG_INF, 0.0).astype(jnp.float32)[:, None, :]   # (B,1,Tsp)
    tb = jnp.where(tgt_p == PAD, NEG_INF, 0.0).astype(jnp.float32)[:, None, :]   # (B,1,Ttp)

    def row_spec(t, d):
        return pl.BlockSpec((1, t, d), lambda b: (b, 0, 0))

    def wspec(a):
        if a.ndim == 2:
            return pl.BlockSpec(a.shape, lambda b: (0, 0))
        return pl.BlockSpec(a.shape, lambda b: (0, 0, 0))

    weights = [model['vecd'], model['veci'], model['wdd'],
               model['w1s'], model['w2s'], model['wgen']]

    out = pl.pallas_call(
        functools.partial(_fwd_kernel, log_probs=log_probs),
        grid=(B,),
        in_specs=[row_spec(Tsp, D_MODEL), row_spec(Ttp, D_MODEL),
                  pl.BlockSpec((1, 1, Tsp), lambda b: (b, 0, 0)),
                  pl.BlockSpec((1, 1, Ttp), lambda b: (b, 0, 0))] +
                 [wspec(a) for a in weights],
        out_specs=pl.BlockSpec((1, Ttp, V_PAD), lambda b: (b, 0, 0)),
        out_shape=jax.ShapeDtypeStruct((B, Ttp, V_PAD), jnp.float32),
        compiler_params=pltpu.CompilerParams(dimension_semantics=("parallel",)),
    )(xs, xt, sb, tb, *weights)
    # Lane-dense padded output (B, Ttp, V_PAD); consumer slices [:, :Tt, :TGT_VOCAB] lazily.
    return out


# ----------------------------- deterministic parameter init + packing -----------------------------
def init_params(key):
    keys = iter(jax.random.split(key, 256))

    def nrm(shape, scale=0.02):
        return scale * jax.random.normal(next(keys), shape, jnp.float32)

    def ln():
        return jnp.ones((1, D_MODEL), jnp.float32), jnp.zeros((1, D_MODEL), jnp.float32)

    def zeros(n):
        return jnp.zeros((1, n), jnp.float32)

    def mha():
        return dict(wq=nrm((D_MODEL, D_MODEL)), bq=zeros(D_MODEL),
                    wk=nrm((D_MODEL, D_MODEL)), bk=zeros(D_MODEL),
                    wv=nrm((D_MODEL, D_MODEL)), bv=zeros(D_MODEL),
                    wo=nrm((D_MODEL, D_MODEL)), bo=zeros(D_MODEL))

    def ffn_p():
        g, b = ln()
        return dict(f_g=g, f_b=b,
                    w1=nrm((D_MODEL, D_INNER)), b1=zeros(D_INNER),
                    w2=nrm((D_INNER, D_MODEL)), b2=zeros(D_MODEL))

    def emb_table(V):
        return nrm((V, D_MODEL)).at[PAD].set(0.0)   # padding_idx=0 row is zero

    enc_layers = []
    for _ in range(N_LAYERS):
        g, b = ln()
        enc_layers.append(dict(ln_g=g, ln_b=b, slf=mha(), ffn=ffn_p()))
    dec_layers = []
    for _ in range(N_LAYERS):
        g1, b1 = ln()
        g2, b2 = ln()
        dec_layers.append(dict(ln1_g=g1, ln1_b=b1, slf=mha(),
                               ln2_g=g2, ln2_b=b2, ctx=mha(), ffn=ffn_p()))
    eg, eb = ln()
    dg, db = ln()
    w_gen = nrm((D_MODEL, TGT_VOCAB))                                   # proj has no bias
    w_pad = jnp.zeros((D_MODEL, V_PAD), jnp.float32).at[:, :TGT_VOCAB].set(w_gen)
    return dict(
        pe=sinusoid_pe(MAX_LEN, D_MODEL),                               # cached positional table
        encoder=dict(emb=emb_table(SRC_VOCAB), layers=enc_layers, ln_g=eg, ln_b=eb),
        decoder=dict(emb=emb_table(TGT_VOCAB), layers=dec_layers, ln_g=dg, ln_b=db),
        generator=dict(w_pad=w_pad),
    )


def pack_params(params):
    """Pack the ~60 tiny parameters into 6 arrays; order mirrors _fwd_kernel consumption."""
    vecd, veci, wdd, w1s, w2s = [], [], [], [], []
    enc, dec = params['encoder'], params['decoder']
    for lp in enc['layers']:
        s, f = lp['slf'], lp['ffn']
        vecd += [lp['ln_g'], lp['ln_b'], s['bq'], s['bk'], s['bv'], s['bo'],
                 f['f_g'], f['f_b'], f['b2']]
        wdd += [s['wq'], s['wk'], s['wv'], s['wo']]
        w1s.append(f['w1']); veci.append(f['b1']); w2s.append(f['w2'])
    vecd += [enc['ln_g'], enc['ln_b']]
    for lp in dec['layers']:
        s, c, f = lp['slf'], lp['ctx'], lp['ffn']
        vecd += [lp['ln1_g'], lp['ln1_b'], s['bq'], s['bk'], s['bv'], s['bo'],
                 lp['ln2_g'], lp['ln2_b'], c['bq'], c['bk'], c['bv'], c['bo'],
                 f['f_g'], f['f_b'], f['b2']]
        wdd += [s['wq'], s['wk'], s['wv'], s['wo'],
                c['wq'], c['wk'], c['wv'], c['wo']]
        w1s.append(f['w1']); veci.append(f['b1']); w2s.append(f['w2'])
    vecd += [dec['ln_g'], dec['ln_b']]
    return dict(
        vecd=jnp.stack(vecd, axis=0),          # (52, 1, D_MODEL)
        veci=jnp.stack(veci, axis=0),          # ( 4, 1, D_INNER)
        wdd=jnp.stack(wdd, axis=0),            # (24, D_MODEL, D_MODEL)
        w1s=jnp.stack(w1s, axis=0),            # ( 4, D_MODEL, D_INNER)
        w2s=jnp.stack(w2s, axis=0),            # ( 4, D_INNER, D_MODEL)
        wgen=params['generator']['w_pad'],     # (D_MODEL, V_PAD)
        emb_src=enc['emb'], emb_tgt=dec['emb'], pe=params['pe'],
    )


# ----------------------------- main -----------------------------
if __name__ == "__main__":
    key = jax.random.PRNGKey(0)
    pkey, skey, tkey = jax.random.split(key, 3)
    model = pack_params(init_params(pkey))

    B, TS, TT = 2, 10, 8
    src_seq = jax.random.randint(skey, (B, TS), 1, SRC_VOCAB).astype(jnp.int32)
    tgt_seq = jax.random.randint(tkey, (B, TT), 1, TGT_VOCAB).astype(jnp.int32)
    # introduce some PAD=0 tokens at the tail of the second example
    src_seq = src_seq.at[1, -3:].set(PAD)
    tgt_seq = tgt_seq.at[1, -2:].set(PAD)

    fwd = jax.jit(functools.partial(transformer_forward, log_probs=True))
    out = jax.block_until_ready(fwd(model, src_seq, tgt_seq))

    # consumer-side (outside the jitted graph) lazy slice back to the real vocab / length
    logp = out[:, :TT, :TGT_VOCAB]
    assert logp.shape == (B, TT, TGT_VOCAB)
    assert bool(jnp.isfinite(out[:, :TT, 1:TGT_VOCAB]).all())            # log-probs over non-pad vocab finite
    assert bool(jnp.allclose(jnp.exp(out[:, :TT, :]).sum(-1), 1.0, atol=1e-3))   # rows are distributions
    # TODO(synk): training-mode dropout / SequenceCriterion loss / incremental beam-search decode paths not implemented.
    print("KERNEL_OK")
</pallas_src>

<mosaic_0001>
module attributes {stable_mosaic.version = 11 : i64} {
  func.func @_fwd_kernel(%arg0: i32, %arg1: memref<1x16x32xf32, #tpu.memory_space<vmem>>, %arg2: memref<1x8x32xf32, #tpu.memory_space<vmem>>, %arg3: memref<1x1x16xf32, #tpu.memory_space<vmem>>, %arg4: memref<1x1x8xf32, #tpu.memory_space<vmem>>, %arg5: memref<52x1x32xf32, #tpu.memory_space<vmem>>, %arg6: memref<4x1x64xf32, #tpu.memory_space<vmem>>, %arg7: memref<24x32x32xf32, #tpu.memory_space<vmem>>, %arg8: memref<4x32x64xf32, #tpu.memory_space<vmem>>, %arg9: memref<4x64x32xf32, #tpu.memory_space<vmem>>, %arg10: memref<32x128xf32, #tpu.memory_space<vmem>>, %arg11: memref<1x8x128xf32, #tpu.memory_space<vmem>>) attributes {dimension_semantics = [#tpu.dimension_semantics<parallel>], iteration_bounds = array<i64: 2>, scalar_prefetch = 0 : i64, scratch_operands = 0 : i64, tpu.core_type = #tpu.core_type<tc>, window_params = [{transform_indices = @transform_0, window_bounds = array<i64: 1, 16, 32>}, {transform_indices = @transform_1, window_bounds = array<i64: 1, 8, 32>}, {transform_indices = @transform_2, window_bounds = array<i64: 1, 1, 16>}, {transform_indices = @transform_3, window_bounds = array<i64: 1, 1, 8>}, {pipeline_mode = #tpu.pipeline_mode<synchronous>, transform_indices = @transform_4, window_bounds = array<i64: 52, 1, 32>}, {pipeline_mode = #tpu.pipeline_mode<synchronous>, transform_indices = @transform_5, window_bounds = array<i64: 4, 1, 64>}, {pipeline_mode = #tpu.pipeline_mode<synchronous>, transform_indices = @transform_6, window_bounds = array<i64: 24, 32, 32>}, {pipeline_mode = #tpu.pipeline_mode<synchronous>, transform_indices = @transform_7, window_bounds = array<i64: 4, 32, 64>}, {pipeline_mode = #tpu.pipeline_mode<synchronous>, transform_indices = @transform_8, window_bounds = array<i64: 4, 64, 32>}, {pipeline_mode = #tpu.pipeline_mode<synchronous>, transform_indices = @transform_9, window_bounds = array<i64: 32, 128>}, {transform_indices = @transform_10, window_bounds = array<i64: 1, 8, 128>}]} {
    %0 = tpu.iota {dimensions = array<i32: 1>} : vector<1x32xi32>
    %c0_i32 = arith.constant 0 : i32
    %1 = vector.broadcast %c0_i32 : i32 to vector<1x32xi32>
    %2 = arith.cmpi sge, %0, %1 : vector<1x32xi32>
    %c8_i32 = arith.constant 8 : i32
    %3 = vector.broadcast %c8_i32 : i32 to vector<1x32xi32>
    %4 = arith.cmpi slt, %0, %3 : vector<1x32xi32>
    %5 = arith.andi %2, %4 : vector<1x32xi1>
    %cst = arith.constant 1.000000e+00 : f32
    %cst_0 = arith.constant 0.000000e+00 : f32
    %6 = vector.broadcast %cst : f32 to vector<1x32xf32>
    %7 = vector.broadcast %cst_0 : f32 to vector<1x32xf32>
    %8 = arith.select %5, %6, %7 : vector<1x32xi1>, vector<1x32xf32>
    %c8_i32_1 = arith.constant 8 : i32
    %9 = vector.broadcast %c8_i32_1 : i32 to vector<1x32xi32>
    %10 = arith.cmpi sge, %0, %9 : vector<1x32xi32>
    %c16_i32 = arith.constant 16 : i32
    %11 = vector.broadcast %c16_i32 : i32 to vector<1x32xi32>
    %12 = arith.cmpi slt, %0, %11 : vector<1x32xi32>
    %13 = arith.andi %10, %12 : vector<1x32xi1>
    %cst_2 = arith.constant 1.000000e+00 : f32
    %cst_3 = arith.constant 0.000000e+00 : f32
    %14 = vector.broadcast %cst_2 : f32 to vector<1x32xf32>
    %15 = vector.broadcast %cst_3 : f32 to vector<1x32xf32>
    %16 = arith.select %13, %14, %15 : vector<1x32xi1>, vector<1x32xf32>
    %c16_i32_4 = arith.constant 16 : i32
    %17 = vector.broadcast %c16_i32_4 : i32 to vector<1x32xi32>
    %18 = arith.cmpi sge, %0, %17 : vector<1x32xi32>
    %c24_i32 = arith.constant 24 : i32
    %19 = vector.broadcast %c24_i32 : i32 to vector<1x32xi32>
    %20 = arith.cmpi slt, %0, %19 : vector<1x32xi32>
    %21 = arith.andi %18, %20 : vector<1x32xi1>
    %cst_5 = arith.constant 1.000000e+00 : f32
    %cst_6 = arith.constant 0.000000e+00 : f32
    %22 = vector.broadcast %cst_5 : f32 to vector<1x32xf32>
    %23 = vector.broadcast %cst_6 : f32 to vector<1x32xf32>
    %24 = arith.select %21, %22, %23 : vector<1x32xi1>, vector<1x32xf32>
    %c24_i32_7 = arith.constant 24 : i32
    %25 = vector.broadcast %c24_i32_7 : i32 to vector<1x32xi32>
    %26 = arith.cmpi sge, %0, %25 : vector<1x32xi32>
    %c32_i32 = arith.constant 32 : i32
    %27 = vector.broadcast %c32_i32 : i32 to vector<1x32xi32>
    %28 = arith.cmpi slt, %0, %27 : vector<1x32xi32>
    %29 = arith.andi %26, %28 : vector<1x32xi1>
    %cst_8 = arith.constant 1.000000e+00 : f32
    %cst_9 = arith.constant 0.000000e+00 : f32
    %30 = vector.broadcast %cst_8 : f32 to vector<1x32xf32>
    %31 = vector.broadcast %cst_9 : f32 to vector<1x32xf32>
    %32 = arith.select %29, %30, %31 : vector<1x32xi1>, vector<1x32xf32>
    %c0 = arith.constant 0 : index
    %c0_10 = arith.constant 0 : index
    %c0_11 = arith.constant 0 : index
    %33 = vector.load %arg3[%c0, %c0_10, %c0_11] : memref<1x1x16xf32, #tpu.memory_space<vmem>>, vector<1x1x16xf32>
    %34 = vector.shape_cast %33 : vector<1x1x16xf32> to vector<1x16xf32>
    %c0_12 = arith.constant 0 : index
    %c0_13 = arith.constant 0 : index
    %c0_14 = arith.constant 0 : index
    %35 = vector.load %arg4[%c0_12, %c0_13, %c0_14] : memref<1x1x8xf32, #tpu.memory_space<vmem>>, vector<1x1x8xf32>
    %36 = vector.shape_cast %35 : vector<1x1x8xf32> to vector<1x8xf32>
    %c0_15 = arith.constant 0 : index
    %c0_16 = arith.constant 0 : index
    %c0_17 = arith.constant 0 : index
    %37 = vector.load %arg1[%c0_15, %c0_16, %c0_17] : memref<1x16x32xf32, #tpu.memory_space<vmem>>, vector<1x16x32xf32>
    %38 = vector.shape_cast %37 : vector<1x16x32xf32> to vector<16x32xf32>
    %c0_18 = arith.constant 0 : index
    %c0_19 = arith.constant 0 : index
    %c0_20 = arith.constant 0 : index
    %39 = vector.load %arg5[%c0_18, %c0_19, %c0_20] : memref<52x1x32xf32, #tpu.memory_space<vmem>>, vector<1x1x32xf32>
    %40 = vector.shape_cast %39 : vector<1x1x32xf32> to vector<1x32xf32>
    %c1 = arith.constant 1 : index
    %c0_21 = arith.constant 0 : index
    %c0_22 = arith.constant 0 : index
    %41 = vector.load %arg5[%c1, %c0_21, %c0_22] : memref<52x1x32xf32, #tpu.memory_space<vmem>>, vector<1x1x32xf32>
    %42 = vector.shape_cast %41 : vector<1x1x32xf32> to vector<1x32xf32>
    %c2 = arith.constant 2 : index
    %c0_23 = arith.constant 0 : index
    %c0_24 = arith.constant 0 : index
    %43 = vector.load %arg5[%c2, %c0_23, %c0_24] : memref<52x1x32xf32, #tpu.memory_space<vmem>>, vector<1x1x32xf32>
    %44 = vector.shape_cast %43 : vector<1x1x32xf32> to vector<1x32xf32>
    %c3 = arith.constant 3 : index
    %c0_25 = arith.constant 0 : index
    %c0_26 = arith.constant 0 : index
    %45 = vector.load %arg5[%c3, %c0_25, %c0_26] : memref<52x1x32xf32, #tpu.memory_space<vmem>>, vector<1x1x32xf32>
    %46 = vector.shape_cast %45 : vector<1x1x32xf32> to vector<1x32xf32>
    %c4 = arith.constant 4 : index
    %c0_27 = arith.constant 0 : index
    %c0_28 = arith.constant 0 : index
    %47 = vector.load %arg5[%c4, %c0_27, %c0_28] : memref<52x1x32xf32, #tpu.memory_space<vmem>>, vector<1x1x32xf32>
    %48 = vector.shape_cast %47 : vector<1x1x32xf32> to vector<1x32xf32>
    %c5 = arith.constant 5 : index
    %c0_29 = arith.constant 0 : index
    %c0_30 = arith.constant 0 : index
    %49 = vector.load %arg5[%c5, %c0_29, %c0_30] : memref<52x1x32xf32, #tpu.memory_space<vmem>>, vector<1x1x32xf32>
    %50 = vector.shape_cast %49 : vector<1x1x32xf32> to vector<1x32xf32>
    %c6 = arith.constant 6 : index
    %c0_31 = arith.constant 0 : index
    %c0_32 = arith.constant 0 : index
    %51 = vector.load %arg5[%c6, %c0_31, %c0_32] : memref<52x1x32xf32, #tpu.memory_space<vmem>>, vector<1x1x32xf32>
    %52 = vector.shape_cast %51 : vector<1x1x32xf32> to vector<1x32xf32>
    %c7 = arith.constant 7 : index
    %c0_33 = arith.constant 0 : index
    %c0_34 = arith.constant 0 : index
    %53 = vector.load %arg5[%c7, %c0_33, %c0_34] : memref<52x1x32xf32, #tpu.memory_space<vmem>>, vector<1x1x32xf32>
    %54 = vector.shape_cast %53 : vector<1x1x32xf32> to vector<1x32xf32>
    %c8 = arith.constant 8 : index
    %c0_35 = arith.constant 0 : index
    %c0_36 = arith.constant 0 : index
    %55 = vector.load %arg5[%c8, %c0_35, %c0_36] : memref<52x1x32xf32, #tpu.memory_space<vmem>>, vector<1x1x32xf32>
    %56 = vector.shape_cast %55 : vector<1x1x32xf32> to vector<1x32xf32>
    %c0_37 = arith.constant 0 : index
    %c0_38 = arith.constant 0 : index
    %c0_39 = arith.constant 0 : index
    %57 = vector.load %arg7[%c0_37, %c0_38, %c0_39] : memref<24x32x32xf32, #tpu.memory_space<vmem>>, vector<1x32x32xf32>
    %58 = vector.shape_cast %57 : vector<1x32x32xf32> to vector<32x32xf32>
    %c1_40 = arith.constant 1 : index
    %c0_41 = arith.constant 0 : index
    %c0_42 = arith.constant 0 : index
    %59 = vector.load %arg7[%c1_40, %c0_41, %c0_42] : memref<24x32x32xf32, #tpu.memory_space<vmem>>, vector<1x32x32xf32>
    %60 = vector.shape_cast %59 : vector<1x32x32xf32> to vector<32x32xf32>
    %c2_43 = arith.constant 2 : index
    %c0_44 = arith.constant 0 : index
    %c0_45 = arith.constant 0 : index
    %61 = vector.load %arg7[%c2_43, %c0_44, %c0_45] : memref<24x32x32xf32, #tpu.memory_space<vmem>>, vector<1x32x32xf32>
    %62 = vector.shape_cast %61 : vector<1x32x32xf32> to vector<32x32xf32>
    %c3_46 = arith.constant 3 : index
    %c0_47 = arith.constant 0 : index
    %c0_48 = arith.constant 0 : index
    %63 = vector.load %arg7[%c3_46, %c0_47, %c0_48] : memref<24x32x32xf32, #tpu.memory_space<vmem>>, vector<1x32x32xf32>
    %64 = vector.shape_cast %63 : vector<1x32x32xf32> to vector<32x32xf32>
    %c0_49 = arith.constant 0 : index
    %c0_50 = arith.constant 0 : index
    %c0_51 = arith.constant 0 : index
    %65 = vector.load %arg8[%c0_49, %c0_50, %c0_51] : memref<4x32x64xf32, #tpu.memory_space<vmem>>, vector<1x32x64xf32>
    %66 = vector.shape_cast %65 : vector<1x32x64xf32> to vector<32x64xf32>
    %c0_52 = arith.constant 0 : index
    %c0_53 = arith.constant 0 : index
    %c0_54 = arith.constant 0 : index
    %67 = vector.load %arg6[%c0_52, %c0_53, %c0_54] : memref<4x1x64xf32, #tpu.memory_space<vmem>>, vector<1x1x64xf32>
    %68 = vector.shape_cast %67 : vector<1x1x64xf32> to vector<1x64xf32>
    %c0_55 = arith.constant 0 : index
    %c0_56 = arith.constant 0 : index
    %c0_57 = arith.constant 0 : index
    %69 = vector.load %arg9[%c0_55, %c0_56, %c0_57] : memref<4x64x32xf32, #tpu.memory_space<vmem>>, vector<1x64x32xf32>
    %70 = vector.shape_cast %69 : vector<1x64x32xf32> to vector<64x32xf32>
    %cst_58 = arith.constant dense<0.000000e+00> : vector<16xf32>
    %71 = vector.multi_reduction <add>, %38, %cst_58 [1] : vector<16x32xf32> to vector<16xf32>
    %72 = vector.shape_cast %71 : vector<16xf32> to vector<16x1xf32>
    %cst_59 = arith.constant 3.200000e+01 : f32
    %73 = vector.broadcast %cst_59 : f32 to vector<16x1xf32>
    %74 = arith.divf %72, %73 : vector<16x1xf32>
    %75 = vector.broadcast %74 : vector<16x1xf32> to vector<16x32xf32>
    %76 = arith.subf %38, %75 : vector<16x32xf32>
    %77 = arith.mulf %76, %76 : vector<16x32xf32>
    %cst_60 = arith.constant dense<0.000000e+00> : vector<16xf32>
    %78 = vector.multi_reduction <add>, %77, %cst_60 [1] : vector<16x32xf32> to vector<16xf32>
    %79 = vector.shape_cast %78 : vector<16xf32> to vector<16x1xf32>
    %cst_61 = arith.constant 3.200000e+01 : f32
    %80 = vector.broadcast %cst_61 : f32 to vector<16x1xf32>
    %81 = arith.divf %79, %80 : vector<16x1xf32>
    %cst_62 = arith.constant 9.99999997E-7 : f32
    %82 = vector.broadcast %cst_62 : f32 to vector<16x1xf32>
    %83 = arith.addf %81, %82 : vector<16x1xf32>
    %84 = math.rsqrt %83 : vector<16x1xf32>
    %85 = vector.broadcast %84 : vector<16x1xf32> to vector<16x32xf32>
    %86 = arith.mulf %76, %85 : vector<16x32xf32>
    %87 = vector.broadcast %40 : vector<1x32xf32> to vector<16x32xf32>
    %88 = arith.mulf %86, %87 : vector<16x32xf32>
    %89 = vector.broadcast %42 : vector<1x32xf32> to vector<16x32xf32>
    %90 = arith.addf %88, %89 : vector<16x32xf32>
    %cst_63 = arith.constant dense<0.000000e+00> : vector<16x32xf32>
    %91 = tpu.matmul %90, %58, %cst_63 {dimension_numbers = #tpu.dot_dimension_numbers<[1], [0], [0], [1], [0, 0, 1, 1], [], []>} : vector<16x32xf32>, vector<32x32xf32>, vector<16x32xf32> -> vector<16x32xf32>
    %92 = vector.broadcast %44 : vector<1x32xf32> to vector<16x32xf32>
    %93 = arith.addf %91, %92 : vector<16x32xf32>
    %cst_64 = arith.constant dense<0.000000e+00> : vector<16x32xf32>
    %94 = tpu.matmul %90, %60, %cst_64 {dimension_numbers = #tpu.dot_dimension_numbers<[1], [0], [0], [1], [0, 0, 1, 1], [], []>} : vector<16x32xf32>, vector<32x32xf32>, vector<16x32xf32> -> vector<16x32xf32>
    %95 = vector.broadcast %46 : vector<1x32xf32> to vector<16x32xf32>
    %96 = arith.addf %94, %95 : vector<16x32xf32>
    %cst_65 = arith.constant dense<0.000000e+00> : vector<16x32xf32>
    %97 = tpu.matmul %90, %62, %cst_65 {dimension_numbers = #tpu.dot_dimension_numbers<[1], [0], [0], [1], [0, 0, 1, 1], [], []>} : vector<16x32xf32>, vector<32x32xf32>, vector<16x32xf32> -> vector<16x32xf32>
    %98 = vector.broadcast %48 : vector<1x32xf32> to vector<16x32xf32>
    %99 = arith.addf %97, %98 : vector<16x32xf32>
    %cst_66 = arith.constant 0.353553385 : f32
    %100 = vector.broadcast %cst_66 : f32 to vector<16x32xf32>
    %101 = arith.mulf %93, %100 : vector<16x32xf32>
    %102 = vector.broadcast %8 : vector<1x32xf32> to vector<16x32xf32>
    %103 = arith.mulf %101, %102 : vector<16x32xf32>
    %104 = vector.broadcast %16 : vector<1x32xf32> to vector<16x32xf32>
    %105 = arith.mulf %101, %104 : vector<16x32xf32>
    %106 = vector.broadcast %24 : vector<1x32xf32> to vector<16x32xf32>
    %107 = arith.mulf %101, %106 : vector<16x32xf32>
    %108 = vector.broadcast %32 : vector<1x32xf32> to vector<16x32xf32>
    %109 = arith.mulf %101, %108 : vector<16x32xf32>
    %110 = tpu.concatenate %103, %105, %107, %109 in 0 : vector<16x32xf32>, vector<16x32xf32>, vector<16x32xf32>, vector<16x32xf32> -> vector<64x32xf32>
    %cst_67 = arith.constant dense<0.000000e+00> : vector<64x16xf32>
    %111 = tpu.matmul %110, %96, %cst_67 {dimension_numbers = #tpu.dot_dimension_numbers<[1], [1], [0], [0], [0, 0, 1, 0], [], []>} : vector<64x32xf32>, vector<16x32xf32>, vector<64x16xf32> -> vector<64x16xf32>
    %112 = vector.broadcast %34 : vector<1x16xf32> to vector<64x16xf32>
    %113 = arith.addf %111, %112 : vector<64x16xf32>
    %cst_68 = arith.constant dense<0xFF800000> : vector<64xf32>
    %114 = vector.multi_reduction <maximumf>, %113, %cst_68 [1] : vector<64x16xf32> to vector<64xf32>
    %115 = vector.shape_cast %114 : vector<64xf32> to vector<64x1xf32>
    %116 = vector.broadcast %115 : vector<64x1xf32> to vector<64x16xf32>
    %117 = arith.subf %113, %116 : vector<64x16xf32>
    %118 = math.exp %117 : vector<64x16xf32>
    %cst_69 = arith.constant dense<0.000000e+00> : vector<64xf32>
    %119 = vector.multi_reduction <add>, %118, %cst_69 [1] : vector<64x16xf32> to vector<64xf32>
    %120 = vector.shape_cast %119 : vector<64xf32> to vector<64x1xf32>
    %121 = tpu.reciprocal %120 {approx = true} : vector<64x1xf32> -> vector<64x1xf32>
    %122 = vector.broadcast %121 : vector<64x1xf32> to vector<64x16xf32>
    %123 = arith.mulf %118, %122 : vector<64x16xf32>
    %cst_70 = arith.constant dense<0.000000e+00> : vector<64x32xf32>
    %124 = tpu.matmul %123, %99, %cst_70 {dimension_numbers = #tpu.dot_dimension_numbers<[1], [0], [0], [1], [0, 0, 1, 1], [], []>} : vector<64x16xf32>, vector<16x32xf32>, vector<64x32xf32> -> vector<64x32xf32>
    %125 = vector.extract_strided_slice %124 {offsets = [0, 0], sizes = [16, 32], strides = [1, 1]} : vector<64x32xf32> to vector<16x32xf32>
    %126 = vector.broadcast %8 : vector<1x32xf32> to vector<16x32xf32>
    %127 = arith.mulf %125, %126 : vector<16x32xf32>
    %128 = vector.extract_strided_slice %124 {offsets = [16, 0], sizes = [16, 32], strides = [1, 1]} : vector<64x32xf32> to vector<16x32xf32>
    %129 = vector.broadcast %16 : vector<1x32xf32> to vector<16x32xf32>
    %130 = arith.mulf %128, %129 : vector<16x32xf32>
    %131 = arith.addf %127, %130 : vector<16x32xf32>
    %132 = vector.extract_strided_slice %124 {offsets = [32, 0], sizes = [16, 32], strides = [1, 1]} : vector<64x32xf32> to vector<16x32xf32>
    %133 = vector.broadcast %24 : vector<1x32xf32> to vector<16x32xf32>
    %134 = arith.mulf %132, %133 : vector<16x32xf32>
    %135 = arith.addf %131, %134 : vector<16x32xf32>
    %136 = vector.extract_strided_slice %124 {offsets = [48, 0], sizes = [16, 32], strides = [1, 1]} : vector<64x32xf32> to vector<16x32xf32>
    %137 = vector.broadcast %32 : vector<1x32xf32> to vector<16x32xf32>
    %138 = arith.mulf %136, %137 : vector<16x32xf32>
    %139 = arith.addf %135, %138 : vector<16x32xf32>
    %cst_71 = arith.constant dense<0.000000e+00> : vector<16x32xf32>
    %140 = tpu.matmul %139, %64, %cst_71 {dimension_numbers = #tpu.dot_dimension_numbers<[1], [0], [0], [1], [0, 0, 1, 1], [], []>} : vector<16x32xf32>, vector<32x32xf32>, vector<16x32xf32> -> vector<16x32xf32>
    %141 = vector.broadcast %50 : vector<1x32xf32> to vector<16x32xf32>
    %142 = arith.addf %140, %141 : vector<16x32xf32>
    %143 = arith.addf %142, %38 : vector<16x32xf32>
    %cst_72 = arith.constant dense<0.000000e+00> : vector<16xf32>
    %144 = vector.multi_reduction <add>, %143, %cst_72 [1] : vector<16x32xf32> to vector<16xf32>
    %145 = vector.shape_cast %144 : vector<16xf32> to vector<16x1xf32>
    %cst_73 = arith.constant 3.200000e+01 : f32
    %146 = vector.broadcast %cst_73 : f32 to vector<16x1xf32>
    %147 = arith.divf %145, %146 : vector<16x1xf32>
    %148 = vector.broadcast %147 : vector<16x1xf32> to vector<16x32xf32>
    %149 = arith.subf %143, %148 : vector<16x32xf32>
    %150 = arith.mulf %149, %149 : vector<16x32xf32>
    %cst_74 = arith.constant dense<0.000000e+00> : vector<16xf32>
    %151 = vector.multi_reduction <add>, %150, %cst_74 [1] : vector<16x32xf32> to vector<16xf32>
    %152 = vector.shape_cast %151 : vector<16xf32> to vector<16x1xf32>
    %cst_75 = arith.constant 3.200000e+01 : f32
    %153 = vector.broadcast %cst_75 : f32 to vector<16x1xf32>
    %154 = arith.divf %152, %153 : vector<16x1xf32>
    %cst_76 = arith.constant 9.99999997E-7 : f32
    %155 = vector.broadcast %cst_76 : f32 to vector<16x1xf32>
    %156 = arith.addf %154, %155 : vector<16x1xf32>
    %157 = math.rsqrt %156 : vector<16x1xf32>
    %158 = vector.broadcast %157 : vector<16x1xf32> to vector<16x32xf32>
    %159 = arith.mulf %149, %158 : vector<16x32xf32>
    %160 = vector.broadcast %52 : vector<1x32xf32> to vector<16x32xf32>
    %161 = arith.mulf %159, %160 : vector<16x32xf32>
    %162 = vector.broadcast %54 : vector<1x32xf32> to vector<16x32xf32>
    %163 = arith.addf %161, %162 : vector<16x32xf32>
    %cst_77 = arith.constant dense<0.000000e+00> : vector<16x64xf32>
    %164 = tpu.matmul %163, %66, %cst_77 {dimension_numbers = #tpu.dot_dimension_numbers<[1], [0], [0], [1], [0, 0, 1, 1], [], []>} : vector<16x32xf32>, vector<32x64xf32>, vector<16x64xf32> -> vector<16x64xf32>
    %165 = vector.broadcast %68 : vector<1x64xf32> to vector<16x64xf32>
    %166 = arith.addf %164, %165 : vector<16x64xf32>
    %cst_78 = arith.constant 0.000000e+00 : f32
    %167 = vector.broadcast %cst_78 : f32 to vector<16x64xf32>
    %168 = arith.maximumf %166, %167 : vector<16x64xf32>
    %cst_79 = arith.constant dense<0.000000e+00> : vector<16x32xf32>
    %169 = tpu.matmul %168, %70, %cst_79 {dimension_numbers = #tpu.dot_dimension_numbers<[1], [0], [0], [1], [0, 0, 1, 1], [], []>} : vector<16x64xf32>, vector<64x32xf32>, vector<16x32xf32> -> vector<16x32xf32>
    %170 = vector.broadcast %56 : vector<1x32xf32> to vector<16x32xf32>
    %171 = arith.addf %169, %170 : vector<16x32xf32>
    %172 = arith.addf %171, %143 : vector<16x32xf32>
    %c9 = arith.constant 9 : index
    %c0_80 = arith.constant 0 : index
    %c0_81 = arith.constant 0 : index
    %173 = vector.load %arg5[%c9, %c0_80, %c0_81] : memref<52x1x32xf32, #tpu.memory_space<vmem>>, vector<1x1x32xf32>
    %174 = vector.shape_cast %173 : vector<1x1x32xf32> to vector<1x32xf32>
    %c10 = arith.constant 10 : index
    %c0_82 = arith.constant 0 : index
    %c0_83 = arith.constant 0 : index
    %175 = vector.load %arg5[%c10, %c0_82, %c0_83] : memref<52x1x32xf32, #tpu.memory_space<vmem>>, vector<1x1x32xf32>
    %176 = vector.shape_cast %175 : vector<1x1x32xf32> to vector<1x32xf32>
    %c11 = arith.constant 11 : index
    %c0_84 = arith.constant 0 : index
    %c0_85 = arith.constant 0 : index
    %177 = vector.load %arg5[%c11, %c0_84, %c0_85] : memref<52x1x32xf32, #tpu.memory_space<vmem>>, vector<1x1x32xf32>
    %178 = vector.shape_cast %177 : vector<1x1x32xf32> to vector<1x32xf32>
    %c12 = arith.constant 12 : index
    %c0_86 = arith.constant 0 : index
    %c0_87 = arith.constant 0 : index
    %179 = vector.load %arg5[%c12, %c0_86, %c0_87] : memref<52x1x32xf32, #tpu.memory_space<vmem>>, vector<1x1x32xf32>
    %180 = vector.shape_cast %179 : vector<1x1x32xf32> to vector<1x32xf32>
    %c13 = arith.constant 13 : index
    %c0_88 = arith.constant 0 : index
    %c0_89 = arith.constant 0 : index
    %181 = vector.load %arg5[%c13, %c0_88, %c0_89] : memref<52x1x32xf32, #tpu.memory_space<vmem>>, vector<1x1x32xf32>
    %182 = vector.shape_cast %181 : vector<1x1x32xf32> to vector<1x32xf32>
    %c14 = arith.constant 14 : index
    %c0_90 = arith.constant 0 : index
    %c0_91 = arith.constant 0 : index
    %183 = vector.load %arg5[%c14, %c0_90, %c0_91] : memref<52x1x32xf32, #tpu.memory_space<vmem>>, vector<1x1x32xf32>
    %184 = vector.shape_cast %183 : vector<1x1x32xf32> to vector<1x32xf32>
    %c15 = arith.constant 15 : index
    %c0_92 = arith.constant 0 : index
    %c0_93 = arith.constant 0 : index
    %185 = vector.load %arg5[%c15, %c0_92, %c0_93] : memref<52x1x32xf32, #tpu.memory_space<vmem>>, vector<1x1x32xf32>
    %186 = vector.shape_cast %185 : vector<1x1x32xf32> to vector<1x32xf32>
    %c16 = arith.constant 16 : index
    %c0_94 = arith.constant 0 : index
    %c0_95 = arith.constant 0 : index
    %187 = vector.load %arg5[%c16, %c0_94, %c0_95] : memref<52x1x32xf32, #tpu.memory_space<vmem>>, vector<1x1x32xf32>
    %188 = vector.shape_cast %187 : vector<1x1x32xf32> to vector<1x32xf32>
    %c17 = arith.constant 17 : index
    %c0_96 = arith.constant 0 : index
    %c0_97 = arith.constant 0 : index
    %189 = vector.load %arg5[%c17, %c0_96, %c0_97] : memref<52x1x32xf32, #tpu.memory_space<vmem>>, vector<1x1x32xf32>
    %190 = vector.shape_cast %189 : vector<1x1x32xf32> to vector<1x32xf32>
    %c4_98 = arith.constant 4 : index
    %c0_99 = arith.constant 0 : index
    %c0_100 = arith.constant 0 : index
    %191 = vector.load %arg7[%c4_98, %c0_99, %c0_100] : memref<24x32x32xf32, #tpu.memory_space<vmem>>, vector<1x32x32xf32>
    %192 = vector.shape_cast %191 : vector<1x32x32xf32> to vector<32x32xf32>
    %c5_101 = arith.constant 5 : index
    %c0_102 = arith.constant 0 : index
    %c0_103 = arith.constant 0 : index
    %193 = vector.load %arg7[%c5_101, %c0_102, %c0_103] : memref<24x32x32xf32, #tpu.memory_space<vmem>>, vector<1x32x32xf32>
    %194 = vector.shape_cast %193 : vector<1x32x32xf32> to vector<32x32xf32>
    %c6_104 = arith.constant 6 : index
    %c0_105 = arith.constant 0 : index
    %c0_106 = arith.constant 0 : index
    %195 = vector.load %arg7[%c6_104, %c0_105, %c0_106] : memref<24x32x32xf32, #tpu.memory_space<vmem>>, vector<1x32x32xf32>
    %196 = vector.shape_cast %195 : vector<1x32x32xf32> to vector<32x32xf32>
    %c7_107 = arith.constant 7 : index
    %c0_108 = arith.constant 0 : index
    %c0_109 = arith.constant 0 : index
    %197 = vector.load %arg7[%c7_107, %c0_108, %c0_109] : memref<24x32x32xf32, #tpu.memory_space<vmem>>, vector<1x32x32xf32>
    %198 = vector.shape_cast %197 : vector<1x32x32xf32> to vector<32x32xf32>
    %c1_110 = arith.constant 1 : index
    %c0_111 = arith.constant 0 : index
    %c0_112 = arith.constant 0 : index
    %199 = vector.load %arg8[%c1_110, %c0_111, %c0_112] : memref<4x32x64xf32, #tpu.memory_space<vmem>>, vector<1x32x64xf32>
    %200 = vector.shape_cast %199 : vector<1x32x64xf32> to vector<32x64xf32>
    %c1_113 = arith.constant 1 : index
    %c0_114 = arith.constant 0 : index
    %c0_115 = arith.constant 0 : index
    %201 = vector.load %arg6[%c1_113, %c0_114, %c0_115] : memref<4x1x64xf32, #tpu.memory_space<vmem>>, vector<1x1x64xf32>
    %202 = vector.shape_cast %201 : vector<1x1x64xf32> to vector<1x64xf32>
    %c1_116 = arith.constant 1 : index
    %c0_117 = arith.constant 0 : index
    %c0_118 = arith.constant 0 : index
    %203 = vector.load %arg9[%c1_116, %c0_117, %c0_118] : memref<4x64x32xf32, #tpu.memory_space<vmem>>, vector<1x64x32xf32>
    %204 = vector.shape_cast %203 : vector<1x64x32xf32> to vector<64x32xf32>
    %cst_119 = arith.constant dense<0.000000e+00> : vector<16xf32>
    %205 = vector.multi_reduction <add>, %172, %cst_119 [1] : vector<16x32xf32> to vector<16xf32>
    %206 = vector.shape_cast %205 : vector<16xf32> to vector<16x1xf32>
    %cst_120 = arith.constant 3.200000e+01 : f32
    %207 = vector.broadcast %cst_120 : f32 to vector<16x1xf32>
    %208 = arith.divf %206, %207 : vector<16x1xf32>
    %209 = vector.broadcast %208 : vector<16x1xf32> to vector<16x32xf32>
    %210 = arith.subf %172, %209 : vector<16x32xf32>
    %211 = arith.mulf %210, %210 : vector<16x32xf32>
    %cst_121 = arith.constant dense<0.000000e+00> : vector<16xf32>
    %212 = vector.multi_reduction <add>, %211, %cst_121 [1] : vector<16x32xf32> to vector<16xf32>
    %213 = vector.shape_cast %212 : vector<16xf32> to vector<16x1xf32>
    %cst_122 = arith.constant 3.200000e+01 : f32
    %214 = vector.broadcast %cst_122 : f32 to vector<16x1xf32>
    %215 = arith.divf %213, %214 : vector<16x1xf32>
    %cst_123 = arith.constant 9.99999997E-7 : f32
    %216 = vector.broadcast %cst_123 : f32 to vector<16x1xf32>
    %217 = arith.addf %215, %216 : vector<16x1xf32>
    %218 = math.rsqrt %217 : vector<16x1xf32>
    %219 = vector.broadcast %218 : vector<16x1xf32> to vector<16x32xf32>
    %220 = arith.mulf %210, %219 : vector<16x32xf32>
    %221 = vector.broadcast %174 : vector<1x32xf32> to vector<16x32xf32>
    %222 = arith.mulf %220, %221 : vector<16x32xf32>
    %223 = vector.broadcast %176 : vector<1x32xf32> to vector<16x32xf32>
    %224 = arith.addf %222, %223 : vector<16x32xf32>
    %cst_124 = arith.constant dense<0.000000e+00> : vector<16x32xf32>
    %225 = tpu.matmul %224, %192, %cst_124 {dimension_numbers = #tpu.dot_dimension_numbers<[1], [0], [0], [1], [0, 0, 1, 1], [], []>} : vector<16x32xf32>, vector<32x32xf32>, vector<16x32xf32> -> vector<16x32xf32>
    %226 = vector.broadcast %178 : vector<1x32xf32> to vector<16x32xf32>
    %227 = arith.addf %225, %226 : vector<16x32xf32>
    %cst_125 = arith.constant dense<0.000000e+00> : vector<16x32xf32>
    %228 = tpu.matmul %224, %194, %cst_125 {dimension_numbers = #tpu.dot_dimension_numbers<[1], [0], [0], [1], [0, 0, 1, 1], [], []>} : vector<16x32xf32>, vector<32x32xf32>, vector<16x32xf32> -> vector<16x32xf32>
    %229 = vector.broadcast %180 : vector<1x32xf32> to vector<16x32xf32>
    %230 = arith.addf %228, %229 : vector<16x32xf32>
    %cst_126 = arith.constant dense<0.000000e+00> : vector<16x32xf32>
    %231 = tpu.matmul %224, %196, %cst_126 {dimension_numbers = #tpu.dot_dimension_numbers<[1], [0], [0], [1], [0, 0, 1, 1], [], []>} : vector<16x32xf32>, vector<32x32xf32>, vector<16x32xf32> -> vector<16x32xf32>
    %232 = vector.broadcast %182 : vector<1x32xf32> to vector<16x32xf32>
    %233 = arith.addf %231, %232 : vector<16x32xf32>
    %cst_127 = arith.constant 0.353553385 : f32
    %234 = vector.broadcast %cst_127 : f32 to vector<16x32xf32>
    %235 = arith.mulf %227, %234 : vector<16x32xf32>
    %236 = vector.broadcast %8 : vector<1x32xf32> to vector<16x32xf32>
    %237 = arith.mulf %235, %236 : vector<16x32xf32>
    %238 = vector.broadcast %16 : vector<1x32xf32> to vector<16x32xf32>
    %239 = arith.mulf %235, %238 : vector<16x32xf32>
    %240 = vector.broadcast %24 : vector<1x32xf32> to vector<16x32xf32>
    %241 = arith.mulf %235, %240 : vector<16x32xf32>
    %242 = vector.broadcast %32 : vector<1x32xf32> to vector<16x32xf32>
    %243 = arith.mulf %235, %242 : vector<16x32xf32>
    %244 = tpu.concatenate %237, %239, %241, %243 in 0 : vector<16x32xf32>, vector<16x32xf32>, vector<16x32xf32>, vector<16x32xf32> -> vector<64x32xf32>
    %cst_128 = arith.constant dense<0.000000e+00> : vector<64x16xf32>
    %245 = tpu.matmul %244, %230, %cst_128 {dimension_numbers = #tpu.dot_dimension_numbers<[1], [1], [0], [0], [0, 0, 1, 0], [], []>} : vector<64x32xf32>, vector<16x32xf32>, vector<64x16xf32> -> vector<64x16xf32>
    %246 = vector.broadcast %34 : vector<1x16xf32> to vector<64x16xf32>
    %247 = arith.addf %245, %246 : vector<64x16xf32>
    %cst_129 = arith.constant dense<0xFF800000> : vector<64xf32>
    %248 = vector.multi_reduction <maximumf>, %247, %cst_129 [1] : vector<64x16xf32> to vector<64xf32>
    %249 = vector.shape_cast %248 : vector<64xf32> to vector<64x1xf32>
    %250 = vector.broadcast %249 : vector<64x1xf32> to vector<64x16xf32>
    %251 = arith.subf %247, %250 : vector<64x16xf32>
    %252 = math.exp %251 : vector<64x16xf32>
    %cst_130 = arith.constant dense<0.000000e+00> : vector<64xf32>
    %253 = vector.multi_reduction <add>, %252, %cst_130 [1] : vector<64x16xf32> to vector<64xf32>
    %254 = vector.shape_cast %253 : vector<64xf32> to vector<64x1xf32>
    %255 = tpu.reciprocal %254 {approx = true} : vector<64x1xf32> -> vector<64x1xf32>
    %256 = vector.broadcast %255 : vector<64x1xf32> to vector<64x16xf32>
    %257 = arith.mulf %252, %256 : vector<64x16xf32>
    %cst_131 = arith.constant dense<0.000000e+00> : vector<64x32xf32>
    %258 = tpu.matmul %257, %233, %cst_131 {dimension_numbers = #tpu.dot_dimension_numbers<[1], [0], [0], [1], [0, 0, 1, 1], [], []>} : vector<64x16xf32>, vector<16x32xf32>, vector<64x32xf32> -> vector<64x32xf32>
    %259 = vector.extract_strided_slice %258 {offsets = [0, 0], sizes = [16, 32], strides = [1, 1]} : vector<64x32xf32> to vector<16x32xf32>
    %260 = vector.broadcast %8 : vector<1x32xf32> to vector<16x32xf32>
    %261 = arith.mulf %259, %260 : vector<16x32xf32>
    %262 = vector.extract_strided_slice %258 {offsets = [16, 0], sizes = [16, 32], strides = [1, 1]} : vector<64x32xf32> to vector<16x32xf32>
    %263 = vector.broadcast %16 : vector<1x32xf32> to vector<16x32xf32>
    %264 = arith.mulf %262, %263 : vector<16x32xf32>
    %265 = arith.addf %261, %264 : vector<16x32xf32>
    %266 = vector.extract_strided_slice %258 {offsets = [32, 0], sizes = [16, 32], strides = [1, 1]} : vector<64x32xf32> to vector<16x32xf32>
    %267 = vector.broadcast %24 : vector<1x32xf32> to vector<16x32xf32>
    %268 = arith.mulf %266, %267 : vector<16x32xf32>
    %269 = arith.addf %265, %268 : vector<16x32xf32>
    %270 = vector.extract_strided_slice %258 {offsets = [48, 0], sizes = [16, 32], strides = [1, 1]} : vector<64x32xf32> to vector<16x32xf32>
    %271 = vector.broadcast %32 : vector<1x32xf32> to vector<16x32xf32>
    %272 = arith.mulf %270, %271 : vector<16x32xf32>
    %273 = arith.addf %269, %272 : vector<16x32xf32>
    %cst_132 = arith.constant dense<0.000000e+00> : vector<16x32xf32>
    %274 = tpu.matmul %273, %198, %cst_132 {dimension_numbers = #tpu.dot_dimension_numbers<[1], [0], [0], [1], [0, 0, 1, 1], [], []>} : vector<16x32xf32>, vector<32x32xf32>, vector<16x32xf32> -> vector<16x32xf32>
    %275 = vector.broadcast %184 : vector<1x32xf32> to vector<16x32xf32>
    %276 = arith.addf %274, %275 : vector<16x32xf32>
    %277 = arith.addf %276, %172 : vector<16x32xf32>
    %cst_133 = arith.constant dense<0.000000e+00> : vector<16xf32>
    %278 = vector.multi_reduction <add>, %277, %cst_133 [1] : vector<16x32xf32> to vector<16xf32>
    %279 = vector.shape_cast %278 : vector<16xf32> to vector<16x1xf32>
    %cst_134 = arith.constant 3.200000e+01 : f32
    %280 = vector.broadcast %cst_134 : f32 to vector<16x1xf32>
    %281 = arith.divf %279, %280 : vector<16x1xf32>
    %282 = vector.broadcast %281 : vector<16x1xf32> to vector<16x32xf32>
    %283 = arith.subf %277, %282 : vector<16x32xf32>
    %284 = arith.mulf %283, %283 : vector<16x32xf32>
    %cst_135 = arith.constant dense<0.000000e+00> : vector<16xf32>
    %285 = vector.multi_reduction <add>, %284, %cst_135 [1] : vector<16x32xf32> to vector<16xf32>
    %286 = vector.shape_cast %285 : vector<16xf32> to vector<16x1xf32>
    %cst_136 = arith.constant 3.200000e+01 : f32
    %287 = vector.broadcast %cst_136 : f32 to vector<16x1xf32>
    %288 = arith.divf %286, %287 : vector<16x1xf32>
    %cst_137 = arith.constant 9.99999997E-7 : f32
    %289 = vector.broadcast %cst_137 : f32 to vector<16x1xf32>
    %290 = arith.addf %288, %289 : vector<16x1xf32>
    %291 = math.rsqrt %290 : vector<16x1xf32>
    %292 = vector.broadcast %291 : vector<16x1xf32> to vector<16x32xf32>
    %293 = arith.mulf %283, %292 : vector<16x32xf32>
    %294 = vector.broadcast %186 : vector<1x32xf32> to vector<16x32xf32>
    %295 = arith.mulf %293, %294 : vector<16x32xf32>
    %296 = vector.broadcast %188 : vector<1x32xf32> to vector<16x32xf32>
    %297 = arith.addf %295, %296 : vector<16x32xf32>
    %cst_138 = arith.constant dense<0.000000e+00> : vector<16x64xf32>
    %298 = tpu.matmul %297, %200, %cst_138 {dimension_numbers = #tpu.dot_dimension_numbers<[1], [0], [0], [1], [0, 0, 1, 1], [], []>} : vector<16x32xf32>, vector<32x64xf32>, vector<16x64xf32> -> vector<16x64xf32>
    %299 = vector.broadcast %202 : vector<1x64xf32> to vector<16x64xf32>
    %300 = arith.addf %298, %299 : vector<16x64xf32>
    %cst_139 = arith.constant 0.000000e+00 : f32
    %301 = vector.broadcast %cst_139 : f32 to vector<16x64xf32>
    %302 = arith.maximumf %300, %301 : vector<16x64xf32>
    %cst_140 = arith.constant dense<0.000000e+00> : vector<16x32xf32>
    %303 = tpu.matmul %302, %204, %cst_140 {dimension_numbers = #tpu.dot_dimension_numbers<[1], [0], [0], [1], [0, 0, 1, 1], [], []>} : vector<16x64xf32>, vector<64x32xf32>, vector<16x32xf32> -> vector<16x32xf32>
    %304 = vector.broadcast %190 : vector<1x32xf32> to vector<16x32xf32>
    %305 = arith.addf %303, %304 : vector<16x32xf32>
    %306 = arith.addf %305, %277 : vector<16x32xf32>
    %c18 = arith.constant 18 : index
    %c0_141 = arith.constant 0 : index
    %c0_142 = arith.constant 0 : index
    %307 = vector.load %arg5[%c18, %c0_141, %c0_142] : memref<52x1x32xf32, #tpu.memory_space<vmem>>, vector<1x1x32xf32>
    %308 = vector.shape_cast %307 : vector<1x1x32xf32> to vector<1x32xf32>
    %c19 = arith.constant 19 : index
    %c0_143 = arith.constant 0 : index
    %c0_144 = arith.constant 0 : index
    %309 = vector.load %arg5[%c19, %c0_143, %c0_144] : memref<52x1x32xf32, #tpu.memory_space<vmem>>, vector<1x1x32xf32>
    %310 = vector.shape_cast %309 : vector<1x1x32xf32> to vector<1x32xf32>
    %cst_145 = arith.constant dense<0.000000e+00> : vector<16xf32>
    %311 = vector.multi_reduction <add>, %306, %cst_145 [1] : vector<16x32xf32> to vector<16xf32>
    %312 = vector.shape_cast %311 : vector<16xf32> to vector<16x1xf32>
    %cst_146 = arith.constant 3.200000e+01 : f32
    %313 = vector.broadcast %cst_146 : f32 to vector<16x1xf32>
    %314 = arith.divf %312, %313 : vector<16x1xf32>
    %315 = vector.broadcast %314 : vector<16x1xf32> to vector<16x32xf32>
    %316 = arith.subf %306, %315 : vector<16x32xf32>
    %317 = arith.mulf %316, %316 : vector<16x32xf32>
    %cst_147 = arith.constant dense<0.000000e+00> : vector<16xf32>
    %318 = vector.multi_reduction <add>, %317, %cst_147 [1] : vector<16x32xf32> to vector<16xf32>
    %319 = vector.shape_cast %318 : vector<16xf32> to vector<16x1xf32>
    %cst_148 = arith.constant 3.200000e+01 : f32
    %320 = vector.broadcast %cst_148 : f32 to vector<16x1xf32>
    %321 = arith.divf %319, %320 : vector<16x1xf32>
    %cst_149 = arith.constant 9.99999997E-7 : f32
    %322 = vector.broadcast %cst_149 : f32 to vector<16x1xf32>
    %323 = arith.addf %321, %322 : vector<16x1xf32>
    %324 = math.rsqrt %323 : vector<16x1xf32>
    %325 = vector.broadcast %324 : vector<16x1xf32> to vector<16x32xf32>
    %326 = arith.mulf %316, %325 : vector<16x32xf32>
    %327 = vector.broadcast %308 : vector<1x32xf32> to vector<16x32xf32>
    %328 = arith.mulf %326, %327 : vector<16x32xf32>
    %329 = vector.broadcast %310 : vector<1x32xf32> to vector<16x32xf32>
    %330 = arith.addf %328, %329 : vector<16x32xf32>
    %c0_150 = arith.constant 0 : index
    %c0_151 = arith.constant 0 : index
    %c0_152 = arith.constant 0 : index
    %331 = vector.load %arg2[%c0_150, %c0_151, %c0_152] : memref<1x8x32xf32, #tpu.memory_space<vmem>>, vector<1x8x32xf32>
    %332 = vector.shape_cast %331 : vector<1x8x32xf32> to vector<8x32xf32>
    %333 = tpu.iota {dimensions = array<i32: 0>} : vector<8x8xi32>
    %334 = tpu.iota {dimensions = array<i32: 1>} : vector<8x8xi32>
    %335 = arith.cmpi sgt, %334, %333 : vector<8x8xi32>
    %cst_153 = arith.constant -1.000000e+09 : f32
    %cst_154 = arith.constant 0.000000e+00 : f32
    %336 = vector.broadcast %cst_153 : f32 to vector<8x8xf32>
    %337 = vector.broadcast %cst_154 : f32 to vector<8x8xf32>
    %338 = arith.select %335, %336, %337 : vector<8x8xi1>, vector<8x8xf32>
    %339 = tpu.concatenate %338, %338, %338, %338 in 0 : vector<8x8xf32>, vector<8x8xf32>, vector<8x8xf32>, vector<8x8xf32> -> vector<32x8xf32>
    %340 = vector.broadcast %36 : vector<1x8xf32> to vector<32x8xf32>
    %341 = arith.addf %339, %340 : vector<32x8xf32>
    %c20 = arith.constant 20 : index
    %c0_155 = arith.constant 0 : index
    %c0_156 = arith.constant 0 : index
    %342 = vector.load %arg5[%c20, %c0_155, %c0_156] : memref<52x1x32xf32, #tpu.memory_space<vmem>>, vector<1x1x32xf32>
    %343 = vector.shape_cast %342 : vector<1x1x32xf32> to vector<1x32xf32>
    %c21 = arith.constant 21 : index
    %c0_157 = arith.constant 0 : index
    %c0_158 = arith.constant 0 : index
    %344 = vector.load %arg5[%c21, %c0_157, %c0_158] : memref<52x1x32xf32, #tpu.memory_space<vmem>>, vector<1x1x32xf32>
    %345 = vector.shape_cast %344 : vector<1x1x32xf32> to vector<1x32xf32>
    %c22 = arith.constant 22 : index
    %c0_159 = arith.constant 0 : index
    %c0_160 = arith.constant 0 : index
    %346 = vector.load %arg5[%c22, %c0_159, %c0_160] : memref<52x1x32xf32, #tpu.memory_space<vmem>>, vector<1x1x32xf32>
    %347 = vector.shape_cast %346 : vector<1x1x32xf32> to vector<1x32xf32>
    %c23 = arith.constant 23 : index
    %c0_161 = arith.constant 0 : index
    %c0_162 = arith.constant 0 : index
    %348 = vector.load %arg5[%c23, %c0_161, %c0_162] : memref<52x1x32xf32, #tpu.memory_space<vmem>>, vector<1x1x32xf32>
    %349 = vector.shape_cast %348 : vector<1x1x32xf32> to vector<1x32xf32>
    %c24 = arith.constant 24 : index
    %c0_163 = arith.constant 0 : index
    %c0_164 = arith.constant 0 : index
    %350 = vector.load %arg5[%c24, %c0_163, %c0_164] : memref<52x1x32xf32, #tpu.memory_space<vmem>>, vector<1x1x32xf32>
    %351 = vector.shape_cast %350 : vector<1x1x32xf32> to vector<1x32xf32>
    %c25 = arith.constant 25 : index
    %c0_165 = arith.constant 0 : index
    %c0_166 = arith.constant 0 : index
    %352 = vector.load %arg5[%c25, %c0_165, %c0_166] : memref<52x1x32xf32, #tpu.memory_space<vmem>>, vector<1x1x32xf32>
    %353 = vector.shape_cast %352 : vector<1x1x32xf32> to vector<1x32xf32>
    %c26 = arith.constant 26 : index
    %c0_167 = arith.constant 0 : index
    %c0_168 = arith.constant 0 : index
    %354 = vector.load %arg5[%c26, %c0_167, %c0_168] : memref<52x1x32xf32, #tpu.memory_space<vmem>>, vector<1x1x32xf32>
    %355 = vector.shape_cast %354 : vector<1x1x32xf32> to vector<1x32xf32>
    %c27 = arith.constant 27 : index
    %c0_169 = arith.constant 0 : index
    %c0_170 = arith.constant 0 : index
    %356 = vector.load %arg5[%c27, %c0_169, %c0_170] : memref<52x1x32xf32, #tpu.memory_space<vmem>>, vector<1x1x32xf32>
    %357 = vector.shape_cast %356 : vector<1x1x32xf32> to vector<1x32xf32>
    %c28 = arith.constant 28 : index
    %c0_171 = arith.constant 0 : index
    %c0_172 = arith.constant 0 : index
    %358 = vector.load %arg5[%c28, %c0_171, %c0_172] : memref<52x1x32xf32, #tpu.memory_space<vmem>>, vector<1x1x32xf32>
    %359 = vector.shape_cast %358 : vector<1x1x32xf32> to vector<1x32xf32>
    %c29 = arith.constant 29 : index
    %c0_173 = arith.constant 0 : index
    %c0_174 = arith.constant 0 : index
    %360 = vector.load %arg5[%c29, %c0_173, %c0_174] : memref<52x1x32xf32, #tpu.memory_space<vmem>>, vector<1x1x32xf32>
    %361 = vector.shape_cast %360 : vector<1x1x32xf32> to vector<1x32xf32>
    %c30 = arith.constant 30 : index
    %c0_175 = arith.constant 0 : index
    %c0_176 = arith.constant 0 : index
    %362 = vector.load %arg5[%c30, %c0_175, %c0_176] : memref<52x1x32xf32, #tpu.memory_space<vmem>>, vector<1x1x32xf32>
    %363 = vector.shape_cast %362 : vector<1x1x32xf32> to vector<1x32xf32>
    %c31 = arith.constant 31 : index
    %c0_177 = arith.constant 0 : index
    %c0_178 = arith.constant 0 : index
    %364 = vector.load %arg5[%c31, %c0_177, %c0_178] : memref<52x1x32xf32, #tpu.memory_space<vmem>>, vector<1x1x32xf32>
    %365 = vector.shape_cast %364 : vector<1x1x32xf32> to vector<1x32xf32>
    %c32 = arith.constant 32 : index
    %c0_179 = arith.constant 0 : index
    %c0_180 = arith.constant 0 : index
    %366 = vector.load %arg5[%c32, %c0_179, %c0_180] : memref<52x1x32xf32, #tpu.memory_space<vmem>>, vector<1x1x32xf32>
    %367 = vector.shape_cast %366 : vector<1x1x32xf32> to vector<1x32xf32>
    %c33 = arith.constant 33 : index
    %c0_181 = arith.constant 0 : index
    %c0_182 = arith.constant 0 : index
    %368 = vector.load %arg5[%c33, %c0_181, %c0_182] : memref<52x1x32xf32, #tpu.memory_space<vmem>>, vector<1x1x32xf32>
    %369 = vector.shape_cast %368 : vector<1x1x32xf32> to vector<1x32xf32>
    %c34 = arith.constant 34 : index
    %c0_183 = arith.constant 0 : index
    %c0_184 = arith.constant 0 : index
    %370 = vector.load %arg5[%c34, %c0_183, %c0_184] : memref<52x1x32xf32, #tpu.memory_space<vmem>>, vector<1x1x32xf32>
    %371 = vector.shape_cast %370 : vector<1x1x32xf32> to vector<1x32xf32>
    %c8_185 = arith.constant 8 : index
    %c0_186 = arith.constant 0 : index
    %c0_187 = arith.constant 0 : index
    %372 = vector.load %arg7[%c8_185, %c0_186, %c0_187] : memref<24x32x32xf32, #tpu.memory_space<vmem>>, vector<1x32x32xf32>
    %373 = vector.shape_cast %372 : vector<1x32x32xf32> to vector<32x32xf32>
    %c9_188 = arith.constant 9 : index
    %c0_189 = arith.constant 0 : index
    %c0_190 = arith.constant 0 : index
    %374 = vector.load %arg7[%c9_188, %c0_189, %c0_190] : memref<24x32x32xf32, #tpu.memory_space<vmem>>, vector<1x32x32xf32>
    %375 = vector.shape_cast %374 : vector<1x32x32xf32> to vector<32x32xf32>
    %c10_191 = arith.constant 10 : index
    %c0_192 = arith.constant 0 : index
    %c0_193 = arith.constant 0 : index
    %376 = vector.load %arg7[%c10_191, %c0_192, %c0_193] : memref<24x32x32xf32, #tpu.memory_space<vmem>>, vector<1x32x32xf32>
    %377 = vector.shape_cast %376 : vector<1x32x32xf32> to vector<32x32xf32>
    %c11_194 = arith.constant 11 : index
    %c0_195 = arith.constant 0 : index
    %c0_196 = arith.constant 0 : index
    %378 = vector.load %arg7[%c11_194, %c0_195, %c0_196] : memref<24x32x32xf32, #tpu.memory_space<vmem>>, vector<1x32x32xf32>
    %379 = vector.shape_cast %378 : vector<1x32x32xf32> to vector<32x32xf32>
    %c12_197 = arith.constant 12 : index
    %c0_198 = arith.constant 0 : index
    %c0_199 = arith.constant 0 : index
    %380 = vector.load %arg7[%c12_197, %c0_198, %c0_199] : memref<24x32x32xf32, #tpu.memory_space<vmem>>, vector<1x32x32xf32>
    %381 = vector.shape_cast %380 : vector<1x32x32xf32> to vector<32x32xf32>
    %c13_200 = arith.constant 13 : index
    %c0_201 = arith.constant 0 : index
    %c0_202 = arith.constant 0 : index
    %382 = vector.load %arg7[%c13_200, %c0_201, %c0_202] : memref<24x32x32xf32, #tpu.memory_space<vmem>>, vector<1x32x32xf32>
    %383 = vector.shape_cast %382 : vector<1x32x32xf32> to vector<32x32xf32>
    %c14_203 = arith.constant 14 : index
    %c0_204 = arith.constant 0 : index
    %c0_205 = arith.constant 0 : index
    %384 = vector.load %arg7[%c14_203, %c0_204, %c0_205] : memref<24x32x32xf32, #tpu.memory_space<vmem>>, vector<1x32x32xf32>
    %385 = vector.shape_cast %384 : vector<1x32x32xf32> to vector<32x32xf32>
    %c15_206 = arith.constant 15 : index
    %c0_207 = arith.constant 0 : index
    %c0_208 = arith.constant 0 : index
    %386 = vector.load %arg7[%c15_206, %c0_207, %c0_208] : memref<24x32x32xf32, #tpu.memory_space<vmem>>, vector<1x32x32xf32>
    %387 = vector.shape_cast %386 : vector<1x32x32xf32> to vector<32x32xf32>
    %c2_209 = arith.constant 2 : index
    %c0_210 = arith.constant 0 : index
    %c0_211 = arith.constant 0 : index
    %388 = vector.load %arg8[%c2_209, %c0_210, %c0_211] : memref<4x32x64xf32, #tpu.memory_space<vmem>>, vector<1x32x64xf32>
    %389 = vector.shape_cast %388 : vector<1x32x64xf32> to vector<32x64xf32>
    %c2_212 = arith.constant 2 : index
    %c0_213 = arith.constant 0 : index
    %c0_214 = arith.constant 0 : index
    %390 = vector.load %arg6[%c2_212, %c0_213, %c0_214] : memref<4x1x64xf32, #tpu.memory_space<vmem>>, vector<1x1x64xf32>
    %391 = vector.shape_cast %390 : vector<1x1x64xf32> to vector<1x64xf32>
    %c2_215 = arith.constant 2 : index
    %c0_216 = arith.constant 0 : index
    %c0_217 = arith.constant 0 : index
    %392 = vector.load %arg9[%c2_215, %c0_216, %c0_217] : memref<4x64x32xf32, #tpu.memory_space<vmem>>, vector<1x64x32xf32>
    %393 = vector.shape_cast %392 : vector<1x64x32xf32> to vector<64x32xf32>
    %cst_218 = arith.constant dense<0.000000e+00> : vector<8xf32>
    %394 = vector.multi_reduction <add>, %332, %cst_218 [1] : vector<8x32xf32> to vector<8xf32>
    %395 = vector.shape_cast %394 : vector<8xf32> to vector<8x1xf32>
    %cst_219 = arith.constant 3.200000e+01 : f32
    %396 = vector.broadcast %cst_219 : f32 to vector<8x1xf32>
    %397 = arith.divf %395, %396 : vector<8x1xf32>
    %398 = vector.broadcast %397 : vector<8x1xf32> to vector<8x32xf32>
    %399 = arith.subf %332, %398 : vector<8x32xf32>
    %400 = arith.mulf %399, %399 : vector<8x32xf32>
    %cst_220 = arith.constant dense<0.000000e+00> : vector<8xf32>
    %401 = vector.multi_reduction <add>, %400, %cst_220 [1] : vector<8x32xf32> to vector<8xf32>
    %402 = vector.shape_cast %401 : vector<8xf32> to vector<8x1xf32>
    %cst_221 = arith.constant 3.200000e+01 : f32
    %403 = vector.broadcast %cst_221 : f32 to vector<8x1xf32>
    %404 = arith.divf %402, %403 : vector<8x1xf32>
    %cst_222 = arith.constant 9.99999997E-7 : f32
    %405 = vector.broadcast %cst_222 : f32 to vector<8x1xf32>
    %406 = arith.addf %404, %405 : vector<8x1xf32>
    %407 = math.rsqrt %406 : vector<8x1xf32>
    %408 = vector.broadcast %407 : vector<8x1xf32> to vector<8x32xf32>
    %409 = arith.mulf %399, %408 : vector<8x32xf32>
    %410 = vector.broadcast %343 : vector<1x32xf32> to vector<8x32xf32>
    %411 = arith.mulf %409, %410 : vector<8x32xf32>
    %412 = vector.broadcast %345 : vector<1x32xf32> to vector<8x32xf32>
    %413 = arith.addf %411, %412 : vector<8x32xf32>
    %cst_223 = arith.constant dense<0.000000e+00> : vector<8x32xf32>
    %414 = tpu.matmul %413, %373, %cst_223 {dimension_numbers = #tpu.dot_dimension_numbers<[1], [0], [0], [1], [0, 0, 1, 1], [], []>} : vector<8x32xf32>, vector<32x32xf32>, vector<8x32xf32> -> vector<8x32xf32>
    %415 = vector.broadcast %347 : vector<1x32xf32> to vector<8x32xf32>
    %416 = arith.addf %414, %415 : vector<8x32xf32>
    %cst_224 = arith.constant dense<0.000000e+00> : vector<8x32xf32>
    %417 = tpu.matmul %413, %375, %cst_224 {dimension_numbers = #tpu.dot_dimension_numbers<[1], [0], [0], [1], [0, 0, 1, 1], [], []>} : vector<8x32xf32>, vector<32x32xf32>, vector<8x32xf32> -> vector<8x32xf32>
    %418 = vector.broadcast %349 : vector<1x32xf32> to vector<8x32xf32>
    %419 = arith.addf %417, %418 : vector<8x32xf32>
    %cst_225 = arith.constant dense<0.000000e+00> : vector<8x32xf32>
    %420 = tpu.matmul %413, %377, %cst_225 {dimension_numbers = #tpu.dot_dimension_numbers<[1], [0], [0], [1], [0, 0, 1, 1], [], []>} : vector<8x32xf32>, vector<32x32xf32>, vector<8x32xf32> -> vector<8x32xf32>
    %421 = vector.broadcast %351 : vector<1x32xf32> to vector<8x32xf32>
    %422 = arith.addf %420, %421 : vector<8x32xf32>
    %cst_226 = arith.constant 0.353553385 : f32
    %423 = vector.broadcast %cst_226 : f32 to vector<8x32xf32>
    %424 = arith.mulf %416, %423 : vector<8x32xf32>
    %425 = vector.broadcast %8 : vector<1x32xf32> to vector<8x32xf32>
    %426 = arith.mulf %424, %425 : vector<8x32xf32>
    %427 = vector.broadcast %16 : vector<1x32xf32> to vector<8x32xf32>
    %428 = arith.mulf %424, %427 : vector<8x32xf32>
    %429 = vector.broadcast %24 : vector<1x32xf32> to vector<8x32xf32>
    %430 = arith.mulf %424, %429 : vector<8x32xf32>
    %431 = vector.broadcast %32 : vector<1x32xf32> to vector<8x32xf32>
    %432 = arith.mulf %424, %431 : vector<8x32xf32>
    %433 = tpu.concatenate %426, %428, %430, %432 in 0 : vector<8x32xf32>, vector<8x32xf32>, vector<8x32xf32>, vector<8x32xf32> -> vector<32x32xf32>
    %cst_227 = arith.constant dense<0.000000e+00> : vector<32x8xf32>
    %434 = tpu.matmul %433, %419, %cst_227 {dimension_numbers = #tpu.dot_dimension_numbers<[1], [1], [0], [0], [0, 0, 1, 0], [], []>} : vector<32x32xf32>, vector<8x32xf32>, vector<32x8xf32> -> vector<32x8xf32>
    %435 = arith.addf %434, %341 : vector<32x8xf32>
    %cst_228 = arith.constant dense<0xFF800000> : vector<32xf32>
    %436 = vector.multi_reduction <maximumf>, %435, %cst_228 [1] : vector<32x8xf32> to vector<32xf32>
    %437 = vector.shape_cast %436 : vector<32xf32> to vector<32x1xf32>
    %438 = vector.broadcast %437 : vector<32x1xf32> to vector<32x8xf32>
    %439 = arith.subf %435, %438 : vector<32x8xf32>
    %440 = math.exp %439 : vector<32x8xf32>
    %cst_229 = arith.constant dense<0.000000e+00> : vector<32xf32>
    %441 = vector.multi_reduction <add>, %440, %cst_229 [1] : vector<32x8xf32> to vector<32xf32>
    %442 = vector.shape_cast %441 : vector<32xf32> to vector<32x1xf32>
    %443 = tpu.reciprocal %442 {approx = true} : vector<32x1xf32> -> vector<32x1xf32>
    %444 = vector.broadcast %443 : vector<32x1xf32> to vector<32x8xf32>
    %445 = arith.mulf %440, %444 : vector<32x8xf32>
    %cst_230 = arith.constant dense<0.000000e+00> : vector<32x32xf32>
    %446 = tpu.matmul %445, %422, %cst_230 {dimension_numbers = #tpu.dot_dimension_numbers<[1], [0], [0], [1], [0, 0, 1, 1], [], []>} : vector<32x8xf32>, vector<8x32xf32>, vector<32x32xf32> -> vector<32x32xf32>
    %447 = vector.extract_strided_slice %446 {offsets = [0, 0], sizes = [8, 32], strides = [1, 1]} : vector<32x32xf32> to vector<8x32xf32>
    %448 = vector.broadcast %8 : vector<1x32xf32> to vector<8x32xf32>
    %449 = arith.mulf %447, %448 : vector<8x32xf32>
    %450 = vector.extract_strided_slice %446 {offsets = [8, 0], sizes = [8, 32], strides = [1, 1]} : vector<32x32xf32> to vector<8x32xf32>
    %451 = vector.broadcast %16 : vector<1x32xf32> to vector<8x32xf32>
    %452 = arith.mulf %450, %451 : vector<8x32xf32>
    %453 = arith.addf %449, %452 : vector<8x32xf32>
    %454 = vector.extract_strided_slice %446 {offsets = [16, 0], sizes = [8, 32], strides = [1, 1]} : vector<32x32xf32> to vector<8x32xf32>
    %455 = vector.broadcast %24 : vector<1x32xf32> to vector<8x32xf32>
    %456 = arith.mulf %454, %455 : vector<8x32xf32>
    %457 = arith.addf %453, %456 : vector<8x32xf32>
    %458 = vector.extract_strided_slice %446 {offsets = [24, 0], sizes = [8, 32], strides = [1, 1]} : vector<32x32xf32> to vector<8x32xf32>
    %459 = vector.broadcast %32 : vector<1x32xf32> to vector<8x32xf32>
    %460 = arith.mulf %458, %459 : vector<8x32xf32>
    %461 = arith.addf %457, %460 : vector<8x32xf32>
    %cst_231 = arith.constant dense<0.000000e+00> : vector<8x32xf32>
    %462 = tpu.matmul %461, %379, %cst_231 {dimension_numbers = #tpu.dot_dimension_numbers<[1], [0], [0], [1], [0, 0, 1, 1], [], []>} : vector<8x32xf32>, vector<32x32xf32>, vector<8x32xf32> -> vector<8x32xf32>
    %463 = vector.broadcast %353 : vector<1x32xf32> to vector<8x32xf32>
    %464 = arith.addf %462, %463 : vector<8x32xf32>
    %465 = arith.addf %464, %332 : vector<8x32xf32>
    %cst_232 = arith.constant dense<0.000000e+00> : vector<8xf32>
    %466 = vector.multi_reduction <add>, %465, %cst_232 [1] : vector<8x32xf32> to vector<8xf32>
    %467 = vector.shape_cast %466 : vector<8xf32> to vector<8x1xf32>
    %cst_233 = arith.constant 3.200000e+01 : f32
    %468 = vector.broadcast %cst_233 : f32 to vector<8x1xf32>
    %469 = arith.divf %467, %468 : vector<8x1xf32>
    %470 = vector.broadcast %469 : vector<8x1xf32> to vector<8x32xf32>
    %471 = arith.subf %465, %470 : vector<8x32xf32>
    %472 = arith.mulf %471, %471 : vector<8x32xf32>
    %cst_234 = arith.constant dense<0.000000e+00> : vector<8xf32>
    %473 = vector.multi_reduction <add>, %472, %cst_234 [1] : vector<8x32xf32> to vector<8xf32>
    %474 = vector.shape_cast %473 : vector<8xf32> to vector<8x1xf32>
    %cst_235 = arith.constant 3.200000e+01 : f32
    %475 = vector.broadcast %cst_235 : f32 to vector<8x1xf32>
    %476 = arith.divf %474, %475 : vector<8x1xf32>
    %cst_236 = arith.constant 9.99999997E-7 : f32
    %477 = vector.broadcast %cst_236 : f32 to vector<8x1xf32>
    %478 = arith.addf %476, %477 : vector<8x1xf32>
    %479 = math.rsqrt %478 : vector<8x1xf32>
    %480 = vector.broadcast %479 : vector<8x1xf32> to vector<8x32xf32>
    %481 = arith.mulf %471, %480 : vector<8x32xf32>
    %482 = vector.broadcast %355 : vector<1x32xf32> to vector<8x32xf32>
    %483 = arith.mulf %481, %482 : vector<8x32xf32>
    %484 = vector.broadcast %357 : vector<1x32xf32> to vector<8x32xf32>
    %485 = arith.addf %483, %484 : vector<8x32xf32>
    %cst_237 = arith.constant dense<0.000000e+00> : vector<8x32xf32>
    %486 = tpu.matmul %485, %381, %cst_237 {dimension_numbers = #tpu.dot_dimension_numbers<[1], [0], [0], [1], [0, 0, 1, 1], [], []>} : vector<8x32xf32>, vector<32x32xf32>, vector<8x32xf32> -> vector<8x32xf32>
    %487 = vector.broadcast %359 : vector<1x32xf32> to vector<8x32xf32>
    %488 = arith.addf %486, %487 : vector<8x32xf32>
    %cst_238 = arith.constant dense<0.000000e+00> : vector<16x32xf32>
    %489 = tpu.matmul %330, %383, %cst_238 {dimension_numbers = #tpu.dot_dimension_numbers<[1], [0], [0], [1], [0, 0, 1, 1], [], []>} : vector<16x32xf32>, vector<32x32xf32>, vector<16x32xf32> -> vector<16x32xf32>
    %490 = vector.broadcast %361 : vector<1x32xf32> to vector<16x32xf32>
    %491 = arith.addf %489, %490 : vector<16x32xf32>
    %cst_239 = arith.constant dense<0.000000e+00> : vector<16x32xf32>
    %492 = tpu.matmul %330, %385, %cst_239 {dimension_numbers = #tpu.dot_dimension_numbers<[1], [0], [0], [1], [0, 0, 1, 1], [], []>} : vector<16x32xf32>, vector<32x32xf32>, vector<16x32xf32> -> vector<16x32xf32>
    %493 = vector.broadcast %363 : vector<1x32xf32> to vector<16x32xf32>
    %494 = arith.addf %492, %493 : vector<16x32xf32>
    %cst_240 = arith.constant 0.353553385 : f32
    %495 = vector.broadcast %cst_240 : f32 to vector<8x32xf32>
    %496 = arith.mulf %488, %495 : vector<8x32xf32>
    %497 = vector.broadcast %8 : vector<1x32xf32> to vector<8x32xf32>
    %498 = arith.mulf %496, %497 : vector<8x32xf32>
    %499 = vector.broadcast %16 : vector<1x32xf32> to vector<8x32xf32>
    %500 = arith.mulf %496, %499 : vector<8x32xf32>
    %501 = vector.broadcast %24 : vector<1x32xf32> to vector<8x32xf32>
    %502 = arith.mulf %496, %501 : vector<8x32xf32>
    %503 = vector.broadcast %32 : vector<1x32xf32> to vector<8x32xf32>
    %504 = arith.mulf %496, %503 : vector<8x32xf32>
    %505 = tpu.concatenate %498, %500, %502, %504 in 0 : vector<8x32xf32>, vector<8x32xf32>, vector<8x32xf32>, vector<8x32xf32> -> vector<32x32xf32>
    %cst_241 = arith.constant dense<0.000000e+00> : vector<32x16xf32>
    %506 = tpu.matmul %505, %491, %cst_241 {dimension_numbers = #tpu.dot_dimension_numbers<[1], [1], [0], [0], [0, 0, 1, 0], [], []>} : vector<32x32xf32>, vector<16x32xf32>, vector<32x16xf32> -> vector<32x16xf32>
    %507 = vector.broadcast %34 : vector<1x16xf32> to vector<32x16xf32>
    %508 = arith.addf %506, %507 : vector<32x16xf32>
    %cst_242 = arith.constant dense<0xFF800000> : vector<32xf32>
    %509 = vector.multi_reduction <maximumf>, %508, %cst_242 [1] : vector<32x16xf32> to vector<32xf32>
    %510 = vector.shape_cast %509 : vector<32xf32> to vector<32x1xf32>
    %511 = vector.broadcast %510 : vector<32x1xf32> to vector<32x16xf32>
    %512 = arith.subf %508, %511 : vector<32x16xf32>
    %513 = math.exp %512 : vector<32x16xf32>
    %cst_243 = arith.constant dense<0.000000e+00> : vector<32xf32>
    %514 = vector.multi_reduction <add>, %513, %cst_243 [1] : vector<32x16xf32> to vector<32xf32>
    %515 = vector.shape_cast %514 : vector<32xf32> to vector<32x1xf32>
    %516 = tpu.reciprocal %515 {approx = true} : vector<32x1xf32> -> vector<32x1xf32>
    %517 = vector.broadcast %516 : vector<32x1xf32> to vector<32x16xf32>
    %518 = arith.mulf %513, %517 : vector<32x16xf32>
    %cst_244 = arith.constant dense<0.000000e+00> : vector<32x32xf32>
    %519 = tpu.matmul %518, %494, %cst_244 {dimension_numbers = #tpu.dot_dimension_numbers<[1], [0], [0], [1], [0, 0, 1, 1], [], []>} : vector<32x16xf32>, vector<16x32xf32>, vector<32x32xf32> -> vector<32x32xf32>
    %520 = vector.extract_strided_slice %519 {offsets = [0, 0], sizes = [8, 32], strides = [1, 1]} : vector<32x32xf32> to vector<8x32xf32>
    %521 = vector.broadcast %8 : vector<1x32xf32> to vector<8x32xf32>
    %522 = arith.mulf %520, %521 : vector<8x32xf32>
    %523 = vector.extract_strided_slice %519 {offsets = [8, 0], sizes = [8, 32], strides = [1, 1]} : vector<32x32xf32> to vector<8x32xf32>
    %524 = vector.broadcast %16 : vector<1x32xf32> to vector<8x32xf32>
    %525 = arith.mulf %523, %524 : vector<8x32xf32>
    %526 = arith.addf %522, %525 : vector<8x32xf32>
    %527 = vector.extract_strided_slice %519 {offsets = [16, 0], sizes = [8, 32], strides = [1, 1]} : vector<32x32xf32> to vector<8x32xf32>
    %528 = vector.broadcast %24 : vector<1x32xf32> to vector<8x32xf32>
    %529 = arith.mulf %527, %528 : vector<8x32xf32>
    %530 = arith.addf %526, %529 : vector<8x32xf32>
    %531 = vector.extract_strided_slice %519 {offsets = [24, 0], sizes = [8, 32], strides = [1, 1]} : vector<32x32xf32> to vector<8x32xf32>
    %532 = vector.broadcast %32 : vector<1x32xf32> to vector<8x32xf32>
    %533 = arith.mulf %531, %532 : vector<8x32xf32>
    %534 = arith.addf %530, %533 : vector<8x32xf32>
    %cst_245 = arith.constant dense<0.000000e+00> : vector<8x32xf32>
    %535 = tpu.matmul %534, %387, %cst_245 {dimension_numbers = #tpu.dot_dimension_numbers<[1], [0], [0], [1], [0, 0, 1, 1], [], []>} : vector<8x32xf32>, vector<32x32xf32>, vector<8x32xf32> -> vector<8x32xf32>
    %536 = vector.broadcast %365 : vector<1x32xf32> to vector<8x32xf32>
    %537 = arith.addf %535, %536 : vector<8x32xf32>
    %538 = arith.addf %537, %465 : vector<8x32xf32>
    %cst_246 = arith.constant dense<0.000000e+00> : vector<8xf32>
    %539 = vector.multi_reduction <add>, %538, %cst_246 [1] : vector<8x32xf32> to vector<8xf32>
    %540 = vector.shape_cast %539 : vector<8xf32> to vector<8x1xf32>
    %cst_247 = arith.constant 3.200000e+01 : f32
    %541 = vector.broadcast %cst_247 : f32 to vector<8x1xf32>
    %542 = arith.divf %540, %541 : vector<8x1xf32>
    %543 = vector.broadcast %542 : vector<8x1xf32> to vector<8x32xf32>
    %544 = arith.subf %538, %543 : vector<8x32xf32>
    %545 = arith.mulf %544, %544 : vector<8x32xf32>
    %cst_248 = arith.constant dense<0.000000e+00> : vector<8xf32>
    %546 = vector.multi_reduction <add>, %545, %cst_248 [1] : vector<8x32xf32> to vector<8xf32>
    %547 = vector.shape_cast %546 : vector<8xf32> to vector<8x1xf32>
    %cst_249 = arith.constant 3.200000e+01 : f32
    %548 = vector.broadcast %cst_249 : f32 to vector<8x1xf32>
    %549 = arith.divf %547, %548 : vector<8x1xf32>
    %cst_250 = arith.constant 9.99999997E-7 : f32
    %550 = vector.broadcast %cst_250 : f32 to vector<8x1xf32>
    %551 = arith.addf %549, %550 : vector<8x1xf32>
    %552 = math.rsqrt %551 : vector<8x1xf32>
    %553 = vector.broadcast %552 : vector<8x1xf32> to vector<8x32xf32>
    %554 = arith.mulf %544, %553 : vector<8x32xf32>
    %555 = vector.broadcast %367 : vector<1x32xf32> to vector<8x32xf32>
    %556 = arith.mulf %554, %555 : vector<8x32xf32>
    %557 = vector.broadcast %369 : vector<1x32xf32> to vector<8x32xf32>
    %558 = arith.addf %556, %557 : vector<8x32xf32>
    %cst_251 = arith.constant dense<0.000000e+00> : vector<8x64xf32>
    %559 = tpu.matmul %558, %389, %cst_251 {dimension_numbers = #tpu.dot_dimension_numbers<[1], [0], [0], [1], [0, 0, 1, 1], [], []>} : vector<8x32xf32>, vector<32x64xf32>, vector<8x64xf32> -> vector<8x64xf32>
    %560 = vector.broadcast %391 : vector<1x64xf32> to vector<8x64xf32>
    %561 = arith.addf %559, %560 : vector<8x64xf32>
    %cst_252 = arith.constant 0.000000e+00 : f32
    %562 = vector.broadcast %cst_252 : f32 to vector<8x64xf32>
    %563 = arith.maximumf %561, %562 : vector<8x64xf32>
    %cst_253 = arith.constant dense<0.000000e+00> : vector<8x32xf32>
    %564 = tpu.matmul %563, %393, %cst_253 {dimension_numbers = #tpu.dot_dimension_numbers<[1], [0], [0], [1], [0, 0, 1, 1], [], []>} : vector<8x64xf32>, vector<64x32xf32>, vector<8x32xf32> -> vector<8x32xf32>
    %565 = vector.broadcast %371 : vector<1x32xf32> to vector<8x32xf32>
    %566 = arith.addf %564, %565 : vector<8x32xf32>
    %567 = arith.addf %566, %538 : vector<8x32xf32>
    %c35 = arith.constant 35 : index
    %c0_254 = arith.constant 0 : index
    %c0_255 = arith.constant 0 : index
    %568 = vector.load %arg5[%c35, %c0_254, %c0_255] : memref<52x1x32xf32, #tpu.memory_space<vmem>>, vector<1x1x32xf32>
    %569 = vector.shape_cast %568 : vector<1x1x32xf32> to vector<1x32xf32>
    %c36 = arith.constant 36 : index
    %c0_256 = arith.constant 0 : index
    %c0_257 = arith.constant 0 : index
    %570 = vector.load %arg5[%c36, %c0_256, %c0_257] : memref<52x1x32xf32, #tpu.memory_space<vmem>>, vector<1x1x32xf32>
    %571 = vector.shape_cast %570 : vector<1x1x32xf32> to vector<1x32xf32>
    %c37 = arith.constant 37 : index
    %c0_258 = arith.constant 0 : index
    %c0_259 = arith.constant 0 : index
    %572 = vector.load %arg5[%c37, %c0_258, %c0_259] : memref<52x1x32xf32, #tpu.memory_space<vmem>>, vector<1x1x32xf32>
    %573 = vector.shape_cast %572 : vector<1x1x32xf32> to vector<1x32xf32>
    %c38 = arith.constant 38 : index
    %c0_260 = arith.constant 0 : index
    %c0_261 = arith.constant 0 : index
    %574 = vector.load %arg5[%c38, %c0_260, %c0_261] : memref<52x1x32xf32, #tpu.memory_space<vmem>>, vector<1x1x32xf32>
    %575 = vector.shape_cast %574 : vector<1x1x32xf32> to vector<1x32xf32>
    %c39 = arith.constant 39 : index
    %c0_262 = arith.constant 0 : index
    %c0_263 = arith.constant 0 : index
    %576 = vector.load %arg5[%c39, %c0_262, %c0_263] : memref<52x1x32xf32, #tpu.memory_space<vmem>>, vector<1x1x32xf32>
    %577 = vector.shape_cast %576 : vector<1x1x32xf32> to vector<1x32xf32>
    %c40 = arith.constant 40 : index
    %c0_264 = arith.constant 0 : index
    %c0_265 = arith.constant 0 : index
    %578 = vector.load %arg5[%c40, %c0_264, %c0_265] : memref<52x1x32xf32, #tpu.memory_space<vmem>>, vector<1x1x32xf32>
    %579 = vector.shape_cast %578 : vector<1x1x32xf32> to vector<1x32xf32>
    %c41 = arith.constant 41 : index
    %c0_266 = arith.constant 0 : index
    %c0_267 = arith.constant 0 : index
    %580 = vector.load %arg5[%c41, %c0_266, %c0_267] : memref<52x1x32xf32, #tpu.memory_space<vmem>>, vector<1x1x32xf32>
    %581 = vector.shape_cast %580 : vector<1x1x32xf32> to vector<1x32xf32>
    %c42 = arith.constant 42 : index
    %c0_268 = arith.constant 0 : index
    %c0_269 = arith.constant 0 : index
    %582 = vector.load %arg5[%c42, %c0_268, %c0_269] : memref<52x1x32xf32, #tpu.memory_space<vmem>>, vector<1x1x32xf32>
    %583 = vector.shape_cast %582 : vector<1x1x32xf32> to vector<1x32xf32>
    %c43 = arith.constant 43 : index
    %c0_270 = arith.constant 0 : index
    %c0_271 = arith.constant 0 : index
    %584 = vector.load %arg5[%c43, %c0_270, %c0_271] : memref<52x1x32xf32, #tpu.memory_space<vmem>>, vector<1x1x32xf32>
    %585 = vector.shape_cast %584 : vector<1x1x32xf32> to vector<1x32xf32>
    %c44 = arith.constant 44 : index
    %c0_272 = arith.constant 0 : index
    %c0_273 = arith.constant 0 : index
    %586 = vector.load %arg5[%c44, %c0_272, %c0_273] : memref<52x1x32xf32, #tpu.memory_space<vmem>>, vector<1x1x32xf32>
    %587 = vector.shape_cast %586 : vector<1x1x32xf32> to vector<1x32xf32>
    %c45 = arith.constant 45 : index
    %c0_274 = arith.constant 0 : index
    %c0_275 = arith.constant 0 : index
    %588 = vector.load %arg5[%c45, %c0_274, %c0_275] : memref<52x1x32xf32, #tpu.memory_space<vmem>>, vector<1x1x32xf32>
    %589 = vector.shape_cast %588 : vector<1x1x32xf32> to vector<1x32xf32>
    %c46 = arith.constant 46 : index
    %c0_276 = arith.constant 0 : index
    %c0_277 = arith.constant 0 : index
    %590 = vector.load %arg5[%c46, %c0_276, %c0_277] : memref<52x1x32xf32, #tpu.memory_space<vmem>>, vector<1x1x32xf32>
    %591 = vector.shape_cast %590 : vector<1x1x32xf32> to vector<1x32xf32>
    %c47 = arith.constant 47 : index
    %c0_278 = arith.constant 0 : index
    %c0_279 = arith.constant 0 : index
    %592 = vector.load %arg5[%c47, %c0_278, %c0_279] : memref<52x1x32xf32, #tpu.memory_space<vmem>>, vector<1x1x32xf32>
    %593 = vector.shape_cast %592 : vector<1x1x32xf32> to vector<1x32xf32>
    %c48 = arith.constant 48 : index
    %c0_280 = arith.constant 0 : index
    %c0_281 = arith.constant 0 : index
    %594 = vector.load %arg5[%c48, %c0_280, %c0_281] : memref<52x1x32xf32, #tpu.memory_space<vmem>>, vector<1x1x32xf32>
    %595 = vector.shape_cast %594 : vector<1x1x32xf32> to vector<1x32xf32>
    %c49 = arith.constant 49 : index
    %c0_282 = arith.constant 0 : index
    %c0_283 = arith.constant 0 : index
    %596 = vector.load %arg5[%c49, %c0_282, %c0_283] : memref<52x1x32xf32, #tpu.memory_space<vmem>>, vector<1x1x32xf32>
    %597 = vector.shape_cast %596 : vector<1x1x32xf32> to vector<1x32xf32>
    %c16_284 = arith.constant 16 : index
    %c0_285 = arith.constant 0 : index
    %c0_286 = arith.constant 0 : index
    %598 = vector.load %arg7[%c16_284, %c0_285, %c0_286] : memref<24x32x32xf32, #tpu.memory_space<vmem>>, vector<1x32x32xf32>
    %599 = vector.shape_cast %598 : vector<1x32x32xf32> to vector<32x32xf32>
    %c17_287 = arith.constant 17 : index
    %c0_288 = arith.constant 0 : index
    %c0_289 = arith.constant 0 : index
    %600 = vector.load %arg7[%c17_287, %c0_288, %c0_289] : memref<24x32x32xf32, #tpu.memory_space<vmem>>, vector<1x32x32xf32>
    %601 = vector.shape_cast %600 : vector<1x32x32xf32> to vector<32x32xf32>
    %c18_290 = arith.constant 18 : index
    %c0_291 = arith.constant 0 : index
    %c0_292 = arith.constant 0 : index
    %602 = vector.load %arg7[%c18_290, %c0_291, %c0_292] : memref<24x32x32xf32, #tpu.memory_space<vmem>>, vector<1x32x32xf32>
    %603 = vector.shape_cast %602 : vector<1x32x32xf32> to vector<32x32xf32>
    %c19_293 = arith.constant 19 : index
    %c0_294 = arith.constant 0 : index
    %c0_295 = arith.constant 0 : index
    %604 = vector.load %arg7[%c19_293, %c0_294, %c0_295] : memref<24x32x32xf32, #tpu.memory_space<vmem>>, vector<1x32x32xf32>
    %605 = vector.shape_cast %604 : vector<1x32x32xf32> to vector<32x32xf32>
    %c20_296 = arith.constant 20 : index
    %c0_297 = arith.constant 0 : index
    %c0_298 = arith.constant 0 : index
    %606 = vector.load %arg7[%c20_296, %c0_297, %c0_298] : memref<24x32x32xf32, #tpu.memory_space<vmem>>, vector<1x32x32xf32>
    %607 = vector.shape_cast %606 : vector<1x32x32xf32> to vector<32x32xf32>
    %c21_299 = arith.constant 21 : index
    %c0_300 = arith.constant 0 : index
    %c0_301 = arith.constant 0 : index
    %608 = vector.load %arg7[%c21_299, %c0_300, %c0_301] : memref<24x32x32xf32, #tpu.memory_space<vmem>>, vector<1x32x32xf32>
    %609 = vector.shape_cast %608 : vector<1x32x32xf32> to vector<32x32xf32>
    %c22_302 = arith.constant 22 : index
    %c0_303 = arith.constant 0 : index
    %c0_304 = arith.constant 0 : index
    %610 = vector.load %arg7[%c22_302, %c0_303, %c0_304] : memref<24x32x32xf32, #tpu.memory_space<vmem>>, vector<1x32x32xf32>
    %611 = vector.shape_cast %610 : vector<1x32x32xf32> to vector<32x32xf32>
    %c23_305 = arith.constant 23 : index
    %c0_306 = arith.constant 0 : index
    %c0_307 = arith.constant 0 : index
    %612 = vector.load %arg7[%c23_305, %c0_306, %c0_307] : memref<24x32x32xf32, #tpu.memory_space<vmem>>, vector<1x32x32xf32>
    %613 = vector.shape_cast %612 : vector<1x32x32xf32> to vector<32x32xf32>
    %c3_308 = arith.constant 3 : index
    %c0_309 = arith.constant 0 : index
    %c0_310 = arith.constant 0 : index
    %614 = vector.load %arg8[%c3_308, %c0_309, %c0_310] : memref<4x32x64xf32, #tpu.memory_space<vmem>>, vector<1x32x64xf32>
    %615 = vector.shape_cast %614 : vector<1x32x64xf32> to vector<32x64xf32>
    %c3_311 = arith.constant 3 : index
    %c0_312 = arith.constant 0 : index
    %c0_313 = arith.constant 0 : index
    %616 = vector.load %arg6[%c3_311, %c0_312, %c0_313] : memref<4x1x64xf32, #tpu.memory_space<vmem>>, vector<1x1x64xf32>
    %617 = vector.shape_cast %616 : vector<1x1x64xf32> to vector<1x64xf32>
    %c3_314 = arith.constant 3 : index
    %c0_315 = arith.constant 0 : index
    %c0_316 = arith.constant 0 : index
    %618 = vector.load %arg9[%c3_314, %c0_315, %c0_316] : memref<4x64x32xf32, #tpu.memory_space<vmem>>, vector<1x64x32xf32>
    %619 = vector.shape_cast %618 : vector<1x64x32xf32> to vector<64x32xf32>
    %cst_317 = arith.constant dense<0.000000e+00> : vector<8xf32>
    %620 = vector.multi_reduction <add>, %567, %cst_317 [1] : vector<8x32xf32> to vector<8xf32>
    %621 = vector.shape_cast %620 : vector<8xf32> to vector<8x1xf32>
    %cst_318 = arith.constant 3.200000e+01 : f32
    %622 = vector.broadcast %cst_318 : f32 to vector<8x1xf32>
    %623 = arith.divf %621, %622 : vector<8x1xf32>
    %624 = vector.broadcast %623 : vector<8x1xf32> to vector<8x32xf32>
    %625 = arith.subf %567, %624 : vector<8x32xf32>
    %626 = arith.mulf %625, %625 : vector<8x32xf32>
    %cst_319 = arith.constant dense<0.000000e+00> : vector<8xf32>
    %627 = vector.multi_reduction <add>, %626, %cst_319 [1] : vector<8x32xf32> to vector<8xf32>
    %628 = vector.shape_cast %627 : vector<8xf32> to vector<8x1xf32>
    %cst_320 = arith.constant 3.200000e+01 : f32
    %629 = vector.broadcast %cst_320 : f32 to vector<8x1xf32>
    %630 = arith.divf %628, %629 : vector<8x1xf32>
    %cst_321 = arith.constant 9.99999997E-7 : f32
    %631 = vector.broadcast %cst_321 : f32 to vector<8x1xf32>
    %632 = arith.addf %630, %631 : vector<8x1xf32>
    %633 = math.rsqrt %632 : vector<8x1xf32>
    %634 = vector.broadcast %633 : vector<8x1xf32> to vector<8x32xf32>
    %635 = arith.mulf %625, %634 : vector<8x32xf32>
    %636 = vector.broadcast %569 : vector<1x32xf32> to vector<8x32xf32>
    %637 = arith.mulf %635, %636 : vector<8x32xf32>
    %638 = vector.broadcast %571 : vector<1x32xf32> to vector<8x32xf32>
    %639 = arith.addf %637, %638 : vector<8x32xf32>
    %cst_322 = arith.constant dense<0.000000e+00> : vector<8x32xf32>
    %640 = tpu.matmul %639, %599, %cst_322 {dimension_numbers = #tpu.dot_dimension_numbers<[1], [0], [0], [1], [0, 0, 1, 1], [], []>} : vector<8x32xf32>, vector<32x32xf32>, vector<8x32xf32> -> vector<8x32xf32>
    %641 = vector.broadcast %573 : vector<1x32xf32> to vector<8x32xf32>
    %642 = arith.addf %640, %641 : vector<8x32xf32>
    %cst_323 = arith.constant dense<0.000000e+00> : vector<8x32xf32>
    %643 = tpu.matmul %639, %601, %cst_323 {dimension_numbers = #tpu.dot_dimension_numbers<[1], [0], [0], [1], [0, 0, 1, 1], [], []>} : vector<8x32xf32>, vector<32x32xf32>, vector<8x32xf32> -> vector<8x32xf32>
    %644 = vector.broadcast %575 : vector<1x32xf32> to vector<8x32xf32>
    %645 = arith.addf %643, %644 : vector<8x32xf32>
    %cst_324 = arith.constant dense<0.000000e+00> : vector<8x32xf32>
    %646 = tpu.matmul %639, %603, %cst_324 {dimension_numbers = #tpu.dot_dimension_numbers<[1], [0], [0], [1], [0, 0, 1, 1], [], []>} : vector<8x32xf32>, vector<32x32xf32>, vector<8x32xf32> -> vector<8x32xf32>
    %647 = vector.broadcast %577 : vector<1x32xf32> to vector<8x32xf32>
    %648 = arith.addf %646, %647 : vector<8x32xf32>
    %cst_325 = arith.constant 0.353553385 : f32
    %649 = vector.broadcast %cst_325 : f32 to vector<8x32xf32>
    %650 = arith.mulf %642, %649 : vector<8x32xf32>
    %651 = vector.broadcast %8 : vector<1x32xf32> to vector<8x32xf32>
    %652 = arith.mulf %650, %651 : vector<8x32xf32>
    %653 = vector.broadcast %16 : vector<1x32xf32> to vector<8x32xf32>
    %654 = arith.mulf %650, %653 : vector<8x32xf32>
    %655 = vector.broadcast %24 : vector<1x32xf32> to vector<8x32xf32>
    %656 = arith.mulf %650, %655 : vector<8x32xf32>
    %657 = vector.broadcast %32 : vector<1x32xf32> to vector<8x32xf32>
    %658 = arith.mulf %650, %657 : vector<8x32xf32>
    %659 = tpu.concatenate %652, %654, %656, %658 in 0 : vector<8x32xf32>, vector<8x32xf32>, vector<8x32xf32>, vector<8x32xf32> -> vector<32x32xf32>
    %cst_326 = arith.constant dense<0.000000e+00> : vector<32x8xf32>
    %660 = tpu.matmul %659, %645, %cst_326 {dimension_numbers = #tpu.dot_dimension_numbers<[1], [1], [0], [0], [0, 0, 1, 0], [], []>} : vector<32x32xf32>, vector<8x32xf32>, vector<32x8xf32> -> vector<32x8xf32>
    %661 = arith.addf %660, %341 : vector<32x8xf32>
    %cst_327 = arith.constant dense<0xFF800000> : vector<32xf32>
    %662 = vector.multi_reduction <maximumf>, %661, %cst_327 [1] : vector<32x8xf32> to vector<32xf32>
    %663 = vector.shape_cast %662 : vector<32xf32> to vector<32x1xf32>
    %664 = vector.broadcast %663 : vector<32x1xf32> to vector<32x8xf32>
    %665 = arith.subf %661, %664 : vector<32x8xf32>
    %666 = math.exp %665 : vector<32x8xf32>
    %cst_328 = arith.constant dense<0.000000e+00> : vector<32xf32>
    %667 = vector.multi_reduction <add>, %666, %cst_328 [1] : vector<32x8xf32> to vector<32xf32>
    %668 = vector.shape_cast %667 : vector<32xf32> to vector<32x1xf32>
    %669 = tpu.reciprocal %668 {approx = true} : vector<32x1xf32> -> vector<32x1xf32>
    %670 = vector.broadcast %669 : vector<32x1xf32> to vector<32x8xf32>
    %671 = arith.mulf %666, %670 : vector<32x8xf32>
    %cst_329 = arith.constant dense<0.000000e+00> : vector<32x32xf32>
    %672 = tpu.matmul %671, %648, %cst_329 {dimension_numbers = #tpu.dot_dimension_numbers<[1], [0], [0], [1], [0, 0, 1, 1], [], []>} : vector<32x8xf32>, vector<8x32xf32>, vector<32x32xf32> -> vector<32x32xf32>
    %673 = vector.extract_strided_slice %672 {offsets = [0, 0], sizes = [8, 32], strides = [1, 1]} : vector<32x32xf32> to vector<8x32xf32>
    %674 = vector.broadcast %8 : vector<1x32xf32> to vector<8x32xf32>
    %675 = arith.mulf %673, %674 : vector<8x32xf32>
    %676 = vector.extract_strided_slice %672 {offsets = [8, 0], sizes = [8, 32], strides = [1, 1]} : vector<32x32xf32> to vector<8x32xf32>
    %677 = vector.broadcast %16 : vector<1x32xf32> to vector<8x32xf32>
    %678 = arith.mulf %676, %677 : vector<8x32xf32>
    %679 = arith.addf %675, %678 : vector<8x32xf32>
    %680 = vector.extract_strided_slice %672 {offsets = [16, 0], sizes = [8, 32], strides = [1, 1]} : vector<32x32xf32> to vector<8x32xf32>
    %681 = vector.broadcast %24 : vector<1x32xf32> to vector<8x32xf32>
    %682 = arith.mulf %680, %681 : vector<8x32xf32>
    %683 = arith.addf %679, %682 : vector<8x32xf32>
    %684 = vector.extract_strided_slice %672 {offsets = [24, 0], sizes = [8, 32], strides = [1, 1]} : vector<32x32xf32> to vector<8x32xf32>
    %685 = vector.broadcast %32 : vector<1x32xf32> to vector<8x32xf32>
    %686 = arith.mulf %684, %685 : vector<8x32xf32>
    %687 = arith.addf %683, %686 : vector<8x32xf32>
    %cst_330 = arith.constant dense<0.000000e+00> : vector<8x32xf32>
    %688 = tpu.matmul %687, %605, %cst_330 {dimension_numbers = #tpu.dot_dimension_numbers<[1], [0], [0], [1], [0, 0, 1, 1], [], []>} : vector<8x32xf32>, vector<32x32xf32>, vector<8x32xf32> -> vector<8x32xf32>
    %689 = vector.broadcast %579 : vector<1x32xf32> to vector<8x32xf32>
    %690 = arith.addf %688, %689 : vector<8x32xf32>
    %691 = arith.addf %690, %567 : vector<8x32xf32>
    %cst_331 = arith.constant dense<0.000000e+00> : vector<8xf32>
    %692 = vector.multi_reduction <add>, %691, %cst_331 [1] : vector<8x32xf32> to vector<8xf32>
    %693 = vector.shape_cast %692 : vector<8xf32> to vector<8x1xf32>
    %cst_332 = arith.constant 3.200000e+01 : f32
    %694 = vector.broadcast %cst_332 : f32 to vector<8x1xf32>
    %695 = arith.divf %693, %694 : vector<8x1xf32>
    %696 = vector.broadcast %695 : vector<8x1xf32> to vector<8x32xf32>
    %697 = arith.subf %691, %696 : vector<8x32xf32>
    %698 = arith.mulf %697, %697 : vector<8x32xf32>
    %cst_333 = arith.constant dense<0.000000e+00> : vector<8xf32>
    %699 = vector.multi_reduction <add>, %698, %cst_333 [1] : vector<8x32xf32> to vector<8xf32>
    %700 = vector.shape_cast %699 : vector<8xf32> to vector<8x1xf32>
    %cst_334 = arith.constant 3.200000e+01 : f32
    %701 = vector.broadcast %cst_334 : f32 to vector<8x1xf32>
    %702 = arith.divf %700, %701 : vector<8x1xf32>
    %cst_335 = arith.constant 9.99999997E-7 : f32
    %703 = vector.broadcast %cst_335 : f32 to vector<8x1xf32>
    %704 = arith.addf %702, %703 : vector<8x1xf32>
    %705 = math.rsqrt %704 : vector<8x1xf32>
    %706 = vector.broadcast %705 : vector<8x1xf32> to vector<8x32xf32>
    %707 = arith.mulf %697, %706 : vector<8x32xf32>
    %708 = vector.broadcast %581 : vector<1x32xf32> to vector<8x32xf32>
    %709 = arith.mulf %707, %708 : vector<8x32xf32>
    %710 = vector.broadcast %583 : vector<1x32xf32> to vector<8x32xf32>
    %711 = arith.addf %709, %710 : vector<8x32xf32>
    %cst_336 = arith.constant dense<0.000000e+00> : vector<8x32xf32>
    %712 = tpu.matmul %711, %607, %cst_336 {dimension_numbers = #tpu.dot_dimension_numbers<[1], [0], [0], [1], [0, 0, 1, 1], [], []>} : vector<8x32xf32>, vector<32x32xf32>, vector<8x32xf32> -> vector<8x32xf32>
    %713 = vector.broadcast %585 : vector<1x32xf32> to vector<8x32xf32>
    %714 = arith.addf %712, %713 : vector<8x32xf32>
    %cst_337 = arith.constant dense<0.000000e+00> : vector<16x32xf32>
    %715 = tpu.matmul %330, %609, %cst_337 {dimension_numbers = #tpu.dot_dimension_numbers<[1], [0], [0], [1], [0, 0, 1, 1], [], []>} : vector<16x32xf32>, vector<32x32xf32>, vector<16x32xf32> -> vector<16x32xf32>
    %716 = vector.broadcast %587 : vector<1x32xf32> to vector<16x32xf32>
    %717 = arith.addf %715, %716 : vector<16x32xf32>
    %cst_338 = arith.constant dense<0.000000e+00> : vector<16x32xf32>
    %718 = tpu.matmul %330, %611, %cst_338 {dimension_numbers = #tpu.dot_dimension_numbers<[1], [0], [0], [1], [0, 0, 1, 1], [], []>} : vector<16x32xf32>, vector<32x32xf32>, vector<16x32xf32> -> vector<16x32xf32>
    %719 = vector.broadcast %589 : vector<1x32xf32> to vector<16x32xf32>
    %720 = arith.addf %718, %719 : vector<16x32xf32>
    %cst_339 = arith.constant 0.353553385 : f32
    %721 = vector.broadcast %cst_339 : f32 to vector<8x32xf32>
    %722 = arith.mulf %714, %721 : vector<8x32xf32>
    %723 = vector.broadcast %8 : vector<1x32xf32> to vector<8x32xf32>
    %724 = arith.mulf %722, %723 : vector<8x32xf32>
    %725 = vector.broadcast %16 : vector<1x32xf32> to vector<8x32xf32>
    %726 = arith.mulf %722, %725 : vector<8x32xf32>
    %727 = vector.broadcast %24 : vector<1x32xf32> to vector<8x32xf32>
    %728 = arith.mulf %722, %727 : vector<8x32xf32>
    %729 = vector.broadcast %32 : vector<1x32xf32> to vector<8x32xf32>
    %730 = arith.mulf %722, %729 : vector<8x32xf32>
    %731 = tpu.concatenate %724, %726, %728, %730 in 0 : vector<8x32xf32>, vector<8x32xf32>, vector<8x32xf32>, vector<8x32xf32> -> vector<32x32xf32>
    %cst_340 = arith.constant dense<0.000000e+00> : vector<32x16xf32>
    %732 = tpu.matmul %731, %717, %cst_340 {dimension_numbers = #tpu.dot_dimension_numbers<[1], [1], [0], [0], [0, 0, 1, 0], [], []>} : vector<32x32xf32>, vector<16x32xf32>, vector<32x16xf32> -> vector<32x16xf32>
    %733 = vector.broadcast %34 : vector<1x16xf32> to vector<32x16xf32>
    %734 = arith.addf %732, %733 : vector<32x16xf32>
    %cst_341 = arith.constant dense<0xFF800000> : vector<32xf32>
    %735 = vector.multi_reduction <maximumf>, %734, %cst_341 [1] : vector<32x16xf32> to vector<32xf32>
    %736 = vector.shape_cast %735 : vector<32xf32> to vector<32x1xf32>
    %737 = vector.broadcast %736 : vector<32x1xf32> to vector<32x16xf32>
    %738 = arith.subf %734, %737 : vector<32x16xf32>
    %739 = math.exp %738 : vector<32x16xf32>
    %cst_342 = arith.constant dense<0.000000e+00> : vector<32xf32>
    %740 = vector.multi_reduction <add>, %739, %cst_342 [1] : vector<32x16xf32> to vector<32xf32>
    %741 = vector.shape_cast %740 : vector<32xf32> to vector<32x1xf32>
    %742 = tpu.reciprocal %741 {approx = true} : vector<32x1xf32> -> vector<32x1xf32>
    %743 = vector.broadcast %742 : vector<32x1xf32> to vector<32x16xf32>
    %744 = arith.mulf %739, %743 : vector<32x16xf32>
    %cst_343 = arith.constant dense<0.000000e+00> : vector<32x32xf32>
    %745 = tpu.matmul %744, %720, %cst_343 {dimension_numbers = #tpu.dot_dimension_numbers<[1], [0], [0], [1], [0, 0, 1, 1], [], []>} : vector<32x16xf32>, vector<16x32xf32>, vector<32x32xf32> -> vector<32x32xf32>
    %746 = vector.extract_strided_slice %745 {offsets = [0, 0], sizes = [8, 32], strides = [1, 1]} : vector<32x32xf32> to vector<8x32xf32>
    %747 = vector.broadcast %8 : vector<1x32xf32> to vector<8x32xf32>
    %748 = arith.mulf %746, %747 : vector<8x32xf32>
    %749 = vector.extract_strided_slice %745 {offsets = [8, 0], sizes = [8, 32], strides = [1, 1]} : vector<32x32xf32> to vector<8x32xf32>
    %750 = vector.broadcast %16 : vector<1x32xf32> to vector<8x32xf32>
    %751 = arith.mulf %749, %750 : vector<8x32xf32>
    %752 = arith.addf %748, %751 : vector<8x32xf32>
    %753 = vector.extract_strided_slice %745 {offsets = [16, 0], sizes = [8, 32], strides = [1, 1]} : vector<32x32xf32> to vector<8x32xf32>
    %754 = vector.broadcast %24 : vector<1x32xf32> to vector<8x32xf32>
    %755 = arith.mulf %753, %754 : vector<8x32xf32>
    %756 = arith.addf %752, %755 : vector<8x32xf32>
    %757 = vector.extract_strided_slice %745 {offsets = [24, 0], sizes = [8, 32], strides = [1, 1]} : vector<32x32xf32> to vector<8x32xf32>
    %758 = vector.broadcast %32 : vector<1x32xf32> to vector<8x32xf32>
    %759 = arith.mulf %757, %758 : vector<8x32xf32>
    %760 = arith.addf %756, %759 : vector<8x32xf32>
    %cst_344 = arith.constant dense<0.000000e+00> : vector<8x32xf32>
    %761 = tpu.matmul %760, %613, %cst_344 {dimension_numbers = #tpu.dot_dimension_numbers<[1], [0], [0], [1], [0, 0, 1, 1], [], []>} : vector<8x32xf32>, vector<32x32xf32>, vector<8x32xf32> -> vector<8x32xf32>
    %762 = vector.broadcast %591 : vector<1x32xf32> to vector<8x32xf32>
    %763 = arith.addf %761, %762 : vector<8x32xf32>
    %764 = arith.addf %763, %691 : vector<8x32xf32>
    %cst_345 = arith.constant dense<0.000000e+00> : vector<8xf32>
    %765 = vector.multi_reduction <add>, %764, %cst_345 [1] : vector<8x32xf32> to vector<8xf32>
    %766 = vector.shape_cast %765 : vector<8xf32> to vector<8x1xf32>
    %cst_346 = arith.constant 3.200000e+01 : f32
    %767 = vector.broadcast %cst_346 : f32 to vector<8x1xf32>
    %768 = arith.divf %766, %767 : vector<8x1xf32>
    %769 = vector.broadcast %768 : vector<8x1xf32> to vector<8x32xf32>
    %770 = arith.subf %764, %769 : vector<8x32xf32>
    %771 = arith.mulf %770, %770 : vector<8x32xf32>
    %cst_347 = arith.constant dense<0.000000e+00> : vector<8xf32>
    %772 = vector.multi_reduction <add>, %771, %cst_347 [1] : vector<8x32xf32> to vector<8xf32>
    %773 = vector.shape_cast %772 : vector<8xf32> to vector<8x1xf32>
    %cst_348 = arith.constant 3.200000e+01 : f32
    %774 = vector.broadcast %cst_348 : f32 to vector<8x1xf32>
    %775 = arith.divf %773, %774 : vector<8x1xf32>
    %cst_349 = arith.constant 9.99999997E-7 : f32
    %776 = vector.broadcast %cst_349 : f32 to vector<8x1xf32>
    %777 = arith.addf %775, %776 : vector<8x1xf32>
    %778 = math.rsqrt %777 : vector<8x1xf32>
    %779 = vector.broadcast %778 : vector<8x1xf32> to vector<8x32xf32>
    %780 = arith.mulf %770, %779 : vector<8x32xf32>
    %781 = vector.broadcast %593 : vector<1x32xf32> to vector<8x32xf32>
    %782 = arith.mulf %780, %781 : vector<8x32xf32>
    %783 = vector.broadcast %595 : vector<1x32xf32> to vector<8x32xf32>
    %784 = arith.addf %782, %783 : vector<8x32xf32>
    %cst_350 = arith.constant dense<0.000000e+00> : vector<8x64xf32>
    %785 = tpu.matmul %784, %615, %cst_350 {dimension_numbers = #tpu.dot_dimension_numbers<[1], [0], [0], [1], [0, 0, 1, 1], [], []>} : vector<8x32xf32>, vector<32x64xf32>, vector<8x64xf32> -> vector<8x64xf32>
    %786 = vector.broadcast %617 : vector<1x64xf32> to vector<8x64xf32>
    %787 = arith.addf %785, %786 : vector<8x64xf32>
    %cst_351 = arith.constant 0.000000e+00 : f32
    %788 = vector.broadcast %cst_351 : f32 to vector<8x64xf32>
    %789 = arith.maximumf %787, %788 : vector<8x64xf32>
    %cst_352 = arith.constant dense<0.000000e+00> : vector<8x32xf32>
    %790 = tpu.matmul %789, %619, %cst_352 {dimension_numbers = #tpu.dot_dimension_numbers<[1], [0], [0], [1], [0, 0, 1, 1], [], []>} : vector<8x64xf32>, vector<64x32xf32>, vector<8x32xf32> -> vector<8x32xf32>
    %791 = vector.broadcast %597 : vector<1x32xf32> to vector<8x32xf32>
    %792 = arith.addf %790, %791 : vector<8x32xf32>
    %793 = arith.addf %792, %764 : vector<8x32xf32>
    %c50 = arith.constant 50 : index
    %c0_353 = arith.constant 0 : index
    %c0_354 = arith.constant 0 : index
    %794 = vector.load %arg5[%c50, %c0_353, %c0_354] : memref<52x1x32xf32, #tpu.memory_space<vmem>>, vector<1x1x32xf32>
    %795 = vector.shape_cast %794 : vector<1x1x32xf32> to vector<1x32xf32>
    %c51 = arith.constant 51 : index
    %c0_355 = arith.constant 0 : index
    %c0_356 = arith.constant 0 : index
    %796 = vector.load %arg5[%c51, %c0_355, %c0_356] : memref<52x1x32xf32, #tpu.memory_space<vmem>>, vector<1x1x32xf32>
    %797 = vector.shape_cast %796 : vector<1x1x32xf32> to vector<1x32xf32>
    %cst_357 = arith.constant dense<0.000000e+00> : vector<8xf32>
    %798 = vector.multi_reduction <add>, %793, %cst_357 [1] : vector<8x32xf32> to vector<8xf32>
    %799 = vector.shape_cast %798 : vector<8xf32> to vector<8x1xf32>
    %cst_358 = arith.constant 3.200000e+01 : f32
    %800 = vector.broadcast %cst_358 : f32 to vector<8x1xf32>
    %801 = arith.divf %799, %800 : vector<8x1xf32>
    %802 = vector.broadcast %801 : vector<8x1xf32> to vector<8x32xf32>
    %803 = arith.subf %793, %802 : vector<8x32xf32>
    %804 = arith.mulf %803, %803 : vector<8x32xf32>
    %cst_359 = arith.constant dense<0.000000e+00> : vector<8xf32>
    %805 = vector.multi_reduction <add>, %804, %cst_359 [1] : vector<8x32xf32> to vector<8xf32>
    %806 = vector.shape_cast %805 : vector<8xf32> to vector<8x1xf32>
    %cst_360 = arith.constant 3.200000e+01 : f32
    %807 = vector.broadcast %cst_360 : f32 to vector<8x1xf32>
    %808 = arith.divf %806, %807 : vector<8x1xf32>
    %cst_361 = arith.constant 9.99999997E-7 : f32
    %809 = vector.broadcast %cst_361 : f32 to vector<8x1xf32>
    %810 = arith.addf %808, %809 : vector<8x1xf32>
    %811 = math.rsqrt %810 : vector<8x1xf32>
    %812 = vector.broadcast %811 : vector<8x1xf32> to vector<8x32xf32>
    %813 = arith.mulf %803, %812 : vector<8x32xf32>
    %814 = vector.broadcast %795 : vector<1x32xf32> to vector<8x32xf32>
    %815 = arith.mulf %813, %814 : vector<8x32xf32>
    %816 = vector.broadcast %797 : vector<1x32xf32> to vector<8x32xf32>
    %817 = arith.addf %815, %816 : vector<8x32xf32>
    %c0_362 = arith.constant 0 : index
    %c0_363 = arith.constant 0 : index
    %818 = vector.load %arg10[%c0_362, %c0_363] : memref<32x128xf32, #tpu.memory_space<vmem>>, vector<32x128xf32>
    %cst_364 = arith.constant dense<0.000000e+00> : vector<8x128xf32>
    %819 = tpu.matmul %817, %818, %cst_364 {dimension_numbers = #tpu.dot_dimension_numbers<[1], [0], [0], [1], [0, 0, 1, 1], [], []>} : vector<8x32xf32>, vector<32x128xf32>, vector<8x128xf32> -> vector<8x128xf32>
    %820 = tpu.iota {dimensions = array<i32: 1>} : vector<1x128xi32>
    %c0_i32_365 = arith.constant 0 : i32
    %821 = vector.broadcast %c0_i32_365 : i32 to vector<1x128xi32>
    %822 = arith.cmpi eq, %820, %821 : vector<1x128xi32>
    %c41_i32 = arith.constant 41 : i32
    %823 = vector.broadcast %c41_i32 : i32 to vector<1x128xi32>
    %824 = arith.cmpi sge, %820, %823 : vector<1x128xi32>
    %825 = arith.ori %822, %824 : vector<1x128xi1>
    %cst_366 = arith.constant -1.000000e+09 : f32
    %cst_367 = arith.constant 0.000000e+00 : f32
    %826 = vector.broadcast %cst_366 : f32 to vector<1x128xf32>
    %827 = vector.broadcast %cst_367 : f32 to vector<1x128xf32>
    %828 = arith.select %825, %826, %827 : vector<1x128xi1>, vector<1x128xf32>
    %829 = vector.broadcast %828 : vector<1x128xf32> to vector<8x128xf32>
    %830 = arith.addf %819, %829 : vector<8x128xf32>
    %cst_368 = arith.constant dense<0xFF800000> : vector<8xf32>
    %831 = vector.multi_reduction <maximumf>, %830, %cst_368 [1] : vector<8x128xf32> to vector<8xf32>
    %832 = vector.shape_cast %831 : vector<8xf32> to vector<8x1xf32>
    %833 = vector.broadcast %832 : vector<8x1xf32> to vector<8x128xf32>
    %834 = arith.subf %830, %833 : vector<8x128xf32>
    %835 = math.exp %834 : vector<8x128xf32>
    %cst_369 = arith.constant dense<0.000000e+00> : vector<8xf32>
    %836 = vector.multi_reduction <add>, %835, %cst_369 [1] : vector<8x128xf32> to vector<8xf32>
    %837 = vector.shape_cast %836 : vector<8xf32> to vector<8x1xf32>
    %838 = math.log %837 : vector<8x1xf32>
    %839 = arith.addf %838, %832 : vector<8x1xf32>
    %840 = vector.broadcast %839 : vector<8x1xf32> to vector<8x128xf32>
    %841 = arith.subf %830, %840 : vector<8x128xf32>
    %c0_370 = arith.constant 0 : index
    %c0_371 = arith.constant 0 : index
    %c0_372 = arith.constant 0 : index
    %842 = vector.load %arg11[%c0_370, %c0_371, %c0_372] : memref<1x8x128xf32, #tpu.memory_space<vmem>>, vector<1x8x128xf32>
    %843 = vector.shape_cast %842 : vector<1x8x128xf32> to vector<8x128xf32>
    %844 = vector.shape_cast %841 : vector<8x128xf32> to vector<1x8x128xf32>
    tpu.vector_store %arg11[%c0_370, %c0_371, %c0_372], %844 {strides = array<i32>} : memref<1x8x128xf32, #tpu.memory_space<vmem>>, vector<1x8x128xf32>,
    return
  }
  func.func @transform_0(%arg0: i32) -> (i32, i32, i32) {
    %c0_i32 = arith.constant 0 : i32
    %c0_i32_0 = arith.constant 0 : i32
    %c0_i32_1 = arith.constant 0 : i32
    return %arg0, %c0_i32, %c0_i32_0 : i32, i32, i32
  }
  func.func @transform_1(%arg0: i32) -> (i32, i32, i32) {
    %c0_i32 = arith.constant 0 : i32
    %c0_i32_0 = arith.constant 0 : i32
    %c0_i32_1 = arith.constant 0 : i32
    return %arg0, %c0_i32, %c0_i32_0 : i32, i32, i32
  }
  func.func @transform_2(%arg0: i32) -> (i32, i32, i32) {
    %c0_i32 = arith.constant 0 : i32
    %c0_i32_0 = arith.constant 0 : i32
    %c0_i32_1 = arith.constant 0 : i32
    return %arg0, %c0_i32, %c0_i32_0 : i32, i32, i32
  }
  func.func @transform_3(%arg0: i32) -> (i32, i32, i32) {
    %c0_i32 = arith.constant 0 : i32
    %c0_i32_0 = arith.constant 0 : i32
    %c0_i32_1 = arith.constant 0 : i32
    return %arg0, %c0_i32, %c0_i32_0 : i32, i32, i32
  }
  func.func @transform_4(%arg0: i32) -> (i32, i32, i32) {
    %c0_i32 = arith.constant 0 : i32
    %c0_i32_0 = arith.constant 0 : i32
    %c0_i32_1 = arith.constant 0 : i32
    %c0_i32_2 = arith.constant 0 : i32
    return %c0_i32, %c0_i32_0, %c0_i32_1 : i32, i32, i32
  }
  func.func @transform_5(%arg0: i32) -> (i32, i32, i32) {
    %c0_i32 = arith.constant 0 : i32
    %c0_i32_0 = arith.constant 0 : i32
    %c0_i32_1 = arith.constant 0 : i32
    %c0_i32_2 = arith.constant 0 : i32
    return %c0_i32, %c0_i32_0, %c0_i32_1 : i32, i32, i32
  }
  func.func @transform_6(%arg0: i32) -> (i32, i32, i32) {
    %c0_i32 = arith.constant 0 : i32
    %c0_i32_0 = arith.constant 0 : i32
    %c0_i32_1 = arith.constant 0 : i32
    %c0_i32_2 = arith.constant 0 : i32
    return %c0_i32, %c0_i32_0, %c0_i32_1 : i32, i32, i32
  }
  func.func @transform_7(%arg0: i32) -> (i32, i32, i32) {
    %c0_i32 = arith.constant 0 : i32
    %c0_i32_0 = arith.constant 0 : i32
    %c0_i32_1 = arith.constant 0 : i32
    %c0_i32_2 = arith.constant 0 : i32
    return %c0_i32, %c0_i32_0, %c0_i32_1 : i32, i32, i32
  }
  func.func @transform_8(%arg0: i32) -> (i32, i32, i32) {
    %c0_i32 = arith.constant 0 : i32
    %c0_i32_0 = arith.constant 0 : i32
    %c0_i32_1 = arith.constant 0 : i32
    %c0_i32_2 = arith.constant 0 : i32
    return %c0_i32, %c0_i32_0, %c0_i32_1 : i32, i32, i32
  }
  func.func @transform_9(%arg0: i32) -> (i32, i32) {
    %c0_i32 = arith.constant 0 : i32
    %c0_i32_0 = arith.constant 0 : i32
    %c0_i32_1 = arith.constant 0 : i32
    return %c0_i32, %c0_i32_0 : i32, i32
  }
  func.func @transform_10(%arg0: i32) -> (i32, i32, i32) {
    %c0_i32 = arith.constant 0 : i32
    %c0_i32_0 = arith.constant 0 : i32
    %c0_i32_1 = arith.constant 0 : i32
    return %arg0, %c0_i32, %c0_i32_0 : i32, i32, i32
  }
}

</mosaic_0001>

<llo_original>
// kernel: transformer_forward.1
$region0: #{transformer_forward.1}
  #allocation0 [shape = 'u32[]', space=smem, size = 0x4, offset = 0x4, fixed_abs, tag = 'smem constant byte address 0x4 - core index']
  #allocation1 [shape = 'u32[144,128]{1,0:T(1,128)}', space=vmem, size = 0x12000, scoped, tag = 'internal scratch']
  %s0 = inlined_call_operand.vmem [shape: f32[2,16,32], index: 0, kind: input, shape index: {}]
  %s1 = inlined_call_operand.vmem [shape: f32[2,8,32], index: 1, kind: input, shape index: {}]
  %s2 = inlined_call_operand.vmem [shape: f32[2,1,16], index: 2, kind: input, shape index: {}]
  %s3 = inlined_call_operand.vmem [shape: f32[2,1,8], index: 3, kind: input, shape index: {}]
  %s4 = inlined_call_operand.vmem [shape: f32[52,1,32], index: 4, kind: input, shape index: {}]
  %s5 = inlined_call_operand.vmem [shape: f32[4,1,64], index: 5, kind: input, shape index: {}]
  %s6 = inlined_call_operand.vmem [shape: f32[24,32,32], index: 6, kind: input, shape index: {}]
  %s7 = inlined_call_operand.vmem [shape: f32[4,32,64], index: 7, kind: input, shape index: {}]
  %s8 = inlined_call_operand.vmem [shape: f32[4,64,32], index: 8, kind: input, shape index: {}]
  %s9 = inlined_call_operand.vmem [shape: f32[32,128], index: 9, kind: input, shape index: {}]
  %s10 = inlined_call_operand.hbm [shape: f32[2,8,128], index: 10, kind: output, shape index: {}]
  %s11 = sld [smem:[#allocation0]]
  $region73: #{transformer_forward.1} parent=0
    _
  %s13 = ssub.s32 1, %s11
  %s14 = scalar_select 0, %s13, %s11
  $region1: #{transformer_forward.1} parent=0
    #allocation2 [shape = 'u8[8192]{0}', space=vmem, size = 0x2000, scoped, tag = 'output window, operand 0']
    #allocation3 [shape = 's32[2]{0}', space=sflag, size = 0x8, scoped, tag = 'scoped memory for transformer_forward.1']
    %15 = vsyncpa [#allocation3], 0
    %s16 = scalar_lea.sflag [#allocation3], 1
    %17 = vsyncpa %s16, 0
    loop: start=0, step=1, limit=4
    $region2: #{transformer_forward.1} parent=1 // loop_pre_header
      _
    $region3: #{transformer_forward.1} parent=1 // loop_header
      %s19 = sphi 0, %s23
      %p20 = scmp.ge.s32.totalorder %s19, 4
      %s29 = sphi 0, %s31
      %s32 = sphi 0, %s29
      %s33 = sphi 0, %s32
      %s49 = sphi 0, %s33
      %s55 = sphi 0, %s57
      %s58 = sphi 0, %s55
      %s59 = sphi 0, %s58
      %s75 = sphi 0, %s59
      %s81 = sphi 0, %s83
      %s84 = sphi 0, %s81
      %s85 = sphi 0, %s84
      %s101 = sphi 0, %s85
      %s107 = sphi 0, %s109
      %s110 = sphi 0, %s107
      %s111 = sphi 0, %s110
      %s127 = sphi 0, %s111
      %s131 = sphi 0, %s131
      %s133 = sphi 0, %s131
      %s134 = sphi 0, %s133
      %s148 = sphi 0, %s134
      %s152 = sphi 0, %s152
      %s154 = sphi 0, %s152
      %s155 = sphi 0, %s154
      %s169 = sphi 0, %s155
      %s173 = sphi 0, %s173
      %s175 = sphi 0, %s173
      %s176 = sphi 0, %s175
      %s190 = sphi 0, %s176
      %s194 = sphi 0, %s194
      %s196 = sphi 0, %s194
      %s197 = sphi 0, %s196
      %s211 = sphi 0, %s197
      %s215 = sphi 0, %s215
      %s217 = sphi 0, %s215
      %s218 = sphi 0, %s217
      %s232 = sphi 0, %s218
      %s236 = sphi 0, %s236
      %s238 = sphi 0, %s236
      %s239 = sphi 0, %s238
      %s253 = sphi 0, %s239
      %s259 = sphi 0, %s261
      %s262 = sphi 0, %s259
      %s263 = sphi 0, %s262
      %s279 = sphi 0, %s263
    $region4: #{transformer_forward.1} parent=1 // loop_header_branch
      %22 = sbr.rel (%p20) target = $region8
    $region5: #{transformer_forward.1} parent=1 // loop_body
      %s24 = ssub.s32 %s19, 1
      %s25 = ssub.s32 %s19, 2
      %s26 = sadd.s32 %s19, 1
      %s27 = ssub.s32 %s19, %s26
      %p28 = scmp.eq.s32.totalorder %s27, 0
      %s30 = sadd.s32 %s29, 1
      %s31 = scalar_select %p28, %s29, %s30
      %p34 = pneg %p28
      %p35 = scmp.eq.s32.totalorder %s19, 1
      %p36 = por %p34, %p35
      %p37 = scmp.ne.s32.totalorder %s29, %s32
      %p38 = scmp.eq.s32.totalorder %s19, 0
      %p39 = por %p37, %p38
      %p40 = scmp.ne.s32.totalorder %s29, %s32
      %p41 = scmp.eq.s32.totalorder %s24, 1
      %p42 = por %p40, %p41
      %p43 = scmp.ne.s32.totalorder %s32, %s33
      %p44 = scmp.eq.s32.totalorder %s24, 0
      %p45 = por %p43, %p44
      %p46 = scmp.ne.s32.totalorder %s32, %s33
      %p47 = scmp.eq.s32.totalorder %s25, 1
      %p48 = por %p46, %p47
      %p50 = scmp.ne.s32.totalorder %s33, %s49
      %p51 = scmp.eq.s32.totalorder %s25, 0
      %p52 = por %p50, %p51
      %s53 = ssub.s32 %s19, %s26
      %p54 = scmp.eq.s32.totalorder %s53, 0
      %s56 = sadd.s32 %s55, 1
      %s57 = scalar_select %p54, %s55, %s56
      %p60 = pneg %p54
      %p61 = scmp.eq.s32.totalorder %s19, 1
      %p62 = por %p60, %p61
      %p63 = scmp.ne.s32.totalorder %s55, %s58
      %p64 = scmp.eq.s32.totalorder %s19, 0
      %p65 = por %p63, %p64
      %p66 = scmp.ne.s32.totalorder %s55, %s58
      %p67 = scmp.eq.s32.totalorder %s24, 1
      %p68 = por %p66, %p67
      %p69 = scmp.ne.s32.totalorder %s58, %s59
      %p70 = scmp.eq.s32.totalorder %s24, 0
      %p71 = por %p69, %p70
      %p72 = scmp.ne.s32.totalorder %s58, %s59
      %p73 = scmp.eq.s32.totalorder %s25, 1
      %p74 = por %p72, %p73
      %p76 = scmp.ne.s32.totalorder %s59, %s75
      %p77 = scmp.eq.s32.totalorder %s25, 0
      %p78 = por %p76, %p77
      %s79 = ssub.s32 %s19, %s26
      %p80 = scmp.eq.s32.totalorder %s79, 0
      %s82 = sadd.s32 %s81, 1
      %s83 = scalar_select %p80, %s81, %s82
      %p86 = pneg %p80
      %p87 = scmp.eq.s32.totalorder %s19, 1
      %p88 = por %p86, %p87
      %p89 = scmp.ne.s32.totalorder %s81, %s84
      %p90 = scmp.eq.s32.totalorder %s19, 0
      %p91 = por %p89, %p90
      %p92 = scmp.ne.s32.totalorder %s81, %s84
      %p93 = scmp.eq.s32.totalorder %s24, 1
      %p94 = por %p92, %p93
      %p95 = scmp.ne.s32.totalorder %s84, %s85
      %p96 = scmp.eq.s32.totalorder %s24, 0
      %p97 = por %p95, %p96
      %p98 = scmp.ne.s32.totalorder %s84, %s85
      %p99 = scmp.eq.s32.totalorder %s25, 1
      %p100 = por %p98, %p99
      %p102 = scmp.ne.s32.totalorder %s85, %s101
      %p103 = scmp.eq.s32.totalorder %s25, 0
      %p104 = por %p102, %p103
      %s105 = ssub.s32 %s19, %s26
      %p106 = scmp.eq.s32.totalorder %s105, 0
      %s108 = sadd.s32 %s107, 1
      %s109 = scalar_select %p106, %s107, %s108
      %p112 = pneg %p106
      %p113 = scmp.eq.s32.totalorder %s19, 1
      %p114 = por %p112, %p113
      %p115 = scmp.ne.s32.totalorder %s107, %s110
      %p116 = scmp.eq.s32.totalorder %s19, 0
      %p117 = por %p115, %p116
      %p118 = scmp.ne.s32.totalorder %s107, %s110
      %p119 = scmp.eq.s32.totalorder %s24, 1
      %p120 = por %p118, %p119
      %p121 = scmp.ne.s32.totalorder %s110, %s111
      %p122 = scmp.eq.s32.totalorder %s24, 0
      %p123 = por %p121, %p122
      %p124 = scmp.ne.s32.totalorder %s110, %s111
      %p125 = scmp.eq.s32.totalorder %s25, 1
      %p126 = por %p124, %p125
      %p128 = scmp.ne.s32.totalorder %s111, %s127
      %p129 = scmp.eq.s32.totalorder %s25, 0
      %p130 = por %p128, %p129
      %s132 = sadd.s32 %s131, 1
      %p135 = scmp.eq.s32.totalorder %s19, 1
      %p136 = scmp.ne.s32.totalorder %s131, %s133
      %p137 = scmp.eq.s32.totalorder %s19, 0
      %p138 = por %p136, %p137
      %p139 = scmp.ne.s32.totalorder %s131, %s133
      %p140 = scmp.eq.s32.totalorder %s24, 1
      %p141 = por %p139, %p140
      %p142 = scmp.ne.s32.totalorder %s133, %s134
      %p143 = scmp.eq.s32.totalorder %s24, 0
      %p144 = por %p142, %p143
      %p145 = scmp.ne.s32.totalorder %s133, %s134
      %p146 = scmp.eq.s32.totalorder %s25, 1
      %p147 = por %p145, %p146
      %p149 = scmp.ne.s32.totalorder %s134, %s148
      %p150 = scmp.eq.s32.totalorder %s25, 0
      %p151 = por %p149, %p150
      %s153 = sadd.s32 %s152, 1
      %p156 = scmp.eq.s32.totalorder %s19, 1
      %p157 = scmp.ne.s32.totalorder %s152, %s154
      %p158 = scmp.eq.s32.totalorder %s19, 0
      %p159 = por %p157, %p158
      %p160 = scmp.ne.s32.totalorder %s152, %s154
      %p161 = scmp.eq.s32.totalorder %s24, 1
      %p162 = por %p160, %p161
      %p163 = scmp.ne.s32.totalorder %s154, %s155
      %p164 = scmp.eq.s32.totalorder %s24, 0
      %p165 = por %p163, %p164
      %p166 = scmp.ne.s32.totalorder %s154, %s155
      %p167 = scmp.eq.s32.totalorder %s25, 1
      %p168 = por %p166, %p167
      %p170 = scmp.ne.s32.totalorder %s155, %s169
      %p171 = scmp.eq.s32.totalorder %s25, 0
      %p172 = por %p170, %p171
      %s174 = sadd.s32 %s173, 1
      %p177 = scmp.eq.s32.totalorder %s19, 1
      %p178 = scmp.ne.s32.totalorder %s173, %s175
      %p179 = scmp.eq.s32.totalorder %s19, 0
      %p180 = por %p178, %p179
      %p181 = scmp.ne.s32.totalorder %s173, %s175
      %p182 = scmp.eq.s32.totalorder %s24, 1
      %p183 = por %p181, %p182
      %p184 = scmp.ne.s32.totalorder %s175, %s176
      %p185 = scmp.eq.s32.totalorder %s24, 0
      %p186 = por %p184, %p185
      %p187 = scmp.ne.s32.totalorder %s175, %s176
      %p188 = scmp.eq.s32.totalorder %s25, 1
      %p189 = por %p187, %p188
      %p191 = scmp.ne.s32.totalorder %s176, %s190
      %p192 = scmp.eq.s32.totalorder %s25, 0
      %p193 = por %p191, %p192
      %s195 = sadd.s32 %s194, 1
      %p198 = scmp.eq.s32.totalorder %s19, 1
      %p199 = scmp.ne.s32.totalorder %s194, %s196
      %p200 = scmp.eq.s32.totalorder %s19, 0
      %p201 = por %p199, %p200
      %p202 = scmp.ne.s32.totalorder %s194, %s196
      %p203 = scmp.eq.s32.totalorder %s24, 1
      %p204 = por %p202, %p203
      %p205 = scmp.ne.s32.totalorder %s196, %s197
      %p206 = scmp.eq.s32.totalorder %s24, 0
      %p207 = por %p205, %p206
      %p208 = scmp.ne.s32.totalorder %s196, %s197
      %p209 = scmp.eq.s32.totalorder %s25, 1
      %p210 = por %p208, %p209
      %p212 = scmp.ne.s32.totalorder %s197, %s211
      %p213 = scmp.eq.s32.totalorder %s25, 0
      %p214 = por %p212, %p213
      %s216 = sadd.s32 %s215, 1
      %p219 = scmp.eq.s32.totalorder %s19, 1
      %p220 = scmp.ne.s32.totalorder %s215, %s217
      %p221 = scmp.eq.s32.totalorder %s19, 0
      %p222 = por %p220, %p221
      %p223 = scmp.ne.s32.totalorder %s215, %s217
      %p224 = scmp.eq.s32.totalorder %s24, 1
      %p225 = por %p223, %p224
      %p226 = scmp.ne.s32.totalorder %s217, %s218
      %p227 = scmp.eq.s32.totalorder %s24, 0
      %p228 = por %p226, %p227
      %p229 = scmp.ne.s32.totalorder %s217, %s218
      %p230 = scmp.eq.s32.totalorder %s25, 1
      %p231 = por %p229, %p230
      %p233 = scmp.ne.s32.totalorder %s218, %s232
      %p234 = scmp.eq.s32.totalorder %s25, 0
      %p235 = por %p233, %p234
      %s237 = sadd.s32 %s236, 1
      %p240 = scmp.eq.s32.totalorder %s19, 1
      %p241 = scmp.ne.s32.totalorder %s236, %s238
      %p242 = scmp.eq.s32.totalorder %s19, 0
      %p243 = por %p241, %p242
      %p244 = scmp.ne.s32.totalorder %s236, %s238
      %p245 = scmp.eq.s32.totalorder %s24, 1
      %p246 = por %p244, %p245
      %p247 = scmp.ne.s32.totalorder %s238, %s239
      %p248 = scmp.eq.s32.totalorder %s24, 0
      %p249 = por %p247, %p248
      %p250 = scmp.ne.s32.totalorder %s238, %s239
      %p251 = scmp.eq.s32.totalorder %s25, 1
      %p252 = por %p250, %p251
      %p254 = scmp.ne.s32.totalorder %s239, %s253
      %p255 = scmp.eq.s32.totalorder %s25, 0
      %p256 = por %p254, %p255
      %s257 = ssub.s32 %s19, %s26
      %p258 = scmp.eq.s32.totalorder %s257, 0
      %s260 = sadd.s32 %s259, 1
      %s261 = scalar_select %p258, %s259, %s260
      %p264 = pneg %p258
      %p265 = scmp.eq.s32.totalorder %s19, 1
      %p266 = por %p264, %p265
      %p267 = scmp.ne.s32.totalorder %s259, %s262
      %p268 = scmp.eq.s32.totalorder %s19, 0
      %p269 = por %p267, %p268
      %p270 = scmp.ne.s32.totalorder %s259, %s262
      %p271 = scmp.eq.s32.totalorder %s24, 1
      %p272 = por %p270, %p271
      %p273 = scmp.ne.s32.totalorder %s262, %s263
      %p274 = scmp.eq.s32.totalorder %s24, 0
      %p275 = por %p273, %p274
      %p276 = scmp.ne.s32.totalorder %s262, %s263
      %p277 = scmp.eq.s32.totalorder %s25, 1
      %p278 = por %p276, %p277
      %p280 = scmp.ne.s32.totalorder %s263, %s279
      %p281 = scmp.eq.s32.totalorder %s25, 0
      %p282 = por %p280, %p281
      %p283 = scmp.le.s32.totalorder 1, %s19
      %p284 = scmp.lt.s32.totalorder %s19, 3
      %p285 = pnand %p283, %p284
      %p286 = pneg %p285
      // Predicated region
      $region9: #{transformer_forward.1} parent=5 // pred_check
        _
      $region10: #{transformer_forward.1} parent=5 // pred_check_branch
        %288 = sbr.rel (%p285) target = $region12
      $region11: #{transformer_forward.1} parent=5 // pred_region
        %s289 = ssub.s32 %s19, 1
        // Predicated region
        $region13: #{transformer_forward.1} parent=11 // pred_check
          %p290 = pneg %p144
        $region14: #{transformer_forward.1} parent=11 // pred_check_branch
          %292 = sbr.rel (%p290) target = $region16
        $region15: #{transformer_forward.1} parent=11 // pred_region
          _
        $region16: #{transformer_forward.1} parent=11 // pred_fallthru
          _
        // Predicated region
        $region17: #{transformer_forward.1} parent=11 // pred_check
          %p293 = pneg %p165
        $region18: #{transformer_forward.1} parent=11 // pred_check_branch
          %295 = sbr.rel (%p293) target = $region20
        $region19: #{transformer_forward.1} parent=11 // pred_region
          _
        $region20: #{transformer_forward.1} parent=11 // pred_fallthru
          _
        // Predicated region
        $region21: #{transformer_forward.1} parent=11 // pred_check
          %p296 = pneg %p186
        $region22: #{transformer_forward.1} parent=11 // pred_check_branch
          %298 = sbr.rel (%p296) target = $region24
        $region23: #{transformer_forward.1} parent=11 // pred_region
          _
        $region24: #{transformer_forward.1} parent=11 // pred_fallthru
          _
        // Predicated region
        $region25: #{transformer_forward.1} parent=11 // pred_check
          %p299 = pneg %p207
        $region26: #{transformer_forward.1} parent=11 // pred_check_branch
          %301 = sbr.rel (%p299) target = $region28
        $region27: #{transformer_forward.1} parent=11 // pred_region
          _
        $region28: #{transformer_forward.1} parent=11 // pred_fallthru
          _
        // Predicated region
        $region29: #{transformer_forward.1} parent=11 // pred_check
          %p302 = pneg %p228
        $region30: #{transformer_forward.1} parent=11 // pred_check_branch
          %304 = sbr.rel (%p302) target = $region32
        $region31: #{transformer_forward.1} parent=11 // pred_region
          _
        $region32: #{transformer_forward.1} parent=11 // pred_fallthru
          _
        // Predicated region
        $region33: #{transformer_forward.1} parent=11 // pred_check
          %p305 = pneg %p249
        $region34: #{transformer_forward.1} parent=11 // pred_check_branch
          %307 = sbr.rel (%p305) target = $region36
        $region35: #{transformer_forward.1} parent=11 // pred_region
          _
        $region36: #{transformer_forward.1} parent=11 // pred_fallthru
          _
      $region12: #{transformer_forward.1} parent=5 // pred_fallthru
        _
      %p308 = scmp.lt.s32.totalorder %s19, 2
      // Predicated region
      $region37: #{transformer_forward.1} parent=5 // pred_check
        %p309 = pneg %p308
      $region38: #{transformer_forward.1} parent=5 // pred_check_branch
        %311 = sbr.rel (%p309) target = $region40
      $region39: #{transformer_forward.1} parent=5 // pred_region
        // Predicated region
        $region41: #{transformer_forward.1} parent=39 // pred_check
          %p312 = pneg %p39
        $region42: #{transformer_forward.1} parent=39 // pred_check_branch
          %314 = sbr.rel (%p312) target = $region44
        $region43: #{transformer_forward.1} parent=39 // pred_region
          %p315 = scmp.lt.s32.totalorder %s19, 1
          %s316 = scalar_select %p315, %s19, 1
          %s317 = smul.addr %s316, 2
          %s318 = smul.addr %s317, 8
          %s319 = scalar_lea.vmem %s0, %s318
        $region44: #{transformer_forward.1} parent=39 // pred_fallthru
          _
        // Predicated region
        $region45: #{transformer_forward.1} parent=39 // pred_check
          %p320 = pneg %p65
        $region46: #{transformer_forward.1} parent=39 // pred_check_branch
          %322 = sbr.rel (%p320) target = $region48
        $region47: #{transformer_forward.1} parent=39 // pred_region
          %p323 = scmp.lt.s32.totalorder %s19, 1
          %s324 = scalar_select %p323, %s19, 1
          %s325 = smul.addr %s324, 8
          %s326 = scalar_lea.vmem %s1, %s325
        $region48: #{transformer_forward.1} parent=39 // pred_fallthru
          _
        // Predicated region
        $region49: #{transformer_forward.1} parent=39 // pred_check
          %p327 = pneg %p91
        $region50: #{transformer_forward.1} parent=39 // pred_check_branch
          %329 = sbr.rel (%p327) target = $region52
        $region51: #{transformer_forward.1} parent=39 // pred_region
          %p330 = scmp.lt.s32.totalorder %s19, 1
          %s331 = scalar_select %p330, %s19, 1
          %s332 = scalar_lea.vmem %s2, %s331
        $region52: #{transformer_forward.1} parent=39 // pred_fallthru
          _
        // Predicated region
        $region53: #{transformer_forward.1} parent=39 // pred_check
          %p333 = pneg %p117
        $region54: #{transformer_forward.1} parent=39 // pred_check_branch
          %335 = sbr.rel (%p333) target = $region56
        $region55: #{transformer_forward.1} parent=39 // pred_region
          %p336 = scmp.lt.s32.totalorder %s19, 1
          %s337 = scalar_select %p336, %s19, 1
          %s338 = scalar_lea.vmem %s3, %s337
        $region56: #{transformer_forward.1} parent=39 // pred_fallthru
          _
      $region40: #{transformer_forward.1} parent=5 // pred_fallthru
        _
      %p339 = scmp.le.s32.totalorder 1, %s19
      %p340 = scmp.lt.s32.totalorder %s19, 3
      %p341 = pnand %p339, %p340
      %p342 = pneg %p341
      // Predicated region
      $region57: #{transformer_forward.1} parent=5 // pred_check
        _
      $region58: #{transformer_forward.1} parent=5 // pred_check_branch
        %344 = sbr.rel (%p341) target = $region60
      $region59: #{transformer_forward.1} parent=5 // pred_region
        %s345 = ssub.s32 %s19, 1
        %p346 = scmp.lt.s32.totalorder %s24, 1
        %s347 = scalar_select %p346, %s24, 1
        %s348 = smul.addr %s347, 2
        %s349 = smul.addr %s348, 8
        %s350 = scalar_lea.vmem %s0, %s349
        %p351 = pneg %p45
        %p352 = pneg %p42
        %p353 = scmp.lt.s32.totalorder %s24, 1
        %s354 = scalar_select %p353, %s24, 1
        %s355 = smul.addr %s354, 8
        %s356 = scalar_lea.vmem %s1, %s355
        %p357 = pneg %p71
        %p358 = pneg %p68
        %p359 = scmp.lt.s32.totalorder %s24, 1
        %s360 = scalar_select %p359, %s24, 1
        %s361 = scalar_lea.vmem %s2, %s360
        %p362 = pneg %p97
        %p363 = pneg %p94
        %p364 = scmp.lt.s32.totalorder %s24, 1
        %s365 = scalar_select %p364, %s24, 1
        %s366 = scalar_lea.vmem %s3, %s365
        %p367 = pneg %p123
        %p368 = pneg %p120
        %p369 = pneg %p144
        %p370 = pneg %p141
        %p371 = pneg %p165
        %p372 = pneg %p162
        %p373 = pneg %p186
        %p374 = pneg %p183
        %p375 = pneg %p207
        %p376 = pneg %p204
        %p377 = pneg %p228
        %p378 = pneg %p225
        %p379 = pneg %p249
        %p380 = pneg %p246
        %p381 = pneg %p275
        %p382 = pneg %p272
        %s383 = sand.u32 %s262, 1
        %s384 = scalar_lea.sflag [#allocation3], %s383
        %s385 = sand.u32 %s262, 1
        %s386 = smul.addr %s385, 8
        %s387 = scalar_lea.vmem [#allocation2], %s386
        %p388 = scmp.lt.s32.totalorder %s24, 1
        %s389 = scalar_select %p388, %s24, 1
        %s390 = smul.addr %s389, 2
        %s391 = smul.addr %s390, 8
        %s392 = scalar_lea.vmem %s0, %s391
        %p393 = scmp.lt.s32.totalorder %s24, 1
        %s394 = scalar_select %p393, %s24, 1
        %s395 = smul.addr %s394, 8
        %s396 = scalar_lea.vmem %s1, %s395
        %p397 = scmp.lt.s32.totalorder %s24, 1
        %s398 = scalar_select %p397, %s24, 1
        %s399 = scalar_lea.vmem %s2, %s398
        %p400 = scmp.lt.s32.totalorder %s24, 1
        %s401 = scalar_select %p400, %s24, 1
        %s402 = scalar_lea.vmem %s3, %s401
        %v403 = vlaneseq
        %v404 = vand.u32 %v403, 127
        %vm405 = vcmp.ge.s32.totalorder %v404, 0
        %vm406 = vcmp.lt.s32.totalorder %v404, 8
        %vm407 = vmand %vm405, %vm406
        %v408 = vsel %vm407, 1.0, 0.0
        %vm409 = vcmp.ge.s32.totalorder %v404, 8
        %vm410 = vcmp.lt.s32.totalorder %v404, 16
        %vm411 = vmand %vm409, %vm410
        %v412 = vsel %vm411, 1.0, 0.0
        %vm413 = vcmp.ge.s32.totalorder %v404, 16
        %vm414 = vcmp.lt.s32.totalorder %v404, 24
        %vm415 = vmand %vm413, %vm414
        %v416 = vsel %vm415, 1.0, 0.0
        %vm417 = vcmp.ge.s32.totalorder %v404, 24
        %vm418 = vcmp.lt.s32.totalorder %v404, 32
        %vm419 = vmand %vm417, %vm418
        %v420 = vsel %vm419, 1.0, 0.0
        %v421 = vld [vmem:[%s399] sm:$0x1]
        %v422 = vld [vmem:[%s402] sm:$0x1]
        %v423 = vld [vmem:[%s392] sm:$0xff]
        %v424 = vld [vmem:[%s392 + $0x8] sm:$0xff]
        %v425 = vld [vmem:[%s4] sm:$0x1]
        %s426 = scalar_lea.vmem %s4, 1
        %v427 = vld [vmem:[%s426] sm:$0x1]
        %s428 = scalar_lea.vmem %s4, 2
        %v429 = vld [vmem:[%s428] sm:$0x1]
        %s430 = scalar_lea.vmem %s4, 3
        %v431 = vld [vmem:[%s430] sm:$0x1]
        %s432 = scalar_lea.vmem %s4, 4
        %v433 = vld [vmem:[%s432] sm:$0x1]
        %s434 = scalar_lea.vmem %s4, 5
        %v435 = vld [vmem:[%s434] sm:$0x1]
        %s436 = scalar_lea.vmem %s4, 6
        %v437 = vld [vmem:[%s436] sm:$0x1]
        %s438 = scalar_lea.vmem %s4, 7
        %v439 = vld [vmem:[%s438] sm:$0x1]
        %s440 = scalar_lea.vmem %s4, 8
        %v441 = vld [vmem:[%s440] sm:$0x1]
        %v442 = vld [vmem:[%s6] sm:$0xff]
        %v443 = vld [vmem:[%s6 + $0x8] sm:$0xff]
        %v444 = vld [vmem:[%s6 + $0x10] sm:$0xff]
        %v445 = vld [vmem:[%s6 + $0x18] sm:$0xff]
        %s446 = scalar_lea.vmem %s6, 32
        %v447 = vld [vmem:[%s446] sm:$0xff]
        %v448 = vld [vmem:[%s446 + $0x8] sm:$0xff]
        %v449 = vld [vmem:[%s446 + $0x10] sm:$0xff]
        %v450 = vld [vmem:[%s446 + $0x18] sm:$0xff]
        %s451 = scalar_lea.vmem %s6, 64
        %v452 = vld [vmem:[%s451] sm:$0xff]
        %v453 = vld [vmem:[%s451 + $0x8] sm:$0xff]
        %v454 = vld [vmem:[%s451 + $0x10] sm:$0xff]
        %v455 = vld [vmem:[%s451 + $0x18] sm:$0xff]
        %s456 = scalar_lea.vmem %s6, 96
        %v457 = vld [vmem:[%s456] sm:$0xff]
        %v458 = vld [vmem:[%s456 + $0x8] sm:$0xff]
        %v459 = vld [vmem:[%s456 + $0x10] sm:$0xff]
        %v460 = vld [vmem:[%s456 + $0x18] sm:$0xff]
        %v461 = vld [vmem:[%s7] sm:$0xff]
        %v462 = vld [vmem:[%s7 + $0x8] sm:$0xff]
        %v463 = vld [vmem:[%s7 + $0x10] sm:$0xff]
        %v464 = vld [vmem:[%s7 + $0x18] sm:$0xff]
        %v465 = vld [vmem:[%s5] sm:$0x1]
        %v466 = vld [vmem:[%s8] sm:$0xff]
        %v467 = vld [vmem:[%s8 + $0x8] sm:$0xff]
        %v468 = vld [vmem:[%s8 + $0x10] sm:$0xff]
        %v469 = vld [vmem:[%s8 + $0x18] sm:$0xff]
        %v470 = vld [vmem:[%s8 + $0x20] sm:$0xff]
        %v471 = vld [vmem:[%s8 + $0x28] sm:$0xff]
        %v472 = vld [vmem:[%s8 + $0x30] sm:$0xff]
        %v473 = vld [vmem:[%s8 + $0x38] sm:$0xff]
        %vm474 = vcmask 261120
        %v475 = vsel %vm474, %v423, 0.0
        %476 = vadd.xlane.f32.xlu0 %v475
        %v477 = vpop.xlane.xlu0 %476
        %v478 = vsel %vm474, %v424, 0.0
        %479 = vadd.xlane.f32.xlu0 %v478
        %v480 = vpop.xlane.xlu0 %479
        %v481 = vrcp.pop 32.0
        %v482 = vmul.f32 %v477, %v481
        %v483 = vmul.f32 %v480, %v481
        %v484 = vsub.f32 %v423, %v482
        %v485 = vsub.f32 %v424, %v483
        %v486 = vmul.f32 %v484, %v484
        %v487 = vmul.f32 %v485, %v485
        %v488 = vsel %vm474, %v486, 0.0
        %489 = vadd.xlane.f32.xlu0 %v488
        %v490 = vpop.xlane.xlu0 %489
        %v491 = vsel %vm474, %v487, 0.0
        %492 = vadd.xlane.f32.xlu0 %v491
        %v493 = vpop.xlane.xlu0 %492
        %v494 = vmul.f32 %v490, %v481
        %v495 = vmul.f32 %v493, %v481
        %v496 = vadd.f32 %v494, 1e-06
        %v497 = vadd.f32 %v495, 1e-06
        %v498 = vrsqrt.pop %v496
        %v499 = vrsqrt.pop %v497
        %v500 = vmul.f32 %v484, %v498
        %v501 = vmul.f32 %v485, %v499
        %v503 = vlaneseq
        %v504 = vshrl.u32 %v503, 7
        %v505 = vsub.s32 0, %v504
        %v506 = vrot.slane %v425, %v505
        %v508 = vmul.f32 %v500, %v506
        %v509 = vmul.f32 %v501, %v506
        %v511 = vlaneseq
        %v512 = vshrl.u32 %v511, 7
        %v513 = vsub.s32 0, %v512
        %v514 = vrot.slane %v427, %v513
        %v516 = vadd.f32 %v508, %v514
        %v517 = vadd.f32 %v509, %v514
        %v519 = vlaneseq
        %v520 = vshrl.u32 %v519, 7
        %v521 = vsub.s32 0, %v520
        %v522 = vrot.slane %v429, %v521
        %v525 = vsel %vm474, %v516, 0
        %v528 = vsel %vm474, %v517, 0
        %530 = vmatprep.subr.mxu0 0.0
        %531 = vmatpush1.msra.mxu0 %v442
        %532 = vmatprep.subr.mxu0 0.0
        %533 = vmatpush1.msra.mxu0 %v443
        %534 = vmatprep.subr.mxu0 0.0
        %535 = vmatpush1.msra.mxu0 %v444
        %536 = vmatprep.subr.mxu0 0.0
        %537 = vmatpush1.msra.mxu0 %v445
        %538 = vmatprep.subr.mxu0 0.0
        %539 = vmatpush1.msra.mxu0 0.0
        %540 = vmatprep.subr.mxu0 0.0
        %541 = vmatpush1.msra.mxu0 0.0
        %542 = vmatprep.subr.mxu0 0.0
        %543 = vmatpush1.msra.mxu0 0.0
        %544 = vmatprep.subr.mxu0 0.0
        %545 = vmatpush1.msra.mxu0 0.0
        %546 = vmatprep.subr.mxu0 0.0
        %547 = vmatpush1.msra.mxu0 0.0
        %548 = vmatprep.subr.mxu0 0.0
        %549 = vmatpush1.msra.mxu0 0.0
        %550 = vmatprep.subr.mxu0 0.0
        %551 = vmatpush1.msra.mxu0 0.0
        %552 = vmatprep.subr.mxu0 0.0
        %553 = vmatpush1.msra.mxu0 0.0
        %554 = vmatprep.subr.mxu0 0.0
        %555 = vmatpush1.msra.mxu0 0.0
        %556 = vmatprep.subr.mxu0 0.0
        %557 = vmatpush1.msra.mxu0 0.0
        %558 = vmatprep.subr.mxu0 0.0
        %559 = vmatpush1.msra.mxu0 0.0
        %560 = vmatprep.subr.mxu0 0.0
        %561 = vmatpush1.msra.mxu0 0.0
        %562 = vmatprep.subr.mxu0 0.0
        %563 = vmatpush1.msra.mxu0 0.0
        %564 = vmatprep.subr.mxu0 0.0
        %565 = vmatpush1.msra.mxu0 0.0
        %566 = vmatprep.subr.mxu0 0.0
        %567 = vmatpush1.msra.mxu0 0.0
        %568 = vmatprep.subr.mxu0 0.0
        %569 = vmatpush1.msra.mxu0 0.0
        %570 = vmatprep.subr.mxu0 0.0
        %571 = vmatpush1.msra.mxu0 0.0
        %572 = vmatprep.subr.mxu0 0.0
        %573 = vmatpush1.msra.mxu0 0.0
        %574 = vmatprep.subr.mxu0 0.0
        %575 = vmatpush1.msra.mxu0 0.0
        %576 = vmatprep.subr.mxu0 0.0
        %577 = vmatpush1.msra.mxu0 0.0
        %578 = vmatprep.subr.mxu0 0.0
        %579 = vmatpush1.msra.mxu0 0.0
        %580 = vmatprep.subr.mxu0 0.0
        %581 = vmatpush1.msra.mxu0 0.0
        %582 = vmatprep.subr.mxu0 0.0
        %583 = vmatpush1.msra.mxu0 0.0
        %584 = vmatprep.subr.mxu0 0.0
        %585 = vmatpush1.msra.mxu0 0.0
        %586 = vmatprep.subr.mxu0 0.0
        %587 = vmatpush1.msra.mxu0 0.0
        %588 = vmatprep.subr.mxu0 0.0
        %589 = vmatpush1.msra.mxu0 0.0
        %590 = vmatprep.subr.mxu0 0.0
        %591 = vmatpush1.msra.mxu0 0.0
        %592 = vmatprep.subr.mxu0 0.0
        %593 = vmatpush1.msra.mxu0 0.0
        %594 = vmatprep.mubr.f32.mxu0 0.0
        %595 = vmatmul.mubr.f32.gmra.mrb[0].mxu0 %v525
        %v596 = vpop.f32.mrb[0].mxu0
        %v597 = vadd.f32 %v522, %v596
        %v598 = vpop.f32.mrb[0].mxu0
        %599 = vmatprep.mubr.f32.mxu0 0.0
        %600 = vmatmul.mubr.f32.gmra.mrb[0].mxu0 %v528
        %v601 = vpop.f32.mrb[0].mxu0
        %v602 = vadd.f32 %v522, %v601
        %v603 = vpop.f32.mrb[0].mxu0
        %604 = vdwg.mxu0
        %v606 = vlaneseq
        %v607 = vshrl.u32 %v606, 7
        %v608 = vsub.s32 0, %v607
        %v609 = vrot.slane %v431, %v608
        %611 = vmatprep.subr.mxu0 0.0
        %612 = vmatpush1.msra.mxu0 %v447
        %613 = vmatprep.subr.mxu0 0.0
        %614 = vmatpush1.msra.mxu0 %v448
        %615 = vmatprep.subr.mxu0 0.0
        %616 = vmatpush1.msra.mxu0 %v449
        %617 = vmatprep.subr.mxu0 0.0
        %618 = vmatpush1.msra.mxu0 %v450
        %619 = vmatprep.subr.mxu0 0.0
        %620 = vmatpush1.msra.mxu0 0.0
        %621 = vmatprep.subr.mxu0 0.0
        %622 = vmatpush1.msra.mxu0 0.0
        %623 = vmatprep.subr.mxu0 0.0
        %624 = vmatpush1.msra.mxu0 0.0
        %625 = vmatprep.subr.mxu0 0.0
        %626 = vmatpush1.msra.mxu0 0.0
        %627 = vmatprep.subr.mxu0 0.0
        %628 = vmatpush1.msra.mxu0 0.0
        %629 = vmatprep.subr.mxu0 0.0
        %630 = vmatpush1.msra.mxu0 0.0
        %631 = vmatprep.subr.mxu0 0.0
        %632 = vmatpush1.msra.mxu0 0.0
        %633 = vmatprep.subr.mxu0 0.0
        %634 = vmatpush1.msra.mxu0 0.0
        %635 = vmatprep.subr.mxu0 0.0
        %636 = vmatpush1.msra.mxu0 0.0
        %637 = vmatprep.subr.mxu0 0.0
        %638 = vmatpush1.msra.mxu0 0.0
        %639 = vmatprep.subr.mxu0 0.0
        %640 = vmatpush1.msra.mxu0 0.0
        %641 = vmatprep.subr.mxu0 0.0
        %642 = vmatpush1.msra.mxu0 0.0
        %643 = vmatprep.subr.mxu0 0.0
        %644 = vmatpush1.msra.mxu0 0.0
        %645 = vmatprep.subr.mxu0 0.0
        %646 = vmatpush1.msra.mxu0 0.0
        %647 = vmatprep.subr.mxu0 0.0
        %648 = vmatpush1.msra.mxu0 0.0
        %649 = vmatprep.subr.mxu0 0.0
        %650 = vmatpush1.msra.mxu0 0.0
        %651 = vmatprep.subr.mxu0 0.0
        %652 = vmatpush1.msra.mxu0 0.0
        %653 = vmatprep.subr.mxu0 0.0
        %654 = vmatpush1.msra.mxu0 0.0
        %655 = vmatprep.subr.mxu0 0.0
        %656 = vmatpush1.msra.mxu0 0.0
        %657 = vmatprep.subr.mxu0 0.0
        %658 = vmatpush1.msra.mxu0 0.0
        %659 = vmatprep.subr.mxu0 0.0
        %660 = vmatpush1.msra.mxu0 0.0
        %661 = vmatprep.subr.mxu0 0.0
        %662 = vmatpush1.msra.mxu0 0.0
        %663 = vmatprep.subr.mxu0 0.0
        %664 = vmatpush1.msra.mxu0 0.0
        %665 = vmatprep.subr.mxu0 0.0
        %666 = vmatpush1.msra.mxu0 0.0
        %667 = vmatprep.subr.mxu0 0.0
        %668 = vmatpush1.msra.mxu0 0.0
        %669 = vmatprep.subr.mxu0 0.0
        %670 = vmatpush1.msra.mxu0 0.0
        %671 = vmatprep.subr.mxu0 0.0
        %672 = vmatpush1.msra.mxu0 0.0
        %673 = vmatprep.subr.mxu0 0.0
        %674 = vmatpush1.msra.mxu0 0.0
        %675 = vmatprep.mubr.f32.mxu0 0.0
        %676 = vmatmul.mubr.f32.gmra.mrb[0].mxu0 %v525
        %v677 = vpop.f32.mrb[0].mxu0
        %v678 = vadd.f32 %v609, %v677
        %v679 = vpop.f32.mrb[0].mxu0
        %680 = vmatprep.mubr.f32.mxu0 0.0
        %681 = vmatmul.mubr.f32.gmra.mrb[0].mxu0 %v528
        %v682 = vpop.f32.mrb[0].mxu0
        %v683 = vadd.f32 %v609, %v682
        %v684 = vpop.f32.mrb[0].mxu0
        %685 = vdwg.mxu0
        %v687 = vlaneseq
        %v688 = vshrl.u32 %v687, 7
        %v689 = vsub.s32 0, %v688
        %v690 = vrot.slane %v433, %v689
        %692 = vmatprep.subr.mxu0 0.0
        %693 = vmatpush1.msra.mxu0 %v452
        %694 = vmatprep.subr.mxu0 0.0
        %695 = vmatpush1.msra.mxu0 %v453
        %696 = vmatprep.subr.mxu0 0.0
        %697 = vmatpush1.msra.mxu0 %v454
        %698 = vmatprep.subr.mxu0 0.0
        %699 = vmatpush1.msra.mxu0 %v455
        %700 = vmatprep.subr.mxu0 0.0
        %701 = vmatpush1.msra.mxu0 0.0
        %702 = vmatprep.subr.mxu0 0.0
        %703 = vmatpush1.msra.mxu0 0.0
        %704 = vmatprep.subr.mxu0 0.0
        %705 = vmatpush1.msra.mxu0 0.0
        %706 = vmatprep.subr.mxu0 0.0
        %707 = vmatpush1.msra.mxu0 0.0
        %708 = vmatprep.subr.mxu0 0.0
        %709 = vmatpush1.msra.mxu0 0.0
        %710 = vmatprep.subr.mxu0 0.0
        %711 = vmatpush1.msra.mxu0 0.0
        %712 = vmatprep.subr.mxu0 0.0
        %713 = vmatpush1.msra.mxu0 0.0
        %714 = vmatprep.subr.mxu0 0.0
        %715 = vmatpush1.msra.mxu0 0.0
        %716 = vmatprep.subr.mxu0 0.0
        %717 = vmatpush1.msra.mxu0 0.0
        %718 = vmatprep.subr.mxu0 0.0
        %719 = vmatpush1.msra.mxu0 0.0
        %720 = vmatprep.subr.mxu0 0.0
        %721 = vmatpush1.msra.mxu0 0.0
        %722 = vmatprep.subr.mxu0 0.0
        %723 = vmatpush1.msra.mxu0 0.0
        %724 = vmatprep.subr.mxu0 0.0
        %725 = vmatpush1.msra.mxu0 0.0
        %726 = vmatprep.subr.mxu0 0.0
        %727 = vmatpush1.msra.mxu0 0.0
        %728 = vmatprep.subr.mxu0 0.0
        %729 = vmatpush1.msra.mxu0 0.0
        %730 = vmatprep.subr.mxu0 0.0
        %731 = vmatpush1.msra.mxu0 0.0
        %732 = vmatprep.subr.mxu0 0.0
        %733 = vmatpush1.msra.mxu0 0.0
        %734 = vmatprep.subr.mxu0 0.0
        %735 = vmatpush1.msra.mxu0 0.0
        %736 = vmatprep.subr.mxu0 0.0
        %737 = vmatpush1.msra.mxu0 0.0
        %738 = vmatprep.subr.mxu0 0.0
        %739 = vmatpush1.msra.mxu0 0.0
        %740 = vmatprep.subr.mxu0 0.0
        %741 = vmatpush1.msra.mxu0 0.0
        %742 = vmatprep.subr.mxu0 0.0
        %743 = vmatpush1.msra.mxu0 0.0
        %744 = vmatprep.subr.mxu0 0.0
        %745 = vmatpush1.msra.mxu0 0.0
        %746 = vmatprep.subr.mxu0 0.0
        %747 = vmatpush1.msra.mxu0 0.0
        %748 = vmatprep.subr.mxu0 0.0
        %749 = vmatpush1.msra.mxu0 0.0
        %750 = vmatprep.subr.mxu0 0.0
        %751 = vmatpush1.msra.mxu0 0.0
        %752 = vmatprep.subr.mxu0 0.0
        %753 = vmatpush1.msra.mxu0 0.0
        %754 = vmatprep.subr.mxu0 0.0
        %755 = vmatpush1.msra.mxu0 0.0
        %756 = vmatprep.mubr.f32.mxu0 0.0
        %757 = vmatmul.mubr.f32.gmra.mrb[0].mxu0 %v525
        %v758 = vpop.f32.mrb[0].mxu0
        %v759 = vadd.f32 %v690, %v758
        %v760 = vpop.f32.mrb[0].mxu0
        %761 = vmatprep.mubr.f32.mxu0 0.0
        %762 = vmatmul.mubr.f32.gmra.mrb[0].mxu0 %v528
        %v763 = vpop.f32.mrb[0].mxu0
        %v764 = vadd.f32 %v690, %v763
        %v765 = vpop.f32.mrb[0].mxu0
        %766 = vdwg.mxu0
        %v767 = vmul.f32 %v597, 0.35355338
        %v768 = vmul.f32 %v602, 0.35355338
        %v769 = vmul.f32 %v767, %v408
        %v770 = vmul.f32 %v768, %v408
        %v771 = vmul.f32 %v767, %v412
        %v772 = vmul.f32 %v768, %v412
        %v773 = vmul.f32 %v767, %v416
        %v774 = vmul.f32 %v768, %v416
        %v775 = vmul.f32 %v767, %v420
        %v776 = vmul.f32 %v768, %v420
        %v778 = vlaneseq
        %v779 = vshrl.u32 %v778, 7
        %v780 = vsub.s32 0, %v779
        %v781 = vrot.slane %v421, %v780
        %v784 = vsel %vm474, %v769, 0
        %v787 = vsel %vm474, %v770, 0
        %v790 = vsel %vm474, %v771, 0
        %v793 = vsel %vm474, %v772, 0
        %v796 = vsel %vm474, %v773, 0
        %v799 = vsel %vm474, %v774, 0
        %v802 = vsel %vm474, %v775, 0
        %v805 = vsel %vm474, %v776, 0
        %v808 = vsel %vm474, %v678, 0
        %v811 = vsel %vm474, %v683, 0
        %813 = vmatprep.subr.mxu0 0.0
        %814 = vmatpush1.xpose.msra.mxu0 %v808
        %815 = vmatprep.subr.mxu0 0.0
        %816 = vmatpush1.xpose.msra.mxu0 %v811
        %817 = vmatprep.subr.mxu0 0.0
        %818 = vmatpush1.xpose.msra.mxu0 0.0
        %819 = vmatprep.subr.mxu0 0.0
        %820 = vmatpush1.xpose.msra.mxu0 0.0
        %821 = vmatprep.subr.mxu0 0.0
        %822 = vmatpush1.xpose.msra.mxu0 0.0
        %823 = vmatprep.subr.mxu0 0.0
        %824 = vmatpush1.xpose.msra.mxu0 0.0
        %825 = vmatprep.subr.mxu0 0.0
        %826 = vmatpush1.xpose.msra.mxu0 0.0
        %827 = vmatprep.subr.mxu0 0.0
        %828 = vmatpush1.xpose.msra.mxu0 0.0
        %829 = vmatprep.subr.mxu0 0.0
        %830 = vmatpush1.xpose.msra.mxu0 0.0
        %831 = vmatprep.subr.mxu0 0.0
        %832 = vmatpush1.xpose.msra.mxu0 0.0
        %833 = vmatprep.subr.mxu0 0.0
        %834 = vmatpush1.xpose.msra.mxu0 0.0
        %835 = vmatprep.subr.mxu0 0.0
        %836 = vmatpush1.xpose.msra.mxu0 0.0
        %837 = vmatprep.subr.mxu0 0.0
        %838 = vmatpush1.xpose.msra.mxu0 0.0
        %839 = vmatprep.subr.mxu0 0.0
        %840 = vmatpush1.xpose.msra.mxu0 0.0
        %841 = vmatprep.subr.mxu0 0.0
        %842 = vmatpush1.xpose.msra.mxu0 0.0
        %843 = vmatprep.subr.mxu0 0.0
        %844 = vmatpush1.xpose.msra.mxu0 0.0
        %845 = vmatprep.subr.mxu0 0.0
        %846 = vmatpush1.xpose.msra.mxu0 0.0
        %847 = vmatprep.subr.mxu0 0.0
        %848 = vmatpush1.xpose.msra.mxu0 0.0
        %849 = vmatprep.subr.mxu0 0.0
        %850 = vmatpush1.xpose.msra.mxu0 0.0
        %851 = vmatprep.subr.mxu0 0.0
        %852 = vmatpush1.xpose.msra.mxu0 0.0
        %853 = vmatprep.subr.mxu0 0.0
        %854 = vmatpush1.xpose.msra.mxu0 0.0
        %855 = vmatprep.subr.mxu0 0.0
        %856 = vmatpush1.xpose.msra.mxu0 0.0
        %857 = vmatprep.subr.mxu0 0.0
        %858 = vmatpush1.xpose.msra.mxu0 0.0
        %859 = vmatprep.subr.mxu0 0.0
        %860 = vmatpush1.xpose.msra.mxu0 0.0
        %861 = vmatprep.subr.mxu0 0.0
        %862 = vmatpush1.xpose.msra.mxu0 0.0
        %863 = vmatprep.subr.mxu0 0.0
        %864 = vmatpush1.xpose.msra.mxu0 0.0
        %865 = vmatprep.subr.mxu0 0.0
        %866 = vmatpush1.xpose.msra.mxu0 0.0
        %867 = vmatprep.subr.mxu0 0.0
        %868 = vmatpush1.xpose.msra.mxu0 0.0
        %869 = vmatprep.subr.mxu0 0.0
        %870 = vmatpush1.xpose.msra.mxu0 0.0
        %871 = vmatprep.subr.mxu0 0.0
        %872 = vmatpush1.xpose.msra.mxu0 0.0
        %873 = vmatprep.subr.mxu0 0.0
        %874 = vmatpush1.xpose.msra.mxu0 0.0
        %875 = vmatprep.subr.mxu0 0.0
        %876 = vmatpush1.xpose.msra.mxu0 0.0
        %877 = vmatprep.mubr.f32.mxu0 0.0
        %878 = vmatmul.mubr.f32.gmra.mrb[0].mxu0 %v784
        %v879 = vpop.f32.mrb[0].mxu0
        %v880 = vadd.f32 %v781, %v879
        %v881 = vpop.f32.mrb[0].mxu0
        %882 = vmatprep.mubr.f32.mxu0 0.0
        %883 = vmatmul.mubr.f32.gmra.mrb[0].mxu0 %v787
        %v884 = vpop.f32.mrb[0].mxu0
        %v885 = vadd.f32 %v781, %v884
        %v886 = vpop.f32.mrb[0].mxu0
        %887 = vmatprep.mubr.f32.mxu0 0.0
        %888 = vmatmul.mubr.f32.gmra.mrb[0].mxu0 %v790
        %v889 = vpop.f32.mrb[0].mxu0
        %v890 = vadd.f32 %v781, %v889
        %v891 = vpop.f32.mrb[0].mxu0
        %892 = vmatprep.mubr.f32.mxu0 0.0
        %893 = vmatmul.mubr.f32.gmra.mrb[0].mxu0 %v793
        %v894 = vpop.f32.mrb[0].mxu0
        %v895 = vadd.f32 %v781, %v894
        %v896 = vpop.f32.mrb[0].mxu0
        %897 = vmatprep.mubr.f32.mxu0 0.0
        %898 = vmatmul.mubr.f32.gmra.mrb[0].mxu0 %v796
        %v899 = vpop.f32.mrb[0].mxu0
        %v900 = vadd.f32 %v781, %v899
        %v901 = vpop.f32.mrb[0].mxu0
        %902 = vmatprep.mubr.f32.mxu0 0.0
        %903 = vmatmul.mubr.f32.gmra.mrb[0].mxu0 %v799
        %v904 = vpop.f32.mrb[0].mxu0
        %v905 = vadd.f32 %v781, %v904
        %v906 = vpop.f32.mrb[0].mxu0
        %907 = vmatprep.mubr.f32.mxu0 0.0
        %908 = vmatmul.mubr.f32.gmra.mrb[0].mxu0 %v802
        %v909 = vpop.f32.mrb[0].mxu0
        %v910 = vadd.f32 %v781, %v909
        %v911 = vpop.f32.mrb[0].mxu0
        %912 = vmatprep.mubr.f32.mxu0 0.0
        %913 = vmatmul.mubr.f32.gmra.mrb[0].mxu0 %v805
        %v914 = vpop.f32.mrb[0].mxu0
        %v915 = vadd.f32 %v781, %v914
        %v916 = vpop.f32.mrb[0].mxu0
        %917 = vdwg.mxu0
        %vm918 = vcmask 130048
        %v919 = vsel %vm918, %v880, -inf
        %920 = vmax.xlane.f32.xlu0 %v919
        %v921 = vpop.xlane.xlu0 %920
        %v922 = vsel %vm918, %v885, -inf
        %923 = vmax.xlane.f32.xlu0 %v922
        %v924 = vpop.xlane.xlu0 %923
        %v925 = vsel %vm918, %v890, -inf
        %926 = vmax.xlane.f32.xlu0 %v925
        %v927 = vpop.xlane.xlu0 %926
        %v928 = vsel %vm918, %v895, -inf
        %929 = vmax.xlane.f32.xlu0 %v928
        %v930 = vpop.xlane.xlu0 %929
        %v931 = vsel %vm918, %v900, -inf
        %932 = vmax.xlane.f32.xlu0 %v931
        %v933 = vpop.xlane.xlu0 %932
        %v934 = vsel %vm918, %v905, -inf
        %935 = vmax.xlane.f32.xlu0 %v934
        %v936 = vpop.xlane.xlu0 %935
        %v937 = vsel %vm918, %v910, -inf
        %938 = vmax.xlane.f32.xlu0 %v937
        %v939 = vpop.xlane.xlu0 %938
        %v940 = vsel %vm918, %v915, -inf
        %941 = vmax.xlane.f32.xlu0 %v940
        %v942 = vpop.xlane.xlu0 %941
        %v943 = vsub.f32 %v880, %v921
        %v944 = vsub.f32 %v885, %v924
        %v945 = vsub.f32 %v890, %v927
        %v946 = vsub.f32 %v895, %v930
        %v947 = vsub.f32 %v900, %v933
        %v948 = vsub.f32 %v905, %v936
        %v949 = vsub.f32 %v910, %v939
        %v950 = vsub.f32 %v915, %v942
        %v951 = vmul.f32 %v943, 1.442695
        %v952 = vpow.pop %v951
        %v953 = vmul.f32 %v944, 1.442695
        %v954 = vpow.pop %v953
        %v955 = vmul.f32 %v945, 1.442695
        %v956 = vpow.pop %v955
        %v957 = vmul.f32 %v946, 1.442695
        %v958 = vpow.pop %v957
        %v959 = vmul.f32 %v947, 1.442695
        %v960 = vpow.pop %v959
        %v961 = vmul.f32 %v948, 1.442695
        %v962 = vpow.pop %v961
        %v963 = vmul.f32 %v949, 1.442695
        %v964 = vpow.pop %v963
        %v965 = vmul.f32 %v950, 1.442695
        %v966 = vpow.pop %v965
        %v967 = vsel %vm918, %v952, 0.0
        %968 = vadd.xlane.f32.xlu0 %v967
        %v969 = vpop.xlane.xlu0 %968
        %v970 = vsel %vm918, %v954, 0.0
        %971 = vadd.xlane.f32.xlu0 %v970
        %v972 = vpop.xlane.xlu0 %971
        %v973 = vsel %vm918, %v956, 0.0
        %974 = vadd.xlane.f32.xlu0 %v973
        %v975 = vpop.xlane.xlu0 %974
        %v976 = vsel %vm918, %v958, 0.0
        %977 = vadd.xlane.f32.xlu0 %v976
        %v978 = vpop.xlane.xlu0 %977
        %v979 = vsel %vm918, %v960, 0.0
        %980 = vadd.xlane.f32.xlu0 %v979
        %v981 = vpop.xlane.xlu0 %980
        %v982 = vsel %vm918, %v962, 0.0
        %983 = vadd.xlane.f32.xlu0 %v982
        %v984 = vpop.xlane.xlu0 %983
        %v985 = vsel %vm918, %v964, 0.0
        %986 = vadd.xlane.f32.xlu0 %v985
        %v987 = vpop.xlane.xlu0 %986
        %v988 = vsel %vm918, %v966, 0.0
        %989 = vadd.xlane.f32.xlu0 %v988
        %v990 = vpop.xlane.xlu0 %989
        %v991 = vrcp.pop %v969
        %v992 = vrcp.pop %v972
        %v993 = vrcp.pop %v975
        %v994 = vrcp.pop %v978
        %v995 = vrcp.pop %v981
        %v996 = vrcp.pop %v984
        %v997 = vrcp.pop %v987
        %v998 = vrcp.pop %v990
        %v999 = vmul.f32 %v952, %v991
        %v1000 = vmul.f32 %v954, %v992
        %v1001 = vmul.f32 %v956, %v993
        %v1002 = vmul.f32 %v958, %v994
        %v1003 = vmul.f32 %v960, %v995
        %v1004 = vmul.f32 %v962, %v996
        %v1005 = vmul.f32 %v964, %v997
        %v1006 = vmul.f32 %v966, %v998
        %v1008 = vsel %vm918, %v999, 0
        %v1011 = vsel %vm918, %v1000, 0
        %v1014 = vsel %vm918, %v1001, 0
        %v1017 = vsel %vm918, %v1002, 0
        %v1020 = vsel %vm918, %v1003, 0
        %v1023 = vsel %vm918, %v1004, 0
        %v1026 = vsel %vm918, %v1005, 0
        %v1029 = vsel %vm918, %v1006, 0
        %1031 = vmatprep.subr.mxu0 0.0
        %1032 = vmatpush1.msra.mxu0 %v759
        %1033 = vmatprep.subr.mxu0 0.0
        %1034 = vmatpush1.msra.mxu0 %v764
        %1035 = vmatprep.subr.mxu0 0.0
        %1036 = vmatpush1.msra.mxu0 0.0
        %1037 = vmatprep.subr.mxu0 0.0
        %1038 = vmatpush1.msra.mxu0 0.0
        %1039 = vmatprep.subr.mxu0 0.0
        %1040 = vmatpush1.msra.mxu0 0.0
        %1041 = vmatprep.subr.mxu0 0.0
        %1042 = vmatpush1.msra.mxu0 0.0
        %1043 = vmatprep.subr.mxu0 0.0
        %1044 = vmatpush1.msra.mxu0 0.0
        %1045 = vmatprep.subr.mxu0 0.0
        %1046 = vmatpush1.msra.mxu0 0.0
        %1047 = vmatprep.subr.mxu0 0.0
        %1048 = vmatpush1.msra.mxu0 0.0
        %1049 = vmatprep.subr.mxu0 0.0
        %1050 = vmatpush1.msra.mxu0 0.0
        %1051 = vmatprep.subr.mxu0 0.0
        %1052 = vmatpush1.msra.mxu0 0.0
        %1053 = vmatprep.subr.mxu0 0.0
        %1054 = vmatpush1.msra.mxu0 0.0
        %1055 = vmatprep.subr.mxu0 0.0
        %1056 = vmatpush1.msra.mxu0 0.0
        %1057 = vmatprep.subr.mxu0 0.0
        %1058 = vmatpush1.msra.mxu0 0.0
        %1059 = vmatprep.subr.mxu0 0.0
        %1060 = vmatpush1.msra.mxu0 0.0
        %1061 = vmatprep.subr.mxu0 0.0
        %1062 = vmatpush1.msra.mxu0 0.0
        %1063 = vmatprep.subr.mxu0 0.0
        %1064 = vmatpush1.msra.mxu0 0.0
        %1065 = vmatprep.subr.mxu0 0.0
        %1066 = vmatpush1.msra.mxu0 0.0
        %1067 = vmatprep.subr.mxu0 0.0
        %1068 = vmatpush1.msra.mxu0 0.0
        %1069 = vmatprep.subr.mxu0 0.0
        %1070 = vmatpush1.msra.mxu0 0.0
        %1071 = vmatprep.subr.mxu0 0.0
        %1072 = vmatpush1.msra.mxu0 0.0
        %1073 = vmatprep.subr.mxu0 0.0
        %1074 = vmatpush1.msra.mxu0 0.0
        %1075 = vmatprep.subr.mxu0 0.0
        %1076 = vmatpush1.msra.mxu0 0.0
        %1077 = vmatprep.subr.mxu0 0.0
        %1078 = vmatpush1.msra.mxu0 0.0
        %1079 = vmatprep.subr.mxu0 0.0
        %1080 = vmatpush1.msra.mxu0 0.0
        %1081 = vmatprep.subr.mxu0 0.0
        %1082 = vmatpush1.msra.mxu0 0.0
        %1083 = vmatprep.subr.mxu0 0.0
        %1084 = vmatpush1.msra.mxu0 0.0
        %1085 = vmatprep.subr.mxu0 0.0
        %1086 = vmatpush1.msra.mxu0 0.0
        %1087 = vmatprep.subr.mxu0 0.0
        %1088 = vmatpush1.msra.mxu0 0.0
        %1089 = vmatprep.subr.mxu0 0.0
        %1090 = vmatpush1.msra.mxu0 0.0
        %1091 = vmatprep.subr.mxu0 0.0
        %1092 = vmatpush1.msra.mxu0 0.0
        %1093 = vmatprep.subr.mxu0 0.0
        %1094 = vmatpush1.msra.mxu0 0.0
        %1095 = vmatprep.mubr.f32.mxu0 0.0
        %1096 = vmatmul.mubr.f32.gmra.mrb[0].mxu0 %v1008
        %v1097 = vpop.f32.mrb[0].mxu0
        %v1098 = vadd.f32 0.0, %v1097
        %v1099 = vpop.f32.mrb[0].mxu0
        %1100 = vmatprep.mubr.f32.mxu0 0.0
        %1101 = vmatmul.mubr.f32.gmra.mrb[0].mxu0 %v1011
        %v1102 = vpop.f32.mrb[0].mxu0
        %v1103 = vadd.f32 0.0, %v1102
        %v1104 = vpop.f32.mrb[0].mxu0
        %1105 = vmatprep.mubr.f32.mxu0 0.0
        %1106 = vmatmul.mubr.f32.gmra.mrb[0].mxu0 %v1014
        %v1107 = vpop.f32.mrb[0].mxu0
        %v1108 = vadd.f32 0.0, %v1107
        %v1109 = vpop.f32.mrb[0].mxu0
        %1110 = vmatprep.mubr.f32.mxu0 0.0
        %1111 = vmatmul.mubr.f32.gmra.mrb[0].mxu0 %v1017
        %v1112 = vpop.f32.mrb[0].mxu0
        %v1113 = vadd.f32 0.0, %v1112
        %v1114 = vpop.f32.mrb[0].mxu0
        %1115 = vmatprep.mubr.f32.mxu0 0.0
        %1116 = vmatmul.mubr.f32.gmra.mrb[0].mxu0 %v1020
        %v1117 = vpop.f32.mrb[0].mxu0
        %v1118 = vadd.f32 0.0, %v1117
        %v1119 = vpop.f32.mrb[0].mxu0
        %1120 = vmatprep.mubr.f32.mxu0 0.0
        %1121 = vmatmul.mubr.f32.gmra.mrb[0].mxu0 %v1023
        %v1122 = vpop.f32.mrb[0].mxu0
        %v1123 = vadd.f32 0.0, %v1122
        %v1124 = vpop.f32.mrb[0].mxu0
        %1125 = vmatprep.mubr.f32.mxu0 0.0
        %1126 = vmatmul.mubr.f32.gmra.mrb[0].mxu0 %v1026
        %v1127 = vpop.f32.mrb[0].mxu0
        %v1128 = vadd.f32 0.0, %v1127
        %v1129 = vpop.f32.mrb[0].mxu0
        %1130 = vmatprep.mubr.f32.mxu0 0.0
        %1131 = vmatmul.mubr.f32.gmra.mrb[0].mxu0 %v1029
        %v1132 = vpop.f32.mrb[0].mxu0
        %v1133 = vadd.f32 0.0, %v1132
        %v1134 = vpop.f32.mrb[0].mxu0
        %1135 = vdwg.mxu0
        %v1136 = vmul.f32 %v1098, %v408
        %v1137 = vmul.f32 %v1103, %v408
        %v1138 = vmul.f32 %v1108, %v412
        %v1139 = vmul.f32 %v1113, %v412
        %v1140 = vadd.f32 %v1136, %v1138
        %v1141 = vadd.f32 %v1137, %v1139
        %v1142 = vmul.f32 %v1118, %v416
        %v1143 = vmul.f32 %v1123, %v416
        %v1144 = vadd.f32 %v1140, %v1142
        %v1145 = vadd.f32 %v1141, %v1143
        %v1146 = vmul.f32 %v1128, %v420
        %v1147 = vmul.f32 %v1133, %v420
        %v1148 = vadd.f32 %v1144, %v1146
        %v1149 = vadd.f32 %v1145, %v1147
        %v1151 = vlaneseq
        %v1152 = vshrl.u32 %v1151, 7
        %v1153 = vsub.s32 0, %v1152
        %v1154 = vrot.slane %v435, %v1153
        %v1157 = vsel %vm474, %v1148, 0
        %v1160 = vsel %vm474, %v1149, 0
        %1162 = vmatprep.subr.mxu0 0.0
        %1163 = vmatpush1.msra.mxu0 %v457
        %1164 = vmatprep.subr.mxu0 0.0
        %1165 = vmatpush1.msra.mxu0 %v458
        %1166 = vmatprep.subr.mxu0 0.0
        %1167 = vmatpush1.msra.mxu0 %v459
        %1168 = vmatprep.subr.mxu0 0.0
        %1169 = vmatpush1.msra.mxu0 %v460
        %1170 = vmatprep.subr.mxu0 0.0
        %1171 = vmatpush1.msra.mxu0 0.0
        %1172 = vmatprep.subr.mxu0 0.0
        %1173 = vmatpush1.msra.mxu0 0.0
        %1174 = vmatprep.subr.mxu0 0.0
        %1175 = vmatpush1.msra.mxu0 0.0
        %1176 = vmatprep.subr.mxu0 0.0
        %1177 = vmatpush1.msra.mxu0 0.0
        %1178 = vmatprep.subr.mxu0 0.0
        %1179 = vmatpush1.msra.mxu0 0.0
        %1180 = vmatprep.subr.mxu0 0.0
        %1181 = vmatpush1.msra.mxu0 0.0
        %1182 = vmatprep.subr.mxu0 0.0
        %1183 = vmatpush1.msra.mxu0 0.0
        %1184 = vmatprep.subr.mxu0 0.0
        %1185 = vmatpush1.msra.mxu0 0.0
        %1186 = vmatprep.subr.mxu0 0.0
        %1187 = vmatpush1.msra.mxu0 0.0
        %1188 = vmatprep.subr.mxu0 0.0
        %1189 = vmatpush1.msra.mxu0 0.0
        %1190 = vmatprep.subr.mxu0 0.0
        %1191 = vmatpush1.msra.mxu0 0.0
        %1192 = vmatprep.subr.mxu0 0.0
        %1193 = vmatpush1.msra.mxu0 0.0
        %1194 = vmatprep.subr.mxu0 0.0
        %1195 = vmatpush1.msra.mxu0 0.0
        %1196 = vmatprep.subr.mxu0 0.0
        %1197 = vmatpush1.msra.mxu0 0.0
        %1198 = vmatprep.subr.mxu0 0.0
        %1199 = vmatpush1.msra.mxu0 0.0
        %1200 = vmatprep.subr.mxu0 0.0
        %1201 = vmatpush1.msra.mxu0 0.0
        %1202 = vmatprep.subr.mxu0 0.0
        %1203 = vmatpush1.msra.mxu0 0.0
        %1204 = vmatprep.subr.mxu0 0.0
        %1205 = vmatpush1.msra.mxu0 0.0
        %1206 = vmatprep.subr.mxu0 0.0
        %1207 = vmatpush1.msra.mxu0 0.0
        %1208 = vmatprep.subr.mxu0 0.0
        %1209 = vmatpush1.msra.mxu0 0.0
        %1210 = vmatprep.subr.mxu0 0.0
        %1211 = vmatpush1.msra.mxu0 0.0
        %1212 = vmatprep.subr.mxu0 0.0
        %1213 = vmatpush1.msra.mxu0 0.0
        %1214 = vmatprep.subr.mxu0 0.0
        %1215 = vmatpush1.msra.mxu0 0.0
        %1216 = vmatprep.subr.mxu0 0.0
        %1217 = vmatpush1.msra.mxu0 0.0
        %1218 = vmatprep.subr.mxu0 0.0
        %1219 = vmatpush1.msra.mxu0 0.0
        %1220 = vmatprep.subr.mxu0 0.0
        %1221 = vmatpush1.msra.mxu0 0.0
        %1222 = vmatprep.subr.mxu0 0.0
        %1223 = vmatpush1.msra.mxu0 0.0
        %1224 = vmatprep.subr.mxu0 0.0
        %1225 = vmatpush1.msra.mxu0 0.0
        %1226 = vmatprep.mubr.f32.mxu0 0.0
        %1227 = vmatmul.mubr.f32.gmra.mrb[0].mxu0 %v1157
        %v1228 = vpop.f32.mrb[0].mxu0
        %v1229 = vadd.f32 %v1154, %v1228
        %v1230 = vpop.f32.mrb[0].mxu0
        %1231 = vmatprep.mubr.f32.mxu0 0.0
        %1232 = vmatmul.mubr.f32.gmra.mrb[0].mxu0 %v1160
        %v1233 = vpop.f32.mrb[0].mxu0
        %v1234 = vadd.f32 %v1154, %v1233
        %v1235 = vpop.f32.mrb[0].mxu0
        %1236 = vdwg.mxu0
        %v1237 = vadd.f32 %v1229, %v423
        %v1238 = vadd.f32 %v1234, %v424
        %v1239 = vsel %vm474, %v1237, 0.0
        %1240 = vadd.xlane.f32.xlu0 %v1239
        %v1241 = vpop.xlane.xlu0 %1240
        %v1242 = vsel %vm474, %v1238, 0.0
        %1243 = vadd.xlane.f32.xlu0 %v1242
        %v1244 = vpop.xlane.xlu0 %1243
        %v1245 = vmul.f32 %v1241, %v481
        %v1246 = vmul.f32 %v1244, %v481
        %v1247 = vsub.f32 %v1237, %v1245
        %v1248 = vsub.f32 %v1238, %v1246
        %v1249 = vmul.f32 %v1247, %v1247
        %v1250 = vmul.f32 %v1248, %v1248
        %v1251 = vsel %vm474, %v1249, 0.0
        %1252 = vadd.xlane.f32.xlu0 %v1251
        %v1253 = vpop.xlane.xlu0 %1252
        %v1254 = vsel %vm474, %v1250, 0.0
        %1255 = vadd.xlane.f32.xlu0 %v1254
        %v1256 = vpop.xlane.xlu0 %1255
        %v1257 = vmul.f32 %v1253, %v481
        %v1258 = vmul.f32 %v1256, %v481
        %v1259 = vadd.f32 %v1257, 1e-06
        %v1260 = vadd.f32 %v1258, 1e-06
        %v1261 = vrsqrt.pop %v1259
        %v1262 = vrsqrt.pop %v1260
        %v1263 = vmul.f32 %v1247, %v1261
        %v1264 = vmul.f32 %v1248, %v1262
        %v1266 = vlaneseq
        %v1267 = vshrl.u32 %v1266, 7
        %v1268 = vsub.s32 0, %v1267
        %v1269 = vrot.slane %v437, %v1268
        %v1271 = vmul.f32 %v1263, %v1269
        %v1272 = vmul.f32 %v1264, %v1269
        %v1274 = vlaneseq
        %v1275 = vshrl.u32 %v1274, 7
        %v1276 = vsub.s32 0, %v1275
        %v1277 = vrot.slane %v439, %v1276
        %v1279 = vadd.f32 %v1271, %v1277
        %v1280 = vadd.f32 %v1272, %v1277
        %v1282 = vlaneseq
        %v1283 = vshrl.u32 %v1282, 7
        %v1284 = vsub.s32 0, %v1283
        %v1285 = vrot.slane %v465, %v1284
        %v1288 = vsel %vm474, %v1279, 0
        %v1291 = vsel %vm474, %v1280, 0
        %1293 = vmatprep.subr.mxu0 0.0
        %1294 = vmatpush1.msra.mxu0 %v461
        %1295 = vmatprep.subr.mxu0 0.0
        %1296 = vmatpush1.msra.mxu0 %v462
        %1297 = vmatprep.subr.mxu0 0.0
        %1298 = vmatpush1.msra.mxu0 %v463
        %1299 = vmatprep.subr.mxu0 0.0
        %1300 = vmatpush1.msra.mxu0 %v464
        %1301 = vmatprep.subr.mxu0 0.0
        %1302 = vmatpush1.msra.mxu0 0.0
        %1303 = vmatprep.subr.mxu0 0.0
        %1304 = vmatpush1.msra.mxu0 0.0
        %1305 = vmatprep.subr.mxu0 0.0
        %1306 = vmatpush1.msra.mxu0 0.0
        %1307 = vmatprep.subr.mxu0 0.0
        %1308 = vmatpush1.msra.mxu0 0.0
        %1309 = vmatprep.subr.mxu0 0.0
        %1310 = vmatpush1.msra.mxu0 0.0
        %1311 = vmatprep.subr.mxu0 0.0
        %1312 = vmatpush1.msra.mxu0 0.0
        %1313 = vmatprep.subr.mxu0 0.0
        %1314 = vmatpush1.msra.mxu0 0.0
        %1315 = vmatprep.subr.mxu0 0.0
        %1316 = vmatpush1.msra.mxu0 0.0
        %1317 = vmatprep.subr.mxu0 0.0
        %1318 = vmatpush1.msra.mxu0 0.0
        %1319 = vmatprep.subr.mxu0 0.0
        %1320 = vmatpush1.msra.mxu0 0.0
        %1321 = vmatprep.subr.mxu0 0.0
        %1322 = vmatpush1.msra.mxu0 0.0
        %1323 = vmatprep.subr.mxu0 0.0
        %1324 = vmatpush1.msra.mxu0 0.0
        %1325 = vmatprep.subr.mxu0 0.0
        %1326 = vmatpush1.msra.mxu0 0.0
        %1327 = vmatprep.subr.mxu0 0.0
        %1328 = vmatpush1.msra.mxu0 0.0
        %1329 = vmatprep.subr.mxu0 0.0
        %1330 = vmatpush1.msra.mxu0 0.0
        %1331 = vmatprep.subr.mxu0 0.0
        %1332 = vmatpush1.msra.mxu0 0.0
        %1333 = vmatprep.subr.mxu0 0.0
        %1334 = vmatpush1.msra.mxu0 0.0
        %1335 = vmatprep.subr.mxu0 0.0
        %1336 = vmatpush1.msra.mxu0 0.0
        %1337 = vmatprep.subr.mxu0 0.0
        %1338 = vmatpush1.msra.mxu0 0.0
        %1339 = vmatprep.subr.mxu0 0.0
        %1340 = vmatpush1.msra.mxu0 0.0
        %1341 = vmatprep.subr.mxu0 0.0
        %1342 = vmatpush1.msra.mxu0 0.0
        %1343 = vmatprep.subr.mxu0 0.0
        %1344 = vmatpush1.msra.mxu0 0.0
        %1345 = vmatprep.subr.mxu0 0.0
        %1346 = vmatpush1.msra.mxu0 0.0
        %1347 = vmatprep.subr.mxu0 0.0
        %1348 = vmatpush1.msra.mxu0 0.0
        %1349 = vmatprep.subr.mxu0 0.0
        %1350 = vmatpush1.msra.mxu0 0.0
        %1351 = vmatprep.subr.mxu0 0.0
        %1352 = vmatpush1.msra.mxu0 0.0
        %1353 = vmatprep.subr.mxu0 0.0
        %1354 = vmatpush1.msra.mxu0 0.0
        %1355 = vmatprep.subr.mxu0 0.0
        %1356 = vmatpush1.msra.mxu0 0.0
        %1357 = vmatprep.mubr.f32.mxu0 0.0
        %1358 = vmatmul.mubr.f32.gmra.mrb[0].mxu0 %v1288
        %v1359 = vpop.f32.mrb[0].mxu0
        %v1360 = vadd.f32 %v1285, %v1359
        %v1361 = vpop.f32.mrb[0].mxu0
        %1362 = vmatprep.mubr.f32.mxu0 0.0
        %1363 = vmatmul.mubr.f32.gmra.mrb[0].mxu0 %v1291
        %v1364 = vpop.f32.mrb[0].mxu0
        %v1365 = vadd.f32 %v1285, %v1364
        %v1366 = vpop.f32.mrb[0].mxu0
        %1367 = vdwg.mxu0
        %v1368 = vmax.f32 %v1360, 0.0
        %v1369 = vmax.f32 %v1365, 0.0
        %v1371 = vlaneseq
        %v1372 = vshrl.u32 %v1371, 7
        %v1373 = vsub.s32 0, %v1372
        %v1374 = vrot.slane %v441, %v1373
        %vm1376 = vcmask 523264
        %v1378 = vsel %vm1376, %v1368, 0
        %v1381 = vsel %vm1376, %v1369, 0
        %1383 = vmatprep.subr.mxu0 0.0
        %1384 = vmatpush1.msra.mxu0 %v466
        %1385 = vmatprep.subr.mxu0 0.0
        %1386 = vmatpush1.msra.mxu0 %v467
        %1387 = vmatprep.subr.mxu0 0.0
        %1388 = vmatpush1.msra.mxu0 %v468
        %1389 = vmatprep.subr.mxu0 0.0
        %1390 = vmatpush1.msra.mxu0 %v469
        %1391 = vmatprep.subr.mxu0 0.0
        %1392 = vmatpush1.msra.mxu0 %v470
        %1393 = vmatprep.subr.mxu0 0.0
        %1394 = vmatpush1.msra.mxu0 %v471
        %1395 = vmatprep.subr.mxu0 0.0
        %1396 = vmatpush1.msra.mxu0 %v472
        %1397 = vmatprep.subr.mxu0 0.0
        %1398 = vmatpush1.msra.mxu0 %v473
        %1399 = vmatprep.subr.mxu0 0.0
        %1400 = vmatpush1.msra.mxu0 0.0
        %1401 = vmatprep.subr.mxu0 0.0
        %1402 = vmatpush1.msra.mxu0 0.0
        %1403 = vmatprep.subr.mxu0 0.0
        %1404 = vmatpush1.msra.mxu0 0.0
        %1405 = vmatprep.subr.mxu0 0.0
        %1406 = vmatpush1.msra.mxu0 0.0
        %1407 = vmatprep.subr.mxu0 0.0
        %1408 = vmatpush1.msra.mxu0 0.0
        %1409 = vmatprep.subr.mxu0 0.0
        %1410 = vmatpush1.msra.mxu0 0.0
        %1411 = vmatprep.subr.mxu0 0.0
        %1412 = vmatpush1.msra.mxu0 0.0
        %1413 = vmatprep.subr.mxu0 0.0
        %1414 = vmatpush1.msra.mxu0 0.0
        %1415 = vmatprep.subr.mxu0 0.0
        %1416 = vmatpush1.msra.mxu0 0.0
        %1417 = vmatprep.subr.mxu0 0.0
        %1418 = vmatpush1.msra.mxu0 0.0
        %1419 = vmatprep.subr.mxu0 0.0
        %1420 = vmatpush1.msra.mxu0 0.0
        %1421 = vmatprep.subr.mxu0 0.0
        %1422 = vmatpush1.msra.mxu0 0.0
        %1423 = vmatprep.subr.mxu0 0.0
        %1424 = vmatpush1.msra.mxu0 0.0
        %1425 = vmatprep.subr.mxu0 0.0
        %1426 = vmatpush1.msra.mxu0 0.0
        %1427 = vmatprep.subr.mxu0 0.0
        %1428 = vmatpush1.msra.mxu0 0.0
        %1429 = vmatprep.subr.mxu0 0.0
        %1430 = vmatpush1.msra.mxu0 0.0
        %1431 = vmatprep.subr.mxu0 0.0
        %1432 = vmatpush1.msra.mxu0 0.0
        %1433 = vmatprep.subr.mxu0 0.0
        %1434 = vmatpush1.msra.mxu0 0.0
        %1435 = vmatprep.subr.mxu0 0.0
        %1436 = vmatpush1.msra.mxu0 0.0
        %1437 = vmatprep.subr.mxu0 0.0
        %1438 = vmatpush1.msra.mxu0 0.0
        %1439 = vmatprep.subr.mxu0 0.0
        %1440 = vmatpush1.msra.mxu0 0.0
        %1441 = vmatprep.subr.mxu0 0.0
        %1442 = vmatpush1.msra.mxu0 0.0
        %1443 = vmatprep.subr.mxu0 0.0
        %1444 = vmatpush1.msra.mxu0 0.0
        %1445 = vmatprep.subr.mxu0 0.0
        %1446 = vmatpush1.msra.mxu0 0.0
        %1447 = vmatprep.mubr.f32.mxu0 0.0
        %1448 = vmatmul.mubr.f32.gmra.mrb[0].mxu0 %v1378
        %v1449 = vpop.f32.mrb[0].mxu0
        %v1450 = vadd.f32 %v1374, %v1449
        %v1451 = vpop.f32.mrb[0].mxu0
        %1452 = vmatprep.mubr.f32.mxu0 0.0
        %1453 = vmatmul.mubr.f32.gmra.mrb[0].mxu0 %v1381
        %v1454 = vpop.f32.mrb[0].mxu0
        %v1455 = vadd.f32 %v1374, %v1454
        %v1456 = vpop.f32.mrb[0].mxu0
        %1457 = vdwg.mxu0
        %v1458 = vadd.f32 %v1450, %v1237
        %v1459 = vadd.f32 %v1455, %v1238
        %s1460 = scalar_lea.vmem %s4, 9
        %v1461 = vld [vmem:[%s1460] sm:$0x1]
        %s1462 = scalar_lea.vmem %s4, 10
        %v1463 = vld [vmem:[%s1462] sm:$0x1]
        %s1464 = scalar_lea.vmem %s4, 11
        %v1465 = vld [vmem:[%s1464] sm:$0x1]
        %s1466 = scalar_lea.vmem %s4, 12
        %v1467 = vld [vmem:[%s1466] sm:$0x1]
        %s1468 = scalar_lea.vmem %s4, 13
        %v1469 = vld [vmem:[%s1468] sm:$0x1]
        %s1470 = scalar_lea.vmem %s4, 14
        %v1471 = vld [vmem:[%s1470] sm:$0x1]
        %s1472 = scalar_lea.vmem %s4, 15
        %v1473 = vld [vmem:[%s1472] sm:$0x1]
        %s1474 = scalar_lea.vmem %s4, 16
        %v1475 = vld [vmem:[%s1474] sm:$0x1]
        %s1476 = scalar_lea.vmem %s4, 17
        %v1477 = vld [vmem:[%s1476] sm:$0x1]
        %s1478 = scalar_lea.vmem %s6, 128
        %v1479 = vld [vmem:[%s1478] sm:$0xff]
        %v1480 = vld [vmem:[%s1478 + $0x8] sm:$0xff]
        %v1481 = vld [vmem:[%s1478 + $0x10] sm:$0xff]
        %v1482 = vld [vmem:[%s1478 + $0x18] sm:$0xff]
        %s1483 = scalar_lea.vmem %s6, 160
        %v1484 = vld [vmem:[%s1483] sm:$0xff]
        %v1485 = vld [vmem:[%s1483 + $0x8] sm:$0xff]
        %v1486 = vld [vmem:[%s1483 + $0x10] sm:$0xff]
        %v1487 = vld [vmem:[%s1483 + $0x18] sm:$0xff]
        %s1488 = scalar_lea.vmem %s6, 192
        %v1489 = vld [vmem:[%s1488] sm:$0xff]
        %v1490 = vld [vmem:[%s1488 + $0x8] sm:$0xff]
        %v1491 = vld [vmem:[%s1488 + $0x10] sm:$0xff]
        %v1492 = vld [vmem:[%s1488 + $0x18] sm:$0xff]
        %s1493 = scalar_lea.vmem %s6, 224
        %v1494 = vld [vmem:[%s1493] sm:$0xff]
        %v1495 = vld [vmem:[%s1493 + $0x8] sm:$0xff]
        %v1496 = vld [vmem:[%s1493 + $0x10] sm:$0xff]
        %v1497 = vld [vmem:[%s1493 + $0x18] sm:$0xff]
        %s1498 = scalar_lea.vmem %s7, 32
        %v1499 = vld [vmem:[%s1498] sm:$0xff]
        %v1500 = vld [vmem:[%s1498 + $0x8] sm:$0xff]
        %v1501 = vld [vmem:[%s1498 + $0x10] sm:$0xff]
        %v1502 = vld [vmem:[%s1498 + $0x18] sm:$0xff]
        %s1503 = scalar_lea.vmem %s5, 1
        %v1504 = vld [vmem:[%s1503] sm:$0x1]
        %s1505 = scalar_lea.vmem %s8, 64
        %v1506 = vld [vmem:[%s1505] sm:$0xff]
        %v1507 = vld [vmem:[%s1505 + $0x8] sm:$0xff]
        %v1508 = vld [vmem:[%s1505 + $0x10] sm:$0xff]
        %v1509 = vld [vmem:[%s1505 + $0x18] sm:$0xff]
        %v1510 = vld [vmem:[%s1505 + $0x20] sm:$0xff]
        %v1511 = vld [vmem:[%s1505 + $0x28] sm:$0xff]
        %v1512 = vld [vmem:[%s1505 + $0x30] sm:$0xff]
        %v1513 = vld [vmem:[%s1505 + $0x38] sm:$0xff]
        %v1514 = vsel %vm474, %v1458, 0.0
        %1515 = vadd.xlane.f32.xlu0 %v1514
        %v1516 = vpop.xlane.xlu0 %1515
        %v1517 = vsel %vm474, %v1459, 0.0
        %1518 = vadd.xlane.f32.xlu0 %v1517
        %v1519 = vpop.xlane.xlu0 %1518
        %v1520 = vmul.f32 %v1516, %v481
        %v1521 = vmul.f32 %v1519, %v481
        %v1522 = vsub.f32 %v1458, %v1520
        %v1523 = vsub.f32 %v1459, %v1521
        %v1524 = vmul.f32 %v1522, %v1522
        %v1525 = vmul.f32 %v1523, %v1523
        %v1526 = vsel %vm474, %v1524, 0.0
        %1527 = vadd.xlane.f32.xlu0 %v1526
        %v1528 = vpop.xlane.xlu0 %1527
        %v1529 = vsel %vm474, %v1525, 0.0
        %1530 = vadd.xlane.f32.xlu0 %v1529
        %v1531 = vpop.xlane.xlu0 %1530
        %v1532 = vmul.f32 %v1528, %v481
        %v1533 = vmul.f32 %v1531, %v481
        %v1534 = vadd.f32 %v1532, 1e-06
        %v1535 = vadd.f32 %v1533, 1e-06
        %v1536 = vrsqrt.pop %v1534
        %v1537 = vrsqrt.pop %v1535
        %v1538 = vmul.f32 %v1522, %v1536
        %v1539 = vmul.f32 %v1523, %v1537
        %v1541 = vlaneseq
        %v1542 = vshrl.u32 %v1541, 7
        %v1543 = vsub.s32 0, %v1542
        %v1544 = vrot.slane %v1461, %v1543
        %v1546 = vmul.f32 %v1538, %v1544
        %v1547 = vmul.f32 %v1539, %v1544
        %v1549 = vlaneseq
        %v1550 = vshrl.u32 %v1549, 7
        %v1551 = vsub.s32 0, %v1550
        %v1552 = vrot.slane %v1463, %v1551
        %v1554 = vadd.f32 %v1546, %v1552
        %v1555 = vadd.f32 %v1547, %v1552
        %v1557 = vlaneseq
        %v1558 = vshrl.u32 %v1557, 7
        %v1559 = vsub.s32 0, %v1558
        %v1560 = vrot.slane %v1465, %v1559
        %v1563 = vsel %vm474, %v1554, 0
        %v1566 = vsel %vm474, %v1555, 0
        %1568 = vmatprep.subr.mxu0 0.0
        %1569 = vmatpush1.msra.mxu0 %v1479
        %1570 = vmatprep.subr.mxu0 0.0
        %1571 = vmatpush1.msra.mxu0 %v1480
        %1572 = vmatprep.subr.mxu0 0.0
        %1573 = vmatpush1.msra.mxu0 %v1481
        %1574 = vmatprep.subr.mxu0 0.0
        %1575 = vmatpush1.msra.mxu0 %v1482
        %1576 = vmatprep.subr.mxu0 0.0
        %1577 = vmatpush1.msra.mxu0 0.0
        %1578 = vmatprep.subr.mxu0 0.0
        %1579 = vmatpush1.msra.mxu0 0.0
        %1580 = vmatprep.subr.mxu0 0.0
        %1581 = vmatpush1.msra.mxu0 0.0
        %1582 = vmatprep.subr.mxu0 0.0
        %1583 = vmatpush1.msra.mxu0 0.0
        %1584 = vmatprep.subr.mxu0 0.0
        %1585 = vmatpush1.msra.mxu0 0.0
        %1586 = vmatprep.subr.mxu0 0.0
        %1587 = vmatpush1.msra.mxu0 0.0
        %1588 = vmatprep.subr.mxu0 0.0
        %1589 = vmatpush1.msra.mxu0 0.0
        %1590 = vmatprep.subr.mxu0 0.0
        %1591 = vmatpush1.msra.mxu0 0.0
        %1592 = vmatprep.subr.mxu0 0.0
        %1593 = vmatpush1.msra.mxu0 0.0
        %1594 = vmatprep.subr.mxu0 0.0
        %1595 = vmatpush1.msra.mxu0 0.0
        %1596 = vmatprep.subr.mxu0 0.0
        %1597 = vmatpush1.msra.mxu0 0.0
        %1598 = vmatprep.subr.mxu0 0.0
        %1599 = vmatpush1.msra.mxu0 0.0
        %1600 = vmatprep.subr.mxu0 0.0
        %1601 = vmatpush1.msra.mxu0 0.0
        %1602 = vmatprep.subr.mxu0 0.0
        %1603 = vmatpush1.msra.mxu0 0.0
        %1604 = vmatprep.subr.mxu0 0.0
        %1605 = vmatpush1.msra.mxu0 0.0
        %1606 = vmatprep.subr.mxu0 0.0
        %1607 = vmatpush1.msra.mxu0 0.0
        %1608 = vmatprep.subr.mxu0 0.0
        %1609 = vmatpush1.msra.mxu0 0.0
        %1610 = vmatprep.subr.mxu0 0.0
        %1611 = vmatpush1.msra.mxu0 0.0
        %1612 = vmatprep.subr.mxu0 0.0
        %1613 = vmatpush1.msra.mxu0 0.0
        %1614 = vmatprep.subr.mxu0 0.0
        %1615 = vmatpush1.msra.mxu0 0.0
        %1616 = vmatprep.subr.mxu0 0.0
        %1617 = vmatpush1.msra.mxu0 0.0
        %1618 = vmatprep.subr.mxu0 0.0
        %1619 = vmatpush1.msra.mxu0 0.0
        %1620 = vmatprep.subr.mxu0 0.0
        %1621 = vmatpush1.msra.mxu0 0.0
        %1622 = vmatprep.subr.mxu0 0.0
        %1623 = vmatpush1.msra.mxu0 0.0
        %1624 = vmatprep.subr.mxu0 0.0
        %1625 = vmatpush1.msra.mxu0 0.0
        %1626 = vmatprep.subr.mxu0 0.0
        %1627 = vmatpush1.msra.mxu0 0.0
        %1628 = vmatprep.subr.mxu0 0.0
        %1629 = vmatpush1.msra.mxu0 0.0
        %1630 = vmatprep.subr.mxu0 0.0
        %1631 = vmatpush1.msra.mxu0 0.0
        %1632 = vmatprep.mubr.f32.mxu0 0.0
        %1633 = vmatmul.mubr.f32.gmra.mrb[0].mxu0 %v1563
        %v1634 = vpop.f32.mrb[0].mxu0
        %v1635 = vadd.f32 %v1560, %v1634
        %v1636 = vpop.f32.mrb[0].mxu0
        %1637 = vmatprep.mubr.f32.mxu0 0.0
        %1638 = vmatmul.mubr.f32.gmra.mrb[0].mxu0 %v1566
        %v1639 = vpop.f32.mrb[0].mxu0
        %v1640 = vadd.f32 %v1560, %v1639
        %v1641 = vpop.f32.mrb[0].mxu0
        %1642 = vdwg.mxu0
        %v1644 = vlaneseq
        %v1645 = vshrl.u32 %v1644, 7
        %v1646 = vsub.s32 0, %v1645
        %v1647 = vrot.slane %v1467, %v1646
        %1649 = vmatprep.subr.mxu0 0.0
        %1650 = vmatpush1.msra.mxu0 %v1484
        %1651 = vmatprep.subr.mxu0 0.0
        %1652 = vmatpush1.msra.mxu0 %v1485
        %1653 = vmatprep.subr.mxu0 0.0
        %1654 = vmatpush1.msra.mxu0 %v1486
        %1655 = vmatprep.subr.mxu0 0.0
        %1656 = vmatpush1.msra.mxu0 %v1487
        %1657 = vmatprep.subr.mxu0 0.0
        %1658 = vmatpush1.msra.mxu0 0.0
        %1659 = vmatprep.subr.mxu0 0.0
        %1660 = vmatpush1.msra.mxu0 0.0
        %1661 = vmatprep.subr.mxu0 0.0
        %1662 = vmatpush1.msra.mxu0 0.0
        %1663 = vmatprep.subr.mxu0 0.0
        %1664 = vmatpush1.msra.mxu0 0.0
        %1665 = vmatprep.subr.mxu0 0.0
        %1666 = vmatpush1.msra.mxu0 0.0
        %1667 = vmatprep.subr.mxu0 0.0
        %1668 = vmatpush1.msra.mxu0 0.0
        %1669 = vmatprep.subr.mxu0 0.0
        %1670 = vmatpush1.msra.mxu0 0.0
        %1671 = vmatprep.subr.mxu0 0.0
        %1672 = vmatpush1.msra.mxu0 0.0
        %1673 = vmatprep.subr.mxu0 0.0
        %1674 = vmatpush1.msra.mxu0 0.0
        %1675 = vmatprep.subr.mxu0 0.0
        %1676 = vmatpush1.msra.mxu0 0.0
        %1677 = vmatprep.subr.mxu0 0.0
        %1678 = vmatpush1.msra.mxu0 0.0
        %1679 = vmatprep.subr.mxu0 0.0
        %1680 = vmatpush1.msra.mxu0 0.0
        %1681 = vmatprep.subr.mxu0 0.0
        %1682 = vmatpush1.msra.mxu0 0.0
        %1683 = vmatprep.subr.mxu0 0.0
        %1684 = vmatpush1.msra.mxu0 0.0
        %1685 = vmatprep.subr.mxu0 0.0
        %1686 = vmatpush1.msra.mxu0 0.0
        %1687 = vmatprep.subr.mxu0 0.0
        %1688 = vmatpush1.msra.mxu0 0.0
        %1689 = vmatprep.subr.mxu0 0.0
        %1690 = vmatpush1.msra.mxu0 0.0
        %1691 = vmatprep.subr.mxu0 0.0
        %1692 = vmatpush1.msra.mxu0 0.0
        %1693 = vmatprep.subr.mxu0 0.0
        %1694 = vmatpush1.msra.mxu0 0.0
        %1695 = vmatprep.subr.mxu0 0.0
        %1696 = vmatpush1.msra.mxu0 0.0
        %1697 = vmatprep.subr.mxu0 0.0
        %1698 = vmatpush1.msra.mxu0 0.0
        %1699 = vmatprep.subr.mxu0 0.0
        %1700 = vmatpush1.msra.mxu0 0.0
        %1701 = vmatprep.subr.mxu0 0.0
        %1702 = vmatpush1.msra.mxu0 0.0
        %1703 = vmatprep.subr.mxu0 0.0
        %1704 = vmatpush1.msra.mxu0 0.0
        %1705 = vmatprep.subr.mxu0 0.0
        %1706 = vmatpush1.msra.mxu0 0.0
        %1707 = vmatprep.subr.mxu0 0.0
        %1708 = vmatpush1.msra.mxu0 0.0
        %1709 = vmatprep.subr.mxu0 0.0
        %1710 = vmatpush1.msra.mxu0 0.0
        %1711 = vmatprep.subr.mxu0 0.0
        %1712 = vmatpush1.msra.mxu0 0.0
        %1713 = vmatprep.mubr.f32.mxu0 0.0
        %1714 = vmatmul.mubr.f32.gmra.mrb[0].mxu0 %v1563
        %v1715 = vpop.f32.mrb[0].mxu0
        %v1716 = vadd.f32 %v1647, %v1715
        %v1717 = vpop.f32.mrb[0].mxu0
        %1718 = vmatprep.mubr.f32.mxu0 0.0
        %1719 = vmatmul.mubr.f32.gmra.mrb[0].mxu0 %v1566
        %v1720 = vpop.f32.mrb[0].mxu0
        %v1721 = vadd.f32 %v1647, %v1720
        %v1722 = vpop.f32.mrb[0].mxu0
        %1723 = vdwg.mxu0
        %v1725 = vlaneseq
        %v1726 = vshrl.u32 %v1725, 7
        %v1727 = vsub.s32 0, %v1726
        %v1728 = vrot.slane %v1469, %v1727
        %1730 = vmatprep.subr.mxu0 0.0
        %1731 = vmatpush1.msra.mxu0 %v1489
        %1732 = vmatprep.subr.mxu0 0.0
        %1733 = vmatpush1.msra.mxu0 %v1490
        %1734 = vmatprep.subr.mxu0 0.0
        %1735 = vmatpush1.msra.mxu0 %v1491
        %1736 = vmatprep.subr.mxu0 0.0
        %1737 = vmatpush1.msra.mxu0 %v1492
        %1738 = vmatprep.subr.mxu0 0.0
        %1739 = vmatpush1.msra.mxu0 0.0
        %1740 = vmatprep.subr.mxu0 0.0
        %1741 = vmatpush1.msra.mxu0 0.0
        %1742 = vmatprep.subr.mxu0 0.0
        %1743 = vmatpush1.msra.mxu0 0.0
        %1744 = vmatprep.subr.mxu0 0.0
        %1745 = vmatpush1.msra.mxu0 0.0
        %1746 = vmatprep.subr.mxu0 0.0
        %1747 = vmatpush1.msra.mxu0 0.0
        %1748 = vmatprep.subr.mxu0 0.0
        %1749 = vmatpush1.msra.mxu0 0.0
        %1750 = vmatprep.subr.mxu0 0.0
        %1751 = vmatpush1.msra.mxu0 0.0
        %1752 = vmatprep.subr.mxu0 0.0
        %1753 = vmatpush1.msra.mxu0 0.0
        %1754 = vmatprep.subr.mxu0 0.0
        %1755 = vmatpush1.msra.mxu0 0.0
        %1756 = vmatprep.subr.mxu0 0.0
        %1757 = vmatpush1.msra.mxu0 0.0
        %1758 = vmatprep.subr.mxu0 0.0
        %1759 = vmatpush1.msra.mxu0 0.0
        %1760 = vmatprep.subr.mxu0 0.0
        %1761 = vmatpush1.msra.mxu0 0.0
        %1762 = vmatprep.subr.mxu0 0.0
        %1763 = vmatpush1.msra.mxu0 0.0
        %1764 = vmatprep.subr.mxu0 0.0
        %1765 = vmatpush1.msra.mxu0 0.0
        %1766 = vmatprep.subr.mxu0 0.0
        %1767 = vmatpush1.msra.mxu0 0.0
        %1768 = vmatprep.subr.mxu0 0.0
        %1769 = vmatpush1.msra.mxu0 0.0
        %1770 = vmatprep.subr.mxu0 0.0
        %1771 = vmatpush1.msra.mxu0 0.0
        %1772 = vmatprep.subr.mxu0 0.0
        %1773 = vmatpush1.msra.mxu0 0.0
        %1774 = vmatprep.subr.mxu0 0.0
        %1775 = vmatpush1.msra.mxu0 0.0
        %1776 = vmatprep.subr.mxu0 0.0
        %1777 = vmatpush1.msra.mxu0 0.0
        %1778 = vmatprep.subr.mxu0 0.0
        %1779 = vmatpush1.msra.mxu0 0.0
        %1780 = vmatprep.subr.mxu0 0.0
        %1781 = vmatpush1.msra.mxu0 0.0
        %1782 = vmatprep.subr.mxu0 0.0
        %1783 = vmatpush1.msra.mxu0 0.0
        %1784 = vmatprep.subr.mxu0 0.0
        %1785 = vmatpush1.msra.mxu0 0.0
        %1786 = vmatprep.subr.mxu0 0.0
        %1787 = vmatpush1.msra.mxu0 0.0
        %1788 = vmatprep.subr.mxu0 0.0
        %1789 = vmatpush1.msra.mxu0 0.0
        %1790 = vmatprep.subr.mxu0 0.0
        %1791 = vmatpush1.msra.mxu0 0.0
        %1792 = vmatprep.subr.mxu0 0.0
        %1793 = vmatpush1.msra.mxu0 0.0
        %1794 = vmatprep.mubr.f32.mxu0 0.0
        %1795 = vmatmul.mubr.f32.gmra.mrb[0].mxu0 %v1563
        %v1796 = vpop.f32.mrb[0].mxu0
        %v1797 = vadd.f32 %v1728, %v1796
        %v1798 = vpop.f32.mrb[0].mxu0
        %1799 = vmatprep.mubr.f32.mxu0 0.0
        %1800 = vmatmul.mubr.f32.gmra.mrb[0].mxu0 %v1566
        %v1801 = vpop.f32.mrb[0].mxu0
        %v1802 = vadd.f32 %v1728, %v1801
        %v1803 = vpop.f32.mrb[0].mxu0
        %1804 = vdwg.mxu0
        %v1805 = vmul.f32 %v1635, 0.35355338
        %v1806 = vmul.f32 %v1640, 0.35355338
        %v1807 = vmul.f32 %v1805, %v408
        %v1808 = vmul.f32 %v1806, %v408
        %v1809 = vmul.f32 %v1805, %v412
        %v1810 = vmul.f32 %v1806, %v412
        %v1811 = vmul.f32 %v1805, %v416
        %v1812 = vmul.f32 %v1806, %v416
        %v1813 = vmul.f32 %v1805, %v420
        %v1814 = vmul.f32 %v1806, %v420
        %v1816 = vsel %vm474, %v1807, 0
        %v1819 = vsel %vm474, %v1808, 0
        %v1822 = vsel %vm474, %v1809, 0
        %v1825 = vsel %vm474, %v1810, 0
        %v1828 = vsel %vm474, %v1811, 0
        %v1831 = vsel %vm474, %v1812, 0
        %v1834 = vsel %vm474, %v1813, 0
        %v1837 = vsel %vm474, %v1814, 0
        %v1840 = vsel %vm474, %v1716, 0
        %v1843 = vsel %vm474, %v1721, 0
        %1845 = vmatprep.subr.mxu0 0.0
        %1846 = vmatpush1.xpose.msra.mxu0 %v1840
        %1847 = vmatprep.subr.mxu0 0.0
        %1848 = vmatpush1.xpose.msra.mxu0 %v1843
        %1849 = vmatprep.subr.mxu0 0.0
        %1850 = vmatpush1.xpose.msra.mxu0 0.0
        %1851 = vmatprep.subr.mxu0 0.0
        %1852 = vmatpush1.xpose.msra.mxu0 0.0
        %1853 = vmatprep.subr.mxu0 0.0
        %1854 = vmatpush1.xpose.msra.mxu0 0.0
        %1855 = vmatprep.subr.mxu0 0.0
        %1856 = vmatpush1.xpose.msra.mxu0 0.0
        %1857 = vmatprep.subr.mxu0 0.0
        %1858 = vmatpush1.xpose.msra.mxu0 0.0
        %1859 = vmatprep.subr.mxu0 0.0
        %1860 = vmatpush1.xpose.msra.mxu0 0.0
        %1861 = vmatprep.subr.mxu0 0.0
        %1862 = vmatpush1.xpose.msra.mxu0 0.0
        %1863 = vmatprep.subr.mxu0 0.0
        %1864 = vmatpush1.xpose.msra.mxu0 0.0
        %1865 = vmatprep.subr.mxu0 0.0
        %1866 = vmatpush1.xpose.msra.mxu0 0.0
        %1867 = vmatprep.subr.mxu0 0.0
        %1868 = vmatpush1.xpose.msra.mxu0 0.0
        %1869 = vmatprep.subr.mxu0 0.0
        %1870 = vmatpush1.xpose.msra.mxu0 0.0
        %1871 = vmatprep.subr.mxu0 0.0
        %1872 = vmatpush1.xpose.msra.mxu0 0.0
        %1873 = vmatprep.subr.mxu0 0.0
        %1874 = vmatpush1.xpose.msra.mxu0 0.0
        %1875 = vmatprep.subr.mxu0 0.0
        %1876 = vmatpush1.xpose.msra.mxu0 0.0
        %1877 = vmatprep.subr.mxu0 0.0
        %1878 = vmatpush1.xpose.msra.mxu0 0.0
        %1879 = vmatprep.subr.mxu0 0.0
        %1880 = vmatpush1.xpose.msra.mxu0 0.0
        %1881 = vmatprep.subr.mxu0 0.0
        %1882 = vmatpush1.xpose.msra.mxu0 0.0
        %1883 = vmatprep.subr.mxu0 0.0
        %1884 = vmatpush1.xpose.msra.mxu0 0.0
        %1885 = vmatprep.subr.mxu0 0.0
        %1886 = vmatpush1.xpose.msra.mxu0 0.0
        %1887 = vmatprep.subr.mxu0 0.0
        %1888 = vmatpush1.xpose.msra.mxu0 0.0
        %1889 = vmatprep.subr.mxu0 0.0
        %1890 = vmatpush1.xpose.msra.mxu0 0.0
        %1891 = vmatprep.subr.mxu0 0.0
        %1892 = vmatpush1.xpose.msra.mxu0 0.0
        %1893 = vmatprep.subr.mxu0 0.0
        %1894 = vmatpush1.xpose.msra.mxu0 0.0
        %1895 = vmatprep.subr.mxu0 0.0
        %1896 = vmatpush1.xpose.msra.mxu0 0.0
        %1897 = vmatprep.subr.mxu0 0.0
        %1898 = vmatpush1.xpose.msra.mxu0 0.0
        %1899 = vmatprep.subr.mxu0 0.0
        %1900 = vmatpush1.xpose.msra.mxu0 0.0
        %1901 = vmatprep.subr.mxu0 0.0
        %1902 = vmatpush1.xpose.msra.mxu0 0.0
        %1903 = vmatprep.subr.mxu0 0.0
        %1904 = vmatpush1.xpose.msra.mxu0 0.0
        %1905 = vmatprep.subr.mxu0 0.0
        %1906 = vmatpush1.xpose.msra.mxu0 0.0
        %1907 = vmatprep.subr.mxu0 0.0
        %1908 = vmatpush1.xpose.msra.mxu0 0.0
        %1909 = vmatprep.mubr.f32.mxu0 0.0
        %1910 = vmatmul.mubr.f32.gmra.mrb[0].mxu0 %v1816
        %v1911 = vpop.f32.mrb[0].mxu0
        %v1912 = vadd.f32 %v781, %v1911
        %v1913 = vpop.f32.mrb[0].mxu0
        %1914 = vmatprep.mubr.f32.mxu0 0.0
        %1915 = vmatmul.mubr.f32.gmra.mrb[0].mxu0 %v1819
        %v1916 = vpop.f32.mrb[0].mxu0
        %v1917 = vadd.f32 %v781, %v1916
        %v1918 = vpop.f32.mrb[0].mxu0
        %1919 = vmatprep.mubr.f32.mxu0 0.0
        %1920 = vmatmul.mubr.f32.gmra.mrb[0].mxu0 %v1822
        %v1921 = vpop.f32.mrb[0].mxu0
        %v1922 = vadd.f32 %v781, %v1921
        %v1923 = vpop.f32.mrb[0].mxu0
        %1924 = vmatprep.mubr.f32.mxu0 0.0
        %1925 = vmatmul.mubr.f32.gmra.mrb[0].mxu0 %v1825
        %v1926 = vpop.f32.mrb[0].mxu0
        %v1927 = vadd.f32 %v781, %v1926
        %v1928 = vpop.f32.mrb[0].mxu0
        %1929 = vmatprep.mubr.f32.mxu0 0.0
        %1930 = vmatmul.mubr.f32.gmra.mrb[0].mxu0 %v1828
        %v1931 = vpop.f32.mrb[0].mxu0
        %v1932 = vadd.f32 %v781, %v1931
        %v1933 = vpop.f32.mrb[0].mxu0
        %1934 = vmatprep.mubr.f32.mxu0 0.0
        %1935 = vmatmul.mubr.f32.gmra.mrb[0].mxu0 %v1831
        %v1936 = vpop.f32.mrb[0].mxu0
        %v1937 = vadd.f32 %v781, %v1936
        %v1938 = vpop.f32.mrb[0].mxu0
        %1939 = vmatprep.mubr.f32.mxu0 0.0
        %1940 = vmatmul.mubr.f32.gmra.mrb[0].mxu0 %v1834
        %v1941 = vpop.f32.mrb[0].mxu0
        %v1942 = vadd.f32 %v781, %v1941
        %v1943 = vpop.f32.mrb[0].mxu0
        %1944 = vmatprep.mubr.f32.mxu0 0.0
        %1945 = vmatmul.mubr.f32.gmra.mrb[0].mxu0 %v1837
        %v1946 = vpop.f32.mrb[0].mxu0
        %v1947 = vadd.f32 %v781, %v1946
        %v1948 = vpop.f32.mrb[0].mxu0
        %1949 = vdwg.mxu0
        %v1950 = vsel %vm918, %v1912, -inf
        %1951 = vmax.xlane.f32.xlu0 %v1950
        %v1952 = vpop.xlane.xlu0 %1951
        %v1953 = vsel %vm918, %v1917, -inf
        %1954 = vmax.xlane.f32.xlu0 %v1953
        %v1955 = vpop.xlane.xlu0 %1954
        %v1956 = vsel %vm918, %v1922, -inf
        %1957 = vmax.xlane.f32.xlu0 %v1956
        %v1958 = vpop.xlane.xlu0 %1957
        %v1959 = vsel %vm918, %v1927, -inf
        %1960 = vmax.xlane.f32.xlu0 %v1959
        %v1961 = vpop.xlane.xlu0 %1960
        %v1962 = vsel %vm918, %v1932, -inf
        %1963 = vmax.xlane.f32.xlu0 %v1962
        %v1964 = vpop.xlane.xlu0 %1963
        %v1965 = vsel %vm918, %v1937, -inf
        %1966 = vmax.xlane.f32.xlu0 %v1965
        %v1967 = vpop.xlane.xlu0 %1966
        %v1968 = vsel %vm918, %v1942, -inf
        %1969 = vmax.xlane.f32.xlu0 %v1968
        %v1970 = vpop.xlane.xlu0 %1969
        %v1971 = vsel %vm918, %v1947, -inf
        %1972 = vmax.xlane.f32.xlu0 %v1971
        %v1973 = vpop.xlane.xlu0 %1972
        %v1974 = vsub.f32 %v1912, %v1952
        %v1975 = vsub.f32 %v1917, %v1955
        %v1976 = vsub.f32 %v1922, %v1958
        %v1977 = vsub.f32 %v1927, %v1961
        %v1978 = vsub.f32 %v1932, %v1964
        %v1979 = vsub.f32 %v1937, %v1967
        %v1980 = vsub.f32 %v1942, %v1970
        %v1981 = vsub.f32 %v1947, %v1973
        %v1982 = vmul.f32 %v1974, 1.442695
        %v1983 = vpow.pop %v1982
        %v1984 = vmul.f32 %v1975, 1.442695
        %v1985 = vpow.pop %v1984
        %v1986 = vmul.f32 %v1976, 1.442695
        %v1987 = vpow.pop %v1986
        %v1988 = vmul.f32 %v1977, 1.442695
        %v1989 = vpow.pop %v1988
        %v1990 = vmul.f32 %v1978, 1.442695
        %v1991 = vpow.pop %v1990
        %v1992 = vmul.f32 %v1979, 1.442695
        %v1993 = vpow.pop %v1992
        %v1994 = vmul.f32 %v1980, 1.442695
        %v1995 = vpow.pop %v1994
        %v1996 = vmul.f32 %v1981, 1.442695
        %v1997 = vpow.pop %v1996
        %v1998 = vsel %vm918, %v1983, 0.0
        %1999 = vadd.xlane.f32.xlu0 %v1998
        %v2000 = vpop.xlane.xlu0 %1999
        %v2001 = vsel %vm918, %v1985, 0.0
        %2002 = vadd.xlane.f32.xlu0 %v2001
        %v2003 = vpop.xlane.xlu0 %2002
        %v2004 = vsel %vm918, %v1987, 0.0
        %2005 = vadd.xlane.f32.xlu0 %v2004
        %v2006 = vpop.xlane.xlu0 %2005
        %v2007 = vsel %vm918, %v1989, 0.0
        %2008 = vadd.xlane.f32.xlu0 %v2007
        %v2009 = vpop.xlane.xlu0 %2008
        %v2010 = vsel %vm918, %v1991, 0.0
        %2011 = vadd.xlane.f32.xlu0 %v2010
        %v2012 = vpop.xlane.xlu0 %2011
        %v2013 = vsel %vm918, %v1993, 0.0
        %2014 = vadd.xlane.f32.xlu0 %v2013
        %v2015 = vpop.xlane.xlu0 %2014
        %v2016 = vsel %vm918, %v1995, 0.0
        %2017 = vadd.xlane.f32.xlu0 %v2016
        %v2018 = vpop.xlane.xlu0 %2017
        %v2019 = vsel %vm918, %v1997, 0.0
        %2020 = vadd.xlane.f32.xlu0 %v2019
        %v2021 = vpop.xlane.xlu0 %2020
        %v2022 = vrcp.pop %v2000
        %v2023 = vrcp.pop %v2003
        %v2024 = vrcp.pop %v2006
        %v2025 = vrcp.pop %v2009
        %v2026 = vrcp.pop %v2012
        %v2027 = vrcp.pop %v2015
        %v2028 = vrcp.pop %v2018
        %v2029 = vrcp.pop %v2021
        %v2030 = vmul.f32 %v1983, %v2022
        %v2031 = vmul.f32 %v1985, %v2023
        %v2032 = vmul.f32 %v1987, %v2024
        %v2033 = vmul.f32 %v1989, %v2025
        %v2034 = vmul.f32 %v1991, %v2026
        %v2035 = vmul.f32 %v1993, %v2027
        %v2036 = vmul.f32 %v1995, %v2028
        %v2037 = vmul.f32 %v1997, %v2029
        %v2039 = vsel %vm918, %v2030, 0
        %v2042 = vsel %vm918, %v2031, 0
        %v2045 = vsel %vm918, %v2032, 0
        %v2048 = vsel %vm918, %v2033, 0
        %v2051 = vsel %vm918, %v2034, 0
        %v2054 = vsel %vm918, %v2035, 0
        %v2057 = vsel %vm918, %v2036, 0
        %v2060 = vsel %vm918, %v2037, 0
        %2062 = vmatprep.subr.mxu0 0.0
        %2063 = vmatpush1.msra.mxu0 %v1797
        %2064 = vmatprep.subr.mxu0 0.0
        %2065 = vmatpush1.msra.mxu0 %v1802
        %2066 = vmatprep.subr.mxu0 0.0
        %2067 = vmatpush1.msra.mxu0 0.0
        %2068 = vmatprep.subr.mxu0 0.0
        %2069 = vmatpush1.msra.mxu0 0.0
        %2070 = vmatprep.subr.mxu0 0.0
        %2071 = vmatpush1.msra.mxu0 0.0
        %2072 = vmatprep.subr.mxu0 0.0
        %2073 = vmatpush1.msra.mxu0 0.0
        %2074 = vmatprep.subr.mxu0 0.0
        %2075 = vmatpush1.msra.mxu0 0.0
        %2076 = vmatprep.subr.mxu0 0.0
        %2077 = vmatpush1.msra.mxu0 0.0
        %2078 = vmatprep.subr.mxu0 0.0
        %2079 = vmatpush1.msra.mxu0 0.0
        %2080 = vmatprep.subr.mxu0 0.0
        %2081 = vmatpush1.msra.mxu0 0.0
        %2082 = vmatprep.subr.mxu0 0.0
        %2083 = vmatpush1.msra.mxu0 0.0
        %2084 = vmatprep.subr.mxu0 0.0
        %2085 = vmatpush1.msra.mxu0 0.0
        %2086 = vmatprep.subr.mxu0 0.0
        %2087 = vmatpush1.msra.mxu0 0.0
        %2088 = vmatprep.subr.mxu0 0.0
        %2089 = vmatpush1.msra.mxu0 0.0
        %2090 = vmatprep.subr.mxu0 0.0
        %2091 = vmatpush1.msra.mxu0 0.0
        %2092 = vmatprep.subr.mxu0 0.0
        %2093 = vmatpush1.msra.mxu0 0.0
        %2094 = vmatprep.subr.mxu0 0.0
        %2095 = vmatpush1.msra.mxu0 0.0
        %2096 = vmatprep.subr.mxu0 0.0
        %2097 = vmatpush1.msra.mxu0 0.0
        %2098 = vmatprep.subr.mxu0 0.0
        %2099 = vmatpush1.msra.mxu0 0.0
        %2100 = vmatprep.subr.mxu0 0.0
        %2101 = vmatpush1.msra.mxu0 0.0
        %2102 = vmatprep.subr.mxu0 0.0
        %2103 = vmatpush1.msra.mxu0 0.0
        %2104 = vmatprep.subr.mxu0 0.0
        %2105 = vmatpush1.msra.mxu0 0.0
        %2106 = vmatprep.subr.mxu0 0.0
        %2107 = vmatpush1.msra.mxu0 0.0
        %2108 = vmatprep.subr.mxu0 0.0
        %2109 = vmatpush1.msra.mxu0 0.0
        %2110 = vmatprep.subr.mxu0 0.0
        %2111 = vmatpush1.msra.mxu0 0.0
        %2112 = vmatprep.subr.mxu0 0.0
        %2113 = vmatpush1.msra.mxu0 0.0
        %2114 = vmatprep.subr.mxu0 0.0
        %2115 = vmatpush1.msra.mxu0 0.0
        %2116 = vmatprep.subr.mxu0 0.0
        %2117 = vmatpush1.msra.mxu0 0.0
        %2118 = vmatprep.subr.mxu0 0.0
        %2119 = vmatpush1.msra.mxu0 0.0
        %2120 = vmatprep.subr.mxu0 0.0
        %2121 = vmatpush1.msra.mxu0 0.0
        %2122 = vmatprep.subr.mxu0 0.0
        %2123 = vmatpush1.msra.mxu0 0.0
        %2124 = vmatprep.subr.mxu0 0.0
        %2125 = vmatpush1.msra.mxu0 0.0
        %2126 = vmatprep.mubr.f32.mxu0 0.0
        %2127 = vmatmul.mubr.f32.gmra.mrb[0].mxu0 %v2039
        %v2128 = vpop.f32.mrb[0].mxu0
        %v2129 = vadd.f32 0.0, %v2128
        %v2130 = vpop.f32.mrb[0].mxu0
        %2131 = vmatprep.mubr.f32.mxu0 0.0
        %2132 = vmatmul.mubr.f32.gmra.mrb[0].mxu0 %v2042
        %v2133 = vpop.f32.mrb[0].mxu0
        %v2134 = vadd.f32 0.0, %v2133
        %v2135 = vpop.f32.mrb[0].mxu0
        %2136 = vmatprep.mubr.f32.mxu0 0.0
        %2137 = vmatmul.mubr.f32.gmra.mrb[0].mxu0 %v2045
        %v2138 = vpop.f32.mrb[0].mxu0
        %v2139 = vadd.f32 0.0, %v2138
        %v2140 = vpop.f32.mrb[0].mxu0
        %2141 = vmatprep.mubr.f32.mxu0 0.0
        %2142 = vmatmul.mubr.f32.gmra.mrb[0].mxu0 %v2048
        %v2143 = vpop.f32.mrb[0].mxu0
        %v2144 = vadd.f32 0.0, %v2143
        %v2145 = vpop.f32.mrb[0].mxu0
        %2146 = vmatprep.mubr.f32.mxu0 0.0
        %2147 = vmatmul.mubr.f32.gmra.mrb[0].mxu0 %v2051
        %v2148 = vpop.f32.mrb[0].mxu0
        %v2149 = vadd.f32 0.0, %v2148
        %v2150 = vpop.f32.mrb[0].mxu0
        %2151 = vmatprep.mubr.f32.mxu0 0.0
        %2152 = vmatmul.mubr.f32.gmra.mrb[0].mxu0 %v2054
        %v2153 = vpop.f32.mrb[0].mxu0
        %v2154 = vadd.f32 0.0, %v2153
        %v2155 = vpop.f32.mrb[0].mxu0
        %2156 = vmatprep.mubr.f32.mxu0 0.0
        %2157 = vmatmul.mubr.f32.gmra.mrb[0].mxu0 %v2057
        %v2158 = vpop.f32.mrb[0].mxu0
        %v2159 = vadd.f32 0.0, %v2158
        %v2160 = vpop.f32.mrb[0].mxu0
        %2161 = vmatprep.mubr.f32.mxu0 0.0
        %2162 = vmatmul.mubr.f32.gmra.mrb[0].mxu0 %v2060
        %v2163 = vpop.f32.mrb[0].mxu0
        %v2164 = vadd.f32 0.0, %v2163
        %v2165 = vpop.f32.mrb[0].mxu0
        %2166 = vdwg.mxu0
        %v2167 = vmul.f32 %v2129, %v408
        %v2168 = vmul.f32 %v2134, %v408
        %v2169 = vmul.f32 %v2139, %v412
        %v2170 = vmul.f32 %v2144, %v412
        %v2171 = vadd.f32 %v2167, %v2169
        %v2172 = vadd.f32 %v2168, %v2170
        %v2173 = vmul.f32 %v2149, %v416
        %v2174 = vmul.f32 %v2154, %v416
        %v2175 = vadd.f32 %v2171, %v2173
        %v2176 = vadd.f32 %v2172, %v2174
        %v2177 = vmul.f32 %v2159, %v420
        %v2178 = vmul.f32 %v2164, %v420
        %v2179 = vadd.f32 %v2175, %v2177
        %v2180 = vadd.f32 %v2176, %v2178
        %v2182 = vlaneseq
        %v2183 = vshrl.u32 %v2182, 7
        %v2184 = vsub.s32 0, %v2183
        %v2185 = vrot.slane %v1471, %v2184
        %v2188 = vsel %vm474, %v2179, 0
        %v2191 = vsel %vm474, %v2180, 0
        %2193 = vmatprep.subr.mxu0 0.0
        %2194 = vmatpush1.msra.mxu0 %v1494
        %2195 = vmatprep.subr.mxu0 0.0
        %2196 = vmatpush1.msra.mxu0 %v1495
        %2197 = vmatprep.subr.mxu0 0.0
        %2198 = vmatpush1.msra.mxu0 %v1496
        %2199 = vmatprep.subr.mxu0 0.0
        %2200 = vmatpush1.msra.mxu0 %v1497
        %2201 = vmatprep.subr.mxu0 0.0
        %2202 = vmatpush1.msra.mxu0 0.0
        %2203 = vmatprep.subr.mxu0 0.0
        %2204 = vmatpush1.msra.mxu0 0.0
        %2205 = vmatprep.subr.mxu0 0.0
        %2206 = vmatpush1.msra.mxu0 0.0
        %2207 = vmatprep.subr.mxu0 0.0
        %2208 = vmatpush1.msra.mxu0 0.0
        %2209 = vmatprep.subr.mxu0 0.0
        %2210 = vmatpush1.msra.mxu0 0.0
        %2211 = vmatprep.subr.mxu0 0.0
        %2212 = vmatpush1.msra.mxu0 0.0
        %2213 = vmatprep.subr.mxu0 0.0
        %2214 = vmatpush1.msra.mxu0 0.0
        %2215 = vmatprep.subr.mxu0 0.0
        %2216 = vmatpush1.msra.mxu0 0.0
        %2217 = vmatprep.subr.mxu0 0.0
        %2218 = vmatpush1.msra.mxu0 0.0
        %2219 = vmatprep.subr.mxu0 0.0
        %2220 = vmatpush1.msra.mxu0 0.0
        %2221 = vmatprep.subr.mxu0 0.0
        %2222 = vmatpush1.msra.mxu0 0.0
        %2223 = vmatprep.subr.mxu0 0.0
        %2224 = vmatpush1.msra.mxu0 0.0
        %2225 = vmatprep.subr.mxu0 0.0
        %2226 = vmatpush1.msra.mxu0 0.0
        %2227 = vmatprep.subr.mxu0 0.0
        %2228 = vmatpush1.msra.mxu0 0.0
        %2229 = vmatprep.subr.mxu0 0.0
        %2230 = vmatpush1.msra.mxu0 0.0
        %2231 = vmatprep.subr.mxu0 0.0
        %2232 = vmatpush1.msra.mxu0 0.0
        %2233 = vmatprep.subr.mxu0 0.0
        %2234 = vmatpush1.msra.mxu0 0.0
        %2235 = vmatprep.subr.mxu0 0.0
        %2236 = vmatpush1.msra.mxu0 0.0
        %2237 = vmatprep.subr.mxu0 0.0
        %2238 = vmatpush1.msra.mxu0 0.0
        %2239 = vmatprep.subr.mxu0 0.0
        %2240 = vmatpush1.msra.mxu0 0.0
        %2241 = vmatprep.subr.mxu0 0.0
        %2242 = vmatpush1.msra.mxu0 0.0
        %2243 = vmatprep.subr.mxu0 0.0
        %2244 = vmatpush1.msra.mxu0 0.0
        %2245 = vmatprep.subr.mxu0 0.0
        %2246 = vmatpush1.msra.mxu0 0.0
        %2247 = vmatprep.subr.mxu0 0.0
        %2248 = vmatpush1.msra.mxu0 0.0
        %2249 = vmatprep.subr.mxu0 0.0
        %2250 = vmatpush1.msra.mxu0 0.0
        %2251 = vmatprep.subr.mxu0 0.0
        %2252 = vmatpush1.msra.mxu0 0.0
        %2253 = vmatprep.subr.mxu0 0.0
        %2254 = vmatpush1.msra.mxu0 0.0
        %2255 = vmatprep.subr.mxu0 0.0
        %2256 = vmatpush1.msra.mxu0 0.0
        %2257 = vmatprep.mubr.f32.mxu0 0.0
        %2258 = vmatmul.mubr.f32.gmra.mrb[0].mxu0 %v2188
        %v2259 = vpop.f32.mrb[0].mxu0
        %v2260 = vadd.f32 %v2185, %v2259
        %v2261 = vpop.f32.mrb[0].mxu0
        %2262 = vmatprep.mubr.f32.mxu0 0.0
        %2263 = vmatmul.mubr.f32.gmra.mrb[0].mxu0 %v2191
        %v2264 = vpop.f32.mrb[0].mxu0
        %v2265 = vadd.f32 %v2185, %v2264
        %v2266 = vpop.f32.mrb[0].mxu0
        %2267 = vdwg.mxu0
        %v2268 = vadd.f32 %v2260, %v1458
        %v2269 = vadd.f32 %v2265, %v1459
        %v2270 = vsel %vm474, %v2268, 0.0
        %2271 = vadd.xlane.f32.xlu0 %v2270
        %v2272 = vpop.xlane.xlu0 %2271
        %v2273 = vsel %vm474, %v2269, 0.0
        %2274 = vadd.xlane.f32.xlu0 %v2273
        %v2275 = vpop.xlane.xlu0 %2274
        %v2276 = vmul.f32 %v2272, %v481
        %v2277 = vmul.f32 %v2275, %v481
        %v2278 = vsub.f32 %v2268, %v2276
        %v2279 = vsub.f32 %v2269, %v2277
        %v2280 = vmul.f32 %v2278, %v2278
        %v2281 = vmul.f32 %v2279, %v2279
        %v2282 = vsel %vm474, %v2280, 0.0
        %2283 = vadd.xlane.f32.xlu0 %v2282
        %v2284 = vpop.xlane.xlu0 %2283
        %v2285 = vsel %vm474, %v2281, 0.0
        %2286 = vadd.xlane.f32.xlu0 %v2285
        %v2287 = vpop.xlane.xlu0 %2286
        %v2288 = vmul.f32 %v2284, %v481
        %v2289 = vmul.f32 %v2287, %v481
        %v2290 = vadd.f32 %v2288, 1e-06
        %v2291 = vadd.f32 %v2289, 1e-06
        %v2292 = vrsqrt.pop %v2290
        %v2293 = vrsqrt.pop %v2291
        %v2294 = vmul.f32 %v2278, %v2292
        %v2295 = vmul.f32 %v2279, %v2293
        %v2297 = vlaneseq
        %v2298 = vshrl.u32 %v2297, 7
        %v2299 = vsub.s32 0, %v2298
        %v2300 = vrot.slane %v1473, %v2299
        %v2302 = vmul.f32 %v2294, %v2300
        %v2303 = vmul.f32 %v2295, %v2300
        %v2305 = vlaneseq
        %v2306 = vshrl.u32 %v2305, 7
        %v2307 = vsub.s32 0, %v2306
        %v2308 = vrot.slane %v1475, %v2307
        %v2310 = vadd.f32 %v2302, %v2308
        %v2311 = vadd.f32 %v2303, %v2308
        %v2313 = vlaneseq
        %v2314 = vshrl.u32 %v2313, 7
        %v2315 = vsub.s32 0, %v2314
        %v2316 = vrot.slane %v1504, %v2315
        %v2319 = vsel %vm474, %v2310, 0
        %v2322 = vsel %vm474, %v2311, 0
        %2324 = vmatprep.subr.mxu0 0.0
        %2325 = vmatpush1.msra.mxu0 %v1499
        %2326 = vmatprep.subr.mxu0 0.0
        %2327 = vmatpush1.msra.mxu0 %v1500
        %2328 = vmatprep.subr.mxu0 0.0
        %2329 = vmatpush1.msra.mxu0 %v1501
        %2330 = vmatprep.subr.mxu0 0.0
        %2331 = vmatpush1.msra.mxu0 %v1502
        %2332 = vmatprep.subr.mxu0 0.0
        %2333 = vmatpush1.msra.mxu0 0.0
        %2334 = vmatprep.subr.mxu0 0.0
        %2335 = vmatpush1.msra.mxu0 0.0
        %2336 = vmatprep.subr.mxu0 0.0
        %2337 = vmatpush1.msra.mxu0 0.0
        %2338 = vmatprep.subr.mxu0 0.0
        %2339 = vmatpush1.msra.mxu0 0.0
        %2340 = vmatprep.subr.mxu0 0.0
        %2341 = vmatpush1.msra.mxu0 0.0
        %2342 = vmatprep.subr.mxu0 0.0
        %2343 = vmatpush1.msra.mxu0 0.0
        %2344 = vmatprep.subr.mxu0 0.0
        %2345 = vmatpush1.msra.mxu0 0.0
        %2346 = vmatprep.subr.mxu0 0.0
        %2347 = vmatpush1.msra.mxu0 0.0
        %2348 = vmatprep.subr.mxu0 0.0
        %2349 = vmatpush1.msra.mxu0 0.0
        %2350 = vmatprep.subr.mxu0 0.0
        %2351 = vmatpush1.msra.mxu0 0.0
        %2352 = vmatprep.subr.mxu0 0.0
        %2353 = vmatpush1.msra.mxu0 0.0
        %2354 = vmatprep.subr.mxu0 0.0
        %2355 = vmatpush1.msra.mxu0 0.0
        %2356 = vmatprep.subr.mxu0 0.0
        %2357 = vmatpush1.msra.mxu0 0.0
        %2358 = vmatprep.subr.mxu0 0.0
        %2359 = vmatpush1.msra.mxu0 0.0
        %2360 = vmatprep.subr.mxu0 0.0
        %2361 = vmatpush1.msra.mxu0 0.0
        %2362 = vmatprep.subr.mxu0 0.0
        %2363 = vmatpush1.msra.mxu0 0.0
        %2364 = vmatprep.subr.mxu0 0.0
        %2365 = vmatpush1.msra.mxu0 0.0
        %2366 = vmatprep.subr.mxu0 0.0
        %2367 = vmatpush1.msra.mxu0 0.0
        %2368 = vmatprep.subr.mxu0 0.0
        %2369 = vmatpush1.msra.mxu0 0.0
        %2370 = vmatprep.subr.mxu0 0.0
        %2371 = vmatpush1.msra.mxu0 0.0
        %2372 = vmatprep.subr.mxu0 0.0
        %2373 = vmatpush1.msra.mxu0 0.0
        %2374 = vmatprep.subr.mxu0 0.0
        %2375 = vmatpush1.msra.mxu0 0.0
        %2376 = vmatprep.subr.mxu0 0.0
        %2377 = vmatpush1.msra.mxu0 0.0
        %2378 = vmatprep.subr.mxu0 0.0
        %2379 = vmatpush1.msra.mxu0 0.0
        %2380 = vmatprep.subr.mxu0 0.0
        %2381 = vmatpush1.msra.mxu0 0.0
        %2382 = vmatprep.subr.mxu0 0.0
        %2383 = vmatpush1.msra.mxu0 0.0
        %2384 = vmatprep.subr.mxu0 0.0
        %2385 = vmatpush1.msra.mxu0 0.0
        %2386 = vmatprep.subr.mxu0 0.0
        %2387 = vmatpush1.msra.mxu0 0.0
        %2388 = vmatprep.mubr.f32.mxu0 0.0
        %2389 = vmatmul.mubr.f32.gmra.mrb[0].mxu0 %v2319
        %v2390 = vpop.f32.mrb[0].mxu0
        %v2391 = vadd.f32 %v2316, %v2390
        %v2392 = vpop.f32.mrb[0].mxu0
        %2393 = vmatprep.mubr.f32.mxu0 0.0
        %2394 = vmatmul.mubr.f32.gmra.mrb[0].mxu0 %v2322
        %v2395 = vpop.f32.mrb[0].mxu0
        %v2396 = vadd.f32 %v2316, %v2395
        %v2397 = vpop.f32.mrb[0].mxu0
        %2398 = vdwg.mxu0
        %v2399 = vmax.f32 %v2391, 0.0
        %v2400 = vmax.f32 %v2396, 0.0
        %v2402 = vlaneseq
        %v2403 = vshrl.u32 %v2402, 7
        %v2404 = vsub.s32 0, %v2403
        %v2405 = vrot.slane %v1477, %v2404
        %v2408 = vsel %vm1376, %v2399, 0
        %v2411 = vsel %vm1376, %v2400, 0
        %2413 = vmatprep.subr.mxu0 0.0
        %2414 = vmatpush1.msra.mxu0 %v1506
        %2415 = vmatprep.subr.mxu0 0.0
        %2416 = vmatpush1.msra.mxu0 %v1507
        %2417 = vmatprep.subr.mxu0 0.0
        %2418 = vmatpush1.msra.mxu0 %v1508
        %2419 = vmatprep.subr.mxu0 0.0
        %2420 = vmatpush1.msra.mxu0 %v1509
        %2421 = vmatprep.subr.mxu0 0.0
        %2422 = vmatpush1.msra.mxu0 %v1510
        %2423 = vmatprep.subr.mxu0 0.0
        %2424 = vmatpush1.msra.mxu0 %v1511
        %2425 = vmatprep.subr.mxu0 0.0
        %2426 = vmatpush1.msra.mxu0 %v1512
        %2427 = vmatprep.subr.mxu0 0.0
        %2428 = vmatpush1.msra.mxu0 %v1513
        %2429 = vmatprep.subr.mxu0 0.0
        %2430 = vmatpush1.msra.mxu0 0.0
        %2431 = vmatprep.subr.mxu0 0.0
        %2432 = vmatpush1.msra.mxu0 0.0
        %2433 = vmatprep.subr.mxu0 0.0
        %2434 = vmatpush1.msra.mxu0 0.0
        %2435 = vmatprep.subr.mxu0 0.0
        %2436 = vmatpush1.msra.mxu0 0.0
        %2437 = vmatprep.subr.mxu0 0.0
        %2438 = vmatpush1.msra.mxu0 0.0
        %2439 = vmatprep.subr.mxu0 0.0
        %2440 = vmatpush1.msra.mxu0 0.0
        %2441 = vmatprep.subr.mxu0 0.0
        %2442 = vmatpush1.msra.mxu0 0.0
        %2443 = vmatprep.subr.mxu0 0.0
        %2444 = vmatpush1.msra.mxu0 0.0
        %2445 = vmatprep.subr.mxu0 0.0
        %2446 = vmatpush1.msra.mxu0 0.0
        %2447 = vmatprep.subr.mxu0 0.0
        %2448 = vmatpush1.msra.mxu0 0.0
        %2449 = vmatprep.subr.mxu0 0.0
        %2450 = vmatpush1.msra.mxu0 0.0
        %2451 = vmatprep.subr.mxu0 0.0
        %2452 = vmatpush1.msra.mxu0 0.0
        %2453 = vmatprep.subr.mxu0 0.0
        %2454 = vmatpush1.msra.mxu0 0.0
        %2455 = vmatprep.subr.mxu0 0.0
        %2456 = vmatpush1.msra.mxu0 0.0
        %2457 = vmatprep.subr.mxu0 0.0
        %2458 = vmatpush1.msra.mxu0 0.0
        %2459 = vmatprep.subr.mxu0 0.0
        %2460 = vmatpush1.msra.mxu0 0.0
        %2461 = vmatprep.subr.mxu0 0.0
        %2462 = vmatpush1.msra.mxu0 0.0
        %2463 = vmatprep.subr.mxu0 0.0
        %2464 = vmatpush1.msra.mxu0 0.0
        %2465 = vmatprep.subr.mxu0 0.0
        %2466 = vmatpush1.msra.mxu0 0.0
        %2467 = vmatprep.subr.mxu0 0.0
        %2468 = vmatpush1.msra.mxu0 0.0
        %2469 = vmatprep.subr.mxu0 0.0
        %2470 = vmatpush1.msra.mxu0 0.0
        %2471 = vmatprep.subr.mxu0 0.0
        %2472 = vmatpush1.msra.mxu0 0.0
        %2473 = vmatprep.subr.mxu0 0.0
        %2474 = vmatpush1.msra.mxu0 0.0
        %2475 = vmatprep.subr.mxu0 0.0
        %2476 = vmatpush1.msra.mxu0 0.0
        %2477 = vmatprep.mubr.f32.mxu0 0.0
        %2478 = vmatmul.mubr.f32.gmra.mrb[0].mxu0 %v2408
        %v2479 = vpop.f32.mrb[0].mxu0
        %v2480 = vadd.f32 %v2405, %v2479
        %v2481 = vpop.f32.mrb[0].mxu0
        %2482 = vmatprep.mubr.f32.mxu0 0.0
        %2483 = vmatmul.mubr.f32.gmra.mrb[0].mxu0 %v2411
        %v2484 = vpop.f32.mrb[0].mxu0
        %v2485 = vadd.f32 %v2405, %v2484
        %v2486 = vpop.f32.mrb[0].mxu0
        %2487 = vdwg.mxu0
        %v2488 = vadd.f32 %v2480, %v2268
        %v2489 = vadd.f32 %v2485, %v2269
        %s2490 = scalar_lea.vmem %s4, 18
        %v2491 = vld [vmem:[%s2490] sm:$0x1]
        %s2492 = scalar_lea.vmem %s4, 19
        %v2493 = vld [vmem:[%s2492] sm:$0x1]
        %v2494 = vsel %vm474, %v2488, 0.0
        %2495 = vadd.xlane.f32.xlu0 %v2494
        %v2496 = vpop.xlane.xlu0 %2495
        %v2497 = vsel %vm474, %v2489, 0.0
        %2498 = vadd.xlane.f32.xlu0 %v2497
        %v2499 = vpop.xlane.xlu0 %2498
        %v2500 = vmul.f32 %v2496, %v481
        %v2501 = vmul.f32 %v2499, %v481
        %v2502 = vsub.f32 %v2488, %v2500
        %v2503 = vsub.f32 %v2489, %v2501
        %v2504 = vmul.f32 %v2502, %v2502
        %v2505 = vmul.f32 %v2503, %v2503
        %v2506 = vsel %vm474, %v2504, 0.0
        %2507 = vadd.xlane.f32.xlu0 %v2506
        %v2508 = vpop.xlane.xlu0 %2507
        %v2509 = vsel %vm474, %v2505, 0.0
        %2510 = vadd.xlane.f32.xlu0 %v2509
        %v2511 = vpop.xlane.xlu0 %2510
        %v2512 = vmul.f32 %v2508, %v481
        %v2513 = vmul.f32 %v2511, %v481
        %v2514 = vadd.f32 %v2512, 1e-06
        %v2515 = vadd.f32 %v2513, 1e-06
        %v2516 = vrsqrt.pop %v2514
        %v2517 = vrsqrt.pop %v2515
        %v2518 = vmul.f32 %v2502, %v2516
        %v2519 = vmul.f32 %v2503, %v2517
        %v2521 = vlaneseq
        %v2522 = vshrl.u32 %v2521, 7
        %v2523 = vsub.s32 0, %v2522
        %v2524 = vrot.slane %v2491, %v2523
        %v2526 = vmul.f32 %v2518, %v2524
        %v2527 = vmul.f32 %v2519, %v2524
        %v2529 = vlaneseq
        %v2530 = vshrl.u32 %v2529, 7
        %v2531 = vsub.s32 0, %v2530
        %v2532 = vrot.slane %v2493, %v2531
        %v2534 = vadd.f32 %v2526, %v2532
        %v2535 = vadd.f32 %v2527, %v2532
        %v2536 = vld [vmem:[%s396] sm:$0xff]
        %v2537 = vlaneseq
        %v2538 = vshrl.u32 %v2537, 7
        %vm2539 = vcmp.gt.s32.totalorder %v404, %v2538
        %v2540 = vsel %vm2539, -1e+09, 0.0
        %v2542 = vlaneseq
        %v2543 = vshrl.u32 %v2542, 7
        %v2544 = vsub.s32 0, %v2543
        %v2545 = vrot.slane %v422, %v2544
        %v2547 = vadd.f32 %v2540, %v2545
        %s2548 = scalar_lea.vmem %s4, 20
        %v2549 = vld [vmem:[%s2548] sm:$0x1]
        %s2550 = scalar_lea.vmem %s4, 21
        %v2551 = vld [vmem:[%s2550] sm:$0x1]
        %s2552 = scalar_lea.vmem %s4, 22
        %v2553 = vld [vmem:[%s2552] sm:$0x1]
        %s2554 = scalar_lea.vmem %s4, 23
        %v2555 = vld [vmem:[%s2554] sm:$0x1]
        %s2556 = scalar_lea.vmem %s4, 24
        %v2557 = vld [vmem:[%s2556] sm:$0x1]
        %s2558 = scalar_lea.vmem %s4, 25
        %v2559 = vld [vmem:[%s2558] sm:$0x1]
        %s2560 = scalar_lea.vmem %s4, 26
        %v2561 = vld [vmem:[%s2560] sm:$0x1]
        %s2562 = scalar_lea.vmem %s4, 27
        %v2563 = vld [vmem:[%s2562] sm:$0x1]
        %s2564 = scalar_lea.vmem %s4, 28
        %v2565 = vld [vmem:[%s2564] sm:$0x1]
        %s2566 = scalar_lea.vmem %s4, 29
        %v2567 = vld [vmem:[%s2566] sm:$0x1]
        %s2568 = scalar_lea.vmem %s4, 30
        %v2569 = vld [vmem:[%s2568] sm:$0x1]
        %s2570 = scalar_lea.vmem %s4, 31
        %v2571 = vld [vmem:[%s2570] sm:$0x1]
        %s2572 = scalar_lea.vmem %s4, 32
        %v2573 = vld [vmem:[%s2572] sm:$0x1]
        %s2574 = scalar_lea.vmem %s4, 33
        %v2575 = vld [vmem:[%s2574] sm:$0x1]
        %s2576 = scalar_lea.vmem %s4, 34
        %v2577 = vld [vmem:[%s2576] sm:$0x1]
        %s2578 = scalar_lea.vmem %s6, 256
        %v2579 = vld [vmem:[%s2578] sm:$0xff]
        %v2580 = vld [vmem:[%s2578 + $0x8] sm:$0xff]
        %v2581 = vld [vmem:[%s2578 + $0x10] sm:$0xff]
        %v2582 = vld [vmem:[%s2578 + $0x18] sm:$0xff]
        %s2583 = scalar_lea.vmem %s6, 288
        %v2584 = vld [vmem:[%s2583] sm:$0xff]
        %v2585 = vld [vmem:[%s2583 + $0x8] sm:$0xff]
        %v2586 = vld [vmem:[%s2583 + $0x10] sm:$0xff]
        %v2587 = vld [vmem:[%s2583 + $0x18] sm:$0xff]
        %s2588 = scalar_lea.vmem %s6, 320
        %v2589 = vld [vmem:[%s2588] sm:$0xff]
        %v2590 = vld [vmem:[%s2588 + $0x8] sm:$0xff]
        %v2591 = vld [vmem:[%s2588 + $0x10] sm:$0xff]
        %v2592 = vld [vmem:[%s2588 + $0x18] sm:$0xff]
        %s2593 = scalar_lea.vmem %s6, 352
        %v2594 = vld [vmem:[%s2593] sm:$0xff]
        %v2595 = vld [vmem:[%s2593 + $0x8] sm:$0xff]
        %v2596 = vld [vmem:[%s2593 + $0x10] sm:$0xff]
        %v2597 = vld [vmem:[%s2593 + $0x18] sm:$0xff]
        %s2598 = scalar_lea.vmem %s6, 384
        %v2599 = vld [vmem:[%s2598] sm:$0xff]
        %v2600 = vld [vmem:[%s2598 + $0x8] sm:$0xff]
        %v2601 = vld [vmem:[%s2598 + $0x10] sm:$0xff]
        %v2602 = vld [vmem:[%s2598 + $0x18] sm:$0xff]
        %s2603 = scalar_lea.vmem %s6, 416
        %v2604 = vld [vmem:[%s2603] sm:$0xff]
        %v2605 = vld [vmem:[%s2603 + $0x8] sm:$0xff]
        %v2606 = vld [vmem:[%s2603 + $0x10] sm:$0xff]
        %v2607 = vld [vmem:[%s2603 + $0x18] sm:$0xff]
        %s2608 = scalar_lea.vmem %s6, 448
        %v2609 = vld [vmem:[%s2608] sm:$0xff]
        %v2610 = vld [vmem:[%s2608 + $0x8] sm:$0xff]
        %v2611 = vld [vmem:[%s2608 + $0x10] sm:$0xff]
        %v2612 = vld [vmem:[%s2608 + $0x18] sm:$0xff]
        %s2613 = scalar_lea.vmem %s6, 480
        %v2614 = vld [vmem:[%s2613] sm:$0xff]
        %v2615 = vld [vmem:[%s2613 + $0x8] sm:$0xff]
        %v2616 = vld [vmem:[%s2613 + $0x10] sm:$0xff]
        %v2617 = vld [vmem:[%s2613 + $0x18] sm:$0xff]
        %s2618 = scalar_lea.vmem %s7, 64
        %v2619 = vld [vmem:[%s2618] sm:$0xff]
        %v2620 = vld [vmem:[%s2618 + $0x8] sm:$0xff]
        %v2621 = vld [vmem:[%s2618 + $0x10] sm:$0xff]
        %v2622 = vld [vmem:[%s2618 + $0x18] sm:$0xff]
        %s2623 = scalar_lea.vmem %s5, 2
        %v2624 = vld [vmem:[%s2623] sm:$0x1]
        %s2625 = scalar_lea.vmem %s8, 128
        %v2626 = vld [vmem:[%s2625] sm:$0xff]
        %v2627 = vld [vmem:[%s2625 + $0x8] sm:$0xff]
        %v2628 = vld [vmem:[%s2625 + $0x10] sm:$0xff]
        %v2629 = vld [vmem:[%s2625 + $0x18] sm:$0xff]
        %v2630 = vld [vmem:[%s2625 + $0x20] sm:$0xff]
        %v2631 = vld [vmem:[%s2625 + $0x28] sm:$0xff]
        %v2632 = vld [vmem:[%s2625 + $0x30] sm:$0xff]
        %v2633 = vld [vmem:[%s2625 + $0x38] sm:$0xff]
        %v2634 = vsel %vm474, %v2536, 0.0
        %2635 = vadd.xlane.f32.xlu0 %v2634
        %v2636 = vpop.xlane.xlu0 %2635
        %v2637 = vmul.f32 %v2636, %v481
        %v2638 = vsub.f32 %v2536, %v2637
        %v2639 = vmul.f32 %v2638, %v2638
        %v2640 = vsel %vm474, %v2639, 0.0
        %2641 = vadd.xlane.f32.xlu0 %v2640
        %v2642 = vpop.xlane.xlu0 %2641
        %v2643 = vmul.f32 %v2642, %v481
        %v2644 = vadd.f32 %v2643, 1e-06
        %v2645 = vrsqrt.pop %v2644
        %v2646 = vmul.f32 %v2638, %v2645
        %v2648 = vlaneseq
        %v2649 = vshrl.u32 %v2648, 7
        %v2650 = vsub.s32 0, %v2649
        %v2651 = vrot.slane %v2549, %v2650
        %v2653 = vmul.f32 %v2646, %v2651
        %v2655 = vlaneseq
        %v2656 = vshrl.u32 %v2655, 7
        %v2657 = vsub.s32 0, %v2656
        %v2658 = vrot.slane %v2551, %v2657
        %v2660 = vadd.f32 %v2653, %v2658
        %v2662 = vlaneseq
        %v2663 = vshrl.u32 %v2662, 7
        %v2664 = vsub.s32 0, %v2663
        %v2665 = vrot.slane %v2553, %v2664
        %v2668 = vsel %vm474, %v2660, 0
        %2670 = vmatprep.subr.mxu0 0.0
        %2671 = vmatpush1.msra.mxu0 %v2579
        %2672 = vmatprep.subr.mxu0 0.0
        %2673 = vmatpush1.msra.mxu0 %v2580
        %2674 = vmatprep.subr.mxu0 0.0
        %2675 = vmatpush1.msra.mxu0 %v2581
        %2676 = vmatprep.subr.mxu0 0.0
        %2677 = vmatpush1.msra.mxu0 %v2582
        %2678 = vmatprep.subr.mxu0 0.0
        %2679 = vmatpush1.msra.mxu0 0.0
        %2680 = vmatprep.subr.mxu0 0.0
        %2681 = vmatpush1.msra.mxu0 0.0
        %2682 = vmatprep.subr.mxu0 0.0
        %2683 = vmatpush1.msra.mxu0 0.0
        %2684 = vmatprep.subr.mxu0 0.0
        %2685 = vmatpush1.msra.mxu0 0.0
        %2686 = vmatprep.subr.mxu0 0.0
        %2687 = vmatpush1.msra.mxu0 0.0
        %2688 = vmatprep.subr.mxu0 0.0
        %2689 = vmatpush1.msra.mxu0 0.0
        %2690 = vmatprep.subr.mxu0 0.0
        %2691 = vmatpush1.msra.mxu0 0.0
        %2692 = vmatprep.subr.mxu0 0.0
        %2693 = vmatpush1.msra.mxu0 0.0
        %2694 = vmatprep.subr.mxu0 0.0
        %2695 = vmatpush1.msra.mxu0 0.0
        %2696 = vmatprep.subr.mxu0 0.0
        %2697 = vmatpush1.msra.mxu0 0.0
        %2698 = vmatprep.subr.mxu0 0.0
        %2699 = vmatpush1.msra.mxu0 0.0
        %2700 = vmatprep.subr.mxu0 0.0
        %2701 = vmatpush1.msra.mxu0 0.0
        %2702 = vmatprep.subr.mxu0 0.0
        %2703 = vmatpush1.msra.mxu0 0.0
        %2704 = vmatprep.subr.mxu0 0.0
        %2705 = vmatpush1.msra.mxu0 0.0
        %2706 = vmatprep.subr.mxu0 0.0
        %2707 = vmatpush1.msra.mxu0 0.0
        %2708 = vmatprep.subr.mxu0 0.0
        %2709 = vmatpush1.msra.mxu0 0.0
        %2710 = vmatprep.subr.mxu0 0.0
        %2711 = vmatpush1.msra.mxu0 0.0
        %2712 = vmatprep.subr.mxu0 0.0
        %2713 = vmatpush1.msra.mxu0 0.0
        %2714 = vmatprep.subr.mxu0 0.0
        %2715 = vmatpush1.msra.mxu0 0.0
        %2716 = vmatprep.subr.mxu0 0.0
        %2717 = vmatpush1.msra.mxu0 0.0
        %2718 = vmatprep.subr.mxu0 0.0
        %2719 = vmatpush1.msra.mxu0 0.0
        %2720 = vmatprep.subr.mxu0 0.0
        %2721 = vmatpush1.msra.mxu0 0.0
        %2722 = vmatprep.subr.mxu0 0.0
        %2723 = vmatpush1.msra.mxu0 0.0
        %2724 = vmatprep.subr.mxu0 0.0
        %2725 = vmatpush1.msra.mxu0 0.0
        %2726 = vmatprep.subr.mxu0 0.0
        %2727 = vmatpush1.msra.mxu0 0.0
        %2728 = vmatprep.subr.mxu0 0.0
        %2729 = vmatpush1.msra.mxu0 0.0
        %2730 = vmatprep.subr.mxu0 0.0
        %2731 = vmatpush1.msra.mxu0 0.0
        %2732 = vmatprep.subr.mxu0 0.0
        %2733 = vmatpush1.msra.mxu0 0.0
        %2734 = vmatprep.mubr.f32.mxu0 0.0
        %2735 = vmatmul.mubr.f32.gmra.mrb[0].mxu0 %v2668
        %v2736 = vpop.f32.mrb[0].mxu0
        %v2737 = vadd.f32 %v2665, %v2736
        %v2738 = vpop.f32.mrb[0].mxu0
        %2739 = vdwg.mxu0
        %v2741 = vlaneseq
        %v2742 = vshrl.u32 %v2741, 7
        %v2743 = vsub.s32 0, %v2742
        %v2744 = vrot.slane %v2555, %v2743
        %2746 = vmatprep.subr.mxu0 0.0
        %2747 = vmatpush1.msra.mxu0 %v2584
        %2748 = vmatprep.subr.mxu0 0.0
        %2749 = vmatpush1.msra.mxu0 %v2585
        %2750 = vmatprep.subr.mxu0 0.0
        %2751 = vmatpush1.msra.mxu0 %v2586
        %2752 = vmatprep.subr.mxu0 0.0
        %2753 = vmatpush1.msra.mxu0 %v2587
        %2754 = vmatprep.subr.mxu0 0.0
        %2755 = vmatpush1.msra.mxu0 0.0
        %2756 = vmatprep.subr.mxu0 0.0
        %2757 = vmatpush1.msra.mxu0 0.0
        %2758 = vmatprep.subr.mxu0 0.0
        %2759 = vmatpush1.msra.mxu0 0.0
        %2760 = vmatprep.subr.mxu0 0.0
        %2761 = vmatpush1.msra.mxu0 0.0
        %2762 = vmatprep.subr.mxu0 0.0
        %2763 = vmatpush1.msra.mxu0 0.0
        %2764 = vmatprep.subr.mxu0 0.0
        %2765 = vmatpush1.msra.mxu0 0.0
        %2766 = vmatprep.subr.mxu0 0.0
        %2767 = vmatpush1.msra.mxu0 0.0
        %2768 = vmatprep.subr.mxu0 0.0
        %2769 = vmatpush1.msra.mxu0 0.0
        %2770 = vmatprep.subr.mxu0 0.0
        %2771 = vmatpush1.msra.mxu0 0.0
        %2772 = vmatprep.subr.mxu0 0.0
        %2773 = vmatpush1.msra.mxu0 0.0
        %2774 = vmatprep.subr.mxu0 0.0
        %2775 = vmatpush1.msra.mxu0 0.0
        %2776 = vmatprep.subr.mxu0 0.0
        %2777 = vmatpush1.msra.mxu0 0.0
        %2778 = vmatprep.subr.mxu0 0.0
        %2779 = vmatpush1.msra.mxu0 0.0
        %2780 = vmatprep.subr.mxu0 0.0
        %2781 = vmatpush1.msra.mxu0 0.0
        %2782 = vmatprep.subr.mxu0 0.0
        %2783 = vmatpush1.msra.mxu0 0.0
        %2784 = vmatprep.subr.mxu0 0.0
        %2785 = vmatpush1.msra.mxu0 0.0
        %2786 = vmatprep.subr.mxu0 0.0
        %2787 = vmatpush1.msra.mxu0 0.0
        %2788 = vmatprep.subr.mxu0 0.0
        %2789 = vmatpush1.msra.mxu0 0.0
        %2790 = vmatprep.subr.mxu0 0.0
        %2791 = vmatpush1.msra.mxu0 0.0
        %2792 = vmatprep.subr.mxu0 0.0
        %2793 = vmatpush1.msra.mxu0 0.0
        %2794 = vmatprep.subr.mxu0 0.0
        %2795 = vmatpush1.msra.mxu0 0.0
        %2796 = vmatprep.subr.mxu0 0.0
        %2797 = vmatpush1.msra.mxu0 0.0
        %2798 = vmatprep.subr.mxu0 0.0
        %2799 = vmatpush1.msra.mxu0 0.0
        %2800 = vmatprep.subr.mxu0 0.0
        %2801 = vmatpush1.msra.mxu0 0.0
        %2802 = vmatprep.subr.mxu0 0.0
        %2803 = vmatpush1.msra.mxu0 0.0
        %2804 = vmatprep.subr.mxu0 0.0
        %2805 = vmatpush1.msra.mxu0 0.0
        %2806 = vmatprep.subr.mxu0 0.0
        %2807 = vmatpush1.msra.mxu0 0.0
        %2808 = vmatprep.subr.mxu0 0.0
        %2809 = vmatpush1.msra.mxu0 0.0
        %2810 = vmatprep.mubr.f32.mxu0 0.0
        %2811 = vmatmul.mubr.f32.gmra.mrb[0].mxu0 %v2668
        %v2812 = vpop.f32.mrb[0].mxu0
        %v2813 = vadd.f32 %v2744, %v2812
        %v2814 = vpop.f32.mrb[0].mxu0
        %2815 = vdwg.mxu0
        %v2817 = vlaneseq
        %v2818 = vshrl.u32 %v2817, 7
        %v2819 = vsub.s32 0, %v2818
        %v2820 = vrot.slane %v2557, %v2819
        %2822 = vmatprep.subr.mxu0 0.0
        %2823 = vmatpush1.msra.mxu0 %v2589
        %2824 = vmatprep.subr.mxu0 0.0
        %2825 = vmatpush1.msra.mxu0 %v2590
        %2826 = vmatprep.subr.mxu0 0.0
        %2827 = vmatpush1.msra.mxu0 %v2591
        %2828 = vmatprep.subr.mxu0 0.0
        %2829 = vmatpush1.msra.mxu0 %v2592
        %2830 = vmatprep.subr.mxu0 0.0
        %2831 = vmatpush1.msra.mxu0 0.0
        %2832 = vmatprep.subr.mxu0 0.0
        %2833 = vmatpush1.msra.mxu0 0.0
        %2834 = vmatprep.subr.mxu0 0.0
        %2835 = vmatpush1.msra.mxu0 0.0
        %2836 = vmatprep.subr.mxu0 0.0
        %2837 = vmatpush1.msra.mxu0 0.0
        %2838 = vmatprep.subr.mxu0 0.0
        %2839 = vmatpush1.msra.mxu0 0.0
        %2840 = vmatprep.subr.mxu0 0.0
        %2841 = vmatpush1.msra.mxu0 0.0
        %2842 = vmatprep.subr.mxu0 0.0
        %2843 = vmatpush1.msra.mxu0 0.0
        %2844 = vmatprep.subr.mxu0 0.0
        %2845 = vmatpush1.msra.mxu0 0.0
        %2846 = vmatprep.subr.mxu0 0.0
        %2847 = vmatpush1.msra.mxu0 0.0
        %2848 = vmatprep.subr.mxu0 0.0
        %2849 = vmatpush1.msra.mxu0 0.0
        %2850 = vmatprep.subr.mxu0 0.0
        %2851 = vmatpush1.msra.mxu0 0.0
        %2852 = vmatprep.subr.mxu0 0.0
        %2853 = vmatpush1.msra.mxu0 0.0
        %2854 = vmatprep.subr.mxu0 0.0
        %2855 = vmatpush1.msra.mxu0 0.0
        %2856 = vmatprep.subr.mxu0 0.0
        %2857 = vmatpush1.msra.mxu0 0.0
        %2858 = vmatprep.subr.mxu0 0.0
        %2859 = vmatpush1.msra.mxu0 0.0
        %2860 = vmatprep.subr.mxu0 0.0
        %2861 = vmatpush1.msra.mxu0 0.0
        %2862 = vmatprep.subr.mxu0 0.0
        %2863 = vmatpush1.msra.mxu0 0.0
        %2864 = vmatprep.subr.mxu0 0.0
        %2865 = vmatpush1.msra.mxu0 0.0
        %2866 = vmatprep.subr.mxu0 0.0
        %2867 = vmatpush1.msra.mxu0 0.0
        %2868 = vmatprep.subr.mxu0 0.0
        %2869 = vmatpush1.msra.mxu0 0.0
        %2870 = vmatprep.subr.mxu0 0.0
        %2871 = vmatpush1.msra.mxu0 0.0
        %2872 = vmatprep.subr.mxu0 0.0
        %2873 = vmatpush1.msra.mxu0 0.0
        %2874 = vmatprep.subr.mxu0 0.0
        %2875 = vmatpush1.msra.mxu0 0.0
        %2876 = vmatprep.subr.mxu0 0.0
        %2877 = vmatpush1.msra.mxu0 0.0
        %2878 = vmatprep.subr.mxu0 0.0
        %2879 = vmatpush1.msra.mxu0 0.0
        %2880 = vmatprep.subr.mxu0 0.0
        %2881 = vmatpush1.msra.mxu0 0.0
        %2882 = vmatprep.subr.mxu0 0.0
        %2883 = vmatpush1.msra.mxu0 0.0
        %2884 = vmatprep.subr.mxu0 0.0
        %2885 = vmatpush1.msra.mxu0 0.0
        %2886 = vmatprep.mubr.f32.mxu0 0.0
        %2887 = vmatmul.mubr.f32.gmra.mrb[0].mxu0 %v2668
        %v2888 = vpop.f32.mrb[0].mxu0
        %v2889 = vadd.f32 %v2820, %v2888
        %v2890 = vpop.f32.mrb[0].mxu0
        %2891 = vdwg.mxu0
        %v2892 = vmul.f32 %v2737, 0.35355338
        %v2893 = vmul.f32 %v2892, %v408
        %v2894 = vmul.f32 %v2892, %v412
        %v2895 = vmul.f32 %v2892, %v416
        %v2896 = vmul.f32 %v2892, %v420
        %v2898 = vsel %vm474, %v2893, 0
        %v2901 = vsel %vm474, %v2894, 0
        %v2904 = vsel %vm474, %v2895, 0
        %v2907 = vsel %vm474, %v2896, 0
        %v2910 = vsel %vm474, %v2813, 0
        %2912 = vmatprep.subr.mxu0 0.0
        %2913 = vmatpush1.xpose.msra.mxu0 %v2910
        %2914 = vmatprep.subr.mxu0 0.0
        %2915 = vmatpush1.xpose.msra.mxu0 0.0
        %2916 = vmatprep.subr.mxu0 0.0
        %2917 = vmatpush1.xpose.msra.mxu0 0.0
        %2918 = vmatprep.subr.mxu0 0.0
        %2919 = vmatpush1.xpose.msra.mxu0 0.0
        %2920 = vmatprep.subr.mxu0 0.0
        %2921 = vmatpush1.xpose.msra.mxu0 0.0
        %2922 = vmatprep.subr.mxu0 0.0
        %2923 = vmatpush1.xpose.msra.mxu0 0.0
        %2924 = vmatprep.subr.mxu0 0.0
        %2925 = vmatpush1.xpose.msra.mxu0 0.0
        %2926 = vmatprep.subr.mxu0 0.0
        %2927 = vmatpush1.xpose.msra.mxu0 0.0
        %2928 = vmatprep.subr.mxu0 0.0
        %2929 = vmatpush1.xpose.msra.mxu0 0.0
        %2930 = vmatprep.subr.mxu0 0.0
        %2931 = vmatpush1.xpose.msra.mxu0 0.0
        %2932 = vmatprep.subr.mxu0 0.0
        %2933 = vmatpush1.xpose.msra.mxu0 0.0
        %2934 = vmatprep.subr.mxu0 0.0
        %2935 = vmatpush1.xpose.msra.mxu0 0.0
        %2936 = vmatprep.subr.mxu0 0.0
        %2937 = vmatpush1.xpose.msra.mxu0 0.0
        %2938 = vmatprep.subr.mxu0 0.0
        %2939 = vmatpush1.xpose.msra.mxu0 0.0
        %2940 = vmatprep.subr.mxu0 0.0
        %2941 = vmatpush1.xpose.msra.mxu0 0.0
        %2942 = vmatprep.subr.mxu0 0.0
        %2943 = vmatpush1.xpose.msra.mxu0 0.0
        %2944 = vmatprep.subr.mxu0 0.0
        %2945 = vmatpush1.xpose.msra.mxu0 0.0
        %2946 = vmatprep.subr.mxu0 0.0
        %2947 = vmatpush1.xpose.msra.mxu0 0.0
        %2948 = vmatprep.subr.mxu0 0.0
        %2949 = vmatpush1.xpose.msra.mxu0 0.0
        %2950 = vmatprep.subr.mxu0 0.0
        %2951 = vmatpush1.xpose.msra.mxu0 0.0
        %2952 = vmatprep.subr.mxu0 0.0
        %2953 = vmatpush1.xpose.msra.mxu0 0.0
        %2954 = vmatprep.subr.mxu0 0.0
        %2955 = vmatpush1.xpose.msra.mxu0 0.0
        %2956 = vmatprep.subr.mxu0 0.0
        %2957 = vmatpush1.xpose.msra.mxu0 0.0
        %2958 = vmatprep.subr.mxu0 0.0
        %2959 = vmatpush1.xpose.msra.mxu0 0.0
        %2960 = vmatprep.subr.mxu0 0.0
        %2961 = vmatpush1.xpose.msra.mxu0 0.0
        %2962 = vmatprep.subr.mxu0 0.0
        %2963 = vmatpush1.xpose.msra.mxu0 0.0
        %2964 = vmatprep.subr.mxu0 0.0
        %2965 = vmatpush1.xpose.msra.mxu0 0.0
        %2966 = vmatprep.subr.mxu0 0.0
        %2967 = vmatpush1.xpose.msra.mxu0 0.0
        %2968 = vmatprep.subr.mxu0 0.0
        %2969 = vmatpush1.xpose.msra.mxu0 0.0
        %2970 = vmatprep.subr.mxu0 0.0
        %2971 = vmatpush1.xpose.msra.mxu0 0.0
        %2972 = vmatprep.subr.mxu0 0.0
        %2973 = vmatpush1.xpose.msra.mxu0 0.0
        %2974 = vmatprep.subr.mxu0 0.0
        %2975 = vmatpush1.xpose.msra.mxu0 0.0
        %2976 = vmatprep.mubr.f32.mxu0 0.0
        %2977 = vmatmul.mubr.f32.gmra.mrb[0].mxu0 %v2898
        %v2978 = vpop.f32.mrb[0].mxu0
        %v2979 = vadd.f32 %v2547, %v2978
        %v2980 = vpop.f32.mrb[0].mxu0
        %2981 = vmatprep.mubr.f32.mxu0 0.0
        %2982 = vmatmul.mubr.f32.gmra.mrb[0].mxu0 %v2901
        %v2983 = vpop.f32.mrb[0].mxu0
        %v2984 = vadd.f32 %v2547, %v2983
        %v2985 = vpop.f32.mrb[0].mxu0
        %2986 = vmatprep.mubr.f32.mxu0 0.0
        %2987 = vmatmul.mubr.f32.gmra.mrb[0].mxu0 %v2904
        %v2988 = vpop.f32.mrb[0].mxu0
        %v2989 = vadd.f32 %v2547, %v2988
        %v2990 = vpop.f32.mrb[0].mxu0
        %2991 = vmatprep.mubr.f32.mxu0 0.0
        %2992 = vmatmul.mubr.f32.gmra.mrb[0].mxu0 %v2907
        %v2993 = vpop.f32.mrb[0].mxu0
        %v2994 = vadd.f32 %v2547, %v2993
        %v2995 = vpop.f32.mrb[0].mxu0
        %2996 = vdwg.mxu0
        %vm2997 = vcmask 64512
        %v2998 = vsel %vm2997, %v2979, -inf
        %2999 = vmax.xlane.f32.xlu0 %v2998
        %v3000 = vpop.xlane.xlu0 %2999
        %v3001 = vsel %vm2997, %v2984, -inf
        %3002 = vmax.xlane.f32.xlu0 %v3001
        %v3003 = vpop.xlane.xlu0 %3002
        %v3004 = vsel %vm2997, %v2989, -inf
        %3005 = vmax.xlane.f32.xlu0 %v3004
        %v3006 = vpop.xlane.xlu0 %3005
        %v3007 = vsel %vm2997, %v2994, -inf
        %3008 = vmax.xlane.f32.xlu0 %v3007
        %v3009 = vpop.xlane.xlu0 %3008
        %v3010 = vsub.f32 %v2979, %v3000
        %v3011 = vsub.f32 %v2984, %v3003
        %v3012 = vsub.f32 %v2989, %v3006
        %v3013 = vsub.f32 %v2994, %v3009
        %v3014 = vmul.f32 %v3010, 1.442695
        %v3015 = vpow.pop %v3014
        %v3016 = vmul.f32 %v3011, 1.442695
        %v3017 = vpow.pop %v3016
        %v3018 = vmul.f32 %v3012, 1.442695
        %v3019 = vpow.pop %v3018
        %v3020 = vmul.f32 %v3013, 1.442695
        %v3021 = vpow.pop %v3020
        %v3022 = vsel %vm2997, %v3015, 0.0
        %3023 = vadd.xlane.f32.xlu0 %v3022
        %v3024 = vpop.xlane.xlu0 %3023
        %v3025 = vsel %vm2997, %v3017, 0.0
        %3026 = vadd.xlane.f32.xlu0 %v3025
        %v3027 = vpop.xlane.xlu0 %3026
        %v3028 = vsel %vm2997, %v3019, 0.0
        %3029 = vadd.xlane.f32.xlu0 %v3028
        %v3030 = vpop.xlane.xlu0 %3029
        %v3031 = vsel %vm2997, %v3021, 0.0
        %3032 = vadd.xlane.f32.xlu0 %v3031
        %v3033 = vpop.xlane.xlu0 %3032
        %v3034 = vrcp.pop %v3024
        %v3035 = vrcp.pop %v3027
        %v3036 = vrcp.pop %v3030
        %v3037 = vrcp.pop %v3033
        %v3038 = vmul.f32 %v3015, %v3034
        %v3039 = vmul.f32 %v3017, %v3035
        %v3040 = vmul.f32 %v3019, %v3036
        %v3041 = vmul.f32 %v3021, %v3037
        %v3043 = vsel %vm2997, %v3038, 0
        %v3046 = vsel %vm2997, %v3039, 0
        %v3049 = vsel %vm2997, %v3040, 0
        %v3052 = vsel %vm2997, %v3041, 0
        %3054 = vmatprep.subr.mxu0 0.0
        %3055 = vmatpush1.msra.mxu0 %v2889
        %3056 = vmatprep.subr.mxu0 0.0
        %3057 = vmatpush1.msra.mxu0 0.0
        %3058 = vmatprep.subr.mxu0 0.0
        %3059 = vmatpush1.msra.mxu0 0.0
        %3060 = vmatprep.subr.mxu0 0.0
        %3061 = vmatpush1.msra.mxu0 0.0
        %3062 = vmatprep.subr.mxu0 0.0
        %3063 = vmatpush1.msra.mxu0 0.0
        %3064 = vmatprep.subr.mxu0 0.0
        %3065 = vmatpush1.msra.mxu0 0.0
        %3066 = vmatprep.subr.mxu0 0.0
        %3067 = vmatpush1.msra.mxu0 0.0
        %3068 = vmatprep.subr.mxu0 0.0
        %3069 = vmatpush1.msra.mxu0 0.0
        %3070 = vmatprep.subr.mxu0 0.0
        %3071 = vmatpush1.msra.mxu0 0.0
        %3072 = vmatprep.subr.mxu0 0.0
        %3073 = vmatpush1.msra.mxu0 0.0
        %3074 = vmatprep.subr.mxu0 0.0
        %3075 = vmatpush1.msra.mxu0 0.0
        %3076 = vmatprep.subr.mxu0 0.0
        %3077 = vmatpush1.msra.mxu0 0.0
        %3078 = vmatprep.subr.mxu0 0.0
        %3079 = vmatpush1.msra.mxu0 0.0
        %3080 = vmatprep.subr.mxu0 0.0
        %3081 = vmatpush1.msra.mxu0 0.0
        %3082 = vmatprep.subr.mxu0 0.0
        %3083 = vmatpush1.msra.mxu0 0.0
        %3084 = vmatprep.subr.mxu0 0.0
        %3085 = vmatpush1.msra.mxu0 0.0
        %3086 = vmatprep.subr.mxu0 0.0
        %3087 = vmatpush1.msra.mxu0 0.0
        %3088 = vmatprep.subr.mxu0 0.0
        %3089 = vmatpush1.msra.mxu0 0.0
        %3090 = vmatprep.subr.mxu0 0.0
        %3091 = vmatpush1.msra.mxu0 0.0
        %3092 = vmatprep.subr.mxu0 0.0
        %3093 = vmatpush1.msra.mxu0 0.0
        %3094 = vmatprep.subr.mxu0 0.0
        %3095 = vmatpush1.msra.mxu0 0.0
        %3096 = vmatprep.subr.mxu0 0.0
        %3097 = vmatpush1.msra.mxu0 0.0
        %3098 = vmatprep.subr.mxu0 0.0
        %3099 = vmatpush1.msra.mxu0 0.0
        %3100 = vmatprep.subr.mxu0 0.0
        %3101 = vmatpush1.msra.mxu0 0.0
        %3102 = vmatprep.subr.mxu0 0.0
        %3103 = vmatpush1.msra.mxu0 0.0
        %3104 = vmatprep.subr.mxu0 0.0
        %3105 = vmatpush1.msra.mxu0 0.0
        %3106 = vmatprep.subr.mxu0 0.0
        %3107 = vmatpush1.msra.mxu0 0.0
        %3108 = vmatprep.subr.mxu0 0.0
        %3109 = vmatpush1.msra.mxu0 0.0
        %3110 = vmatprep.subr.mxu0 0.0
        %3111 = vmatpush1.msra.mxu0 0.0
        %3112 = vmatprep.subr.mxu0 0.0
        %3113 = vmatpush1.msra.mxu0 0.0
        %3114 = vmatprep.subr.mxu0 0.0
        %3115 = vmatpush1.msra.mxu0 0.0
        %3116 = vmatprep.subr.mxu0 0.0
        %3117 = vmatpush1.msra.mxu0 0.0
        %3118 = vmatprep.mubr.f32.mxu0 0.0
        %3119 = vmatmul.mubr.f32.gmra.mrb[0].mxu0 %v3043
        %v3120 = vpop.f32.mrb[0].mxu0
        %v3121 = vadd.f32 0.0, %v3120
        %v3122 = vpop.f32.mrb[0].mxu0
        %3123 = vmatprep.mubr.f32.mxu0 0.0
        %3124 = vmatmul.mubr.f32.gmra.mrb[0].mxu0 %v3046
        %v3125 = vpop.f32.mrb[0].mxu0
        %v3126 = vadd.f32 0.0, %v3125
        %v3127 = vpop.f32.mrb[0].mxu0
        %3128 = vmatprep.mubr.f32.mxu0 0.0
        %3129 = vmatmul.mubr.f32.gmra.mrb[0].mxu0 %v3049
        %v3130 = vpop.f32.mrb[0].mxu0
        %v3131 = vadd.f32 0.0, %v3130
        %v3132 = vpop.f32.mrb[0].mxu0
        %3133 = vmatprep.mubr.f32.mxu0 0.0
        %3134 = vmatmul.mubr.f32.gmra.mrb[0].mxu0 %v3052
        %v3135 = vpop.f32.mrb[0].mxu0
        %v3136 = vadd.f32 0.0, %v3135
        %v3137 = vpop.f32.mrb[0].mxu0
        %3138 = vdwg.mxu0
        %v3139 = vmul.f32 %v3121, %v408
        %v3140 = vmul.f32 %v3126, %v412
        %v3141 = vadd.f32 %v3139, %v3140
        %v3142 = vmul.f32 %v3131, %v416
        %v3143 = vadd.f32 %v3141, %v3142
        %v3144 = vmul.f32 %v3136, %v420
        %v3145 = vadd.f32 %v3143, %v3144
        %v3147 = vlaneseq
        %v3148 = vshrl.u32 %v3147, 7
        %v3149 = vsub.s32 0, %v3148
        %v3150 = vrot.slane %v2559, %v3149
        %v3153 = vsel %vm474, %v3145, 0
        %3155 = vmatprep.subr.mxu0 0.0
        %3156 = vmatpush1.msra.mxu0 %v2594
        %3157 = vmatprep.subr.mxu0 0.0
        %3158 = vmatpush1.msra.mxu0 %v2595
        %3159 = vmatprep.subr.mxu0 0.0
        %3160 = vmatpush1.msra.mxu0 %v2596
        %3161 = vmatprep.subr.mxu0 0.0
        %3162 = vmatpush1.msra.mxu0 %v2597
        %3163 = vmatprep.subr.mxu0 0.0
        %3164 = vmatpush1.msra.mxu0 0.0
        %3165 = vmatprep.subr.mxu0 0.0
        %3166 = vmatpush1.msra.mxu0 0.0
        %3167 = vmatprep.subr.mxu0 0.0
        %3168 = vmatpush1.msra.mxu0 0.0
        %3169 = vmatprep.subr.mxu0 0.0
        %3170 = vmatpush1.msra.mxu0 0.0
        %3171 = vmatprep.subr.mxu0 0.0
        %3172 = vmatpush1.msra.mxu0 0.0
        %3173 = vmatprep.subr.mxu0 0.0
        %3174 = vmatpush1.msra.mxu0 0.0
        %3175 = vmatprep.subr.mxu0 0.0
        %3176 = vmatpush1.msra.mxu0 0.0
        %3177 = vmatprep.subr.mxu0 0.0
        %3178 = vmatpush1.msra.mxu0 0.0
        %3179 = vmatprep.subr.mxu0 0.0
        %3180 = vmatpush1.msra.mxu0 0.0
        %3181 = vmatprep.subr.mxu0 0.0
        %3182 = vmatpush1.msra.mxu0 0.0
        %3183 = vmatprep.subr.mxu0 0.0
        %3184 = vmatpush1.msra.mxu0 0.0
        %3185 = vmatprep.subr.mxu0 0.0
        %3186 = vmatpush1.msra.mxu0 0.0
        %3187 = vmatprep.subr.mxu0 0.0
        %3188 = vmatpush1.msra.mxu0 0.0
        %3189 = vmatprep.subr.mxu0 0.0
        %3190 = vmatpush1.msra.mxu0 0.0
        %3191 = vmatprep.subr.mxu0 0.0
        %3192 = vmatpush1.msra.mxu0 0.0
        %3193 = vmatprep.subr.mxu0 0.0
        %3194 = vmatpush1.msra.mxu0 0.0
        %3195 = vmatprep.subr.mxu0 0.0
        %3196 = vmatpush1.msra.mxu0 0.0
        %3197 = vmatprep.subr.mxu0 0.0
        %3198 = vmatpush1.msra.mxu0 0.0
        %3199 = vmatprep.subr.mxu0 0.0
        %3200 = vmatpush1.msra.mxu0 0.0
        %3201 = vmatprep.subr.mxu0 0.0
        %3202 = vmatpush1.msra.mxu0 0.0
        %3203 = vmatprep.subr.mxu0 0.0
        %3204 = vmatpush1.msra.mxu0 0.0
        %3205 = vmatprep.subr.mxu0 0.0
        %3206 = vmatpush1.msra.mxu0 0.0
        %3207 = vmatprep.subr.mxu0 0.0
        %3208 = vmatpush1.msra.mxu0 0.0
        %3209 = vmatprep.subr.mxu0 0.0
        %3210 = vmatpush1.msra.mxu0 0.0
        %3211 = vmatprep.subr.mxu0 0.0
        %3212 = vmatpush1.msra.mxu0 0.0
        %3213 = vmatprep.subr.mxu0 0.0
        %3214 = vmatpush1.msra.mxu0 0.0
        %3215 = vmatprep.subr.mxu0 0.0
        %3216 = vmatpush1.msra.mxu0 0.0
        %3217 = vmatprep.subr.mxu0 0.0
        %3218 = vmatpush1.msra.mxu0 0.0
        %3219 = vmatprep.mubr.f32.mxu0 0.0
        %3220 = vmatmul.mubr.f32.gmra.mrb[0].mxu0 %v3153
        %v3221 = vpop.f32.mrb[0].mxu0
        %v3222 = vadd.f32 %v3150, %v3221
        %v3223 = vpop.f32.mrb[0].mxu0
        %3224 = vdwg.mxu0
        %v3225 = vadd.f32 %v3222, %v2536
        %v3226 = vsel %vm474, %v3225, 0.0
        %3227 = vadd.xlane.f32.xlu0 %v3226
        %v3228 = vpop.xlane.xlu0 %3227
        %v3229 = vmul.f32 %v3228, %v481
        %v3230 = vsub.f32 %v3225, %v3229
        %v3231 = vmul.f32 %v3230, %v3230
        %v3232 = vsel %vm474, %v3231, 0.0
        %3233 = vadd.xlane.f32.xlu0 %v3232
        %v3234 = vpop.xlane.xlu0 %3233
        %v3235 = vmul.f32 %v3234, %v481
        %v3236 = vadd.f32 %v3235, 1e-06
        %v3237 = vrsqrt.pop %v3236
        %v3238 = vmul.f32 %v3230, %v3237
        %v3240 = vlaneseq
        %v3241 = vshrl.u32 %v3240, 7
        %v3242 = vsub.s32 0, %v3241
        %v3243 = vrot.slane %v2561, %v3242
        %v3245 = vmul.f32 %v3238, %v3243
        %v3247 = vlaneseq
        %v3248 = vshrl.u32 %v3247, 7
        %v3249 = vsub.s32 0, %v3248
        %v3250 = vrot.slane %v2563, %v3249
        %v3252 = vadd.f32 %v3245, %v3250
        %v3254 = vlaneseq
        %v3255 = vshrl.u32 %v3254, 7
        %v3256 = vsub.s32 0, %v3255
        %v3257 = vrot.slane %v2565, %v3256
        %v3260 = vsel %vm474, %v3252, 0
        %3262 = vmatprep.subr.mxu0 0.0
        %3263 = vmatpush1.msra.mxu0 %v2599
        %3264 = vmatprep.subr.mxu0 0.0
        %3265 = vmatpush1.msra.mxu0 %v2600
        %3266 = vmatprep.subr.mxu0 0.0
        %3267 = vmatpush1.msra.mxu0 %v2601
        %3268 = vmatprep.subr.mxu0 0.0
        %3269 = vmatpush1.msra.mxu0 %v2602
        %3270 = vmatprep.subr.mxu0 0.0
        %3271 = vmatpush1.msra.mxu0 0.0
        %3272 = vmatprep.subr.mxu0 0.0
        %3273 = vmatpush1.msra.mxu0 0.0
        %3274 = vmatprep.subr.mxu0 0.0
        %3275 = vmatpush1.msra.mxu0 0.0
        %3276 = vmatprep.subr.mxu0 0.0
        %3277 = vmatpush1.msra.mxu0 0.0
        %3278 = vmatprep.subr.mxu0 0.0
        %3279 = vmatpush1.msra.mxu0 0.0
        %3280 = vmatprep.subr.mxu0 0.0
        %3281 = vmatpush1.msra.mxu0 0.0
        %3282 = vmatprep.subr.mxu0 0.0
        %3283 = vmatpush1.msra.mxu0 0.0
        %3284 = vmatprep.subr.mxu0 0.0
        %3285 = vmatpush1.msra.mxu0 0.0
        %3286 = vmatprep.subr.mxu0 0.0
        %3287 = vmatpush1.msra.mxu0 0.0
        %3288 = vmatprep.subr.mxu0 0.0
        %3289 = vmatpush1.msra.mxu0 0.0
        %3290 = vmatprep.subr.mxu0 0.0
        %3291 = vmatpush1.msra.mxu0 0.0
        %3292 = vmatprep.subr.mxu0 0.0
        %3293 = vmatpush1.msra.mxu0 0.0
        %3294 = vmatprep.subr.mxu0 0.0
        %3295 = vmatpush1.msra.mxu0 0.0
        %3296 = vmatprep.subr.mxu0 0.0
        %3297 = vmatpush1.msra.mxu0 0.0
        %3298 = vmatprep.subr.mxu0 0.0
        %3299 = vmatpush1.msra.mxu0 0.0
        %3300 = vmatprep.subr.mxu0 0.0
        %3301 = vmatpush1.msra.mxu0 0.0
        %3302 = vmatprep.subr.mxu0 0.0
        %3303 = vmatpush1.msra.mxu0 0.0
        %3304 = vmatprep.subr.mxu0 0.0
        %3305 = vmatpush1.msra.mxu0 0.0
        %3306 = vmatprep.subr.mxu0 0.0
        %3307 = vmatpush1.msra.mxu0 0.0
        %3308 = vmatprep.subr.mxu0 0.0
        %3309 = vmatpush1.msra.mxu0 0.0
        %3310 = vmatprep.subr.mxu0 0.0
        %3311 = vmatpush1.msra.mxu0 0.0
        %3312 = vmatprep.subr.mxu0 0.0
        %3313 = vmatpush1.msra.mxu0 0.0
        %3314 = vmatprep.subr.mxu0 0.0
        %3315 = vmatpush1.msra.mxu0 0.0
        %3316 = vmatprep.subr.mxu0 0.0
        %3317 = vmatpush1.msra.mxu0 0.0
        %3318 = vmatprep.subr.mxu0 0.0
        %3319 = vmatpush1.msra.mxu0 0.0
        %3320 = vmatprep.subr.mxu0 0.0
        %3321 = vmatpush1.msra.mxu0 0.0
        %3322 = vmatprep.subr.mxu0 0.0
        %3323 = vmatpush1.msra.mxu0 0.0
        %3324 = vmatprep.subr.mxu0 0.0
        %3325 = vmatpush1.msra.mxu0 0.0
        %3326 = vmatprep.mubr.f32.mxu0 0.0
        %3327 = vmatmul.mubr.f32.gmra.mrb[0].mxu0 %v3260
        %v3328 = vpop.f32.mrb[0].mxu0
        %v3329 = vadd.f32 %v3257, %v3328
        %v3330 = vpop.f32.mrb[0].mxu0
        %3331 = vdwg.mxu0
        %v3333 = vlaneseq
        %v3334 = vshrl.u32 %v3333, 7
        %v3335 = vsub.s32 0, %v3334
        %v3336 = vrot.slane %v2567, %v3335
        %v3339 = vsel %vm474, %v2534, 0
        %v3342 = vsel %vm474, %v2535, 0
        %3344 = vmatprep.subr.mxu0 0.0
        %3345 = vmatpush1.msra.mxu0 %v2604
        %3346 = vmatprep.subr.mxu0 0.0
        %3347 = vmatpush1.msra.mxu0 %v2605
        %3348 = vmatprep.subr.mxu0 0.0
        %3349 = vmatpush1.msra.mxu0 %v2606
        %3350 = vmatprep.subr.mxu0 0.0
        %3351 = vmatpush1.msra.mxu0 %v2607
        %3352 = vmatprep.subr.mxu0 0.0
        %3353 = vmatpush1.msra.mxu0 0.0
        %3354 = vmatprep.subr.mxu0 0.0
        %3355 = vmatpush1.msra.mxu0 0.0
        %3356 = vmatprep.subr.mxu0 0.0
        %3357 = vmatpush1.msra.mxu0 0.0
        %3358 = vmatprep.subr.mxu0 0.0
        %3359 = vmatpush1.msra.mxu0 0.0
        %3360 = vmatprep.subr.mxu0 0.0
        %3361 = vmatpush1.msra.mxu0 0.0
        %3362 = vmatprep.subr.mxu0 0.0
        %3363 = vmatpush1.msra.mxu0 0.0
        %3364 = vmatprep.subr.mxu0 0.0
        %3365 = vmatpush1.msra.mxu0 0.0
        %3366 = vmatprep.subr.mxu0 0.0
        %3367 = vmatpush1.msra.mxu0 0.0
        %3368 = vmatprep.subr.mxu0 0.0
        %3369 = vmatpush1.msra.mxu0 0.0
        %3370 = vmatprep.subr.mxu0 0.0
        %3371 = vmatpush1.msra.mxu0 0.0
        %3372 = vmatprep.subr.mxu0 0.0
        %3373 = vmatpush1.msra.mxu0 0.0
        %3374 = vmatprep.subr.mxu0 0.0
        %3375 = vmatpush1.msra.mxu0 0.0
        %3376 = vmatprep.subr.mxu0 0.0
        %3377 = vmatpush1.msra.mxu0 0.0
        %3378 = vmatprep.subr.mxu0 0.0
        %3379 = vmatpush1.msra.mxu0 0.0
        %3380 = vmatprep.subr.mxu0 0.0
        %3381 = vmatpush1.msra.mxu0 0.0
        %3382 = vmatprep.subr.mxu0 0.0
        %3383 = vmatpush1.msra.mxu0 0.0
        %3384 = vmatprep.subr.mxu0 0.0
        %3385 = vmatpush1.msra.mxu0 0.0
        %3386 = vmatprep.subr.mxu0 0.0
        %3387 = vmatpush1.msra.mxu0 0.0
        %3388 = vmatprep.subr.mxu0 0.0
        %3389 = vmatpush1.msra.mxu0 0.0
        %3390 = vmatprep.subr.mxu0 0.0
        %3391 = vmatpush1.msra.mxu0 0.0
        %3392 = vmatprep.subr.mxu0 0.0
        %3393 = vmatpush1.msra.mxu0 0.0
        %3394 = vmatprep.subr.mxu0 0.0
        %3395 = vmatpush1.msra.mxu0 0.0
        %3396 = vmatprep.subr.mxu0 0.0
        %3397 = vmatpush1.msra.mxu0 0.0
        %3398 = vmatprep.subr.mxu0 0.0
        %3399 = vmatpush1.msra.mxu0 0.0
        %3400 = vmatprep.subr.mxu0 0.0
        %3401 = vmatpush1.msra.mxu0 0.0
        %3402 = vmatprep.subr.mxu0 0.0
        %3403 = vmatpush1.msra.mxu0 0.0
        %3404 = vmatprep.subr.mxu0 0.0
        %3405 = vmatpush1.msra.mxu0 0.0
        %3406 = vmatprep.subr.mxu0 0.0
        %3407 = vmatpush1.msra.mxu0 0.0
        %3408 = vmatprep.mubr.f32.mxu0 0.0
        %3409 = vmatmul.mubr.f32.gmra.mrb[0].mxu0 %v3339
        %v3410 = vpop.f32.mrb[0].mxu0
        %v3411 = vadd.f32 %v3336, %v3410
        %v3412 = vpop.f32.mrb[0].mxu0
        %3413 = vmatprep.mubr.f32.mxu0 0.0
        %3414 = vmatmul.mubr.f32.gmra.mrb[0].mxu0 %v3342
        %v3415 = vpop.f32.mrb[0].mxu0
        %v3416 = vadd.f32 %v3336, %v3415
        %v3417 = vpop.f32.mrb[0].mxu0
        %3418 = vdwg.mxu0
        %v3420 = vlaneseq
        %v3421 = vshrl.u32 %v3420, 7
        %v3422 = vsub.s32 0, %v3421
        %v3423 = vrot.slane %v2569, %v3422
        %3425 = vmatprep.subr.mxu0 0.0
        %3426 = vmatpush1.msra.mxu0 %v2609
        %3427 = vmatprep.subr.mxu0 0.0
        %3428 = vmatpush1.msra.mxu0 %v2610
        %3429 = vmatprep.subr.mxu0 0.0
        %3430 = vmatpush1.msra.mxu0 %v2611
        %3431 = vmatprep.subr.mxu0 0.0
        %3432 = vmatpush1.msra.mxu0 %v2612
        %3433 = vmatprep.subr.mxu0 0.0
        %3434 = vmatpush1.msra.mxu0 0.0
        %3435 = vmatprep.subr.mxu0 0.0
        %3436 = vmatpush1.msra.mxu0 0.0
        %3437 = vmatprep.subr.mxu0 0.0
        %3438 = vmatpush1.msra.mxu0 0.0
        %3439 = vmatprep.subr.mxu0 0.0
        %3440 = vmatpush1.msra.mxu0 0.0
        %3441 = vmatprep.subr.mxu0 0.0
        %3442 = vmatpush1.msra.mxu0 0.0
        %3443 = vmatprep.subr.mxu0 0.0
        %3444 = vmatpush1.msra.mxu0 0.0
        %3445 = vmatprep.subr.mxu0 0.0
        %3446 = vmatpush1.msra.mxu0 0.0
        %3447 = vmatprep.subr.mxu0 0.0
        %3448 = vmatpush1.msra.mxu0 0.0
        %3449 = vmatprep.subr.mxu0 0.0
        %3450 = vmatpush1.msra.mxu0 0.0
        %3451 = vmatprep.subr.mxu0 0.0
        %3452 = vmatpush1.msra.mxu0 0.0
        %3453 = vmatprep.subr.mxu0 0.0
        %3454 = vmatpush1.msra.mxu0 0.0
        %3455 = vmatprep.subr.mxu0 0.0
        %3456 = vmatpush1.msra.mxu0 0.0
        %3457 = vmatprep.subr.mxu0 0.0
        %3458 = vmatpush1.msra.mxu0 0.0
        %3459 = vmatprep.subr.mxu0 0.0
        %3460 = vmatpush1.msra.mxu0 0.0
        %3461 = vmatprep.subr.mxu0 0.0
        %3462 = vmatpush1.msra.mxu0 0.0
        %3463 = vmatprep.subr.mxu0 0.0
        %3464 = vmatpush1.msra.mxu0 0.0
        %3465 = vmatprep.subr.mxu0 0.0
        %3466 = vmatpush1.msra.mxu0 0.0
        %3467 = vmatprep.subr.mxu0 0.0
        %3468 = vmatpush1.msra.mxu0 0.0
        %3469 = vmatprep.subr.mxu0 0.0
        %3470 = vmatpush1.msra.mxu0 0.0
        %3471 = vmatprep.subr.mxu0 0.0
        %3472 = vmatpush1.msra.mxu0 0.0
        %3473 = vmatprep.subr.mxu0 0.0
        %3474 = vmatpush1.msra.mxu0 0.0
        %3475 = vmatprep.subr.mxu0 0.0
        %3476 = vmatpush1.msra.mxu0 0.0
        %3477 = vmatprep.subr.mxu0 0.0
        %3478 = vmatpush1.msra.mxu0 0.0
        %3479 = vmatprep.subr.mxu0 0.0
        %3480 = vmatpush1.msra.mxu0 0.0
        %3481 = vmatprep.subr.mxu0 0.0
        %3482 = vmatpush1.msra.mxu0 0.0
        %3483 = vmatprep.subr.mxu0 0.0
        %3484 = vmatpush1.msra.mxu0 0.0
        %3485 = vmatprep.subr.mxu0 0.0
        %3486 = vmatpush1.msra.mxu0 0.0
        %3487 = vmatprep.subr.mxu0 0.0
        %3488 = vmatpush1.msra.mxu0 0.0
        %3489 = vmatprep.mubr.f32.mxu0 0.0
        %3490 = vmatmul.mubr.f32.gmra.mrb[0].mxu0 %v3339
        %v3491 = vpop.f32.mrb[0].mxu0
        %v3492 = vadd.f32 %v3423, %v3491
        %v3493 = vpop.f32.mrb[0].mxu0
        %3494 = vmatprep.mubr.f32.mxu0 0.0
        %3495 = vmatmul.mubr.f32.gmra.mrb[0].mxu0 %v3342
        %v3496 = vpop.f32.mrb[0].mxu0
        %v3497 = vadd.f32 %v3423, %v3496
        %v3498 = vpop.f32.mrb[0].mxu0
        %3499 = vdwg.mxu0
        %v3500 = vmul.f32 %v3329, 0.35355338
        %v3501 = vmul.f32 %v3500, %v408
        %v3502 = vmul.f32 %v3500, %v412
        %v3503 = vmul.f32 %v3500, %v416
        %v3504 = vmul.f32 %v3500, %v420
        %v3506 = vsel %vm474, %v3501, 0
        %v3509 = vsel %vm474, %v3502, 0
        %v3512 = vsel %vm474, %v3503, 0
        %v3515 = vsel %vm474, %v3504, 0
        %v3518 = vsel %vm474, %v3411, 0
        %v3521 = vsel %vm474, %v3416, 0
        %3523 = vmatprep.subr.mxu0 0.0
        %3524 = vmatpush1.xpose.msra.mxu0 %v3518
        %3525 = vmatprep.subr.mxu0 0.0
        %3526 = vmatpush1.xpose.msra.mxu0 %v3521
        %3527 = vmatprep.subr.mxu0 0.0
        %3528 = vmatpush1.xpose.msra.mxu0 0.0
        %3529 = vmatprep.subr.mxu0 0.0
        %3530 = vmatpush1.xpose.msra.mxu0 0.0
        %3531 = vmatprep.subr.mxu0 0.0
        %3532 = vmatpush1.xpose.msra.mxu0 0.0
        %3533 = vmatprep.subr.mxu0 0.0
        %3534 = vmatpush1.xpose.msra.mxu0 0.0
        %3535 = vmatprep.subr.mxu0 0.0
        %3536 = vmatpush1.xpose.msra.mxu0 0.0
        %3537 = vmatprep.subr.mxu0 0.0
        %3538 = vmatpush1.xpose.msra.mxu0 0.0
        %3539 = vmatprep.subr.mxu0 0.0
        %3540 = vmatpush1.xpose.msra.mxu0 0.0
        %3541 = vmatprep.subr.mxu0 0.0
        %3542 = vmatpush1.xpose.msra.mxu0 0.0
        %3543 = vmatprep.subr.mxu0 0.0
        %3544 = vmatpush1.xpose.msra.mxu0 0.0
        %3545 = vmatprep.subr.mxu0 0.0
        %3546 = vmatpush1.xpose.msra.mxu0 0.0
        %3547 = vmatprep.subr.mxu0 0.0
        %3548 = vmatpush1.xpose.msra.mxu0 0.0
        %3549 = vmatprep.subr.mxu0 0.0
        %3550 = vmatpush1.xpose.msra.mxu0 0.0
        %3551 = vmatprep.subr.mxu0 0.0
        %3552 = vmatpush1.xpose.msra.mxu0 0.0
        %3553 = vmatprep.subr.mxu0 0.0
        %3554 = vmatpush1.xpose.msra.mxu0 0.0
        %3555 = vmatprep.subr.mxu0 0.0
        %3556 = vmatpush1.xpose.msra.mxu0 0.0
        %3557 = vmatprep.subr.mxu0 0.0
        %3558 = vmatpush1.xpose.msra.mxu0 0.0
        %3559 = vmatprep.subr.mxu0 0.0
        %3560 = vmatpush1.xpose.msra.mxu0 0.0
        %3561 = vmatprep.subr.mxu0 0.0
        %3562 = vmatpush1.xpose.msra.mxu0 0.0
        %3563 = vmatprep.subr.mxu0 0.0
        %3564 = vmatpush1.xpose.msra.mxu0 0.0
        %3565 = vmatprep.subr.mxu0 0.0
        %3566 = vmatpush1.xpose.msra.mxu0 0.0
        %3567 = vmatprep.subr.mxu0 0.0
        %3568 = vmatpush1.xpose.msra.mxu0 0.0
        %3569 = vmatprep.subr.mxu0 0.0
        %3570 = vmatpush1.xpose.msra.mxu0 0.0
        %3571 = vmatprep.subr.mxu0 0.0
        %3572 = vmatpush1.xpose.msra.mxu0 0.0
        %3573 = vmatprep.subr.mxu0 0.0
        %3574 = vmatpush1.xpose.msra.mxu0 0.0
        %3575 = vmatprep.subr.mxu0 0.0
        %3576 = vmatpush1.xpose.msra.mxu0 0.0
        %3577 = vmatprep.subr.mxu0 0.0
        %3578 = vmatpush1.xpose.msra.mxu0 0.0
        %3579 = vmatprep.subr.mxu0 0.0
        %3580 = vmatpush1.xpose.msra.mxu0 0.0
        %3581 = vmatprep.subr.mxu0 0.0
        %3582 = vmatpush1.xpose.msra.mxu0 0.0
        %3583 = vmatprep.subr.mxu0 0.0
        %3584 = vmatpush1.xpose.msra.mxu0 0.0
        %3585 = vmatprep.subr.mxu0 0.0
        %3586 = vmatpush1.xpose.msra.mxu0 0.0
        %3587 = vmatprep.mubr.f32.mxu0 0.0
        %3588 = vmatmul.mubr.f32.gmra.mrb[0].mxu0 %v3506
        %v3589 = vpop.f32.mrb[0].mxu0
        %v3590 = vadd.f32 %v781, %v3589
        %v3591 = vpop.f32.mrb[0].mxu0
        %3592 = vmatprep.mubr.f32.mxu0 0.0
        %3593 = vmatmul.mubr.f32.gmra.mrb[0].mxu0 %v3509
        %v3594 = vpop.f32.mrb[0].mxu0
        %v3595 = vadd.f32 %v781, %v3594
        %v3596 = vpop.f32.mrb[0].mxu0
        %3597 = vmatprep.mubr.f32.mxu0 0.0
        %3598 = vmatmul.mubr.f32.gmra.mrb[0].mxu0 %v3512
        %v3599 = vpop.f32.mrb[0].mxu0
        %v3600 = vadd.f32 %v781, %v3599
        %v3601 = vpop.f32.mrb[0].mxu0
        %3602 = vmatprep.mubr.f32.mxu0 0.0
        %3603 = vmatmul.mubr.f32.gmra.mrb[0].mxu0 %v3515
        %v3604 = vpop.f32.mrb[0].mxu0
        %v3605 = vadd.f32 %v781, %v3604
        %v3606 = vpop.f32.mrb[0].mxu0
        %3607 = vdwg.mxu0
        %v3608 = vsel %vm918, %v3590, -inf
        %3609 = vmax.xlane.f32.xlu0 %v3608
        %v3610 = vpop.xlane.xlu0 %3609
        %v3611 = vsel %vm918, %v3595, -inf
        %3612 = vmax.xlane.f32.xlu0 %v3611
        %v3613 = vpop.xlane.xlu0 %3612
        %v3614 = vsel %vm918, %v3600, -inf
        %3615 = vmax.xlane.f32.xlu0 %v3614
        %v3616 = vpop.xlane.xlu0 %3615
        %v3617 = vsel %vm918, %v3605, -inf
        %3618 = vmax.xlane.f32.xlu0 %v3617
        %v3619 = vpop.xlane.xlu0 %3618
        %v3620 = vsub.f32 %v3590, %v3610
        %v3621 = vsub.f32 %v3595, %v3613
        %v3622 = vsub.f32 %v3600, %v3616
        %v3623 = vsub.f32 %v3605, %v3619
        %v3624 = vmul.f32 %v3620, 1.442695
        %v3625 = vpow.pop %v3624
        %v3626 = vmul.f32 %v3621, 1.442695
        %v3627 = vpow.pop %v3626
        %v3628 = vmul.f32 %v3622, 1.442695
        %v3629 = vpow.pop %v3628
        %v3630 = vmul.f32 %v3623, 1.442695
        %v3631 = vpow.pop %v3630
        %v3632 = vsel %vm918, %v3625, 0.0
        %3633 = vadd.xlane.f32.xlu0 %v3632
        %v3634 = vpop.xlane.xlu0 %3633
        %v3635 = vsel %vm918, %v3627, 0.0
        %3636 = vadd.xlane.f32.xlu0 %v3635
        %v3637 = vpop.xlane.xlu0 %3636
        %v3638 = vsel %vm918, %v3629, 0.0
        %3639 = vadd.xlane.f32.xlu0 %v3638
        %v3640 = vpop.xlane.xlu0 %3639
        %v3641 = vsel %vm918, %v3631, 0.0
        %3642 = vadd.xlane.f32.xlu0 %v3641
        %v3643 = vpop.xlane.xlu0 %3642
        %v3644 = vrcp.pop %v3634
        %v3645 = vrcp.pop %v3637
        %v3646 = vrcp.pop %v3640
        %v3647 = vrcp.pop %v3643
        %v3648 = vmul.f32 %v3625, %v3644
        %v3649 = vmul.f32 %v3627, %v3645
        %v3650 = vmul.f32 %v3629, %v3646
        %v3651 = vmul.f32 %v3631, %v3647
        %v3653 = vsel %vm918, %v3648, 0
        %v3656 = vsel %vm918, %v3649, 0
        %v3659 = vsel %vm918, %v3650, 0
        %v3662 = vsel %vm918, %v3651, 0
        %3664 = vmatprep.subr.mxu0 0.0
        %3665 = vmatpush1.msra.mxu0 %v3492
        %3666 = vmatprep.subr.mxu0 0.0
        %3667 = vmatpush1.msra.mxu0 %v3497
        %3668 = vmatprep.subr.mxu0 0.0
        %3669 = vmatpush1.msra.mxu0 0.0
        %3670 = vmatprep.subr.mxu0 0.0
        %3671 = vmatpush1.msra.mxu0 0.0
        %3672 = vmatprep.subr.mxu0 0.0
        %3673 = vmatpush1.msra.mxu0 0.0
        %3674 = vmatprep.subr.mxu0 0.0
        %3675 = vmatpush1.msra.mxu0 0.0
        %3676 = vmatprep.subr.mxu0 0.0
        %3677 = vmatpush1.msra.mxu0 0.0
        %3678 = vmatprep.subr.mxu0 0.0
        %3679 = vmatpush1.msra.mxu0 0.0
        %3680 = vmatprep.subr.mxu0 0.0
        %3681 = vmatpush1.msra.mxu0 0.0
        %3682 = vmatprep.subr.mxu0 0.0
        %3683 = vmatpush1.msra.mxu0 0.0
        %3684 = vmatprep.subr.mxu0 0.0
        %3685 = vmatpush1.msra.mxu0 0.0
        %3686 = vmatprep.subr.mxu0 0.0
        %3687 = vmatpush1.msra.mxu0 0.0
        %3688 = vmatprep.subr.mxu0 0.0
        %3689 = vmatpush1.msra.mxu0 0.0
        %3690 = vmatprep.subr.mxu0 0.0
        %3691 = vmatpush1.msra.mxu0 0.0
        %3692 = vmatprep.subr.mxu0 0.0
        %3693 = vmatpush1.msra.mxu0 0.0
        %3694 = vmatprep.subr.mxu0 0.0
        %3695 = vmatpush1.msra.mxu0 0.0
        %3696 = vmatprep.subr.mxu0 0.0
        %3697 = vmatpush1.msra.mxu0 0.0
        %3698 = vmatprep.subr.mxu0 0.0
        %3699 = vmatpush1.msra.mxu0 0.0
        %3700 = vmatprep.subr.mxu0 0.0
        %3701 = vmatpush1.msra.mxu0 0.0
        %3702 = vmatprep.subr.mxu0 0.0
        %3703 = vmatpush1.msra.mxu0 0.0
        %3704 = vmatprep.subr.mxu0 0.0
        %3705 = vmatpush1.msra.mxu0 0.0
        %3706 = vmatprep.subr.mxu0 0.0
        %3707 = vmatpush1.msra.mxu0 0.0
        %3708 = vmatprep.subr.mxu0 0.0
        %3709 = vmatpush1.msra.mxu0 0.0
        %3710 = vmatprep.subr.mxu0 0.0
        %3711 = vmatpush1.msra.mxu0 0.0
        %3712 = vmatprep.subr.mxu0 0.0
        %3713 = vmatpush1.msra.mxu0 0.0
        %3714 = vmatprep.subr.mxu0 0.0
        %3715 = vmatpush1.msra.mxu0 0.0
        %3716 = vmatprep.subr.mxu0 0.0
        %3717 = vmatpush1.msra.mxu0 0.0
        %3718 = vmatprep.subr.mxu0 0.0
        %3719 = vmatpush1.msra.mxu0 0.0
        %3720 = vmatprep.subr.mxu0 0.0
        %3721 = vmatpush1.msra.mxu0 0.0
        %3722 = vmatprep.subr.mxu0 0.0
        %3723 = vmatpush1.msra.mxu0 0.0
        %3724 = vmatprep.subr.mxu0 0.0
        %3725 = vmatpush1.msra.mxu0 0.0
        %3726 = vmatprep.subr.mxu0 0.0
        %3727 = vmatpush1.msra.mxu0 0.0
        %3728 = vmatprep.mubr.f32.mxu0 0.0
        %3729 = vmatmul.mubr.f32.gmra.mrb[0].mxu0 %v3653
        %v3730 = vpop.f32.mrb[0].mxu0
        %v3731 = vadd.f32 0.0, %v3730
        %v3732 = vpop.f32.mrb[0].mxu0
        %3733 = vmatprep.mubr.f32.mxu0 0.0
        %3734 = vmatmul.mubr.f32.gmra.mrb[0].mxu0 %v3656
        %v3735 = vpop.f32.mrb[0].mxu0
        %v3736 = vadd.f32 0.0, %v3735
        %v3737 = vpop.f32.mrb[0].mxu0
        %3738 = vmatprep.mubr.f32.mxu0 0.0
        %3739 = vmatmul.mubr.f32.gmra.mrb[0].mxu0 %v3659
        %v3740 = vpop.f32.mrb[0].mxu0
        %v3741 = vadd.f32 0.0, %v3740
        %v3742 = vpop.f32.mrb[0].mxu0
        %3743 = vmatprep.mubr.f32.mxu0 0.0
        %3744 = vmatmul.mubr.f32.gmra.mrb[0].mxu0 %v3662
        %v3745 = vpop.f32.mrb[0].mxu0
        %v3746 = vadd.f32 0.0, %v3745
        %v3747 = vpop.f32.mrb[0].mxu0
        %3748 = vdwg.mxu0
        %v3749 = vmul.f32 %v3731, %v408
        %v3750 = vmul.f32 %v3736, %v412
        %v3751 = vadd.f32 %v3749, %v3750
        %v3752 = vmul.f32 %v3741, %v416
        %v3753 = vadd.f32 %v3751, %v3752
        %v3754 = vmul.f32 %v3746, %v420
        %v3755 = vadd.f32 %v3753, %v3754
        %v3757 = vlaneseq
        %v3758 = vshrl.u32 %v3757, 7
        %v3759 = vsub.s32 0, %v3758
        %v3760 = vrot.slane %v2571, %v3759
        %v3763 = vsel %vm474, %v3755, 0
        %3765 = vmatprep.subr.mxu0 0.0
        %3766 = vmatpush1.msra.mxu0 %v2614
        %3767 = vmatprep.subr.mxu0 0.0
        %3768 = vmatpush1.msra.mxu0 %v2615
        %3769 = vmatprep.subr.mxu0 0.0
        %3770 = vmatpush1.msra.mxu0 %v2616
        %3771 = vmatprep.subr.mxu0 0.0
        %3772 = vmatpush1.msra.mxu0 %v2617
        %3773 = vmatprep.subr.mxu0 0.0
        %3774 = vmatpush1.msra.mxu0 0.0
        %3775 = vmatprep.subr.mxu0 0.0
        %3776 = vmatpush1.msra.mxu0 0.0
        %3777 = vmatprep.subr.mxu0 0.0
        %3778 = vmatpush1.msra.mxu0 0.0
        %3779 = vmatprep.subr.mxu0 0.0
        %3780 = vmatpush1.msra.mxu0 0.0
        %3781 = vmatprep.subr.mxu0 0.0
        %3782 = vmatpush1.msra.mxu0 0.0
        %3783 = vmatprep.subr.mxu0 0.0
        %3784 = vmatpush1.msra.mxu0 0.0
        %3785 = vmatprep.subr.mxu0 0.0
        %3786 = vmatpush1.msra.mxu0 0.0
        %3787 = vmatprep.subr.mxu0 0.0
        %3788 = vmatpush1.msra.mxu0 0.0
        %3789 = vmatprep.subr.mxu0 0.0
        %3790 = vmatpush1.msra.mxu0 0.0
        %3791 = vmatprep.subr.mxu0 0.0
        %3792 = vmatpush1.msra.mxu0 0.0
        %3793 = vmatprep.subr.mxu0 0.0
        %3794 = vmatpush1.msra.mxu0 0.0
        %3795 = vmatprep.subr.mxu0 0.0
        %3796 = vmatpush1.msra.mxu0 0.0
        %3797 = vmatprep.subr.mxu0 0.0
        %3798 = vmatpush1.msra.mxu0 0.0
        %3799 = vmatprep.subr.mxu0 0.0
        %3800 = vmatpush1.msra.mxu0 0.0
        %3801 = vmatprep.subr.mxu0 0.0
        %3802 = vmatpush1.msra.mxu0 0.0
        %3803 = vmatprep.subr.mxu0 0.0
        %3804 = vmatpush1.msra.mxu0 0.0
        %3805 = vmatprep.subr.mxu0 0.0
        %3806 = vmatpush1.msra.mxu0 0.0
        %3807 = vmatprep.subr.mxu0 0.0
        %3808 = vmatpush1.msra.mxu0 0.0
        %3809 = vmatprep.subr.mxu0 0.0
        %3810 = vmatpush1.msra.mxu0 0.0
        %3811 = vmatprep.subr.mxu0 0.0
        %3812 = vmatpush1.msra.mxu0 0.0
        %3813 = vmatprep.subr.mxu0 0.0
        %3814 = vmatpush1.msra.mxu0 0.0
        %3815 = vmatprep.subr.mxu0 0.0
        %3816 = vmatpush1.msra.mxu0 0.0
        %3817 = vmatprep.subr.mxu0 0.0
        %3818 = vmatpush1.msra.mxu0 0.0
        %3819 = vmatprep.subr.mxu0 0.0
        %3820 = vmatpush1.msra.mxu0 0.0
        %3821 = vmatprep.subr.mxu0 0.0
        %3822 = vmatpush1.msra.mxu0 0.0
        %3823 = vmatprep.subr.mxu0 0.0
        %3824 = vmatpush1.msra.mxu0 0.0
        %3825 = vmatprep.subr.mxu0 0.0
        %3826 = vmatpush1.msra.mxu0 0.0
        %3827 = vmatprep.subr.mxu0 0.0
        %3828 = vmatpush1.msra.mxu0 0.0
        %3829 = vmatprep.mubr.f32.mxu0 0.0
        %3830 = vmatmul.mubr.f32.gmra.mrb[0].mxu0 %v3763
        %v3831 = vpop.f32.mrb[0].mxu0
        %v3832 = vadd.f32 %v3760, %v3831
        %v3833 = vpop.f32.mrb[0].mxu0
        %3834 = vdwg.mxu0
        %v3835 = vadd.f32 %v3832, %v3225
        %v3836 = vsel %vm474, %v3835, 0.0
        %3837 = vadd.xlane.f32.xlu0 %v3836
        %v3838 = vpop.xlane.xlu0 %3837
        %v3839 = vmul.f32 %v3838, %v481
        %v3840 = vsub.f32 %v3835, %v3839
        %v3841 = vmul.f32 %v3840, %v3840
        %v3842 = vsel %vm474, %v3841, 0.0
        %3843 = vadd.xlane.f32.xlu0 %v3842
        %v3844 = vpop.xlane.xlu0 %3843
        %v3845 = vmul.f32 %v3844, %v481
        %v3846 = vadd.f32 %v3845, 1e-06
        %v3847 = vrsqrt.pop %v3846
        %v3848 = vmul.f32 %v3840, %v3847
        %v3850 = vlaneseq
        %v3851 = vshrl.u32 %v3850, 7
        %v3852 = vsub.s32 0, %v3851
        %v3853 = vrot.slane %v2573, %v3852
        %v3855 = vmul.f32 %v3848, %v3853
        %v3857 = vlaneseq
        %v3858 = vshrl.u32 %v3857, 7
        %v3859 = vsub.s32 0, %v3858
        %v3860 = vrot.slane %v2575, %v3859
        %v3862 = vadd.f32 %v3855, %v3860
        %v3864 = vlaneseq
        %v3865 = vshrl.u32 %v3864, 7
        %v3866 = vsub.s32 0, %v3865
        %v3867 = vrot.slane %v2624, %v3866
        %v3870 = vsel %vm474, %v3862, 0
        %3872 = vmatprep.subr.mxu0 0.0
        %3873 = vmatpush1.msra.mxu0 %v2619
        %3874 = vmatprep.subr.mxu0 0.0
        %3875 = vmatpush1.msra.mxu0 %v2620
        %3876 = vmatprep.subr.mxu0 0.0
        %3877 = vmatpush1.msra.mxu0 %v2621
        %3878 = vmatprep.subr.mxu0 0.0
        %3879 = vmatpush1.msra.mxu0 %v2622
        %3880 = vmatprep.subr.mxu0 0.0
        %3881 = vmatpush1.msra.mxu0 0.0
        %3882 = vmatprep.subr.mxu0 0.0
        %3883 = vmatpush1.msra.mxu0 0.0
        %3884 = vmatprep.subr.mxu0 0.0
        %3885 = vmatpush1.msra.mxu0 0.0
        %3886 = vmatprep.subr.mxu0 0.0
        %3887 = vmatpush1.msra.mxu0 0.0
        %3888 = vmatprep.subr.mxu0 0.0
        %3889 = vmatpush1.msra.mxu0 0.0
        %3890 = vmatprep.subr.mxu0 0.0
        %3891 = vmatpush1.msra.mxu0 0.0
        %3892 = vmatprep.subr.mxu0 0.0
        %3893 = vmatpush1.msra.mxu0 0.0
        %3894 = vmatprep.subr.mxu0 0.0
        %3895 = vmatpush1.msra.mxu0 0.0
        %3896 = vmatprep.subr.mxu0 0.0
        %3897 = vmatpush1.msra.mxu0 0.0
        %3898 = vmatprep.subr.mxu0 0.0
        %3899 = vmatpush1.msra.mxu0 0.0
        %3900 = vmatprep.subr.mxu0 0.0
        %3901 = vmatpush1.msra.mxu0 0.0
        %3902 = vmatprep.subr.mxu0 0.0
        %3903 = vmatpush1.msra.mxu0 0.0
        %3904 = vmatprep.subr.mxu0 0.0
        %3905 = vmatpush1.msra.mxu0 0.0
        %3906 = vmatprep.subr.mxu0 0.0
        %3907 = vmatpush1.msra.mxu0 0.0
        %3908 = vmatprep.subr.mxu0 0.0
        %3909 = vmatpush1.msra.mxu0 0.0
        %3910 = vmatprep.subr.mxu0 0.0
        %3911 = vmatpush1.msra.mxu0 0.0
        %3912 = vmatprep.subr.mxu0 0.0
        %3913 = vmatpush1.msra.mxu0 0.0
        %3914 = vmatprep.subr.mxu0 0.0
        %3915 = vmatpush1.msra.mxu0 0.0
        %3916 = vmatprep.subr.mxu0 0.0
        %3917 = vmatpush1.msra.mxu0 0.0
        %3918 = vmatprep.subr.mxu0 0.0
        %3919 = vmatpush1.msra.mxu0 0.0
        %3920 = vmatprep.subr.mxu0 0.0
        %3921 = vmatpush1.msra.mxu0 0.0
        %3922 = vmatprep.subr.mxu0 0.0
        %3923 = vmatpush1.msra.mxu0 0.0
        %3924 = vmatprep.subr.mxu0 0.0
        %3925 = vmatpush1.msra.mxu0 0.0
        %3926 = vmatprep.subr.mxu0 0.0
        %3927 = vmatpush1.msra.mxu0 0.0
        %3928 = vmatprep.subr.mxu0 0.0
        %3929 = vmatpush1.msra.mxu0 0.0
        %3930 = vmatprep.subr.mxu0 0.0
        %3931 = vmatpush1.msra.mxu0 0.0
        %3932 = vmatprep.subr.mxu0 0.0
        %3933 = vmatpush1.msra.mxu0 0.0
        %3934 = vmatprep.subr.mxu0 0.0
        %3935 = vmatpush1.msra.mxu0 0.0
        %3936 = vmatprep.mubr.f32.mxu0 0.0
        %3937 = vmatmul.mubr.f32.gmra.mrb[0].mxu0 %v3870
        %v3938 = vpop.f32.mrb[0].mxu0
        %v3939 = vadd.f32 %v3867, %v3938
        %v3940 = vpop.f32.mrb[0].mxu0
        %3941 = vdwg.mxu0
        %v3942 = vmax.f32 %v3939, 0.0
        %v3944 = vlaneseq
        %v3945 = vshrl.u32 %v3944, 7
        %v3946 = vsub.s32 0, %v3945
        %v3947 = vrot.slane %v2577, %v3946
        %v3950 = vsel %vm1376, %v3942, 0
        %3952 = vmatprep.subr.mxu0 0.0
        %3953 = vmatpush1.msra.mxu0 %v2626
        %3954 = vmatprep.subr.mxu0 0.0
        %3955 = vmatpush1.msra.mxu0 %v2627
        %3956 = vmatprep.subr.mxu0 0.0
        %3957 = vmatpush1.msra.mxu0 %v2628
        %3958 = vmatprep.subr.mxu0 0.0
        %3959 = vmatpush1.msra.mxu0 %v2629
        %3960 = vmatprep.subr.mxu0 0.0
        %3961 = vmatpush1.msra.mxu0 %v2630
        %3962 = vmatprep.subr.mxu0 0.0
        %3963 = vmatpush1.msra.mxu0 %v2631
        %3964 = vmatprep.subr.mxu0 0.0
        %3965 = vmatpush1.msra.mxu0 %v2632
        %3966 = vmatprep.subr.mxu0 0.0
        %3967 = vmatpush1.msra.mxu0 %v2633
        %3968 = vmatprep.subr.mxu0 0.0
        %3969 = vmatpush1.msra.mxu0 0.0
        %3970 = vmatprep.subr.mxu0 0.0
        %3971 = vmatpush1.msra.mxu0 0.0
        %3972 = vmatprep.subr.mxu0 0.0
        %3973 = vmatpush1.msra.mxu0 0.0
        %3974 = vmatprep.subr.mxu0 0.0
        %3975 = vmatpush1.msra.mxu0 0.0
        %3976 = vmatprep.subr.mxu0 0.0
        %3977 = vmatpush1.msra.mxu0 0.0
        %3978 = vmatprep.subr.mxu0 0.0
        %3979 = vmatpush1.msra.mxu0 0.0
        %3980 = vmatprep.subr.mxu0 0.0
        %3981 = vmatpush1.msra.mxu0 0.0
        %3982 = vmatprep.subr.mxu0 0.0
        %3983 = vmatpush1.msra.mxu0 0.0
        %3984 = vmatprep.subr.mxu0 0.0
        %3985 = vmatpush1.msra.mxu0 0.0
        %3986 = vmatprep.subr.mxu0 0.0
        %3987 = vmatpush1.msra.mxu0 0.0
        %3988 = vmatprep.subr.mxu0 0.0
        %3989 = vmatpush1.msra.mxu0 0.0
        %3990 = vmatprep.subr.mxu0 0.0
        %3991 = vmatpush1.msra.mxu0 0.0
        %3992 = vmatprep.subr.mxu0 0.0
        %3993 = vmatpush1.msra.mxu0 0.0
        %3994 = vmatprep.subr.mxu0 0.0
        %3995 = vmatpush1.msra.mxu0 0.0
        %3996 = vmatprep.subr.mxu0 0.0
        %3997 = vmatpush1.msra.mxu0 0.0
        %3998 = vmatprep.subr.mxu0 0.0
        %3999 = vmatpush1.msra.mxu0 0.0
        %4000 = vmatprep.subr.mxu0 0.0
        %4001 = vmatpush1.msra.mxu0 0.0
        %4002 = vmatprep.subr.mxu0 0.0
        %4003 = vmatpush1.msra.mxu0 0.0
        %4004 = vmatprep.subr.mxu0 0.0
        %4005 = vmatpush1.msra.mxu0 0.0
        %4006 = vmatprep.subr.mxu0 0.0
        %4007 = vmatpush1.msra.mxu0 0.0
        %4008 = vmatprep.subr.mxu0 0.0
        %4009 = vmatpush1.msra.mxu0 0.0
        %4010 = vmatprep.subr.mxu0 0.0
        %4011 = vmatpush1.msra.mxu0 0.0
        %4012 = vmatprep.subr.mxu0 0.0
        %4013 = vmatpush1.msra.mxu0 0.0
        %4014 = vmatprep.subr.mxu0 0.0
        %4015 = vmatpush1.msra.mxu0 0.0
        %4016 = vmatprep.mubr.f32.mxu0 0.0
        %4017 = vmatmul.mubr.f32.gmra.mrb[0].mxu0 %v3950
        %v4018 = vpop.f32.mrb[0].mxu0
        %v4019 = vadd.f32 %v3947, %v4018
        %v4020 = vpop.f32.mrb[0].mxu0
        %4021 = vdwg.mxu0
        %v4022 = vadd.f32 %v4019, %v3835
        %s4023 = scalar_lea.vmem %s4, 35
        %v4024 = vld [vmem:[%s4023] sm:$0x1]
        %s4025 = scalar_lea.vmem %s4, 36
        %v4026 = vld [vmem:[%s4025] sm:$0x1]
        %s4027 = scalar_lea.vmem %s4, 37
        %v4028 = vld [vmem:[%s4027] sm:$0x1]
        %s4029 = scalar_lea.vmem %s4, 38
        %v4030 = vld [vmem:[%s4029] sm:$0x1]
        %s4031 = scalar_lea.vmem %s4, 39
        %v4032 = vld [vmem:[%s4031] sm:$0x1]
        %s4033 = scalar_lea.vmem %s4, 40
        %v4034 = vld [vmem:[%s4033] sm:$0x1]
        %s4035 = scalar_lea.vmem %s4, 41
        %v4036 = vld [vmem:[%s4035] sm:$0x1]
        %s4037 = scalar_lea.vmem %s4, 42
        %v4038 = vld [vmem:[%s4037] sm:$0x1]
        %s4039 = scalar_lea.vmem %s4, 43
        %v4040 = vld [vmem:[%s4039] sm:$0x1]
        %s4041 = scalar_lea.vmem %s4, 44
        %v4042 = vld [vmem:[%s4041] sm:$0x1]
        %s4043 = scalar_lea.vmem %s4, 45
        %v4044 = vld [vmem:[%s4043] sm:$0x1]
        %s4045 = scalar_lea.vmem %s4, 46
        %v4046 = vld [vmem:[%s4045] sm:$0x1]
        %s4047 = scalar_lea.vmem %s4, 47
        %v4048 = vld [vmem:[%s4047] sm:$0x1]
        %s4049 = scalar_lea.vmem %s4, 48
        %v4050 = vld [vmem:[%s4049] sm:$0x1]
        %s4051 = scalar_lea.vmem %s4, 49
        %v4052 = vld [vmem:[%s4051] sm:$0x1]
        %s4053 = scalar_lea.vmem %s6, 512
        %v4054 = vld [vmem:[%s4053] sm:$0xff]
        %v4055 = vld [vmem:[%s4053 + $0x8] sm:$0xff]
        %v4056 = vld [vmem:[%s4053 + $0x10] sm:$0xff]
        %v4057 = vld [vmem:[%s4053 + $0x18] sm:$0xff]
        %s4058 = scalar_lea.vmem %s6, 544
        %v4059 = vld [vmem:[%s4058] sm:$0xff]
        %v4060 = vld [vmem:[%s4058 + $0x8] sm:$0xff]
        %v4061 = vld [vmem:[%s4058 + $0x10] sm:$0xff]
        %v4062 = vld [vmem:[%s4058 + $0x18] sm:$0xff]
        %s4063 = scalar_lea.vmem %s6, 576
        %v4064 = vld [vmem:[%s4063] sm:$0xff]
        %v4065 = vld [vmem:[%s4063 + $0x8] sm:$0xff]
        %v4066 = vld [vmem:[%s4063 + $0x10] sm:$0xff]
        %v4067 = vld [vmem:[%s4063 + $0x18] sm:$0xff]
        %s4068 = scalar_lea.vmem %s6, 608
        %v4069 = vld [vmem:[%s4068] sm:$0xff]
        %v4070 = vld [vmem:[%s4068 + $0x8] sm:$0xff]
        %v4071 = vld [vmem:[%s4068 + $0x10] sm:$0xff]
        %v4072 = vld [vmem:[%s4068 + $0x18] sm:$0xff]
        %s4073 = scalar_lea.vmem %s6, 640
        %v4074 = vld [vmem:[%s4073] sm:$0xff]
        %v4075 = vld [vmem:[%s4073 + $0x8] sm:$0xff]
        %v4076 = vld [vmem:[%s4073 + $0x10] sm:$0xff]
        %v4077 = vld [vmem:[%s4073 + $0x18] sm:$0xff]
        %s4078 = scalar_lea.vmem %s6, 672
        %v4079 = vld [vmem:[%s4078] sm:$0xff]
        %v4080 = vld [vmem:[%s4078 + $0x8] sm:$0xff]
        %v4081 = vld [vmem:[%s4078 + $0x10] sm:$0xff]
        %v4082 = vld [vmem:[%s4078 + $0x18] sm:$0xff]
        %s4083 = scalar_lea.vmem %s6, 704
        %v4084 = vld [vmem:[%s4083] sm:$0xff]
        %v4085 = vld [vmem:[%s4083 + $0x8] sm:$0xff]
        %v4086 = vld [vmem:[%s4083 + $0x10] sm:$0xff]
        %v4087 = vld [vmem:[%s4083 + $0x18] sm:$0xff]
        %s4088 = scalar_lea.vmem %s6, 736
        %v4089 = vld [vmem:[%s4088] sm:$0xff]
        %v4090 = vld [vmem:[%s4088 + $0x8] sm:$0xff]
        %v4091 = vld [vmem:[%s4088 + $0x10] sm:$0xff]
        %v4092 = vld [vmem:[%s4088 + $0x18] sm:$0xff]
        %s4093 = scalar_lea.vmem %s7, 96
        %v4094 = vld [vmem:[%s4093] sm:$0xff]
        %v4095 = vld [vmem:[%s4093 + $0x8] sm:$0xff]
        %v4096 = vld [vmem:[%s4093 + $0x10] sm:$0xff]
        %v4097 = vld [vmem:[%s4093 + $0x18] sm:$0xff]
        %s4098 = scalar_lea.vmem %s5, 3
        %v4099 = vld [vmem:[%s4098] sm:$0x1]
        %s4100 = scalar_lea.vmem %s8, 192
        %v4101 = vld [vmem:[%s4100] sm:$0xff]
        %v4102 = vld [vmem:[%s4100 + $0x8] sm:$0xff]
        %v4103 = vld [vmem:[%s4100 + $0x10] sm:$0xff]
        %v4104 = vld [vmem:[%s4100 + $0x18] sm:$0xff]
        %v4105 = vld [vmem:[%s4100 + $0x20] sm:$0xff]
        %v4106 = vld [vmem:[%s4100 + $0x28] sm:$0xff]
        %v4107 = vld [vmem:[%s4100 + $0x30] sm:$0xff]
        %v4108 = vld [vmem:[%s4100 + $0x38] sm:$0xff]
        %v4109 = vsel %vm474, %v4022, 0.0
        %4110 = vadd.xlane.f32.xlu0 %v4109
        %v4111 = vpop.xlane.xlu0 %4110
        %v4112 = vmul.f32 %v4111, %v481
        %v4113 = vsub.f32 %v4022, %v4112
        %v4114 = vmul.f32 %v4113, %v4113
        %v4115 = vsel %vm474, %v4114, 0.0
        %4116 = vadd.xlane.f32.xlu0 %v4115
        %v4117 = vpop.xlane.xlu0 %4116
        %v4118 = vmul.f32 %v4117, %v481
        %v4119 = vadd.f32 %v4118, 1e-06
        %v4120 = vrsqrt.pop %v4119
        %v4121 = vmul.f32 %v4113, %v4120
        %v4123 = vlaneseq
        %v4124 = vshrl.u32 %v4123, 7
        %v4125 = vsub.s32 0, %v4124
        %v4126 = vrot.slane %v4024, %v4125
        %v4128 = vmul.f32 %v4121, %v4126
        %v4130 = vlaneseq
        %v4131 = vshrl.u32 %v4130, 7
        %v4132 = vsub.s32 0, %v4131
        %v4133 = vrot.slane %v4026, %v4132
        %v4135 = vadd.f32 %v4128, %v4133
        %v4137 = vlaneseq
        %v4138 = vshrl.u32 %v4137, 7
        %v4139 = vsub.s32 0, %v4138
        %v4140 = vrot.slane %v4028, %v4139
        %v4143 = vsel %vm474, %v4135, 0
        %4145 = vmatprep.subr.mxu0 0.0
        %4146 = vmatpush1.msra.mxu0 %v4054
        %4147 = vmatprep.subr.mxu0 0.0
        %4148 = vmatpush1.msra.mxu0 %v4055
        %4149 = vmatprep.subr.mxu0 0.0
        %4150 = vmatpush1.msra.mxu0 %v4056
        %4151 = vmatprep.subr.mxu0 0.0
        %4152 = vmatpush1.msra.mxu0 %v4057
        %4153 = vmatprep.subr.mxu0 0.0
        %4154 = vmatpush1.msra.mxu0 0.0
        %4155 = vmatprep.subr.mxu0 0.0
        %4156 = vmatpush1.msra.mxu0 0.0
        %4157 = vmatprep.subr.mxu0 0.0
        %4158 = vmatpush1.msra.mxu0 0.0
        %4159 = vmatprep.subr.mxu0 0.0
        %4160 = vmatpush1.msra.mxu0 0.0
        %4161 = vmatprep.subr.mxu0 0.0
        %4162 = vmatpush1.msra.mxu0 0.0
        %4163 = vmatprep.subr.mxu0 0.0
        %4164 = vmatpush1.msra.mxu0 0.0
        %4165 = vmatprep.subr.mxu0 0.0
        %4166 = vmatpush1.msra.mxu0 0.0
        %4167 = vmatprep.subr.mxu0 0.0
        %4168 = vmatpush1.msra.mxu0 0.0
        %4169 = vmatprep.subr.mxu0 0.0
        %4170 = vmatpush1.msra.mxu0 0.0
        %4171 = vmatprep.subr.mxu0 0.0
        %4172 = vmatpush1.msra.mxu0 0.0
        %4173 = vmatprep.subr.mxu0 0.0
        %4174 = vmatpush1.msra.mxu0 0.0
        %4175 = vmatprep.subr.mxu0 0.0
        %4176 = vmatpush1.msra.mxu0 0.0
        %4177 = vmatprep.subr.mxu0 0.0
        %4178 = vmatpush1.msra.mxu0 0.0
        %4179 = vmatprep.subr.mxu0 0.0
        %4180 = vmatpush1.msra.mxu0 0.0
        %4181 = vmatprep.subr.mxu0 0.0
        %4182 = vmatpush1.msra.mxu0 0.0
        %4183 = vmatprep.subr.mxu0 0.0
        %4184 = vmatpush1.msra.mxu0 0.0
        %4185 = vmatprep.subr.mxu0 0.0
        %4186 = vmatpush1.msra.mxu0 0.0
        %4187 = vmatprep.subr.mxu0 0.0
        %4188 = vmatpush1.msra.mxu0 0.0
        %4189 = vmatprep.subr.mxu0 0.0
        %4190 = vmatpush1.msra.mxu0 0.0
        %4191 = vmatprep.subr.mxu0 0.0
        %4192 = vmatpush1.msra.mxu0 0.0
        %4193 = vmatprep.subr.mxu0 0.0
        %4194 = vmatpush1.msra.mxu0 0.0
        %4195 = vmatprep.subr.mxu0 0.0
        %4196 = vmatpush1.msra.mxu0 0.0
        %4197 = vmatprep.subr.mxu0 0.0
        %4198 = vmatpush1.msra.mxu0 0.0
        %4199 = vmatprep.subr.mxu0 0.0
        %4200 = vmatpush1.msra.mxu0 0.0
        %4201 = vmatprep.subr.mxu0 0.0
        %4202 = vmatpush1.msra.mxu0 0.0
        %4203 = vmatprep.subr.mxu0 0.0
        %4204 = vmatpush1.msra.mxu0 0.0
        %4205 = vmatprep.subr.mxu0 0.0
        %4206 = vmatpush1.msra.mxu0 0.0
        %4207 = vmatprep.subr.mxu0 0.0
        %4208 = vmatpush1.msra.mxu0 0.0
        %4209 = vmatprep.mubr.f32.mxu0 0.0
        %4210 = vmatmul.mubr.f32.gmra.mrb[0].mxu0 %v4143
        %v4211 = vpop.f32.mrb[0].mxu0
        %v4212 = vadd.f32 %v4140, %v4211
        %v4213 = vpop.f32.mrb[0].mxu0
        %4214 = vdwg.mxu0
        %v4216 = vlaneseq
        %v4217 = vshrl.u32 %v4216, 7
        %v4218 = vsub.s32 0, %v4217
        %v4219 = vrot.slane %v4030, %v4218
        %4221 = vmatprep.subr.mxu0 0.0
        %4222 = vmatpush1.msra.mxu0 %v4059
        %4223 = vmatprep.subr.mxu0 0.0
        %4224 = vmatpush1.msra.mxu0 %v4060
        %4225 = vmatprep.subr.mxu0 0.0
        %4226 = vmatpush1.msra.mxu0 %v4061
        %4227 = vmatprep.subr.mxu0 0.0
        %4228 = vmatpush1.msra.mxu0 %v4062
        %4229 = vmatprep.subr.mxu0 0.0
        %4230 = vmatpush1.msra.mxu0 0.0
        %4231 = vmatprep.subr.mxu0 0.0
        %4232 = vmatpush1.msra.mxu0 0.0
        %4233 = vmatprep.subr.mxu0 0.0
        %4234 = vmatpush1.msra.mxu0 0.0
        %4235 = vmatprep.subr.mxu0 0.0
        %4236 = vmatpush1.msra.mxu0 0.0
        %4237 = vmatprep.subr.mxu0 0.0
        %4238 = vmatpush1.msra.mxu0 0.0
        %4239 = vmatprep.subr.mxu0 0.0
        %4240 = vmatpush1.msra.mxu0 0.0
        %4241 = vmatprep.subr.mxu0 0.0
        %4242 = vmatpush1.msra.mxu0 0.0
        %4243 = vmatprep.subr.mxu0 0.0
        %4244 = vmatpush1.msra.mxu0 0.0
        %4245 = vmatprep.subr.mxu0 0.0
        %4246 = vmatpush1.msra.mxu0 0.0
        %4247 = vmatprep.subr.mxu0 0.0
        %4248 = vmatpush1.msra.mxu0 0.0
        %4249 = vmatprep.subr.mxu0 0.0
        %4250 = vmatpush1.msra.mxu0 0.0
        %4251 = vmatprep.subr.mxu0 0.0
        %4252 = vmatpush1.msra.mxu0 0.0
        %4253 = vmatprep.subr.mxu0 0.0
        %4254 = vmatpush1.msra.mxu0 0.0
        %4255 = vmatprep.subr.mxu0 0.0
        %4256 = vmatpush1.msra.mxu0 0.0
        %4257 = vmatprep.subr.mxu0 0.0
        %4258 = vmatpush1.msra.mxu0 0.0
        %4259 = vmatprep.subr.mxu0 0.0
        %4260 = vmatpush1.msra.mxu0 0.0
        %4261 = vmatprep.subr.mxu0 0.0
        %4262 = vmatpush1.msra.mxu0 0.0
        %4263 = vmatprep.subr.mxu0 0.0
        %4264 = vmatpush1.msra.mxu0 0.0
        %4265 = vmatprep.subr.mxu0 0.0
        %4266 = vmatpush1.msra.mxu0 0.0
        %4267 = vmatprep.subr.mxu0 0.0
        %4268 = vmatpush1.msra.mxu0 0.0
        %4269 = vmatprep.subr.mxu0 0.0
        %4270 = vmatpush1.msra.mxu0 0.0
        %4271 = vmatprep.subr.mxu0 0.0
        %4272 = vmatpush1.msra.mxu0 0.0
        %4273 = vmatprep.subr.mxu0 0.0
        %4274 = vmatpush1.msra.mxu0 0.0
        %4275 = vmatprep.subr.mxu0 0.0
        %4276 = vmatpush1.msra.mxu0 0.0
        %4277 = vmatprep.subr.mxu0 0.0
        %4278 = vmatpush1.msra.mxu0 0.0
        %4279 = vmatprep.subr.mxu0 0.0
        %4280 = vmatpush1.msra.mxu0 0.0
        %4281 = vmatprep.subr.mxu0 0.0
        %4282 = vmatpush1.msra.mxu0 0.0
        %4283 = vmatprep.subr.mxu0 0.0
        %4284 = vmatpush1.msra.mxu0 0.0
        %4285 = vmatprep.mubr.f32.mxu0 0.0
        %4286 = vmatmul.mubr.f32.gmra.mrb[0].mxu0 %v4143
        %v4287 = vpop.f32.mrb[0].mxu0
        %v4288 = vadd.f32 %v4219, %v4287
        %v4289 = vpop.f32.mrb[0].mxu0
        %4290 = vdwg.mxu0
        %v4292 = vlaneseq
        %v4293 = vshrl.u32 %v4292, 7
        %v4294 = vsub.s32 0, %v4293
        %v4295 = vrot.slane %v4032, %v4294
        %4297 = vmatprep.subr.mxu0 0.0
        %4298 = vmatpush1.msra.mxu0 %v4064
        %4299 = vmatprep.subr.mxu0 0.0
        %4300 = vmatpush1.msra.mxu0 %v4065
        %4301 = vmatprep.subr.mxu0 0.0
        %4302 = vmatpush1.msra.mxu0 %v4066
        %4303 = vmatprep.subr.mxu0 0.0
        %4304 = vmatpush1.msra.mxu0 %v4067
        %4305 = vmatprep.subr.mxu0 0.0
        %4306 = vmatpush1.msra.mxu0 0.0
        %4307 = vmatprep.subr.mxu0 0.0
        %4308 = vmatpush1.msra.mxu0 0.0
        %4309 = vmatprep.subr.mxu0 0.0
        %4310 = vmatpush1.msra.mxu0 0.0
        %4311 = vmatprep.subr.mxu0 0.0
        %4312 = vmatpush1.msra.mxu0 0.0
        %4313 = vmatprep.subr.mxu0 0.0
        %4314 = vmatpush1.msra.mxu0 0.0
        %4315 = vmatprep.subr.mxu0 0.0
        %4316 = vmatpush1.msra.mxu0 0.0
        %4317 = vmatprep.subr.mxu0 0.0
        %4318 = vmatpush1.msra.mxu0 0.0
        %4319 = vmatprep.subr.mxu0 0.0
        %4320 = vmatpush1.msra.mxu0 0.0
        %4321 = vmatprep.subr.mxu0 0.0
        %4322 = vmatpush1.msra.mxu0 0.0
        %4323 = vmatprep.subr.mxu0 0.0
        %4324 = vmatpush1.msra.mxu0 0.0
        %4325 = vmatprep.subr.mxu0 0.0
        %4326 = vmatpush1.msra.mxu0 0.0
        %4327 = vmatprep.subr.mxu0 0.0
        %4328 = vmatpush1.msra.mxu0 0.0
        %4329 = vmatprep.subr.mxu0 0.0
        %4330 = vmatpush1.msra.mxu0 0.0
        %4331 = vmatprep.subr.mxu0 0.0
        %4332 = vmatpush1.msra.mxu0 0.0
        %4333 = vmatprep.subr.mxu0 0.0
        %4334 = vmatpush1.msra.mxu0 0.0
        %4335 = vmatprep.subr.mxu0 0.0
        %4336 = vmatpush1.msra.mxu0 0.0
        %4337 = vmatprep.subr.mxu0 0.0
        %4338 = vmatpush1.msra.mxu0 0.0
        %4339 = vmatprep.subr.mxu0 0.0
        %4340 = vmatpush1.msra.mxu0 0.0
        %4341 = vmatprep.subr.mxu0 0.0
        %4342 = vmatpush1.msra.mxu0 0.0
        %4343 = vmatprep.subr.mxu0 0.0
        %4344 = vmatpush1.msra.mxu0 0.0
        %4345 = vmatprep.subr.mxu0 0.0
        %4346 = vmatpush1.msra.mxu0 0.0
        %4347 = vmatprep.subr.mxu0 0.0
        %4348 = vmatpush1.msra.mxu0 0.0
        %4349 = vmatprep.subr.mxu0 0.0
        %4350 = vmatpush1.msra.mxu0 0.0
        %4351 = vmatprep.subr.mxu0 0.0
        %4352 = vmatpush1.msra.mxu0 0.0
        %4353 = vmatprep.subr.mxu0 0.0
        %4354 = vmatpush1.msra.mxu0 0.0
        %4355 = vmatprep.subr.mxu0 0.0
        %4356 = vmatpush1.msra.mxu0 0.0
        %4357 = vmatprep.subr.mxu0 0.0
        %4358 = vmatpush1.msra.mxu0 0.0
        %4359 = vmatprep.subr.mxu0 0.0
        %4360 = vmatpush1.msra.mxu0 0.0
        %4361 = vmatprep.mubr.f32.mxu0 0.0
        %4362 = vmatmul.mubr.f32.gmra.mrb[0].mxu0 %v4143
        %v4363 = vpop.f32.mrb[0].mxu0
        %v4364 = vadd.f32 %v4295, %v4363
        %v4365 = vpop.f32.mrb[0].mxu0
        %4366 = vdwg.mxu0
        %v4367 = vmul.f32 %v4212, 0.35355338
        %v4368 = vmul.f32 %v4367, %v408
        %v4369 = vmul.f32 %v4367, %v412
        %v4370 = vmul.f32 %v4367, %v416
        %v4371 = vmul.f32 %v4367, %v420
        %v4373 = vsel %vm474, %v4368, 0
        %v4376 = vsel %vm474, %v4369, 0
        %v4379 = vsel %vm474, %v4370, 0
        %v4382 = vsel %vm474, %v4371, 0
        %v4385 = vsel %vm474, %v4288, 0
        %4387 = vmatprep.subr.mxu0 0.0
        %4388 = vmatpush1.xpose.msra.mxu0 %v4385
        %4389 = vmatprep.subr.mxu0 0.0
        %4390 = vmatpush1.xpose.msra.mxu0 0.0
        %4391 = vmatprep.subr.mxu0 0.0
        %4392 = vmatpush1.xpose.msra.mxu0 0.0
        %4393 = vmatprep.subr.mxu0 0.0
        %4394 = vmatpush1.xpose.msra.mxu0 0.0
        %4395 = vmatprep.subr.mxu0 0.0
        %4396 = vmatpush1.xpose.msra.mxu0 0.0
        %4397 = vmatprep.subr.mxu0 0.0
        %4398 = vmatpush1.xpose.msra.mxu0 0.0
        %4399 = vmatprep.subr.mxu0 0.0
        %4400 = vmatpush1.xpose.msra.mxu0 0.0
        %4401 = vmatprep.subr.mxu0 0.0
        %4402 = vmatpush1.xpose.msra.mxu0 0.0
        %4403 = vmatprep.subr.mxu0 0.0
        %4404 = vmatpush1.xpose.msra.mxu0 0.0
        %4405 = vmatprep.subr.mxu0 0.0
        %4406 = vmatpush1.xpose.msra.mxu0 0.0
        %4407 = vmatprep.subr.mxu0 0.0
        %4408 = vmatpush1.xpose.msra.mxu0 0.0
        %4409 = vmatprep.subr.mxu0 0.0
        %4410 = vmatpush1.xpose.msra.mxu0 0.0
        %4411 = vmatprep.subr.mxu0 0.0
        %4412 = vmatpush1.xpose.msra.mxu0 0.0
        %4413 = vmatprep.subr.mxu0 0.0
        %4414 = vmatpush1.xpose.msra.mxu0 0.0
        %4415 = vmatprep.subr.mxu0 0.0
        %4416 = vmatpush1.xpose.msra.mxu0 0.0
        %4417 = vmatprep.subr.mxu0 0.0
        %4418 = vmatpush1.xpose.msra.mxu0 0.0
        %4419 = vmatprep.subr.mxu0 0.0
        %4420 = vmatpush1.xpose.msra.mxu0 0.0
        %4421 = vmatprep.subr.mxu0 0.0
        %4422 = vmatpush1.xpose.msra.mxu0 0.0
        %4423 = vmatprep.subr.mxu0 0.0
        %4424 = vmatpush1.xpose.msra.mxu0 0.0
        %4425 = vmatprep.subr.mxu0 0.0
        %4426 = vmatpush1.xpose.msra.mxu0 0.0
        %4427 = vmatprep.subr.mxu0 0.0
        %4428 = vmatpush1.xpose.msra.mxu0 0.0
        %4429 = vmatprep.subr.mxu0 0.0
        %4430 = vmatpush1.xpose.msra.mxu0 0.0
        %4431 = vmatprep.subr.mxu0 0.0
        %4432 = vmatpush1.xpose.msra.mxu0 0.0
        %4433 = vmatprep.subr.mxu0 0.0
        %4434 = vmatpush1.xpose.msra.mxu0 0.0
        %4435 = vmatprep.subr.mxu0 0.0
        %4436 = vmatpush1.xpose.msra.mxu0 0.0
        %4437 = vmatprep.subr.mxu0 0.0
        %4438 = vmatpush1.xpose.msra.mxu0 0.0
        %4439 = vmatprep.subr.mxu0 0.0
        %4440 = vmatpush1.xpose.msra.mxu0 0.0
        %4441 = vmatprep.subr.mxu0 0.0
        %4442 = vmatpush1.xpose.msra.mxu0 0.0
        %4443 = vmatprep.subr.mxu0 0.0
        %4444 = vmatpush1.xpose.msra.mxu0 0.0
        %4445 = vmatprep.subr.mxu0 0.0
        %4446 = vmatpush1.xpose.msra.mxu0 0.0
        %4447 = vmatprep.subr.mxu0 0.0
        %4448 = vmatpush1.xpose.msra.mxu0 0.0
        %4449 = vmatprep.subr.mxu0 0.0
        %4450 = vmatpush1.xpose.msra.mxu0 0.0
        %4451 = vmatprep.mubr.f32.mxu0 0.0
        %4452 = vmatmul.mubr.f32.gmra.mrb[0].mxu0 %v4373
        %v4453 = vpop.f32.mrb[0].mxu0
        %v4454 = vadd.f32 %v2547, %v4453
        %v4455 = vpop.f32.mrb[0].mxu0
        %4456 = vmatprep.mubr.f32.mxu0 0.0
        %4457 = vmatmul.mubr.f32.gmra.mrb[0].mxu0 %v4376
        %v4458 = vpop.f32.mrb[0].mxu0
        %v4459 = vadd.f32 %v2547, %v4458
        %v4460 = vpop.f32.mrb[0].mxu0
        %4461 = vmatprep.mubr.f32.mxu0 0.0
        %4462 = vmatmul.mubr.f32.gmra.mrb[0].mxu0 %v4379
        %v4463 = vpop.f32.mrb[0].mxu0
        %v4464 = vadd.f32 %v2547, %v4463
        %v4465 = vpop.f32.mrb[0].mxu0
        %4466 = vmatprep.mubr.f32.mxu0 0.0
        %4467 = vmatmul.mubr.f32.gmra.mrb[0].mxu0 %v4382
        %v4468 = vpop.f32.mrb[0].mxu0
        %v4469 = vadd.f32 %v2547, %v4468
        %v4470 = vpop.f32.mrb[0].mxu0
        %4471 = vdwg.mxu0
        %v4472 = vsel %vm2997, %v4454, -inf
        %4473 = vmax.xlane.f32.xlu0 %v4472
        %v4474 = vpop.xlane.xlu0 %4473
        %v4475 = vsel %vm2997, %v4459, -inf
        %4476 = vmax.xlane.f32.xlu0 %v4475
        %v4477 = vpop.xlane.xlu0 %4476
        %v4478 = vsel %vm2997, %v4464, -inf
        %4479 = vmax.xlane.f32.xlu0 %v4478
        %v4480 = vpop.xlane.xlu0 %4479
        %v4481 = vsel %vm2997, %v4469, -inf
        %4482 = vmax.xlane.f32.xlu0 %v4481
        %v4483 = vpop.xlane.xlu0 %4482
        %v4484 = vsub.f32 %v4454, %v4474
        %v4485 = vsub.f32 %v4459, %v4477
        %v4486 = vsub.f32 %v4464, %v4480
        %v4487 = vsub.f32 %v4469, %v4483
        %v4488 = vmul.f32 %v4484, 1.442695
        %v4489 = vpow.pop %v4488
        %v4490 = vmul.f32 %v4485, 1.442695
        %v4491 = vpow.pop %v4490
        %v4492 = vmul.f32 %v4486, 1.442695
        %v4493 = vpow.pop %v4492
        %v4494 = vmul.f32 %v4487, 1.442695
        %v4495 = vpow.pop %v4494
        %v4496 = vsel %vm2997, %v4489, 0.0
        %4497 = vadd.xlane.f32.xlu0 %v4496
        %v4498 = vpop.xlane.xlu0 %4497
        %v4499 = vsel %vm2997, %v4491, 0.0
        %4500 = vadd.xlane.f32.xlu0 %v4499
        %v4501 = vpop.xlane.xlu0 %4500
        %v4502 = vsel %vm2997, %v4493, 0.0
        %4503 = vadd.xlane.f32.xlu0 %v4502
        %v4504 = vpop.xlane.xlu0 %4503
        %v4505 = vsel %vm2997, %v4495, 0.0
        %4506 = vadd.xlane.f32.xlu0 %v4505
        %v4507 = vpop.xlane.xlu0 %4506
        %v4508 = vrcp.pop %v4498
        %v4509 = vrcp.pop %v4501
        %v4510 = vrcp.pop %v4504
        %v4511 = vrcp.pop %v4507
        %v4512 = vmul.f32 %v4489, %v4508
        %v4513 = vmul.f32 %v4491, %v4509
        %v4514 = vmul.f32 %v4493, %v4510
        %v4515 = vmul.f32 %v4495, %v4511
        %v4517 = vsel %vm2997, %v4512, 0
        %v4520 = vsel %vm2997, %v4513, 0
        %v4523 = vsel %vm2997, %v4514, 0
        %v4526 = vsel %vm2997, %v4515, 0
        %4528 = vmatprep.subr.mxu0 0.0
        %4529 = vmatpush1.msra.mxu0 %v4364
        %4530 = vmatprep.subr.mxu0 0.0
        %4531 = vmatpush1.msra.mxu0 0.0
        %4532 = vmatprep.subr.mxu0 0.0
        %4533 = vmatpush1.msra.mxu0 0.0
        %4534 = vmatprep.subr.mxu0 0.0
        %4535 = vmatpush1.msra.mxu0 0.0
        %4536 = vmatprep.subr.mxu0 0.0
        %4537 = vmatpush1.msra.mxu0 0.0
        %4538 = vmatprep.subr.mxu0 0.0
        %4539 = vmatpush1.msra.mxu0 0.0
        %4540 = vmatprep.subr.mxu0 0.0
        %4541 = vmatpush1.msra.mxu0 0.0
        %4542 = vmatprep.subr.mxu0 0.0
        %4543 = vmatpush1.msra.mxu0 0.0
        %4544 = vmatprep.subr.mxu0 0.0
        %4545 = vmatpush1.msra.mxu0 0.0
        %4546 = vmatprep.subr.mxu0 0.0
        %4547 = vmatpush1.msra.mxu0 0.0
        %4548 = vmatprep.subr.mxu0 0.0
        %4549 = vmatpush1.msra.mxu0 0.0
        %4550 = vmatprep.subr.mxu0 0.0
        %4551 = vmatpush1.msra.mxu0 0.0
        %4552 = vmatprep.subr.mxu0 0.0
        %4553 = vmatpush1.msra.mxu0 0.0
        %4554 = vmatprep.subr.mxu0 0.0
        %4555 = vmatpush1.msra.mxu0 0.0
        %4556 = vmatprep.subr.mxu0 0.0
        %4557 = vmatpush1.msra.mxu0 0.0
        %4558 = vmatprep.subr.mxu0 0.0
        %4559 = vmatpush1.msra.mxu0 0.0
        %4560 = vmatprep.subr.mxu0 0.0
        %4561 = vmatpush1.msra.mxu0 0.0
        %4562 = vmatprep.subr.mxu0 0.0
        %4563 = vmatpush1.msra.mxu0 0.0
        %4564 = vmatprep.subr.mxu0 0.0
        %4565 = vmatpush1.msra.mxu0 0.0
        %4566 = vmatprep.subr.mxu0 0.0
        %4567 = vmatpush1.msra.mxu0 0.0
        %4568 = vmatprep.subr.mxu0 0.0
        %4569 = vmatpush1.msra.mxu0 0.0
        %4570 = vmatprep.subr.mxu0 0.0
        %4571 = vmatpush1.msra.mxu0 0.0
        %4572 = vmatprep.subr.mxu0 0.0
        %4573 = vmatpush1.msra.mxu0 0.0
        %4574 = vmatprep.subr.mxu0 0.0
        %4575 = vmatpush1.msra.mxu0 0.0
        %4576 = vmatprep.subr.mxu0 0.0
        %4577 = vmatpush1.msra.mxu0 0.0
        %4578 = vmatprep.subr.mxu0 0.0
        %4579 = vmatpush1.msra.mxu0 0.0
        %4580 = vmatprep.subr.mxu0 0.0
        %4581 = vmatpush1.msra.mxu0 0.0
        %4582 = vmatprep.subr.mxu0 0.0
        %4583 = vmatpush1.msra.mxu0 0.0
        %4584 = vmatprep.subr.mxu0 0.0
        %4585 = vmatpush1.msra.mxu0 0.0
        %4586 = vmatprep.subr.mxu0 0.0
        %4587 = vmatpush1.msra.mxu0 0.0
        %4588 = vmatprep.subr.mxu0 0.0
        %4589 = vmatpush1.msra.mxu0 0.0
        %4590 = vmatprep.subr.mxu0 0.0
        %4591 = vmatpush1.msra.mxu0 0.0
        %4592 = vmatprep.mubr.f32.mxu0 0.0
        %4593 = vmatmul.mubr.f32.gmra.mrb[0].mxu0 %v4517
        %v4594 = vpop.f32.mrb[0].mxu0
        %v4595 = vadd.f32 0.0, %v4594
        %v4596 = vpop.f32.mrb[0].mxu0
        %4597 = vmatprep.mubr.f32.mxu0 0.0
        %4598 = vmatmul.mubr.f32.gmra.mrb[0].mxu0 %v4520
        %v4599 = vpop.f32.mrb[0].mxu0
        %v4600 = vadd.f32 0.0, %v4599
        %v4601 = vpop.f32.mrb[0].mxu0
        %4602 = vmatprep.mubr.f32.mxu0 0.0
        %4603 = vmatmul.mubr.f32.gmra.mrb[0].mxu0 %v4523
        %v4604 = vpop.f32.mrb[0].mxu0
        %v4605 = vadd.f32 0.0, %v4604
        %v4606 = vpop.f32.mrb[0].mxu0
        %4607 = vmatprep.mubr.f32.mxu0 0.0
        %4608 = vmatmul.mubr.f32.gmra.mrb[0].mxu0 %v4526
        %v4609 = vpop.f32.mrb[0].mxu0
        %v4610 = vadd.f32 0.0, %v4609
        %v4611 = vpop.f32.mrb[0].mxu0
        %4612 = vdwg.mxu0
        %v4613 = vmul.f32 %v4595, %v408
        %v4614 = vmul.f32 %v4600, %v412
        %v4615 = vadd.f32 %v4613, %v4614
        %v4616 = vmul.f32 %v4605, %v416
        %v4617 = vadd.f32 %v4615, %v4616
        %v4618 = vmul.f32 %v4610, %v420
        %v4619 = vadd.f32 %v4617, %v4618
        %v4621 = vlaneseq
        %v4622 = vshrl.u32 %v4621, 7
        %v4623 = vsub.s32 0, %v4622
        %v4624 = vrot.slane %v4034, %v4623
        %v4627 = vsel %vm474, %v4619, 0
        %4629 = vmatprep.subr.mxu0 0.0
        %4630 = vmatpush1.msra.mxu0 %v4069
        %4631 = vmatprep.subr.mxu0 0.0
        %4632 = vmatpush1.msra.mxu0 %v4070
        %4633 = vmatprep.subr.mxu0 0.0
        %4634 = vmatpush1.msra.mxu0 %v4071
        %4635 = vmatprep.subr.mxu0 0.0
        %4636 = vmatpush1.msra.mxu0 %v4072
        %4637 = vmatprep.subr.mxu0 0.0
        %4638 = vmatpush1.msra.mxu0 0.0
        %4639 = vmatprep.subr.mxu0 0.0
        %4640 = vmatpush1.msra.mxu0 0.0
        %4641 = vmatprep.subr.mxu0 0.0
        %4642 = vmatpush1.msra.mxu0 0.0
        %4643 = vmatprep.subr.mxu0 0.0
        %4644 = vmatpush1.msra.mxu0 0.0
        %4645 = vmatprep.subr.mxu0 0.0
        %4646 = vmatpush1.msra.mxu0 0.0
        %4647 = vmatprep.subr.mxu0 0.0
        %4648 = vmatpush1.msra.mxu0 0.0
        %4649 = vmatprep.subr.mxu0 0.0
        %4650 = vmatpush1.msra.mxu0 0.0
        %4651 = vmatprep.subr.mxu0 0.0
        %4652 = vmatpush1.msra.mxu0 0.0
        %4653 = vmatprep.subr.mxu0 0.0
        %4654 = vmatpush1.msra.mxu0 0.0
        %4655 = vmatprep.subr.mxu0 0.0
        %4656 = vmatpush1.msra.mxu0 0.0
        %4657 = vmatprep.subr.mxu0 0.0
        %4658 = vmatpush1.msra.mxu0 0.0
        %4659 = vmatprep.subr.mxu0 0.0
        %4660 = vmatpush1.msra.mxu0 0.0
        %4661 = vmatprep.subr.mxu0 0.0
        %4662 = vmatpush1.msra.mxu0 0.0
        %4663 = vmatprep.subr.mxu0 0.0
        %4664 = vmatpush1.msra.mxu0 0.0
        %4665 = vmatprep.subr.mxu0 0.0
        %4666 = vmatpush1.msra.mxu0 0.0
        %4667 = vmatprep.subr.mxu0 0.0
        %4668 = vmatpush1.msra.mxu0 0.0
        %4669 = vmatprep.subr.mxu0 0.0
        %4670 = vmatpush1.msra.mxu0 0.0
        %4671 = vmatprep.subr.mxu0 0.0
        %4672 = vmatpush1.msra.mxu0 0.0
        %4673 = vmatprep.subr.mxu0 0.0
        %4674 = vmatpush1.msra.mxu0 0.0
        %4675 = vmatprep.subr.mxu0 0.0
        %4676 = vmatpush1.msra.mxu0 0.0
        %4677 = vmatprep.subr.mxu0 0.0
        %4678 = vmatpush1.msra.mxu0 0.0
        %4679 = vmatprep.subr.mxu0 0.0
        %4680 = vmatpush1.msra.mxu0 0.0
        %4681 = vmatprep.subr.mxu0 0.0
        %4682 = vmatpush1.msra.mxu0 0.0
        %4683 = vmatprep.subr.mxu0 0.0
        %4684 = vmatpush1.msra.mxu0 0.0
        %4685 = vmatprep.subr.mxu0 0.0
        %4686 = vmatpush1.msra.mxu0 0.0
        %4687 = vmatprep.subr.mxu0 0.0
        %4688 = vmatpush1.msra.mxu0 0.0
        %4689 = vmatprep.subr.mxu0 0.0
        %4690 = vmatpush1.msra.mxu0 0.0
        %4691 = vmatprep.subr.mxu0 0.0
        %4692 = vmatpush1.msra.mxu0 0.0
        %4693 = vmatprep.mubr.f32.mxu0 0.0
        %4694 = vmatmul.mubr.f32.gmra.mrb[0].mxu0 %v4627
        %v4695 = vpop.f32.mrb[0].mxu0
        %v4696 = vadd.f32 %v4624, %v4695
        %v4697 = vpop.f32.mrb[0].mxu0
        %4698 = vdwg.mxu0
        %v4699 = vadd.f32 %v4696, %v4022
        %v4700 = vsel %vm474, %v4699, 0.0
        %4701 = vadd.xlane.f32.xlu0 %v4700
        %v4702 = vpop.xlane.xlu0 %4701
        %v4703 = vmul.f32 %v4702, %v481
        %v4704 = vsub.f32 %v4699, %v4703
        %v4705 = vmul.f32 %v4704, %v4704
        %v4706 = vsel %vm474, %v4705, 0.0
        %4707 = vadd.xlane.f32.xlu0 %v4706
        %v4708 = vpop.xlane.xlu0 %4707
        %v4709 = vmul.f32 %v4708, %v481
        %v4710 = vadd.f32 %v4709, 1e-06
        %v4711 = vrsqrt.pop %v4710
        %v4712 = vmul.f32 %v4704, %v4711
        %v4714 = vlaneseq
        %v4715 = vshrl.u32 %v4714, 7
        %v4716 = vsub.s32 0, %v4715
        %v4717 = vrot.slane %v4036, %v4716
        %v4719 = vmul.f32 %v4712, %v4717
        %v4721 = vlaneseq
        %v4722 = vshrl.u32 %v4721, 7
        %v4723 = vsub.s32 0, %v4722
        %v4724 = vrot.slane %v4038, %v4723
        %v4726 = vadd.f32 %v4719, %v4724
        %v4728 = vlaneseq
        %v4729 = vshrl.u32 %v4728, 7
        %v4730 = vsub.s32 0, %v4729
        %v4731 = vrot.slane %v4040, %v4730
        %v4734 = vsel %vm474, %v4726, 0
        %4736 = vmatprep.subr.mxu0 0.0
        %4737 = vmatpush1.msra.mxu0 %v4074
        %4738 = vmatprep.subr.mxu0 0.0
        %4739 = vmatpush1.msra.mxu0 %v4075
        %4740 = vmatprep.subr.mxu0 0.0
        %4741 = vmatpush1.msra.mxu0 %v4076
        %4742 = vmatprep.subr.mxu0 0.0
        %4743 = vmatpush1.msra.mxu0 %v4077
        %4744 = vmatprep.subr.mxu0 0.0
        %4745 = vmatpush1.msra.mxu0 0.0
        %4746 = vmatprep.subr.mxu0 0.0
        %4747 = vmatpush1.msra.mxu0 0.0
        %4748 = vmatprep.subr.mxu0 0.0
        %4749 = vmatpush1.msra.mxu0 0.0
        %4750 = vmatprep.subr.mxu0 0.0
        %4751 = vmatpush1.msra.mxu0 0.0
        %4752 = vmatprep.subr.mxu0 0.0
        %4753 = vmatpush1.msra.mxu0 0.0
        %4754 = vmatprep.subr.mxu0 0.0
        %4755 = vmatpush1.msra.mxu0 0.0
        %4756 = vmatprep.subr.mxu0 0.0
        %4757 = vmatpush1.msra.mxu0 0.0
        %4758 = vmatprep.subr.mxu0 0.0
        %4759 = vmatpush1.msra.mxu0 0.0
        %4760 = vmatprep.subr.mxu0 0.0
        %4761 = vmatpush1.msra.mxu0 0.0
        %4762 = vmatprep.subr.mxu0 0.0
        %4763 = vmatpush1.msra.mxu0 0.0
        %4764 = vmatprep.subr.mxu0 0.0
        %4765 = vmatpush1.msra.mxu0 0.0
        %4766 = vmatprep.subr.mxu0 0.0
        %4767 = vmatpush1.msra.mxu0 0.0
        %4768 = vmatprep.subr.mxu0 0.0
        %4769 = vmatpush1.msra.mxu0 0.0
        %4770 = vmatprep.subr.mxu0 0.0
        %4771 = vmatpush1.msra.mxu0 0.0
        %4772 = vmatprep.subr.mxu0 0.0
        %4773 = vmatpush1.msra.mxu0 0.0
        %4774 = vmatprep.subr.mxu0 0.0
        %4775 = vmatpush1.msra.mxu0 0.0
        %4776 = vmatprep.subr.mxu0 0.0
        %4777 = vmatpush1.msra.mxu0 0.0
        %4778 = vmatprep.subr.mxu0 0.0
        %4779 = vmatpush1.msra.mxu0 0.0
        %4780 = vmatprep.subr.mxu0 0.0
        %4781 = vmatpush1.msra.mxu0 0.0
        %4782 = vmatprep.subr.mxu0 0.0
        %4783 = vmatpush1.msra.mxu0 0.0
        %4784 = vmatprep.subr.mxu0 0.0
        %4785 = vmatpush1.msra.mxu0 0.0
        %4786 = vmatprep.subr.mxu0 0.0
        %4787 = vmatpush1.msra.mxu0 0.0
        %4788 = vmatprep.subr.mxu0 0.0
        %4789 = vmatpush1.msra.mxu0 0.0
        %4790 = vmatprep.subr.mxu0 0.0
        %4791 = vmatpush1.msra.mxu0 0.0
        %4792 = vmatprep.subr.mxu0 0.0
        %4793 = vmatpush1.msra.mxu0 0.0
        %4794 = vmatprep.subr.mxu0 0.0
        %4795 = vmatpush1.msra.mxu0 0.0
        %4796 = vmatprep.subr.mxu0 0.0
        %4797 = vmatpush1.msra.mxu0 0.0
        %4798 = vmatprep.subr.mxu0 0.0
        %4799 = vmatpush1.msra.mxu0 0.0
        %4800 = vmatprep.mubr.f32.mxu0 0.0
        %4801 = vmatmul.mubr.f32.gmra.mrb[0].mxu0 %v4734
        %v4802 = vpop.f32.mrb[0].mxu0
        %v4803 = vadd.f32 %v4731, %v4802
        %v4804 = vpop.f32.mrb[0].mxu0
        %4805 = vdwg.mxu0
        %v4807 = vlaneseq
        %v4808 = vshrl.u32 %v4807, 7
        %v4809 = vsub.s32 0, %v4808
        %v4810 = vrot.slane %v4042, %v4809
        %4812 = vmatprep.subr.mxu0 0.0
        %4813 = vmatpush1.msra.mxu0 %v4079
        %4814 = vmatprep.subr.mxu0 0.0
        %4815 = vmatpush1.msra.mxu0 %v4080
        %4816 = vmatprep.subr.mxu0 0.0
        %4817 = vmatpush1.msra.mxu0 %v4081
        %4818 = vmatprep.subr.mxu0 0.0
        %4819 = vmatpush1.msra.mxu0 %v4082
        %4820 = vmatprep.subr.mxu0 0.0
        %4821 = vmatpush1.msra.mxu0 0.0
        %4822 = vmatprep.subr.mxu0 0.0
        %4823 = vmatpush1.msra.mxu0 0.0
        %4824 = vmatprep.subr.mxu0 0.0
        %4825 = vmatpush1.msra.mxu0 0.0
        %4826 = vmatprep.subr.mxu0 0.0
        %4827 = vmatpush1.msra.mxu0 0.0
        %4828 = vmatprep.subr.mxu0 0.0
        %4829 = vmatpush1.msra.mxu0 0.0
        %4830 = vmatprep.subr.mxu0 0.0
        %4831 = vmatpush1.msra.mxu0 0.0
        %4832 = vmatprep.subr.mxu0 0.0
        %4833 = vmatpush1.msra.mxu0 0.0
        %4834 = vmatprep.subr.mxu0 0.0
        %4835 = vmatpush1.msra.mxu0 0.0
        %4836 = vmatprep.subr.mxu0 0.0
        %4837 = vmatpush1.msra.mxu0 0.0
        %4838 = vmatprep.subr.mxu0 0.0
        %4839 = vmatpush1.msra.mxu0 0.0
        %4840 = vmatprep.subr.mxu0 0.0
        %4841 = vmatpush1.msra.mxu0 0.0
        %4842 = vmatprep.subr.mxu0 0.0
        %4843 = vmatpush1.msra.mxu0 0.0
        %4844 = vmatprep.subr.mxu0 0.0
        %4845 = vmatpush1.msra.mxu0 0.0
        %4846 = vmatprep.subr.mxu0 0.0
        %4847 = vmatpush1.msra.mxu0 0.0
        %4848 = vmatprep.subr.mxu0 0.0
        %4849 = vmatpush1.msra.mxu0 0.0
        %4850 = vmatprep.subr.mxu0 0.0
        %4851 = vmatpush1.msra.mxu0 0.0
        %4852 = vmatprep.subr.mxu0 0.0
        %4853 = vmatpush1.msra.mxu0 0.0
        %4854 = vmatprep.subr.mxu0 0.0
        %4855 = vmatpush1.msra.mxu0 0.0
        %4856 = vmatprep.subr.mxu0 0.0
        %4857 = vmatpush1.msra.mxu0 0.0
        %4858 = vmatprep.subr.mxu0 0.0
        %4859 = vmatpush1.msra.mxu0 0.0
        %4860 = vmatprep.subr.mxu0 0.0
        %4861 = vmatpush1.msra.mxu0 0.0
        %4862 = vmatprep.subr.mxu0 0.0
        %4863 = vmatpush1.msra.mxu0 0.0
        %4864 = vmatprep.subr.mxu0 0.0
        %4865 = vmatpush1.msra.mxu0 0.0
        %4866 = vmatprep.subr.mxu0 0.0
        %4867 = vmatpush1.msra.mxu0 0.0
        %4868 = vmatprep.subr.mxu0 0.0
        %4869 = vmatpush1.msra.mxu0 0.0
        %4870 = vmatprep.subr.mxu0 0.0
        %4871 = vmatpush1.msra.mxu0 0.0
        %4872 = vmatprep.subr.mxu0 0.0
        %4873 = vmatpush1.msra.mxu0 0.0
        %4874 = vmatprep.subr.mxu0 0.0
        %4875 = vmatpush1.msra.mxu0 0.0
        %4876 = vmatprep.mubr.f32.mxu0 0.0
        %4877 = vmatmul.mubr.f32.gmra.mrb[0].mxu0 %v3339
        %v4878 = vpop.f32.mrb[0].mxu0
        %v4879 = vadd.f32 %v4810, %v4878
        %v4880 = vpop.f32.mrb[0].mxu0
        %4881 = vmatprep.mubr.f32.mxu0 0.0
        %4882 = vmatmul.mubr.f32.gmra.mrb[0].mxu0 %v3342
        %v4883 = vpop.f32.mrb[0].mxu0
        %v4884 = vadd.f32 %v4810, %v4883
        %v4885 = vpop.f32.mrb[0].mxu0
        %4886 = vdwg.mxu0
        %v4888 = vlaneseq
        %v4889 = vshrl.u32 %v4888, 7
        %v4890 = vsub.s32 0, %v4889
        %v4891 = vrot.slane %v4044, %v4890
        %4893 = vmatprep.subr.mxu0 0.0
        %4894 = vmatpush1.msra.mxu0 %v4084
        %4895 = vmatprep.subr.mxu0 0.0
        %4896 = vmatpush1.msra.mxu0 %v4085
        %4897 = vmatprep.subr.mxu0 0.0
        %4898 = vmatpush1.msra.mxu0 %v4086
        %4899 = vmatprep.subr.mxu0 0.0
        %4900 = vmatpush1.msra.mxu0 %v4087
        %4901 = vmatprep.subr.mxu0 0.0
        %4902 = vmatpush1.msra.mxu0 0.0
        %4903 = vmatprep.subr.mxu0 0.0
        %4904 = vmatpush1.msra.mxu0 0.0
        %4905 = vmatprep.subr.mxu0 0.0
        %4906 = vmatpush1.msra.mxu0 0.0
        %4907 = vmatprep.subr.mxu0 0.0
        %4908 = vmatpush1.msra.mxu0 0.0
        %4909 = vmatprep.subr.mxu0 0.0
        %4910 = vmatpush1.msra.mxu0 0.0
        %4911 = vmatprep.subr.mxu0 0.0
        %4912 = vmatpush1.msra.mxu0 0.0
        %4913 = vmatprep.subr.mxu0 0.0
        %4914 = vmatpush1.msra.mxu0 0.0
        %4915 = vmatprep.subr.mxu0 0.0
        %4916 = vmatpush1.msra.mxu0 0.0
        %4917 = vmatprep.subr.mxu0 0.0
        %4918 = vmatpush1.msra.mxu0 0.0
        %4919 = vmatprep.subr.mxu0 0.0
        %4920 = vmatpush1.msra.mxu0 0.0
        %4921 = vmatprep.subr.mxu0 0.0
        %4922 = vmatpush1.msra.mxu0 0.0
        %4923 = vmatprep.subr.mxu0 0.0
        %4924 = vmatpush1.msra.mxu0 0.0
        %4925 = vmatprep.subr.mxu0 0.0
        %4926 = vmatpush1.msra.mxu0 0.0
        %4927 = vmatprep.subr.mxu0 0.0
        %4928 = vmatpush1.msra.mxu0 0.0
        %4929 = vmatprep.subr.mxu0 0.0
        %4930 = vmatpush1.msra.mxu0 0.0
        %4931 = vmatprep.subr.mxu0 0.0
        %4932 = vmatpush1.msra.mxu0 0.0
        %4933 = vmatprep.subr.mxu0 0.0
        %4934 = vmatpush1.msra.mxu0 0.0
        %4935 = vmatprep.subr.mxu0 0.0
        %4936 = vmatpush1.msra.mxu0 0.0
        %4937 = vmatprep.subr.mxu0 0.0
        %4938 = vmatpush1.msra.mxu0 0.0
        %4939 = vmatprep.subr.mxu0 0.0
        %4940 = vmatpush1.msra.mxu0 0.0
        %4941 = vmatprep.subr.mxu0 0.0
        %4942 = vmatpush1.msra.mxu0 0.0
        %4943 = vmatprep.subr.mxu0 0.0
        %4944 = vmatpush1.msra.mxu0 0.0
        %4945 = vmatprep.subr.mxu0 0.0
        %4946 = vmatpush1.msra.mxu0 0.0
        %4947 = vmatprep.subr.mxu0 0.0
        %4948 = vmatpush1.msra.mxu0 0.0
        %4949 = vmatprep.subr.mxu0 0.0
        %4950 = vmatpush1.msra.mxu0 0.0
        %4951 = vmatprep.subr.mxu0 0.0
        %4952 = vmatpush1.msra.mxu0 0.0
        %4953 = vmatprep.subr.mxu0 0.0
        %4954 = vmatpush1.msra.mxu0 0.0
        %4955 = vmatprep.subr.mxu0 0.0
        %4956 = vmatpush1.msra.mxu0 0.0
        %4957 = vmatprep.mubr.f32.mxu0 0.0
        %4958 = vmatmul.mubr.f32.gmra.mrb[0].mxu0 %v3339
        %v4959 = vpop.f32.mrb[0].mxu0
        %v4960 = vadd.f32 %v4891, %v4959
        %v4961 = vpop.f32.mrb[0].mxu0
        %4962 = vmatprep.mubr.f32.mxu0 0.0
        %4963 = vmatmul.mubr.f32.gmra.mrb[0].mxu0 %v3342
        %v4964 = vpop.f32.mrb[0].mxu0
        %v4965 = vadd.f32 %v4891, %v4964
        %v4966 = vpop.f32.mrb[0].mxu0
        %4967 = vdwg.mxu0
        %v4968 = vmul.f32 %v4803, 0.35355338
        %v4969 = vmul.f32 %v4968, %v408
        %v4970 = vmul.f32 %v4968, %v412
        %v4971 = vmul.f32 %v4968, %v416
        %v4972 = vmul.f32 %v4968, %v420
        %v4974 = vsel %vm474, %v4969, 0
        %v4977 = vsel %vm474, %v4970, 0
        %v4980 = vsel %vm474, %v4971, 0
        %v4983 = vsel %vm474, %v4972, 0
        %v4986 = vsel %vm474, %v4879, 0
        %v4989 = vsel %vm474, %v4884, 0
        %4991 = vmatprep.subr.mxu0 0.0
        %4992 = vmatpush1.xpose.msra.mxu0 %v4986
        %4993 = vmatprep.subr.mxu0 0.0
        %4994 = vmatpush1.xpose.msra.mxu0 %v4989
        %4995 = vmatprep.subr.mxu0 0.0
        %4996 = vmatpush1.xpose.msra.mxu0 0.0
        %4997 = vmatprep.subr.mxu0 0.0
        %4998 = vmatpush1.xpose.msra.mxu0 0.0
        %4999 = vmatprep.subr.mxu0 0.0
        %5000 = vmatpush1.xpose.msra.mxu0 0.0
        %5001 = vmatprep.subr.mxu0 0.0
        %5002 = vmatpush1.xpose.msra.mxu0 0.0
        %5003 = vmatprep.subr.mxu0 0.0
        %5004 = vmatpush1.xpose.msra.mxu0 0.0
        %5005 = vmatprep.subr.mxu0 0.0
        %5006 = vmatpush1.xpose.msra.mxu0 0.0
        %5007 = vmatprep.subr.mxu0 0.0
        %5008 = vmatpush1.xpose.msra.mxu0 0.0
        %5009 = vmatprep.subr.mxu0 0.0
        %5010 = vmatpush1.xpose.msra.mxu0 0.0
        %5011 = vmatprep.subr.mxu0 0.0
        %5012 = vmatpush1.xpose.msra.mxu0 0.0
        %5013 = vmatprep.subr.mxu0 0.0
        %5014 = vmatpush1.xpose.msra.mxu0 0.0
        %5015 = vmatprep.subr.mxu0 0.0
        %5016 = vmatpush1.xpose.msra.mxu0 0.0
        %5017 = vmatprep.subr.mxu0 0.0
        %5018 = vmatpush1.xpose.msra.mxu0 0.0
        %5019 = vmatprep.subr.mxu0 0.0
        %5020 = vmatpush1.xpose.msra.mxu0 0.0
        %5021 = vmatprep.subr.mxu0 0.0
        %5022 = vmatpush1.xpose.msra.mxu0 0.0
        %5023 = vmatprep.subr.mxu0 0.0
        %5024 = vmatpush1.xpose.msra.mxu0 0.0
        %5025 = vmatprep.subr.mxu0 0.0
        %5026 = vmatpush1.xpose.msra.mxu0 0.0
        %5027 = vmatprep.subr.mxu0 0.0
        %5028 = vmatpush1.xpose.msra.mxu0 0.0
        %5029 = vmatprep.subr.mxu0 0.0
        %5030 = vmatpush1.xpose.msra.mxu0 0.0
        %5031 = vmatprep.subr.mxu0 0.0
        %5032 = vmatpush1.xpose.msra.mxu0 0.0
        %5033 = vmatprep.subr.mxu0 0.0
        %5034 = vmatpush1.xpose.msra.mxu0 0.0
        %5035 = vmatprep.subr.mxu0 0.0
        %5036 = vmatpush1.xpose.msra.mxu0 0.0
        %5037 = vmatprep.subr.mxu0 0.0
        %5038 = vmatpush1.xpose.msra.mxu0 0.0
        %5039 = vmatprep.subr.mxu0 0.0
        %5040 = vmatpush1.xpose.msra.mxu0 0.0
        %5041 = vmatprep.subr.mxu0 0.0
        %5042 = vmatpush1.xpose.msra.mxu0 0.0
        %5043 = vmatprep.subr.mxu0 0.0
        %5044 = vmatpush1.xpose.msra.mxu0 0.0
        %5045 = vmatprep.subr.mxu0 0.0
        %5046 = vmatpush1.xpose.msra.mxu0 0.0
        %5047 = vmatprep.subr.mxu0 0.0
        %5048 = vmatpush1.xpose.msra.mxu0 0.0
        %5049 = vmatprep.subr.mxu0 0.0
        %5050 = vmatpush1.xpose.msra.mxu0 0.0
        %5051 = vmatprep.subr.mxu0 0.0
        %5052 = vmatpush1.xpose.msra.mxu0 0.0
        %5053 = vmatprep.subr.mxu0 0.0
        %5054 = vmatpush1.xpose.msra.mxu0 0.0
        %5055 = vmatprep.mubr.f32.mxu0 0.0
        %5056 = vmatmul.mubr.f32.gmra.mrb[0].mxu0 %v4974
        %v5057 = vpop.f32.mrb[0].mxu0
        %v5058 = vadd.f32 %v781, %v5057
        %v5059 = vpop.f32.mrb[0].mxu0
        %5060 = vmatprep.mubr.f32.mxu0 0.0
        %5061 = vmatmul.mubr.f32.gmra.mrb[0].mxu0 %v4977
        %v5062 = vpop.f32.mrb[0].mxu0
        %v5063 = vadd.f32 %v781, %v5062
        %v5064 = vpop.f32.mrb[0].mxu0
        %5065 = vmatprep.mubr.f32.mxu0 0.0
        %5066 = vmatmul.mubr.f32.gmra.mrb[0].mxu0 %v4980
        %v5067 = vpop.f32.mrb[0].mxu0
        %v5068 = vadd.f32 %v781, %v5067
        %v5069 = vpop.f32.mrb[0].mxu0
        %5070 = vmatprep.mubr.f32.mxu0 0.0
        %5071 = vmatmul.mubr.f32.gmra.mrb[0].mxu0 %v4983
        %v5072 = vpop.f32.mrb[0].mxu0
        %v5073 = vadd.f32 %v781, %v5072
        %v5074 = vpop.f32.mrb[0].mxu0
        %5075 = vdwg.mxu0
        %v5076 = vsel %vm918, %v5058, -inf
        %5077 = vmax.xlane.f32.xlu0 %v5076
        %v5078 = vpop.xlane.xlu0 %5077
        %v5079 = vsel %vm918, %v5063, -inf
        %5080 = vmax.xlane.f32.xlu0 %v5079
        %v5081 = vpop.xlane.xlu0 %5080
        %v5082 = vsel %vm918, %v5068, -inf
        %5083 = vmax.xlane.f32.xlu0 %v5082
        %v5084 = vpop.xlane.xlu0 %5083
        %v5085 = vsel %vm918, %v5073, -inf
        %5086 = vmax.xlane.f32.xlu0 %v5085
        %v5087 = vpop.xlane.xlu0 %5086
        %v5088 = vsub.f32 %v5058, %v5078
        %v5089 = vsub.f32 %v5063, %v5081
        %v5090 = vsub.f32 %v5068, %v5084
        %v5091 = vsub.f32 %v5073, %v5087
        %v5092 = vmul.f32 %v5088, 1.442695
        %v5093 = vpow.pop %v5092
        %v5094 = vmul.f32 %v5089, 1.442695
        %v5095 = vpow.pop %v5094
        %v5096 = vmul.f32 %v5090, 1.442695
        %v5097 = vpow.pop %v5096
        %v5098 = vmul.f32 %v5091, 1.442695
        %v5099 = vpow.pop %v5098
        %v5100 = vsel %vm918, %v5093, 0.0
        %5101 = vadd.xlane.f32.xlu0 %v5100
        %v5102 = vpop.xlane.xlu0 %5101
        %v5103 = vsel %vm918, %v5095, 0.0
        %5104 = vadd.xlane.f32.xlu0 %v5103
        %v5105 = vpop.xlane.xlu0 %5104
        %v5106 = vsel %vm918, %v5097, 0.0
        %5107 = vadd.xlane.f32.xlu0 %v5106
        %v5108 = vpop.xlane.xlu0 %5107
        %v5109 = vsel %vm918, %v5099, 0.0
        %5110 = vadd.xlane.f32.xlu0 %v5109
        %v5111 = vpop.xlane.xlu0 %5110
        %v5112 = vrcp.pop %v5102
        %v5113 = vrcp.pop %v5105
        %v5114 = vrcp.pop %v5108
        %v5115 = vrcp.pop %v5111
        %v5116 = vmul.f32 %v5093, %v5112
        %v5117 = vmul.f32 %v5095, %v5113
        %v5118 = vmul.f32 %v5097, %v5114
        %v5119 = vmul.f32 %v5099, %v5115
        %v5121 = vsel %vm918, %v5116, 0
        %v5124 = vsel %vm918, %v5117, 0
        %v5127 = vsel %vm918, %v5118, 0
        %v5130 = vsel %vm918, %v5119, 0
        %5132 = vmatprep.subr.mxu0 0.0
        %5133 = vmatpush1.msra.mxu0 %v4960
        %5134 = vmatprep.subr.mxu0 0.0
        %5135 = vmatpush1.msra.mxu0 %v4965
        %5136 = vmatprep.subr.mxu0 0.0
        %5137 = vmatpush1.msra.mxu0 0.0
        %5138 = vmatprep.subr.mxu0 0.0
        %5139 = vmatpush1.msra.mxu0 0.0
        %5140 = vmatprep.subr.mxu0 0.0
        %5141 = vmatpush1.msra.mxu0 0.0
        %5142 = vmatprep.subr.mxu0 0.0
        %5143 = vmatpush1.msra.mxu0 0.0
        %5144 = vmatprep.subr.mxu0 0.0
        %5145 = vmatpush1.msra.mxu0 0.0
        %5146 = vmatprep.subr.mxu0 0.0
        %5147 = vmatpush1.msra.mxu0 0.0
        %5148 = vmatprep.subr.mxu0 0.0
        %5149 = vmatpush1.msra.mxu0 0.0
        %5150 = vmatprep.subr.mxu0 0.0
        %5151 = vmatpush1.msra.mxu0 0.0
        %5152 = vmatprep.subr.mxu0 0.0
        %5153 = vmatpush1.msra.mxu0 0.0
        %5154 = vmatprep.subr.mxu0 0.0
        %5155 = vmatpush1.msra.mxu0 0.0
        %5156 = vmatprep.subr.mxu0 0.0
        %5157 = vmatpush1.msra.mxu0 0.0
        %5158 = vmatprep.subr.mxu0 0.0
        %5159 = vmatpush1.msra.mxu0 0.0
        %5160 = vmatprep.subr.mxu0 0.0
        %5161 = vmatpush1.msra.mxu0 0.0
        %5162 = vmatprep.subr.mxu0 0.0
        %5163 = vmatpush1.msra.mxu0 0.0
        %5164 = vmatprep.subr.mxu0 0.0
        %5165 = vmatpush1.msra.mxu0 0.0
        %5166 = vmatprep.subr.mxu0 0.0
        %5167 = vmatpush1.msra.mxu0 0.0
        %5168 = vmatprep.subr.mxu0 0.0
        %5169 = vmatpush1.msra.mxu0 0.0
        %5170 = vmatprep.subr.mxu0 0.0
        %5171 = vmatpush1.msra.mxu0 0.0
        %5172 = vmatprep.subr.mxu0 0.0
        %5173 = vmatpush1.msra.mxu0 0.0
        %5174 = vmatprep.subr.mxu0 0.0
        %5175 = vmatpush1.msra.mxu0 0.0
        %5176 = vmatprep.subr.mxu0 0.0
        %5177 = vmatpush1.msra.mxu0 0.0
        %5178 = vmatprep.subr.mxu0 0.0
        %5179 = vmatpush1.msra.mxu0 0.0
        %5180 = vmatprep.subr.mxu0 0.0
        %5181 = vmatpush1.msra.mxu0 0.0
        %5182 = vmatprep.subr.mxu0 0.0
        %5183 = vmatpush1.msra.mxu0 0.0
        %5184 = vmatprep.subr.mxu0 0.0
        %5185 = vmatpush1.msra.mxu0 0.0
        %5186 = vmatprep.subr.mxu0 0.0
        %5187 = vmatpush1.msra.mxu0 0.0
        %5188 = vmatprep.subr.mxu0 0.0
        %5189 = vmatpush1.msra.mxu0 0.0
        %5190 = vmatprep.subr.mxu0 0.0
        %5191 = vmatpush1.msra.mxu0 0.0
        %5192 = vmatprep.subr.mxu0 0.0
        %5193 = vmatpush1.msra.mxu0 0.0
        %5194 = vmatprep.subr.mxu0 0.0
        %5195 = vmatpush1.msra.mxu0 0.0
        %5196 = vmatprep.mubr.f32.mxu0 0.0
        %5197 = vmatmul.mubr.f32.gmra.mrb[0].mxu0 %v5121
        %v5198 = vpop.f32.mrb[0].mxu0
        %v5199 = vadd.f32 0.0, %v5198
        %v5200 = vpop.f32.mrb[0].mxu0
        %5201 = vmatprep.mubr.f32.mxu0 0.0
        %5202 = vmatmul.mubr.f32.gmra.mrb[0].mxu0 %v5124
        %v5203 = vpop.f32.mrb[0].mxu0
        %v5204 = vadd.f32 0.0, %v5203
        %v5205 = vpop.f32.mrb[0].mxu0
        %5206 = vmatprep.mubr.f32.mxu0 0.0
        %5207 = vmatmul.mubr.f32.gmra.mrb[0].mxu0 %v5127
        %v5208 = vpop.f32.mrb[0].mxu0
        %v5209 = vadd.f32 0.0, %v5208
        %v5210 = vpop.f32.mrb[0].mxu0
        %5211 = vmatprep.mubr.f32.mxu0 0.0
        %5212 = vmatmul.mubr.f32.gmra.mrb[0].mxu0 %v5130
        %v5213 = vpop.f32.mrb[0].mxu0
        %v5214 = vadd.f32 0.0, %v5213
        %v5215 = vpop.f32.mrb[0].mxu0
        %5216 = vdwg.mxu0
        %v5217 = vmul.f32 %v5199, %v408
        %v5218 = vmul.f32 %v5204, %v412
        %v5219 = vadd.f32 %v5217, %v5218
        %v5220 = vmul.f32 %v5209, %v416
        %v5221 = vadd.f32 %v5219, %v5220
        %v5222 = vmul.f32 %v5214, %v420
        %v5223 = vadd.f32 %v5221, %v5222
        %v5225 = vlaneseq
        %v5226 = vshrl.u32 %v5225, 7
        %v5227 = vsub.s32 0, %v5226
        %v5228 = vrot.slane %v4046, %v5227
        %v5231 = vsel %vm474, %v5223, 0
        %5233 = vmatprep.subr.mxu0 0.0
        %5234 = vmatpush1.msra.mxu0 %v4089
        %5235 = vmatprep.subr.mxu0 0.0
        %5236 = vmatpush1.msra.mxu0 %v4090
        %5237 = vmatprep.subr.mxu0 0.0
        %5238 = vmatpush1.msra.mxu0 %v4091
        %5239 = vmatprep.subr.mxu0 0.0
        %5240 = vmatpush1.msra.mxu0 %v4092
        %5241 = vmatprep.subr.mxu0 0.0
        %5242 = vmatpush1.msra.mxu0 0.0
        %5243 = vmatprep.subr.mxu0 0.0
        %5244 = vmatpush1.msra.mxu0 0.0
        %5245 = vmatprep.subr.mxu0 0.0
        %5246 = vmatpush1.msra.mxu0 0.0
        %5247 = vmatprep.subr.mxu0 0.0
        %5248 = vmatpush1.msra.mxu0 0.0
        %5249 = vmatprep.subr.mxu0 0.0
        %5250 = vmatpush1.msra.mxu0 0.0
        %5251 = vmatprep.subr.mxu0 0.0
        %5252 = vmatpush1.msra.mxu0 0.0
        %5253 = vmatprep.subr.mxu0 0.0
        %5254 = vmatpush1.msra.mxu0 0.0
        %5255 = vmatprep.subr.mxu0 0.0
        %5256 = vmatpush1.msra.mxu0 0.0
        %5257 = vmatprep.subr.mxu0 0.0
        %5258 = vmatpush1.msra.mxu0 0.0
        %5259 = vmatprep.subr.mxu0 0.0
        %5260 = vmatpush1.msra.mxu0 0.0
        %5261 = vmatprep.subr.mxu0 0.0
        %5262 = vmatpush1.msra.mxu0 0.0
        %5263 = vmatprep.subr.mxu0 0.0
        %5264 = vmatpush1.msra.mxu0 0.0
        %5265 = vmatprep.subr.mxu0 0.0
        %5266 = vmatpush1.msra.mxu0 0.0
        %5267 = vmatprep.subr.mxu0 0.0
        %5268 = vmatpush1.msra.mxu0 0.0
        %5269 = vmatprep.subr.mxu0 0.0
        %5270 = vmatpush1.msra.mxu0 0.0
        %5271 = vmatprep.subr.mxu0 0.0
        %5272 = vmatpush1.msra.mxu0 0.0
        %5273 = vmatprep.subr.mxu0 0.0
        %5274 = vmatpush1.msra.mxu0 0.0
        %5275 = vmatprep.subr.mxu0 0.0
        %5276 = vmatpush1.msra.mxu0 0.0
        %5277 = vmatprep.subr.mxu0 0.0
        %5278 = vmatpush1.msra.mxu0 0.0
        %5279 = vmatprep.subr.mxu0 0.0
        %5280 = vmatpush1.msra.mxu0 0.0
        %5281 = vmatprep.subr.mxu0 0.0
        %5282 = vmatpush1.msra.mxu0 0.0
        %5283 = vmatprep.subr.mxu0 0.0
        %5284 = vmatpush1.msra.mxu0 0.0
        %5285 = vmatprep.subr.mxu0 0.0
        %5286 = vmatpush1.msra.mxu0 0.0
        %5287 = vmatprep.subr.mxu0 0.0
        %5288 = vmatpush1.msra.mxu0 0.0
        %5289 = vmatprep.subr.mxu0 0.0
        %5290 = vmatpush1.msra.mxu0 0.0
        %5291 = vmatprep.subr.mxu0 0.0
        %5292 = vmatpush1.msra.mxu0 0.0
        %5293 = vmatprep.subr.mxu0 0.0
        %5294 = vmatpush1.msra.mxu0 0.0
        %5295 = vmatprep.subr.mxu0 0.0
        %5296 = vmatpush1.msra.mxu0 0.0
        %5297 = vmatprep.mubr.f32.mxu0 0.0
        %5298 = vmatmul.mubr.f32.gmra.mrb[0].mxu0 %v5231
        %v5299 = vpop.f32.mrb[0].mxu0
        %v5300 = vadd.f32 %v5228, %v5299
        %v5301 = vpop.f32.mrb[0].mxu0
        %5302 = vdwg.mxu0
        %v5303 = vadd.f32 %v5300, %v4699
        %v5304 = vsel %vm474, %v5303, 0.0
        %5305 = vadd.xlane.f32.xlu0 %v5304
        %v5306 = vpop.xlane.xlu0 %5305
        %v5307 = vmul.f32 %v5306, %v481
        %v5308 = vsub.f32 %v5303, %v5307
        %v5309 = vmul.f32 %v5308, %v5308
        %v5310 = vsel %vm474, %v5309, 0.0
        %5311 = vadd.xlane.f32.xlu0 %v5310
        %v5312 = vpop.xlane.xlu0 %5311
        %v5313 = vmul.f32 %v5312, %v481
        %v5314 = vadd.f32 %v5313, 1e-06
        %v5315 = vrsqrt.pop %v5314
        %v5316 = vmul.f32 %v5308, %v5315
        %v5318 = vlaneseq
        %v5319 = vshrl.u32 %v5318, 7
        %v5320 = vsub.s32 0, %v5319
        %v5321 = vrot.slane %v4048, %v5320
        %v5323 = vmul.f32 %v5316, %v5321
        %v5325 = vlaneseq
        %v5326 = vshrl.u32 %v5325, 7
        %v5327 = vsub.s32 0, %v5326
        %v5328 = vrot.slane %v4050, %v5327
        %v5330 = vadd.f32 %v5323, %v5328
        %v5332 = vlaneseq
        %v5333 = vshrl.u32 %v5332, 7
        %v5334 = vsub.s32 0, %v5333
        %v5335 = vrot.slane %v4099, %v5334
        %v5338 = vsel %vm474, %v5330, 0
        %5340 = vmatprep.subr.mxu0 0.0
        %5341 = vmatpush1.msra.mxu0 %v4094
        %5342 = vmatprep.subr.mxu0 0.0
        %5343 = vmatpush1.msra.mxu0 %v4095
        %5344 = vmatprep.subr.mxu0 0.0
        %5345 = vmatpush1.msra.mxu0 %v4096
        %5346 = vmatprep.subr.mxu0 0.0
        %5347 = vmatpush1.msra.mxu0 %v4097
        %5348 = vmatprep.subr.mxu0 0.0
        %5349 = vmatpush1.msra.mxu0 0.0
        %5350 = vmatprep.subr.mxu0 0.0
        %5351 = vmatpush1.msra.mxu0 0.0
        %5352 = vmatprep.subr.mxu0 0.0
        %5353 = vmatpush1.msra.mxu0 0.0
        %5354 = vmatprep.subr.mxu0 0.0
        %5355 = vmatpush1.msra.mxu0 0.0
        %5356 = vmatprep.subr.mxu0 0.0
        %5357 = vmatpush1.msra.mxu0 0.0
        %5358 = vmatprep.subr.mxu0 0.0
        %5359 = vmatpush1.msra.mxu0 0.0
        %5360 = vmatprep.subr.mxu0 0.0
        %5361 = vmatpush1.msra.mxu0 0.0
        %5362 = vmatprep.subr.mxu0 0.0
        %5363 = vmatpush1.msra.mxu0 0.0
        %5364 = vmatprep.subr.mxu0 0.0
        %5365 = vmatpush1.msra.mxu0 0.0
        %5366 = vmatprep.subr.mxu0 0.0
        %5367 = vmatpush1.msra.mxu0 0.0
        %5368 = vmatprep.subr.mxu0 0.0
        %5369 = vmatpush1.msra.mxu0 0.0
        %5370 = vmatprep.subr.mxu0 0.0
        %5371 = vmatpush1.msra.mxu0 0.0
        %5372 = vmatprep.subr.mxu0 0.0
        %5373 = vmatpush1.msra.mxu0 0.0
        %5374 = vmatprep.subr.mxu0 0.0
        %5375 = vmatpush1.msra.mxu0 0.0
        %5376 = vmatprep.subr.mxu0 0.0
        %5377 = vmatpush1.msra.mxu0 0.0
        %5378 = vmatprep.subr.mxu0 0.0
        %5379 = vmatpush1.msra.mxu0 0.0
        %5380 = vmatprep.subr.mxu0 0.0
        %5381 = vmatpush1.msra.mxu0 0.0
        %5382 = vmatprep.subr.mxu0 0.0
        %5383 = vmatpush1.msra.mxu0 0.0
        %5384 = vmatprep.subr.mxu0 0.0
        %5385 = vmatpush1.msra.mxu0 0.0
        %5386 = vmatprep.subr.mxu0 0.0
        %5387 = vmatpush1.msra.mxu0 0.0
        %5388 = vmatprep.subr.mxu0 0.0
        %5389 = vmatpush1.msra.mxu0 0.0
        %5390 = vmatprep.subr.mxu0 0.0
        %5391 = vmatpush1.msra.mxu0 0.0
        %5392 = vmatprep.subr.mxu0 0.0
        %5393 = vmatpush1.msra.mxu0 0.0
        %5394 = vmatprep.subr.mxu0 0.0
        %5395 = vmatpush1.msra.mxu0 0.0
        %5396 = vmatprep.subr.mxu0 0.0
        %5397 = vmatpush1.msra.mxu0 0.0
        %5398 = vmatprep.subr.mxu0 0.0
        %5399 = vmatpush1.msra.mxu0 0.0
        %5400 = vmatprep.subr.mxu0 0.0
        %5401 = vmatpush1.msra.mxu0 0.0
        %5402 = vmatprep.subr.mxu0 0.0
        %5403 = vmatpush1.msra.mxu0 0.0
        %5404 = vmatprep.mubr.f32.mxu0 0.0
        %5405 = vmatmul.mubr.f32.gmra.mrb[0].mxu0 %v5338
        %v5406 = vpop.f32.mrb[0].mxu0
        %v5407 = vadd.f32 %v5335, %v5406
        %v5408 = vpop.f32.mrb[0].mxu0
        %5409 = vdwg.mxu0
        %v5410 = vmax.f32 %v5407, 0.0
        %v5412 = vlaneseq
        %v5413 = vshrl.u32 %v5412, 7
        %v5414 = vsub.s32 0, %v5413
        %v5415 = vrot.slane %v4052, %v5414
        %v5418 = vsel %vm1376, %v5410, 0
        %5420 = vmatprep.subr.mxu0 0.0
        %5421 = vmatpush1.msra.mxu0 %v4101
        %5422 = vmatprep.subr.mxu0 0.0
        %5423 = vmatpush1.msra.mxu0 %v4102
        %5424 = vmatprep.subr.mxu0 0.0
        %5425 = vmatpush1.msra.mxu0 %v4103
        %5426 = vmatprep.subr.mxu0 0.0
        %5427 = vmatpush1.msra.mxu0 %v4104
        %5428 = vmatprep.subr.mxu0 0.0
        %5429 = vmatpush1.msra.mxu0 %v4105
        %5430 = vmatprep.subr.mxu0 0.0
        %5431 = vmatpush1.msra.mxu0 %v4106
        %5432 = vmatprep.subr.mxu0 0.0
        %5433 = vmatpush1.msra.mxu0 %v4107
        %5434 = vmatprep.subr.mxu0 0.0
        %5435 = vmatpush1.msra.mxu0 %v4108
        %5436 = vmatprep.subr.mxu0 0.0
        %5437 = vmatpush1.msra.mxu0 0.0
        %5438 = vmatprep.subr.mxu0 0.0
        %5439 = vmatpush1.msra.mxu0 0.0
        %5440 = vmatprep.subr.mxu0 0.0
        %5441 = vmatpush1.msra.mxu0 0.0
        %5442 = vmatprep.subr.mxu0 0.0
        %5443 = vmatpush1.msra.mxu0 0.0
        %5444 = vmatprep.subr.mxu0 0.0
        %5445 = vmatpush1.msra.mxu0 0.0
        %5446 = vmatprep.subr.mxu0 0.0
        %5447 = vmatpush1.msra.mxu0 0.0
        %5448 = vmatprep.subr.mxu0 0.0
        %5449 = vmatpush1.msra.mxu0 0.0
        %5450 = vmatprep.subr.mxu0 0.0
        %5451 = vmatpush1.msra.mxu0 0.0
        %5452 = vmatprep.subr.mxu0 0.0
        %5453 = vmatpush1.msra.mxu0 0.0
        %5454 = vmatprep.subr.mxu0 0.0
        %5455 = vmatpush1.msra.mxu0 0.0
        %5456 = vmatprep.subr.mxu0 0.0
        %5457 = vmatpush1.msra.mxu0 0.0
        %5458 = vmatprep.subr.mxu0 0.0
        %5459 = vmatpush1.msra.mxu0 0.0
        %5460 = vmatprep.subr.mxu0 0.0
        %5461 = vmatpush1.msra.mxu0 0.0
        %5462 = vmatprep.subr.mxu0 0.0
        %5463 = vmatpush1.msra.mxu0 0.0
        %5464 = vmatprep.subr.mxu0 0.0
        %5465 = vmatpush1.msra.mxu0 0.0
        %5466 = vmatprep.subr.mxu0 0.0
        %5467 = vmatpush1.msra.mxu0 0.0
        %5468 = vmatprep.subr.mxu0 0.0
        %5469 = vmatpush1.msra.mxu0 0.0
        %5470 = vmatprep.subr.mxu0 0.0
        %5471 = vmatpush1.msra.mxu0 0.0
        %5472 = vmatprep.subr.mxu0 0.0
        %5473 = vmatpush1.msra.mxu0 0.0
        %5474 = vmatprep.subr.mxu0 0.0
        %5475 = vmatpush1.msra.mxu0 0.0
        %5476 = vmatprep.subr.mxu0 0.0
        %5477 = vmatpush1.msra.mxu0 0.0
        %5478 = vmatprep.subr.mxu0 0.0
        %5479 = vmatpush1.msra.mxu0 0.0
        %5480 = vmatprep.subr.mxu0 0.0
        %5481 = vmatpush1.msra.mxu0 0.0
        %5482 = vmatprep.subr.mxu0 0.0
        %5483 = vmatpush1.msra.mxu0 0.0
        %5484 = vmatprep.mubr.f32.mxu0 0.0
        %5485 = vmatmul.mubr.f32.gmra.mrb[0].mxu0 %v5418
        %v5486 = vpop.f32.mrb[0].mxu0
        %v5487 = vadd.f32 %v5415, %v5486
        %v5488 = vpop.f32.mrb[0].mxu0
        %5489 = vdwg.mxu0
        %v5490 = vadd.f32 %v5487, %v5303
        %s5491 = scalar_lea.vmem %s4, 50
        %v5492 = vld [vmem:[%s5491] sm:$0x1]
        %s5493 = scalar_lea.vmem %s4, 51
        %v5494 = vld [vmem:[%s5493] sm:$0x1]
        %v5495 = vsel %vm474, %v5490, 0.0
        %5496 = vadd.xlane.f32.xlu0 %v5495
        %v5497 = vpop.xlane.xlu0 %5496
        %v5498 = vmul.f32 %v5497, %v481
        %v5499 = vsub.f32 %v5490, %v5498
        %v5500 = vmul.f32 %v5499, %v5499
        %v5501 = vsel %vm474, %v5500, 0.0
        %5502 = vadd.xlane.f32.xlu0 %v5501
        %v5503 = vpop.xlane.xlu0 %5502
        %v5504 = vmul.f32 %v5503, %v481
        %v5505 = vadd.f32 %v5504, 1e-06
        %v5506 = vrsqrt.pop %v5505
        %v5507 = vmul.f32 %v5499, %v5506
        %v5509 = vlaneseq
        %v5510 = vshrl.u32 %v5509, 7
        %v5511 = vsub.s32 0, %v5510
        %v5512 = vrot.slane %v5492, %v5511
        %v5514 = vmul.f32 %v5507, %v5512
        %v5516 = vlaneseq
        %v5517 = vshrl.u32 %v5516, 7
        %v5518 = vsub.s32 0, %v5517
        %v5519 = vrot.slane %v5494, %v5518
        %v5521 = vadd.f32 %v5514, %v5519
        %v5522 = vld [vmem:[%s9] sm:$0xff]
        %v5523 = vld [vmem:[%s9 + $0x8] sm:$0xff]
        %v5524 = vld [vmem:[%s9 + $0x10] sm:$0xff]
        %v5525 = vld [vmem:[%s9 + $0x18] sm:$0xff]
        %vm5526 = vcmp.eq.s32.totalorder %v404, 0
        %vm5527 = vcmp.ge.s32.totalorder %v404, 41
        %vm5528 = vmor %vm5526, %vm5527
        %v5529 = vsel %vm5528, -1e+09, 0.0
        %v5531 = vsel %vm474, %v5521, 0
        %5533 = vmatprep.subr.mxu0 0.0
        %5534 = vmatpush1.msra.mxu0 %v5522
        %5535 = vmatprep.subr.mxu0 0.0
        %5536 = vmatpush1.msra.mxu0 %v5523
        %5537 = vmatprep.subr.mxu0 0.0
        %5538 = vmatpush1.msra.mxu0 %v5524
        %5539 = vmatprep.subr.mxu0 0.0
        %5540 = vmatpush1.msra.mxu0 %v5525
        %5541 = vmatprep.subr.mxu0 0.0
        %5542 = vmatpush1.msra.mxu0 0.0
        %5543 = vmatprep.subr.mxu0 0.0
        %5544 = vmatpush1.msra.mxu0 0.0
        %5545 = vmatprep.subr.mxu0 0.0
        %5546 = vmatpush1.msra.mxu0 0.0
        %5547 = vmatprep.subr.mxu0 0.0
        %5548 = vmatpush1.msra.mxu0 0.0
        %5549 = vmatprep.subr.mxu0 0.0
        %5550 = vmatpush1.msra.mxu0 0.0
        %5551 = vmatprep.subr.mxu0 0.0
        %5552 = vmatpush1.msra.mxu0 0.0
        %5553 = vmatprep.subr.mxu0 0.0
        %5554 = vmatpush1.msra.mxu0 0.0
        %5555 = vmatprep.subr.mxu0 0.0
        %5556 = vmatpush1.msra.mxu0 0.0
        %5557 = vmatprep.subr.mxu0 0.0
        %5558 = vmatpush1.msra.mxu0 0.0
        %5559 = vmatprep.subr.mxu0 0.0
        %5560 = vmatpush1.msra.mxu0 0.0
        %5561 = vmatprep.subr.mxu0 0.0
        %5562 = vmatpush1.msra.mxu0 0.0
        %5563 = vmatprep.subr.mxu0 0.0
        %5564 = vmatpush1.msra.mxu0 0.0
        %5565 = vmatprep.subr.mxu0 0.0
        %5566 = vmatpush1.msra.mxu0 0.0
        %5567 = vmatprep.subr.mxu0 0.0
        %5568 = vmatpush1.msra.mxu0 0.0
        %5569 = vmatprep.subr.mxu0 0.0
        %5570 = vmatpush1.msra.mxu0 0.0
        %5571 = vmatprep.subr.mxu0 0.0
        %5572 = vmatpush1.msra.mxu0 0.0
        %5573 = vmatprep.subr.mxu0 0.0
        %5574 = vmatpush1.msra.mxu0 0.0
        %5575 = vmatprep.subr.mxu0 0.0
        %5576 = vmatpush1.msra.mxu0 0.0
        %5577 = vmatprep.subr.mxu0 0.0
        %5578 = vmatpush1.msra.mxu0 0.0
        %5579 = vmatprep.subr.mxu0 0.0
        %5580 = vmatpush1.msra.mxu0 0.0
        %5581 = vmatprep.subr.mxu0 0.0
        %5582 = vmatpush1.msra.mxu0 0.0
        %5583 = vmatprep.subr.mxu0 0.0
        %5584 = vmatpush1.msra.mxu0 0.0
        %5585 = vmatprep.subr.mxu0 0.0
        %5586 = vmatpush1.msra.mxu0 0.0
        %5587 = vmatprep.subr.mxu0 0.0
        %5588 = vmatpush1.msra.mxu0 0.0
        %5589 = vmatprep.subr.mxu0 0.0
        %5590 = vmatpush1.msra.mxu0 0.0
        %5591 = vmatprep.subr.mxu0 0.0
        %5592 = vmatpush1.msra.mxu0 0.0
        %5593 = vmatprep.subr.mxu0 0.0
        %5594 = vmatpush1.msra.mxu0 0.0
        %5595 = vmatprep.subr.mxu0 0.0
        %5596 = vmatpush1.msra.mxu0 0.0
        %5597 = vmatprep.mubr.f32.mxu0 0.0
        %5598 = vmatmul.mubr.f32.gmra.mrb[0].mxu0 %v5531
        %v5599 = vpop.f32.mrb[0].mxu0
        %v5600 = vadd.f32 %v5529, %v5599
        %v5601 = vpop.f32.mrb[0].mxu0
        %5602 = vdwg.mxu0
        %5603 = vmax.xlane.f32.xlu0 %v5600
        %v5604 = vpop.xlane.xlu0 %5603
        %v5605 = vsub.f32 %v5600, %v5604
        %v5606 = vmul.f32 %v5605, 1.442695
        %v5607 = vpow.pop %v5606
        %5608 = vadd.xlane.f32.xlu0 %v5607
        %v5609 = vpop.xlane.xlu0 %5608
        %v5610 = vlog2.pop %v5609
        %v5611 = vmul.f32 %v5610, 0.6931472
        %v5612 = vadd.f32 %v5611, %v5604
        %v5613 = vsub.f32 %v5600, %v5612
        %5614 = vst [vmem:[%s387] sm:$0xff] %v5613
        %s5615 = sand.u32 %s262, 1
        %s5616 = scalar_lea.sflag [#allocation3], %s5615
        %s5617 = sand.u32 %s262, 1
        %s5618 = smul.addr %s5617, 8
        %s5619 = scalar_lea.vmem [#allocation2], %s5618
        // Predicated region
        $region61: #{transformer_forward.1} parent=59 // pred_check
          %p5620 = pneg %p272
        $region62: #{transformer_forward.1} parent=59 // pred_check_branch
          %5622 = sbr.rel (%p5620) target = $region64
        $region63: #{transformer_forward.1} parent=59 // pred_region
          %s5624 = ssub.s32 128, 128
          %5625 = vsyncadd %s5616, %s5624
          %s5626 = smul.addr %s24, 128
          %s5627 = scalar_lea.hbm %s10, %s5626
          %s5629 = sshll.u32 %s5619, 4
          %s5630 = int_to_ptr.vmem [resolvable:$true] %s5629
          %5632 = dma.vmem_to_hbm [thread:$0]  %s5630, 128, %s5627, %s5616
        $region64: #{transformer_forward.1} parent=59 // pred_fallthru
          _
      $region60: #{transformer_forward.1} parent=5 // pred_fallthru
        _
      %p5633 = scmp.le.s32.totalorder 2, %s19
      // Predicated region
      $region65: #{transformer_forward.1} parent=5 // pred_check
        %p5634 = pneg %p5633
      $region66: #{transformer_forward.1} parent=5 // pred_check_branch
        %5636 = sbr.rel (%p5634) target = $region68
      $region67: #{transformer_forward.1} parent=5 // pred_region
        %s5637 = ssub.s32 %s19, 2
        // Predicated region
        $region69: #{transformer_forward.1} parent=67 // pred_check
          %p5638 = pneg %p278
        $region70: #{transformer_forward.1} parent=67 // pred_check_branch
          %5640 = sbr.rel (%p5638) target = $region72
        $region71: #{transformer_forward.1} parent=67 // pred_region
          %s5641 = sand.u32 %s263, 1
          %s5642 = scalar_lea.sflag [#allocation3], %s5641
          %s5643 = sand.u32 %s263, 1
          %s5644 = smul.addr %s5643, 8
          %s5645 = scalar_lea.vmem [#allocation2], %s5644
          %5646 = dma.done %s5642, 128
        $region72: #{transformer_forward.1} parent=67 // pred_fallthru
          _
      $region68: #{transformer_forward.1} parent=5 // pred_fallthru
        _
    $region6: #{transformer_forward.1} parent=1 // loop_footer
      %s23 = sadd.s32 1, %s19
    $region7: #{transformer_forward.1} parent=1 // loop_footer_branch
      %18 = sbr.rel target = $region3
    $region8: #{transformer_forward.1} parent=1 // loop_exit
      _
    %5647 = vsyncpa [#allocation3], 1
    %s5648 = scalar_lea.sflag [#allocation3], 1
    %5649 = vsyncpa %s5648, 1

</llo_original>
